<compile_context>
chip_gen: v5e
topology: v5e:2x2
jax: 0.10.0
libtpu: 0.0.40
codegen_flags: <defaults>
</compile_context>

<pallas_src>
import functools

import jax
import jax.numpy as jnp
from jax.experimental import pallas as pl
from jax.experimental.pallas import tpu as pltpu


# ----------------------------- device helpers ------------------------------
def _device_kind():
    try:
        return jax.devices()[0].device_kind.lower()
    except Exception:
        return ""


def _num_tensorcores():
    kind = _device_kind()
    return 2 if ("v7" in kind or "7x" in kind) else 1


def _default_elementwise_dtype():
    kind = _device_kind()
    if any(tag in kind for tag in ("v6", "v7", "7x")):
        return jnp.bfloat16          # bf16 VALU available -> halve VALU slot pressure
    return jnp.float32               # v5e / unknown: no bf16 VALU, keep f32


def _vmem_capacity_bytes():
    try:
        return int(pltpu.get_tpu_info().vmem_capacity_bytes)
    except Exception:
        pass
    kind = _device_kind()
    if "v7" in kind or "7x" in kind:
        return 64 << 20
    return 128 << 20                 # v5e / v6e


# --------------------------------- math -------------------------------------
_SQRT_HALF = 0.7071067811865476


def _gelu(x, approximate=True):
    if approximate:
        # tanh formulation: the transcendental goes to the EUP slot (frees the VALU).
        # Small numeric deviation vs PyTorch nn.GELU()'s exact erf default.
        return jax.nn.gelu(x, approximate=True)
    # PyTorch nn.GELU() default = exact erf, evaluated in f32.
    xf = x.astype(jnp.float32)
    return (0.5 * xf * (1.0 + jax.lax.erf(xf * _SQRT_HALF))).astype(x.dtype)


def _ffn_kernel(x_ref, w1_ref, b1_ref, w2_ref, b2_ref, w3_ref, b3_ref,
                g_ref, beta_ref, o_ref, *, residual: bool, eps: float,
                matmul_dtype, elementwise_dtype, approximate_gelu: bool):
    ew = elementwise_dtype
    x = x_ref[...]                                   # f32 [row_tile, d_in]

    # Hoist broadcast parameters: one read each per grid step.
    b1 = b1_ref[...].astype(ew)
    b2 = b2_ref[...].astype(ew)
    b3 = b3_ref[...]
    gamma = g_ref[...]
    beta = beta_ref[...]

    # Layer 1: Linear + GELU (Dropout is identity in eval mode).
    # MXU takes bf16 operands, accumulates in f32; bias/GELU in `ew`.
    h = jnp.dot(x.astype(matmul_dtype), w1_ref[...],
                preferred_element_type=jnp.float32)
    h = _gelu(h.astype(ew) + b1, approximate_gelu)

    # Layer 2: Linear + GELU.
    h = jnp.dot(h.astype(matmul_dtype), w2_ref[...],
                preferred_element_type=jnp.float32)
    h = _gelu(h.astype(ew) + b2, approximate_gelu)

    # Output projection + residual + LayerNorm, all in f32.
    y = jnp.dot(h.astype(matmul_dtype), w3_ref[...],
                preferred_element_type=jnp.float32) + b3
    if residual:
        y = y + x

    mean = jnp.mean(y, axis=-1, keepdims=True)
    var = jnp.mean(jnp.square(y - mean), axis=-1, keepdims=True)
    y_hat = (y - mean) * jax.lax.rsqrt(var + eps)
    o_ref[...] = (y_hat * gamma + beta).astype(o_ref.dtype)


# ------------------------------ tiling helpers -------------------------------
def _pick_row_tile(m, n_cores):
    # Require >= 2 grid steps per TensorCore (2 TCs on v7x, 1 elsewhere); among
    # those, prefer the largest tile whose step count balances across cores.
    cands = [t for t in (512, 256, 128) if m >= t * 2 * n_cores]
    if cands:
        balanced = [t for t in cands if pl.cdiv(m, t) % n_cores == 0]
        return (balanced or cands)[0]
    for t in (512, 256, 128, 64, 32, 16, 8):
        if m >= t:
            return t
    return 8


def _param_spec(shape, single_buffer):
    index_map = lambda i: (0, 0)
    if single_buffer:
        try:
            # Grid-invariant block: double-buffering it only burns VMEM.
            return pl.BlockSpec(shape, index_map, pipeline_mode=pl.Buffered(1))
        except TypeError:
            pass          # older jax without pipeline_mode support
    return pl.BlockSpec(shape, index_map)


# --------------------------------- wrapper -----------------------------------
def improved_update_ffn(x, params, *, row_tile=None, matmul_dtype=jnp.bfloat16,
                        elementwise_dtype=None, approximate_gelu=True,
                        single_buffer_params=True):
    """x: [M, input_dim] f32.  params: dict of pre-transposed weights [in, out].

    Weights should be pre-cast to `matmul_dtype` once by the caller (cast here
    only as a fallback, which costs an extra HBM pass per call at large hidden).
    """
    M, d_in = x.shape
    if elementwise_dtype is None:
        elementwise_dtype = _default_elementwise_dtype()

    def maybe_cast(w):
        return w if w.dtype == matmul_dtype else w.astype(matmul_dtype)

    w1, w2, w3 = (maybe_cast(params["w1"]), maybe_cast(params["w2"]),
                  maybe_cast(params["w3"]))
    b1, b2, b3 = params["b1"], params["b2"], params["b3"]
    gamma, beta = params["gamma"], params["beta"]
    hidden = w1.shape[1]
    d_out = w3.shape[1]
    residual = (d_in == d_out)

    n_cores = _num_tensorcores()
    if row_tile is None:
        row_tile = _pick_row_tile(M, n_cores)
    row_tile = max(8, int(row_tile))

    # Pad ragged M up to a whole number of row tiles (padded rows sliced off).
    m_pad = pl.cdiv(M, row_tile) * row_tile
    x_in = x if m_pad == M else jnp.pad(x, ((0, m_pad - M), (0, 0)))
    grid = (m_pad // row_tile,)

    wbytes = jnp.dtype(matmul_dtype).itemsize
    ebytes = jnp.dtype(elementwise_dtype).itemsize
    weight_bytes = (d_in * hidden + hidden * hidden + hidden * d_out) * wbytes
    small_param_bytes = (2 * hidden + 3 * d_out) * 4

    # Cost estimate for XLA's scheduler around the custom call.
    flops = 2 * m_pad * (d_in * hidden + hidden * hidden + hidden * d_out)
    transcendentals = 2 * m_pad * hidden          # two GELUs per row
    bytes_accessed = (m_pad * (d_in + d_out) * 4 + weight_bytes + small_param_bytes)

    kernel = functools.partial(
        _ffn_kernel, residual=residual, eps=1e-5, matmul_dtype=matmul_dtype,
        elementwise_dtype=elementwise_dtype, approximate_gelu=approximate_gelu)

    def _run(single_buffer):
        # ---- VMEM budget (bytes). ----
        param_factor = 1 if single_buffer else 2              # single- vs double-buffered params
        io_bytes = 2 * row_tile * (d_in + d_out) * 4           # x/out tiles, double-buffered
        interm_bytes = (row_tile * hidden * (4 + ebytes + wbytes)   # f32 acc + ew h + bf16 copy
                        + 3 * row_tile * d_out * 4)                 # residual / LN temporaries
        needed = (param_factor * (weight_bytes + small_param_bytes)
                  + io_bytes + interm_bytes)
        cap = _vmem_capacity_bytes() - (8 << 20)               # headroom for Mosaic scratch
        vmem_limit = int(min(max(needed + (4 << 20), 16 << 20), cap))
        # TODO(synk): once single-buffered bf16 weights exceed ~1/3 of VMEM
        # (hidden >~ 2-3K on v7x's 64 MiB, ~2x later on v5e/v6e), K-tile the W2/W3
        # matmuls with an added reduction grid axis (or inner pltpu.emit_pipeline)
        # + f32 VMEM accumulator and pl.when init/finalize instead of full residency.

        pspec = lambda shape: _param_spec(shape, single_buffer)
        call = pl.pallas_call(
            kernel,
            out_shape=jax.ShapeDtypeStruct((m_pad, d_out), x.dtype),
            grid_spec=pltpu.PrefetchScalarGridSpec(
                num_scalar_prefetch=0,
                grid=grid,
                in_specs=[
                    pl.BlockSpec((row_tile, d_in), lambda i: (i, 0)),   # x tile
                    pspec((d_in, hidden)),                              # W1 (bf16)
                    pspec((1, hidden)),                                 # b1
                    pspec((hidden, hidden)),                            # W2 (bf16)
                    pspec((1, hidden)),                                 # b2
                    pspec((hidden, d_out)),                             # W3 (bf16)
                    pspec((1, d_out)),                                  # b3
                    pspec((1, d_out)),                                  # LN gamma
                    pspec((1, d_out)),                                  # LN beta
                ],
                out_specs=pl.BlockSpec((row_tile, d_out), lambda i: (i, 0)),
            ),
            compiler_params=pltpu.CompilerParams(
                dimension_semantics=("parallel",),
                vmem_limit_bytes=vmem_limit),
            cost_estimate=pl.CostEstimate(flops=flops,
                                          transcendentals=transcendentals,
                                          bytes_accessed=bytes_accessed),
        )
        out = call(x_in, w1, b1, w2, b2, w3, b3, gamma, beta)
        return out if m_pad == M else out[:M]

    if single_buffer_params:
        try:
            return _run(True)
        except Exception:
            # pl.Buffered(1) not supported by this jax/Mosaic build -> default buffering.
            return _run(False)
    return _run(False)


# ------------------------------ params / reference ---------------------------
def init_params(key, input_dim, hidden_dim, output_dim):
    """Deterministic synthetic params (shapes match nn.Linear / nn.LayerNorm)."""
    ks = jax.random.split(key, 6)

    def lin(kw, kb, fan_in, fan_out):
        bound = 1.0 / jnp.sqrt(fan_in)
        # stored transposed: [fan_in, fan_out]
        w = jax.random.uniform(kw, (fan_in, fan_out), jnp.float32, -bound, bound)
        b = jax.random.uniform(kb, (1, fan_out), jnp.float32, -bound, bound)
        return w, b

    w1, b1 = lin(ks[0], ks[1], input_dim, hidden_dim)
    w2, b2 = lin(ks[2], ks[3], hidden_dim, hidden_dim)
    w3, b3 = lin(ks[4], ks[5], hidden_dim, output_dim)
    return dict(w1=w1, b1=b1, w2=w2, b2=b2, w3=w3, b3=b3,
                gamma=jnp.ones((1, output_dim), jnp.float32),
                beta=jnp.zeros((1, output_dim), jnp.float32))


def reference(x, p, *, matmul_dtype=jnp.float32, elementwise_dtype=jnp.float32,
              approximate_gelu=False):
    """Plain-JAX reference; dtypes let us match the kernel's MXU / VPU path."""
    ew = elementwise_dtype

    def mm(a, w):
        return jnp.dot(a.astype(matmul_dtype), w.astype(matmul_dtype),
                       preferred_element_type=jnp.float32)

    h = _gelu(mm(x, p["w1"]).astype(ew) + p["b1"].astype(ew), approximate_gelu)
    h = _gelu(mm(h, p["w2"]).astype(ew) + p["b2"].astype(ew), approximate_gelu)
    y = mm(h, p["w3"]) + p["b3"]
    if x.shape[-1] == y.shape[-1]:
        y = y + x
    mean = jnp.mean(y, axis=-1, keepdims=True)
    var = jnp.mean(jnp.square(y - mean), axis=-1, keepdims=True)
    return (y - mean) * jax.lax.rsqrt(var + 1e-5) * p["gamma"] + p["beta"]


if __name__ == "__main__":
    # Lane-dense small config: hidden_dim = 256 (module default), feature dims are
    # multiples of 128; M = 512 rows -> 256-row tiles (2 steps) on v5e/v6e,
    # 128-row tiles (4 steps, 2 per core) on v7x.
    M, INPUT_DIM, HIDDEN_DIM = 512, 128, 256
    key = jax.random.PRNGKey(0)
    kx, kp = jax.random.split(key)
    x = jax.random.normal(kx, (M, INPUT_DIM), jnp.float32)
    params = init_params(kp, INPUT_DIM, HIDDEN_DIM, INPUT_DIM)  # out_dim == in_dim -> residual

    # Pre-cast weights to the MXU dtype ONCE, outside the per-call path.
    params_dev = dict(params)
    for name in ("w1", "w2", "w3"):
        params_dev[name] = params[name].astype(jnp.bfloat16)

    ew = _default_elementwise_dtype()
    out = improved_update_ffn(x, params_dev, elementwise_dtype=ew)
    out = jax.block_until_ready(out)
    assert out.shape == (M, INPUT_DIM)
    assert bool(jnp.all(jnp.isfinite(out)))

    # Primary correctness check: same bf16-operand / f32-accumulate / tanh-GELU
    # math reproduced in plain JAX.
    ref_matched = reference(x, params_dev, matmul_dtype=jnp.bfloat16,
                            elementwise_dtype=ew, approximate_gelu=True)
    assert jnp.allclose(out, ref_matched, atol=5e-2, rtol=5e-2), \
        "mismatch vs matched-precision reference"

    # Sanity check against the pure-f32 exact-erf (PyTorch-equivalent) formulation;
    # loose tolerance covers bf16 quantization + tanh-GELU approximation only.
    ref_f32 = reference(x, params, matmul_dtype=jnp.float32,
                        elementwise_dtype=jnp.float32, approximate_gelu=False)
    max_err = float(jnp.max(jnp.abs(out - ref_f32)))
    assert max_err < 0.35, f"unexpectedly large deviation vs f32 reference: {max_err}"

    # TODO(synk): dropout is implemented as identity (eval-mode forward); training-mode
    # stochastic dropout would use pltpu.prng_seed / prng_random_bits in-kernel.
    print("KERNEL_OK")
</pallas_src>

<mosaic_0001>
module attributes {stable_mosaic.version = 11 : i64} {
  func.func @_ffn_kernel(%arg0: i32, %arg1: memref<256x128xf32, #tpu.memory_space<vmem>>, %arg2: memref<128x256xbf16, #tpu.memory_space<vmem>>, %arg3: memref<1x256xf32, #tpu.memory_space<vmem>>, %arg4: memref<256x256xbf16, #tpu.memory_space<vmem>>, %arg5: memref<1x256xf32, #tpu.memory_space<vmem>>, %arg6: memref<256x128xbf16, #tpu.memory_space<vmem>>, %arg7: memref<1x128xf32, #tpu.memory_space<vmem>>, %arg8: memref<1x128xf32, #tpu.memory_space<vmem>>, %arg9: memref<1x128xf32, #tpu.memory_space<vmem>>, %arg10: memref<256x128xf32, #tpu.memory_space<vmem>>) attributes {dimension_semantics = [#tpu.dimension_semantics<parallel>], iteration_bounds = array<i64: 2>, scalar_prefetch = 0 : i64, scratch_operands = 0 : i64, tpu.core_type = #tpu.core_type<tc>, window_params = [{transform_indices = @transform_0, window_bounds = array<i64: 256, 128>}, {pipeline_mode = #tpu.pipeline_mode<synchronous>, transform_indices = @transform_1, window_bounds = array<i64: 128, 256>}, {pipeline_mode = #tpu.pipeline_mode<synchronous>, transform_indices = @transform_2, window_bounds = array<i64: 1, 256>}, {pipeline_mode = #tpu.pipeline_mode<synchronous>, transform_indices = @transform_3, window_bounds = array<i64: 256, 256>}, {pipeline_mode = #tpu.pipeline_mode<synchronous>, transform_indices = @transform_4, window_bounds = array<i64: 1, 256>}, {pipeline_mode = #tpu.pipeline_mode<synchronous>, transform_indices = @transform_5, window_bounds = array<i64: 256, 128>}, {pipeline_mode = #tpu.pipeline_mode<synchronous>, transform_indices = @transform_6, window_bounds = array<i64: 1, 128>}, {pipeline_mode = #tpu.pipeline_mode<synchronous>, transform_indices = @transform_7, window_bounds = array<i64: 1, 128>}, {pipeline_mode = #tpu.pipeline_mode<synchronous>, transform_indices = @transform_8, window_bounds = array<i64: 1, 128>}, {transform_indices = @transform_9, window_bounds = array<i64: 256, 128>}]} {
    %c0 = arith.constant 0 : index
    %c0_0 = arith.constant 0 : index
    %0 = vector.load %arg1[%c0, %c0_0] : memref<256x128xf32, #tpu.memory_space<vmem>>, vector<256x128xf32>
    %c0_1 = arith.constant 0 : index
    %c0_2 = arith.constant 0 : index
    %1 = vector.load %arg3[%c0_1, %c0_2] : memref<1x256xf32, #tpu.memory_space<vmem>>, vector<1x256xf32>
    %c0_3 = arith.constant 0 : index
    %c0_4 = arith.constant 0 : index
    %2 = vector.load %arg5[%c0_3, %c0_4] : memref<1x256xf32, #tpu.memory_space<vmem>>, vector<1x256xf32>
    %c0_5 = arith.constant 0 : index
    %c0_6 = arith.constant 0 : index
    %3 = vector.load %arg7[%c0_5, %c0_6] : memref<1x128xf32, #tpu.memory_space<vmem>>, vector<1x128xf32>
    %c0_7 = arith.constant 0 : index
    %c0_8 = arith.constant 0 : index
    %4 = vector.load %arg8[%c0_7, %c0_8] : memref<1x128xf32, #tpu.memory_space<vmem>>, vector<1x128xf32>
    %c0_9 = arith.constant 0 : index
    %c0_10 = arith.constant 0 : index
    %5 = vector.load %arg9[%c0_9, %c0_10] : memref<1x128xf32, #tpu.memory_space<vmem>>, vector<1x128xf32>
    %6 = arith.truncf %0 : vector<256x128xf32> to vector<256x128xbf16>
    %c0_11 = arith.constant 0 : index
    %c0_12 = arith.constant 0 : index
    %7 = vector.load %arg2[%c0_11, %c0_12] : memref<128x256xbf16, #tpu.memory_space<vmem>>, vector<128x256xbf16>
    %cst = arith.constant dense<0.000000e+00> : vector<256x256xf32>
    %8 = tpu.matmul %6, %7, %cst {dimension_numbers = #tpu.dot_dimension_numbers<[1], [0], [0], [1], [0, 0, 1, 1], [], []>} : vector<256x128xbf16>, vector<128x256xbf16>, vector<256x256xf32> -> vector<256x256xf32>
    %9 = vector.broadcast %1 : vector<1x256xf32> to vector<256x256xf32>
    %10 = arith.addf %8, %9 : vector<256x256xf32>
    %11 = arith.mulf %10, %10 : vector<256x256xf32>
    %12 = arith.mulf %10, %11 : vector<256x256xf32>
    %cst_13 = arith.constant 4.471500e-02 : f32
    %13 = vector.broadcast %cst_13 : f32 to vector<256x256xf32>
    %14 = arith.mulf %13, %12 : vector<256x256xf32>
    %15 = arith.addf %10, %14 : vector<256x256xf32>
    %cst_14 = arith.constant 0.797884583 : f32
    %16 = vector.broadcast %cst_14 : f32 to vector<256x256xf32>
    %17 = arith.mulf %16, %15 : vector<256x256xf32>
    %18 = math.tanh %17 : vector<256x256xf32>
    %cst_15 = arith.constant 1.000000e+00 : f32
    %19 = vector.broadcast %cst_15 : f32 to vector<256x256xf32>
    %20 = arith.addf %19, %18 : vector<256x256xf32>
    %cst_16 = arith.constant 5.000000e-01 : f32
    %21 = vector.broadcast %cst_16 : f32 to vector<256x256xf32>
    %22 = arith.mulf %21, %20 : vector<256x256xf32>
    %23 = arith.mulf %10, %22 : vector<256x256xf32>
    %24 = arith.truncf %23 : vector<256x256xf32> to vector<256x256xbf16>
    %c0_17 = arith.constant 0 : index
    %c0_18 = arith.constant 0 : index
    %25 = vector.load %arg4[%c0_17, %c0_18] : memref<256x256xbf16, #tpu.memory_space<vmem>>, vector<256x256xbf16>
    %cst_19 = arith.constant dense<0.000000e+00> : vector<256x256xf32>
    %26 = tpu.matmul %24, %25, %cst_19 {dimension_numbers = #tpu.dot_dimension_numbers<[1], [0], [0], [1], [0, 0, 1, 1], [], []>} : vector<256x256xbf16>, vector<256x256xbf16>, vector<256x256xf32> -> vector<256x256xf32>
    %27 = vector.broadcast %2 : vector<1x256xf32> to vector<256x256xf32>
    %28 = arith.addf %26, %27 : vector<256x256xf32>
    %29 = arith.mulf %28, %28 : vector<256x256xf32>
    %30 = arith.mulf %28, %29 : vector<256x256xf32>
    %cst_20 = arith.constant 4.471500e-02 : f32
    %31 = vector.broadcast %cst_20 : f32 to vector<256x256xf32>
    %32 = arith.mulf %31, %30 : vector<256x256xf32>
    %33 = arith.addf %28, %32 : vector<256x256xf32>
    %cst_21 = arith.constant 0.797884583 : f32
    %34 = vector.broadcast %cst_21 : f32 to vector<256x256xf32>
    %35 = arith.mulf %34, %33 : vector<256x256xf32>
    %36 = math.tanh %35 : vector<256x256xf32>
    %cst_22 = arith.constant 1.000000e+00 : f32
    %37 = vector.broadcast %cst_22 : f32 to vector<256x256xf32>
    %38 = arith.addf %37, %36 : vector<256x256xf32>
    %cst_23 = arith.constant 5.000000e-01 : f32
    %39 = vector.broadcast %cst_23 : f32 to vector<256x256xf32>
    %40 = arith.mulf %39, %38 : vector<256x256xf32>
    %41 = arith.mulf %28, %40 : vector<256x256xf32>
    %42 = arith.truncf %41 : vector<256x256xf32> to vector<256x256xbf16>
    %c0_24 = arith.constant 0 : index
    %c0_25 = arith.constant 0 : index
    %43 = vector.load %arg6[%c0_24, %c0_25] : memref<256x128xbf16, #tpu.memory_space<vmem>>, vector<256x128xbf16>
    %cst_26 = arith.constant dense<0.000000e+00> : vector<256x128xf32>
    %44 = tpu.matmul %42, %43, %cst_26 {dimension_numbers = #tpu.dot_dimension_numbers<[1], [0], [0], [1], [0, 0, 1, 1], [], []>} : vector<256x256xbf16>, vector<256x128xbf16>, vector<256x128xf32> -> vector<256x128xf32>
    %45 = vector.broadcast %3 : vector<1x128xf32> to vector<256x128xf32>
    %46 = arith.addf %44, %45 : vector<256x128xf32>
    %47 = arith.addf %46, %0 : vector<256x128xf32>
    %cst_27 = arith.constant dense<0.000000e+00> : vector<256xf32>
    %48 = vector.multi_reduction <add>, %47, %cst_27 [1] : vector<256x128xf32> to vector<256xf32>
    %49 = vector.shape_cast %48 : vector<256xf32> to vector<256x1xf32>
    %cst_28 = arith.constant 1.280000e+02 : f32
    %50 = vector.broadcast %cst_28 : f32 to vector<256x1xf32>
    %51 = arith.divf %49, %50 : vector<256x1xf32>
    %52 = vector.broadcast %51 : vector<256x1xf32> to vector<256x128xf32>
    %53 = arith.subf %47, %52 : vector<256x128xf32>
    %54 = arith.mulf %53, %53 : vector<256x128xf32>
    %cst_29 = arith.constant dense<0.000000e+00> : vector<256xf32>
    %55 = vector.multi_reduction <add>, %54, %cst_29 [1] : vector<256x128xf32> to vector<256xf32>
    %56 = vector.shape_cast %55 : vector<256xf32> to vector<256x1xf32>
    %cst_30 = arith.constant 1.280000e+02 : f32
    %57 = vector.broadcast %cst_30 : f32 to vector<256x1xf32>
    %58 = arith.divf %56, %57 : vector<256x1xf32>
    %59 = vector.broadcast %51 : vector<256x1xf32> to vector<256x128xf32>
    %60 = arith.subf %47, %59 : vector<256x128xf32>
    %cst_31 = arith.constant 9.99999974E-6 : f32
    %61 = vector.broadcast %cst_31 : f32 to vector<256x1xf32>
    %62 = arith.addf %58, %61 : vector<256x1xf32>
    %63 = math.rsqrt %62 : vector<256x1xf32>
    %64 = vector.broadcast %63 : vector<256x1xf32> to vector<256x128xf32>
    %65 = arith.mulf %60, %64 : vector<256x128xf32>
    %66 = vector.broadcast %4 : vector<1x128xf32> to vector<256x128xf32>
    %67 = arith.mulf %65, %66 : vector<256x128xf32>
    %68 = vector.broadcast %5 : vector<1x128xf32> to vector<256x128xf32>
    %69 = arith.addf %67, %68 : vector<256x128xf32>
    %c0_32 = arith.constant 0 : index
    %c0_33 = arith.constant 0 : index
    %70 = vector.load %arg10[%c0_32, %c0_33] : memref<256x128xf32, #tpu.memory_space<vmem>>, vector<256x128xf32>
    tpu.vector_store %arg10[%c0_32, %c0_33], %69 {strides = array<i32>} : memref<256x128xf32, #tpu.memory_space<vmem>>, vector<256x128xf32>,
    return
  }
  func.func @transform_0(%arg0: i32) -> (i32, i32) {
    %c0_i32 = arith.constant 0 : i32
    %c0_i32_0 = arith.constant 0 : i32
    return %arg0, %c0_i32 : i32, i32
  }
  func.func @transform_1(%arg0: i32) -> (i32, i32) {
    %c0_i32 = arith.constant 0 : i32
    %c0_i32_0 = arith.constant 0 : i32
    %c0_i32_1 = arith.constant 0 : i32
    return %c0_i32, %c0_i32_0 : i32, i32
  }
  func.func @transform_2(%arg0: i32) -> (i32, i32) {
    %c0_i32 = arith.constant 0 : i32
    %c0_i32_0 = arith.constant 0 : i32
    %c0_i32_1 = arith.constant 0 : i32
    return %c0_i32, %c0_i32_0 : i32, i32
  }
  func.func @transform_3(%arg0: i32) -> (i32, i32) {
    %c0_i32 = arith.constant 0 : i32
    %c0_i32_0 = arith.constant 0 : i32
    %c0_i32_1 = arith.constant 0 : i32
    return %c0_i32, %c0_i32_0 : i32, i32
  }
  func.func @transform_4(%arg0: i32) -> (i32, i32) {
    %c0_i32 = arith.constant 0 : i32
    %c0_i32_0 = arith.constant 0 : i32
    %c0_i32_1 = arith.constant 0 : i32
    return %c0_i32, %c0_i32_0 : i32, i32
  }
  func.func @transform_5(%arg0: i32) -> (i32, i32) {
    %c0_i32 = arith.constant 0 : i32
    %c0_i32_0 = arith.constant 0 : i32
    %c0_i32_1 = arith.constant 0 : i32
    return %c0_i32, %c0_i32_0 : i32, i32
  }
  func.func @transform_6(%arg0: i32) -> (i32, i32) {
    %c0_i32 = arith.constant 0 : i32
    %c0_i32_0 = arith.constant 0 : i32
    %c0_i32_1 = arith.constant 0 : i32
    return %c0_i32, %c0_i32_0 : i32, i32
  }
  func.func @transform_7(%arg0: i32) -> (i32, i32) {
    %c0_i32 = arith.constant 0 : i32
    %c0_i32_0 = arith.constant 0 : i32
    %c0_i32_1 = arith.constant 0 : i32
    return %c0_i32, %c0_i32_0 : i32, i32
  }
  func.func @transform_8(%arg0: i32) -> (i32, i32) {
    %c0_i32 = arith.constant 0 : i32
    %c0_i32_0 = arith.constant 0 : i32
    %c0_i32_1 = arith.constant 0 : i32
    return %c0_i32, %c0_i32_0 : i32, i32
  }
  func.func @transform_9(%arg0: i32) -> (i32, i32) {
    %c0_i32 = arith.constant 0 : i32
    %c0_i32_0 = arith.constant 0 : i32
    return %arg0, %c0_i32 : i32, i32
  }
}

module attributes {stable_mosaic.version = 11 : i64} {
  func.func @_ffn_kernel(%arg0: i32, %arg1: memref<256x128xf32, #tpu.memory_space<vmem>>, %arg2: memref<128x256xbf16, #tpu.memory_space<vmem>>, %arg3: memref<1x256xf32, #tpu.memory_space<vmem>>, %arg4: memref<256x256xbf16, #tpu.memory_space<vmem>>, %arg5: memref<1x256xf32, #tpu.memory_space<vmem>>, %arg6: memref<256x128xbf16, #tpu.memory_space<vmem>>, %arg7: memref<1x128xf32, #tpu.memory_space<vmem>>, %arg8: memref<1x128xf32, #tpu.memory_space<vmem>>, %arg9: memref<1x128xf32, #tpu.memory_space<vmem>>, %arg10: memref<256x128xf32, #tpu.memory_space<vmem>>) attributes {dimension_semantics = [#tpu.dimension_semantics<parallel>], iteration_bounds = array<i64: 2>, scalar_prefetch = 0 : i64, scratch_operands = 0 : i64, tpu.core_type = #tpu.core_type<tc>, window_params = [{transform_indices = @transform_0, window_bounds = array<i64: 256, 128>}, {pipeline_mode = #tpu.pipeline_mode<synchronous>, transform_indices = @transform_1, window_bounds = array<i64: 128, 256>}, {pipeline_mode = #tpu.pipeline_mode<synchronous>, transform_indices = @transform_2, window_bounds = array<i64: 1, 256>}, {pipeline_mode = #tpu.pipeline_mode<synchronous>, transform_indices = @transform_3, window_bounds = array<i64: 256, 256>}, {pipeline_mode = #tpu.pipeline_mode<synchronous>, transform_indices = @transform_4, window_bounds = array<i64: 1, 256>}, {pipeline_mode = #tpu.pipeline_mode<synchronous>, transform_indices = @transform_5, window_bounds = array<i64: 256, 128>}, {pipeline_mode = #tpu.pipeline_mode<synchronous>, transform_indices = @transform_6, window_bounds = array<i64: 1, 128>}, {pipeline_mode = #tpu.pipeline_mode<synchronous>, transform_indices = @transform_7, window_bounds = array<i64: 1, 128>}, {pipeline_mode = #tpu.pipeline_mode<synchronous>, transform_indices = @transform_8, window_bounds = array<i64: 1, 128>}, {transform_indices = @transform_9, window_bounds = array<i64: 256, 128>}]} {
    %c0 = arith.constant 0 : index
    %c0_0 = arith.constant 0 : index
    %0 = vector.load %arg1[%c0, %c0_0] : memref<256x128xf32, #tpu.memory_space<vmem>>, vector<256x128xf32>
    %c0_1 = arith.constant 0 : index
    %c0_2 = arith.constant 0 : index
    %1 = vector.load %arg3[%c0_1, %c0_2] : memref<1x256xf32, #tpu.memory_space<vmem>>, vector<1x256xf32>
    %c0_3 = arith.constant 0 : index
    %c0_4 = arith.constant 0 : index
    %2 = vector.load %arg5[%c0_3, %c0_4] : memref<1x256xf32, #tpu.memory_space<vmem>>, vector<1x256xf32>
    %c0_5 = arith.constant 0 : index
    %c0_6 = arith.constant 0 : index
    %3 = vector.load %arg7[%c0_5, %c0_6] : memref<1x128xf32, #tpu.memory_space<vmem>>, vector<1x128xf32>
    %c0_7 = arith.constant 0 : index
    %c0_8 = arith.constant 0 : index
    %4 = vector.load %arg8[%c0_7, %c0_8] : memref<1x128xf32, #tpu.memory_space<vmem>>, vector<1x128xf32>
    %c0_9 = arith.constant 0 : index
    %c0_10 = arith.constant 0 : index
    %5 = vector.load %arg9[%c0_9, %c0_10] : memref<1x128xf32, #tpu.memory_space<vmem>>, vector<1x128xf32>
    %6 = arith.truncf %0 : vector<256x128xf32> to vector<256x128xbf16>
    %c0_11 = arith.constant 0 : index
    %c0_12 = arith.constant 0 : index
    %7 = vector.load %arg2[%c0_11, %c0_12] : memref<128x256xbf16, #tpu.memory_space<vmem>>, vector<128x256xbf16>
    %cst = arith.constant dense<0.000000e+00> : vector<256x256xf32>
    %8 = tpu.matmul %6, %7, %cst {dimension_numbers = #tpu.dot_dimension_numbers<[1], [0], [0], [1], [0, 0, 1, 1], [], []>} : vector<256x128xbf16>, vector<128x256xbf16>, vector<256x256xf32> -> vector<256x256xf32>
    %9 = vector.broadcast %1 : vector<1x256xf32> to vector<256x256xf32>
    %10 = arith.addf %8, %9 : vector<256x256xf32>
    %11 = arith.mulf %10, %10 : vector<256x256xf32>
    %12 = arith.mulf %10, %11 : vector<256x256xf32>
    %cst_13 = arith.constant 4.471500e-02 : f32
    %13 = vector.broadcast %cst_13 : f32 to vector<256x256xf32>
    %14 = arith.mulf %13, %12 : vector<256x256xf32>
    %15 = arith.addf %10, %14 : vector<256x256xf32>
    %cst_14 = arith.constant 0.797884583 : f32
    %16 = vector.broadcast %cst_14 : f32 to vector<256x256xf32>
    %17 = arith.mulf %16, %15 : vector<256x256xf32>
    %18 = math.tanh %17 : vector<256x256xf32>
    %cst_15 = arith.constant 1.000000e+00 : f32
    %19 = vector.broadcast %cst_15 : f32 to vector<256x256xf32>
    %20 = arith.addf %19, %18 : vector<256x256xf32>
    %cst_16 = arith.constant 5.000000e-01 : f32
    %21 = vector.broadcast %cst_16 : f32 to vector<256x256xf32>
    %22 = arith.mulf %21, %20 : vector<256x256xf32>
    %23 = arith.mulf %10, %22 : vector<256x256xf32>
    %24 = arith.truncf %23 : vector<256x256xf32> to vector<256x256xbf16>
    %c0_17 = arith.constant 0 : index
    %c0_18 = arith.constant 0 : index
    %25 = vector.load %arg4[%c0_17, %c0_18] : memref<256x256xbf16, #tpu.memory_space<vmem>>, vector<256x256xbf16>
    %cst_19 = arith.constant dense<0.000000e+00> : vector<256x256xf32>
    %26 = tpu.matmul %24, %25, %cst_19 {dimension_numbers = #tpu.dot_dimension_numbers<[1], [0], [0], [1], [0, 0, 1, 1], [], []>} : vector<256x256xbf16>, vector<256x256xbf16>, vector<256x256xf32> -> vector<256x256xf32>
    %27 = vector.broadcast %2 : vector<1x256xf32> to vector<256x256xf32>
    %28 = arith.addf %26, %27 : vector<256x256xf32>
    %29 = arith.mulf %28, %28 : vector<256x256xf32>
    %30 = arith.mulf %28, %29 : vector<256x256xf32>
    %cst_20 = arith.constant 4.471500e-02 : f32
    %31 = vector.broadcast %cst_20 : f32 to vector<256x256xf32>
    %32 = arith.mulf %31, %30 : vector<256x256xf32>
    %33 = arith.addf %28, %32 : vector<256x256xf32>
    %cst_21 = arith.constant 0.797884583 : f32
    %34 = vector.broadcast %cst_21 : f32 to vector<256x256xf32>
    %35 = arith.mulf %34, %33 : vector<256x256xf32>
    %36 = math.tanh %35 : vector<256x256xf32>
    %cst_22 = arith.constant 1.000000e+00 : f32
    %37 = vector.broadcast %cst_22 : f32 to vector<256x256xf32>
    %38 = arith.addf %37, %36 : vector<256x256xf32>
    %cst_23 = arith.constant 5.000000e-01 : f32
    %39 = vector.broadcast %cst_23 : f32 to vector<256x256xf32>
    %40 = arith.mulf %39, %38 : vector<256x256xf32>
    %41 = arith.mulf %28, %40 : vector<256x256xf32>
    %42 = arith.truncf %41 : vector<256x256xf32> to vector<256x256xbf16>
    %c0_24 = arith.constant 0 : index
    %c0_25 = arith.constant 0 : index
    %43 = vector.load %arg6[%c0_24, %c0_25] : memref<256x128xbf16, #tpu.memory_space<vmem>>, vector<256x128xbf16>
    %cst_26 = arith.constant dense<0.000000e+00> : vector<256x128xf32>
    %44 = tpu.matmul %42, %43, %cst_26 {dimension_numbers = #tpu.dot_dimension_numbers<[1], [0], [0], [1], [0, 0, 1, 1], [], []>} : vector<256x256xbf16>, vector<256x128xbf16>, vector<256x128xf32> -> vector<256x128xf32>
    %45 = vector.broadcast %3 : vector<1x128xf32> to vector<256x128xf32>
    %46 = arith.addf %44, %45 : vector<256x128xf32>
    %47 = arith.addf %46, %0 : vector<256x128xf32>
    %cst_27 = arith.constant dense<0.000000e+00> : vector<256xf32>
    %48 = vector.multi_reduction <add>, %47, %cst_27 [1] : vector<256x128xf32> to vector<256xf32>
    %49 = vector.shape_cast %48 : vector<256xf32> to vector<256x1xf32>
    %cst_28 = arith.constant 1.280000e+02 : f32
    %50 = vector.broadcast %cst_28 : f32 to vector<256x1xf32>
    %51 = arith.divf %49, %50 : vector<256x1xf32>
    %52 = vector.broadcast %51 : vector<256x1xf32> to vector<256x128xf32>
    %53 = arith.subf %47, %52 : vector<256x128xf32>
    %54 = arith.mulf %53, %53 : vector<256x128xf32>
    %cst_29 = arith.constant dense<0.000000e+00> : vector<256xf32>
    %55 = vector.multi_reduction <add>, %54, %cst_29 [1] : vector<256x128xf32> to vector<256xf32>
    %56 = vector.shape_cast %55 : vector<256xf32> to vector<256x1xf32>
    %cst_30 = arith.constant 1.280000e+02 : f32
    %57 = vector.broadcast %cst_30 : f32 to vector<256x1xf32>
    %58 = arith.divf %56, %57 : vector<256x1xf32>
    %59 = vector.broadcast %51 : vector<256x1xf32> to vector<256x128xf32>
    %60 = arith.subf %47, %59 : vector<256x128xf32>
    %cst_31 = arith.constant 9.99999974E-6 : f32
    %61 = vector.broadcast %cst_31 : f32 to vector<256x1xf32>
    %62 = arith.addf %58, %61 : vector<256x1xf32>
    %63 = math.rsqrt %62 : vector<256x1xf32>
    %64 = vector.broadcast %63 : vector<256x1xf32> to vector<256x128xf32>
    %65 = arith.mulf %60, %64 : vector<256x128xf32>
    %66 = vector.broadcast %4 : vector<1x128xf32> to vector<256x128xf32>
    %67 = arith.mulf %65, %66 : vector<256x128xf32>
    %68 = vector.broadcast %5 : vector<1x128xf32> to vector<256x128xf32>
    %69 = arith.addf %67, %68 : vector<256x128xf32>
    %c0_32 = arith.constant 0 : index
    %c0_33 = arith.constant 0 : index
    %70 = vector.load %arg10[%c0_32, %c0_33] : memref<256x128xf32, #tpu.memory_space<vmem>>, vector<256x128xf32>
    tpu.vector_store %arg10[%c0_32, %c0_33], %69 {strides = array<i32>} : memref<256x128xf32, #tpu.memory_space<vmem>>, vector<256x128xf32>,
    return
  }
  func.func @transform_0(%arg0: i32) -> (i32, i32) {
    %c0_i32 = arith.constant 0 : i32
    %c0_i32_0 = arith.constant 0 : i32
    return %arg0, %c0_i32 : i32, i32
  }
  func.func @transform_1(%arg0: i32) -> (i32, i32) {
    %c0_i32 = arith.constant 0 : i32
    %c0_i32_0 = arith.constant 0 : i32
    %c0_i32_1 = arith.constant 0 : i32
    return %c0_i32, %c0_i32_0 : i32, i32
  }
  func.func @transform_2(%arg0: i32) -> (i32, i32) {
    %c0_i32 = arith.constant 0 : i32
    %c0_i32_0 = arith.constant 0 : i32
    %c0_i32_1 = arith.constant 0 : i32
    return %c0_i32, %c0_i32_0 : i32, i32
  }
  func.func @transform_3(%arg0: i32) -> (i32, i32) {
    %c0_i32 = arith.constant 0 : i32
    %c0_i32_0 = arith.constant 0 : i32
    %c0_i32_1 = arith.constant 0 : i32
    return %c0_i32, %c0_i32_0 : i32, i32
  }
  func.func @transform_4(%arg0: i32) -> (i32, i32) {
    %c0_i32 = arith.constant 0 : i32
    %c0_i32_0 = arith.constant 0 : i32
    %c0_i32_1 = arith.constant 0 : i32
    return %c0_i32, %c0_i32_0 : i32, i32
  }
  func.func @transform_5(%arg0: i32) -> (i32, i32) {
    %c0_i32 = arith.constant 0 : i32
    %c0_i32_0 = arith.constant 0 : i32
    %c0_i32_1 = arith.constant 0 : i32
    return %c0_i32, %c0_i32_0 : i32, i32
  }
  func.func @transform_6(%arg0: i32) -> (i32, i32) {
    %c0_i32 = arith.constant 0 : i32
    %c0_i32_0 = arith.constant 0 : i32
    %c0_i32_1 = arith.constant 0 : i32
    return %c0_i32, %c0_i32_0 : i32, i32
  }
  func.func @transform_7(%arg0: i32) -> (i32, i32) {
    %c0_i32 = arith.constant 0 : i32
    %c0_i32_0 = arith.constant 0 : i32
    %c0_i32_1 = arith.constant 0 : i32
    return %c0_i32, %c0_i32_0 : i32, i32
  }
  func.func @transform_8(%arg0: i32) -> (i32, i32) {
    %c0_i32 = arith.constant 0 : i32
    %c0_i32_0 = arith.constant 0 : i32
    %c0_i32_1 = arith.constant 0 : i32
    return %c0_i32, %c0_i32_0 : i32, i32
  }
  func.func @transform_9(%arg0: i32) -> (i32, i32) {
    %c0_i32 = arith.constant 0 : i32
    %c0_i32_0 = arith.constant 0 : i32
    return %arg0, %c0_i32 : i32, i32
  }
}

</mosaic_0001>

<llo_original>
// kernel: tpu_custom_call.1
$region0: #{tpu_custom_call.1}
  #allocation0 [shape = 'u32[]', space=smem, size = 0x4, offset = 0x4, fixed_abs, tag = 'smem constant byte address 0x4 - core index']
  #allocation1 [shape = 'u32[72,128]{1,0:T(1,128)}', space=vmem, size = 0x9000, scoped, tag = 'internal scratch']
  %s0 = inlined_call_operand.hbm [shape: f32[512,128], index: 0, kind: input, shape index: {}]
  %s1 = inlined_call_operand.hbm [shape: bf16[128,256], index: 1, kind: input, shape index: {}]
  %s2 = inlined_call_operand.hbm [shape: f32[1,256], index: 2, kind: input, shape index: {}]
  %s3 = inlined_call_operand.hbm [shape: bf16[256,256], index: 3, kind: input, shape index: {}]
  %s4 = inlined_call_operand.vmem [shape: f32[1,256], index: 4, kind: input, shape index: {}]
  %s5 = inlined_call_operand.hbm [shape: bf16[256,128], index: 5, kind: input, shape index: {}]
  %s6 = inlined_call_operand.vmem [shape: f32[1,128], index: 6, kind: input, shape index: {}]
  %s7 = inlined_call_operand.vmem [shape: f32[1,128], index: 7, kind: input, shape index: {}]
  %s8 = inlined_call_operand.vmem [shape: f32[1,128], index: 8, kind: input, shape index: {}]
  %s9 = inlined_call_operand.hbm [shape: f32[512,128], index: 9, kind: output, shape index: {}]
  %s10 = sld [smem:[#allocation0]]
  $region89: #{tpu_custom_call.1} parent=0
    _
  %s12 = ssub.s32 1, %s10
  %s13 = scalar_select 0, %s12, %s10
  $region1: #{tpu_custom_call.1} parent=0
    #allocation2 [shape = 'u8[262144]{0}', space=vmem, size = 0x40000, scoped, tag = 'input window, operand 0']
    #allocation3 [shape = 's32[2]{0}', space=sflag, size = 0x8, scoped, tag = 'scoped memory for tpu_custom_call.1']
    #allocation4 [shape = 's32[2]{0}', space=sflag, size = 0x8, scoped, tag = 'scoped memory for tpu_custom_call.1']
    #allocation5 [shape = 'u8[65536]{0}', space=vmem, size = 0x10000, scoped, tag = 'input window, operand 1, single buffered']
    #allocation6 [shape = 's32[1]{0}', space=sflag, size = 0x4, scoped, tag = 'scoped memory for tpu_custom_call.1']
    #allocation7 [shape = 'u8[1024]{0}', space=vmem, size = 0x400, scoped, tag = 'input window, operand 2, single buffered']
    #allocation8 [shape = 'u8[131072]{0}', space=vmem, size = 0x20000, scoped, tag = 'input window, operand 3, single buffered']
    #allocation9 [shape = 's32[1]{0}', space=sflag, size = 0x4, scoped, tag = 'scoped memory for tpu_custom_call.1']
    #allocation10 [shape = 'u8[65536]{0}', space=vmem, size = 0x10000, scoped, tag = 'input window, operand 5, single buffered']
    #allocation11 [shape = 'u8[262144]{0}', space=vmem, size = 0x40000, scoped, tag = 'output window, operand 0']
    %14 = vsyncpa [#allocation3], 0
    %s15 = scalar_lea.sflag [#allocation3], 1
    %16 = vsyncpa %s15, 0
    %17 = vsyncpa [#allocation6], 0
    %18 = vsyncpa [#allocation9], 0
    %19 = vsyncpa [#allocation4], 0
    %s20 = scalar_lea.sflag [#allocation4], 1
    %21 = vsyncpa %s20, 0
    loop: start=0, step=1, limit=4
    $region2: #{tpu_custom_call.1} parent=1 // loop_pre_header
      _
    $region3: #{tpu_custom_call.1} parent=1 // loop_header
      %s23 = sphi 0, %s27
      %p24 = scmp.ge.s32.totalorder %s23, 4
      %s33 = sphi 0, %s35
      %s36 = sphi 0, %s33
      %s37 = sphi 0, %s36
      %s53 = sphi 0, %s37
      %s57 = sphi 0, %s57
      %s59 = sphi 0, %s57
      %s60 = sphi 0, %s59
      %s74 = sphi 0, %s60
      %s78 = sphi 0, %s78
      %s80 = sphi 0, %s78
      %s81 = sphi 0, %s80
      %s95 = sphi 0, %s81
      %s99 = sphi 0, %s99
      %s101 = sphi 0, %s99
      %s102 = sphi 0, %s101
      %s116 = sphi 0, %s102
      %s120 = sphi 0, %s120
      %s122 = sphi 0, %s120
      %s123 = sphi 0, %s122
      %s137 = sphi 0, %s123
      %s141 = sphi 0, %s141
      %s143 = sphi 0, %s141
      %s144 = sphi 0, %s143
      %s158 = sphi 0, %s144
      %s162 = sphi 0, %s162
      %s164 = sphi 0, %s162
      %s165 = sphi 0, %s164
      %s179 = sphi 0, %s165
      %s183 = sphi 0, %s183
      %s185 = sphi 0, %s183
      %s186 = sphi 0, %s185
      %s200 = sphi 0, %s186
      %s204 = sphi 0, %s204
      %s206 = sphi 0, %s204
      %s207 = sphi 0, %s206
      %s221 = sphi 0, %s207
      %s227 = sphi 0, %s229
      %s230 = sphi 0, %s227
      %s231 = sphi 0, %s230
      %s247 = sphi 0, %s231
    $region4: #{tpu_custom_call.1} parent=1 // loop_header_branch
      %26 = sbr.rel (%p24) target = $region8
    $region5: #{tpu_custom_call.1} parent=1 // loop_body
      %s28 = ssub.s32 %s23, 1
      %s29 = ssub.s32 %s23, 2
      %s30 = sadd.s32 %s23, 1
      %s31 = ssub.s32 %s23, %s30
      %p32 = scmp.eq.s32.totalorder %s31, 0
      %s34 = sadd.s32 %s33, 1
      %s35 = scalar_select %p32, %s33, %s34
      %p38 = pneg %p32
      %p39 = scmp.eq.s32.totalorder %s23, 1
      %p40 = por %p38, %p39
      %p41 = scmp.ne.s32.totalorder %s33, %s36
      %p42 = scmp.eq.s32.totalorder %s23, 0
      %p43 = por %p41, %p42
      %p44 = scmp.ne.s32.totalorder %s33, %s36
      %p45 = scmp.eq.s32.totalorder %s28, 1
      %p46 = por %p44, %p45
      %p47 = scmp.ne.s32.totalorder %s36, %s37
      %p48 = scmp.eq.s32.totalorder %s28, 0
      %p49 = por %p47, %p48
      %p50 = scmp.ne.s32.totalorder %s36, %s37
      %p51 = scmp.eq.s32.totalorder %s29, 1
      %p52 = por %p50, %p51
      %p54 = scmp.ne.s32.totalorder %s37, %s53
      %p55 = scmp.eq.s32.totalorder %s29, 0
      %p56 = por %p54, %p55
      %s58 = sadd.s32 %s57, 1
      %p61 = scmp.eq.s32.totalorder %s23, 1
      %p62 = scmp.ne.s32.totalorder %s57, %s59
      %p63 = scmp.eq.s32.totalorder %s23, 0
      %p64 = por %p62, %p63
      %p65 = scmp.ne.s32.totalorder %s57, %s59
      %p66 = scmp.eq.s32.totalorder %s28, 1
      %p67 = por %p65, %p66
      %p68 = scmp.ne.s32.totalorder %s59, %s60
      %p69 = scmp.eq.s32.totalorder %s28, 0
      %p70 = por %p68, %p69
      %p71 = scmp.ne.s32.totalorder %s59, %s60
      %p72 = scmp.eq.s32.totalorder %s29, 1
      %p73 = por %p71, %p72
      %p75 = scmp.ne.s32.totalorder %s60, %s74
      %p76 = scmp.eq.s32.totalorder %s29, 0
      %p77 = por %p75, %p76
      %s79 = sadd.s32 %s78, 1
      %p82 = scmp.eq.s32.totalorder %s23, 1
      %p83 = scmp.ne.s32.totalorder %s78, %s80
      %p84 = scmp.eq.s32.totalorder %s23, 0
      %p85 = por %p83, %p84
      %p86 = scmp.ne.s32.totalorder %s78, %s80
      %p87 = scmp.eq.s32.totalorder %s28, 1
      %p88 = por %p86, %p87
      %p89 = scmp.ne.s32.totalorder %s80, %s81
      %p90 = scmp.eq.s32.totalorder %s28, 0
      %p91 = por %p89, %p90
      %p92 = scmp.ne.s32.totalorder %s80, %s81
      %p93 = scmp.eq.s32.totalorder %s29, 1
      %p94 = por %p92, %p93
      %p96 = scmp.ne.s32.totalorder %s81, %s95
      %p97 = scmp.eq.s32.totalorder %s29, 0
      %p98 = por %p96, %p97
      %s100 = sadd.s32 %s99, 1
      %p103 = scmp.eq.s32.totalorder %s23, 1
      %p104 = scmp.ne.s32.totalorder %s99, %s101
      %p105 = scmp.eq.s32.totalorder %s23, 0
      %p106 = por %p104, %p105
      %p107 = scmp.ne.s32.totalorder %s99, %s101
      %p108 = scmp.eq.s32.totalorder %s28, 1
      %p109 = por %p107, %p108
      %p110 = scmp.ne.s32.totalorder %s101, %s102
      %p111 = scmp.eq.s32.totalorder %s28, 0
      %p112 = por %p110, %p111
      %p113 = scmp.ne.s32.totalorder %s101, %s102
      %p114 = scmp.eq.s32.totalorder %s29, 1
      %p115 = por %p113, %p114
      %p117 = scmp.ne.s32.totalorder %s102, %s116
      %p118 = scmp.eq.s32.totalorder %s29, 0
      %p119 = por %p117, %p118
      %s121 = sadd.s32 %s120, 1
      %p124 = scmp.eq.s32.totalorder %s23, 1
      %p125 = scmp.ne.s32.totalorder %s120, %s122
      %p126 = scmp.eq.s32.totalorder %s23, 0
      %p127 = por %p125, %p126
      %p128 = scmp.ne.s32.totalorder %s120, %s122
      %p129 = scmp.eq.s32.totalorder %s28, 1
      %p130 = por %p128, %p129
      %p131 = scmp.ne.s32.totalorder %s122, %s123
      %p132 = scmp.eq.s32.totalorder %s28, 0
      %p133 = por %p131, %p132
      %p134 = scmp.ne.s32.totalorder %s122, %s123
      %p135 = scmp.eq.s32.totalorder %s29, 1
      %p136 = por %p134, %p135
      %p138 = scmp.ne.s32.totalorder %s123, %s137
      %p139 = scmp.eq.s32.totalorder %s29, 0
      %p140 = por %p138, %p139
      %s142 = sadd.s32 %s141, 1
      %p145 = scmp.eq.s32.totalorder %s23, 1
      %p146 = scmp.ne.s32.totalorder %s141, %s143
      %p147 = scmp.eq.s32.totalorder %s23, 0
      %p148 = por %p146, %p147
      %p149 = scmp.ne.s32.totalorder %s141, %s143
      %p150 = scmp.eq.s32.totalorder %s28, 1
      %p151 = por %p149, %p150
      %p152 = scmp.ne.s32.totalorder %s143, %s144
      %p153 = scmp.eq.s32.totalorder %s28, 0
      %p154 = por %p152, %p153
      %p155 = scmp.ne.s32.totalorder %s143, %s144
      %p156 = scmp.eq.s32.totalorder %s29, 1
      %p157 = por %p155, %p156
      %p159 = scmp.ne.s32.totalorder %s144, %s158
      %p160 = scmp.eq.s32.totalorder %s29, 0
      %p161 = por %p159, %p160
      %s163 = sadd.s32 %s162, 1
      %p166 = scmp.eq.s32.totalorder %s23, 1
      %p167 = scmp.ne.s32.totalorder %s162, %s164
      %p168 = scmp.eq.s32.totalorder %s23, 0
      %p169 = por %p167, %p168
      %p170 = scmp.ne.s32.totalorder %s162, %s164
      %p171 = scmp.eq.s32.totalorder %s28, 1
      %p172 = por %p170, %p171
      %p173 = scmp.ne.s32.totalorder %s164, %s165
      %p174 = scmp.eq.s32.totalorder %s28, 0
      %p175 = por %p173, %p174
      %p176 = scmp.ne.s32.totalorder %s164, %s165
      %p177 = scmp.eq.s32.totalorder %s29, 1
      %p178 = por %p176, %p177
      %p180 = scmp.ne.s32.totalorder %s165, %s179
      %p181 = scmp.eq.s32.totalorder %s29, 0
      %p182 = por %p180, %p181
      %s184 = sadd.s32 %s183, 1
      %p187 = scmp.eq.s32.totalorder %s23, 1
      %p188 = scmp.ne.s32.totalorder %s183, %s185
      %p189 = scmp.eq.s32.totalorder %s23, 0
      %p190 = por %p188, %p189
      %p191 = scmp.ne.s32.totalorder %s183, %s185
      %p192 = scmp.eq.s32.totalorder %s28, 1
      %p193 = por %p191, %p192
      %p194 = scmp.ne.s32.totalorder %s185, %s186
      %p195 = scmp.eq.s32.totalorder %s28, 0
      %p196 = por %p194, %p195
      %p197 = scmp.ne.s32.totalorder %s185, %s186
      %p198 = scmp.eq.s32.totalorder %s29, 1
      %p199 = por %p197, %p198
      %p201 = scmp.ne.s32.totalorder %s186, %s200
      %p202 = scmp.eq.s32.totalorder %s29, 0
      %p203 = por %p201, %p202
      %s205 = sadd.s32 %s204, 1
      %p208 = scmp.eq.s32.totalorder %s23, 1
      %p209 = scmp.ne.s32.totalorder %s204, %s206
      %p210 = scmp.eq.s32.totalorder %s23, 0
      %p211 = por %p209, %p210
      %p212 = scmp.ne.s32.totalorder %s204, %s206
      %p213 = scmp.eq.s32.totalorder %s28, 1
      %p214 = por %p212, %p213
      %p215 = scmp.ne.s32.totalorder %s206, %s207
      %p216 = scmp.eq.s32.totalorder %s28, 0
      %p217 = por %p215, %p216
      %p218 = scmp.ne.s32.totalorder %s206, %s207
      %p219 = scmp.eq.s32.totalorder %s29, 1
      %p220 = por %p218, %p219
      %p222 = scmp.ne.s32.totalorder %s207, %s221
      %p223 = scmp.eq.s32.totalorder %s29, 0
      %p224 = por %p222, %p223
      %s225 = ssub.s32 %s23, %s30
      %p226 = scmp.eq.s32.totalorder %s225, 0
      %s228 = sadd.s32 %s227, 1
      %s229 = scalar_select %p226, %s227, %s228
      %p232 = pneg %p226
      %p233 = scmp.eq.s32.totalorder %s23, 1
      %p234 = por %p232, %p233
      %p235 = scmp.ne.s32.totalorder %s227, %s230
      %p236 = scmp.eq.s32.totalorder %s23, 0
      %p237 = por %p235, %p236
      %p238 = scmp.ne.s32.totalorder %s227, %s230
      %p239 = scmp.eq.s32.totalorder %s28, 1
      %p240 = por %p238, %p239
      %p241 = scmp.ne.s32.totalorder %s230, %s231
      %p242 = scmp.eq.s32.totalorder %s28, 0
      %p243 = por %p241, %p242
      %p244 = scmp.ne.s32.totalorder %s230, %s231
      %p245 = scmp.eq.s32.totalorder %s29, 1
      %p246 = por %p244, %p245
      %p248 = scmp.ne.s32.totalorder %s231, %s247
      %p249 = scmp.eq.s32.totalorder %s29, 0
      %p250 = por %p248, %p249
      %p251 = scmp.le.s32.totalorder 1, %s23
      %p252 = scmp.lt.s32.totalorder %s23, 3
      %p253 = pnand %p251, %p252
      %p254 = pneg %p253
      // Predicated region
      $region9: #{tpu_custom_call.1} parent=5 // pred_check
        _
      $region10: #{tpu_custom_call.1} parent=5 // pred_check_branch
        %256 = sbr.rel (%p253) target = $region12
      $region11: #{tpu_custom_call.1} parent=5 // pred_region
        %s257 = ssub.s32 %s23, 1
        // Predicated region
        $region13: #{tpu_custom_call.1} parent=11 // pred_check
          %p258 = pneg %p70
        $region14: #{tpu_custom_call.1} parent=11 // pred_check_branch
          %260 = sbr.rel (%p258) target = $region16
        $region15: #{tpu_custom_call.1} parent=11 // pred_region
          %262 = vsyncadd [#allocation6], 0
          %s263 = sshll.u32 %s1, 4
          %s264 = int_to_ptr.hbm [resolvable:$true] %s263
          %s265 = sshll.u32 [#allocation5], 4
          %s266 = int_to_ptr.vmem [resolvable:$true] %s265
          %271 = dma.hbm_to_vmem [thread:$0]  %s264, 2048, %s266, [#allocation6], 128, 128, 8
        $region16: #{tpu_custom_call.1} parent=11 // pred_fallthru
          _
        // Predicated region
        $region17: #{tpu_custom_call.1} parent=11 // pred_check
          %p272 = pneg %p91
        $region18: #{tpu_custom_call.1} parent=11 // pred_check_branch
          %274 = sbr.rel (%p272) target = $region20
        $region19: #{tpu_custom_call.1} parent=11 // pred_region
          %276 = vsyncadd [#allocation6], 0
          %s278 = sshll.u32 %s2, 4
          %s279 = int_to_ptr.hbm [resolvable:$true] %s278
          %s280 = sshll.u32 [#allocation7], 4
          %s281 = int_to_ptr.vmem [resolvable:$true] %s280
          %283 = dma.hbm_to_vmem [thread:$0]  %s279, 32, %s281, [#allocation6]
        $region20: #{tpu_custom_call.1} parent=11 // pred_fallthru
          _
        // Predicated region
        $region21: #{tpu_custom_call.1} parent=11 // pred_check
          %p284 = pneg %p112
        $region22: #{tpu_custom_call.1} parent=11 // pred_check_branch
          %286 = sbr.rel (%p284) target = $region24
        $region23: #{tpu_custom_call.1} parent=11 // pred_region
          %288 = vsyncadd [#allocation9], 0
          %s289 = sshll.u32 %s3, 4
          %s290 = int_to_ptr.hbm [resolvable:$true] %s289
          %s291 = sshll.u32 [#allocation8], 4
          %s292 = int_to_ptr.vmem [resolvable:$true] %s291
          %297 = dma.hbm_to_vmem [thread:$0]  %s290, 4096, %s292, [#allocation9], 128, 128, 8
        $region24: #{tpu_custom_call.1} parent=11 // pred_fallthru
          _
        // Predicated region
        $region25: #{tpu_custom_call.1} parent=11 // pred_check
          %p298 = pneg %p133
        $region26: #{tpu_custom_call.1} parent=11 // pred_check_branch
          %300 = sbr.rel (%p298) target = $region28
        $region27: #{tpu_custom_call.1} parent=11 // pred_region
          _
        $region28: #{tpu_custom_call.1} parent=11 // pred_fallthru
          _
        // Predicated region
        $region29: #{tpu_custom_call.1} parent=11 // pred_check
          %p301 = pneg %p154
        $region30: #{tpu_custom_call.1} parent=11 // pred_check_branch
          %303 = sbr.rel (%p301) target = $region32
        $region31: #{tpu_custom_call.1} parent=11 // pred_region
          %305 = vsyncadd [#allocation9], 0
          %s306 = sshll.u32 %s5, 4
          %s307 = int_to_ptr.hbm [resolvable:$true] %s306
          %s308 = sshll.u32 [#allocation10], 4
          %s309 = int_to_ptr.vmem [resolvable:$true] %s308
          %314 = dma.hbm_to_vmem [thread:$0]  %s307, 2048, %s309, [#allocation9], 64, 64, 4
        $region32: #{tpu_custom_call.1} parent=11 // pred_fallthru
          _
        // Predicated region
        $region33: #{tpu_custom_call.1} parent=11 // pred_check
          %p315 = pneg %p175
        $region34: #{tpu_custom_call.1} parent=11 // pred_check_branch
          %317 = sbr.rel (%p315) target = $region36
        $region35: #{tpu_custom_call.1} parent=11 // pred_region
          _
        $region36: #{tpu_custom_call.1} parent=11 // pred_fallthru
          _
        // Predicated region
        $region37: #{tpu_custom_call.1} parent=11 // pred_check
          %p318 = pneg %p196
        $region38: #{tpu_custom_call.1} parent=11 // pred_check_branch
          %320 = sbr.rel (%p318) target = $region40
        $region39: #{tpu_custom_call.1} parent=11 // pred_region
          _
        $region40: #{tpu_custom_call.1} parent=11 // pred_fallthru
          _
        // Predicated region
        $region41: #{tpu_custom_call.1} parent=11 // pred_check
          %p321 = pneg %p217
        $region42: #{tpu_custom_call.1} parent=11 // pred_check_branch
          %323 = sbr.rel (%p321) target = $region44
        $region43: #{tpu_custom_call.1} parent=11 // pred_region
          _
        $region44: #{tpu_custom_call.1} parent=11 // pred_fallthru
          _
      $region12: #{tpu_custom_call.1} parent=5 // pred_fallthru
        _
      %p324 = scmp.lt.s32.totalorder %s23, 2
      // Predicated region
      $region45: #{tpu_custom_call.1} parent=5 // pred_check
        %p325 = pneg %p324
      $region46: #{tpu_custom_call.1} parent=5 // pred_check_branch
        %327 = sbr.rel (%p325) target = $region48
      $region47: #{tpu_custom_call.1} parent=5 // pred_region
        // Predicated region
        $region49: #{tpu_custom_call.1} parent=47 // pred_check
          %p328 = pneg %p43
        $region50: #{tpu_custom_call.1} parent=47 // pred_check_branch
          %330 = sbr.rel (%p328) target = $region52
        $region51: #{tpu_custom_call.1} parent=47 // pred_region
          %s331 = sand.u32 %s33, 1
          %s332 = scalar_lea.sflag [#allocation3], %s331
          %s333 = sand.u32 %s33, 1
          %s334 = smul.addr %s333, 256
          %s335 = scalar_lea.vmem [#allocation2], %s334
          %s336 = smul.u32 32, %s23
          %338 = vsyncadd %s332, 0
          %s339 = smul.addr %s336, 8
          %s340 = scalar_lea.hbm %s0, %s339
          %s341 = sshll.u32 %s340, 4
          %s342 = int_to_ptr.hbm [resolvable:$true] %s341
          %s343 = sshll.u32 %s335, 4
          %s344 = int_to_ptr.vmem [resolvable:$true] %s343
          %349 = dma.hbm_to_vmem [thread:$0]  %s342, 4096, %s344, %s332, 128, 128, 8
        $region52: #{tpu_custom_call.1} parent=47 // pred_fallthru
          _
      $region48: #{tpu_custom_call.1} parent=5 // pred_fallthru
        _
      %p350 = scmp.le.s32.totalorder 1, %s23
      %p351 = scmp.lt.s32.totalorder %s23, 3
      %p352 = pnand %p350, %p351
      %p353 = pneg %p352
      // Predicated region
      $region53: #{tpu_custom_call.1} parent=5 // pred_check
        _
      $region54: #{tpu_custom_call.1} parent=5 // pred_check_branch
        %355 = sbr.rel (%p352) target = $region56
      $region55: #{tpu_custom_call.1} parent=5 // pred_region
        %s356 = ssub.s32 %s23, 1
        %s357 = sand.u32 %s36, 1
        %s358 = scalar_lea.sflag [#allocation3], %s357
        %s359 = sand.u32 %s36, 1
        %s360 = smul.addr %s359, 256
        %s361 = scalar_lea.vmem [#allocation2], %s360
        // Predicated region
        $region57: #{tpu_custom_call.1} parent=55 // pred_check
          %p362 = pneg %p49
        $region58: #{tpu_custom_call.1} parent=55 // pred_check_branch
          %364 = sbr.rel (%p362) target = $region60
        $region59: #{tpu_custom_call.1} parent=55 // pred_region
          %366 = dma.done %s358, 4096
        $region60: #{tpu_custom_call.1} parent=55 // pred_fallthru
          _
        // Predicated region
        $region61: #{tpu_custom_call.1} parent=55 // pred_check
          %p367 = pneg %p70
        $region62: #{tpu_custom_call.1} parent=55 // pred_check_branch
          %369 = sbr.rel (%p367) target = $region64
        $region63: #{tpu_custom_call.1} parent=55 // pred_region
          %371 = dma.done [#allocation6], 2048
        $region64: #{tpu_custom_call.1} parent=55 // pred_fallthru
          _
        // Predicated region
        $region65: #{tpu_custom_call.1} parent=55 // pred_check
          %p372 = pneg %p91
        $region66: #{tpu_custom_call.1} parent=55 // pred_check_branch
          %374 = sbr.rel (%p372) target = $region68
        $region67: #{tpu_custom_call.1} parent=55 // pred_region
          %376 = dma.done [#allocation6], 32
        $region68: #{tpu_custom_call.1} parent=55 // pred_fallthru
          _
        // Predicated region
        $region69: #{tpu_custom_call.1} parent=55 // pred_check
          %p377 = pneg %p112
        $region70: #{tpu_custom_call.1} parent=55 // pred_check_branch
          %379 = sbr.rel (%p377) target = $region72
        $region71: #{tpu_custom_call.1} parent=55 // pred_region
          %381 = dma.done [#allocation9], 4096
        $region72: #{tpu_custom_call.1} parent=55 // pred_fallthru
          _
        // Predicated region
        $region73: #{tpu_custom_call.1} parent=55 // pred_check
          %p382 = pneg %p154
        $region74: #{tpu_custom_call.1} parent=55 // pred_check_branch
          %384 = sbr.rel (%p382) target = $region76
        $region75: #{tpu_custom_call.1} parent=55 // pred_region
          %386 = dma.done [#allocation9], 2048
        $region76: #{tpu_custom_call.1} parent=55 // pred_fallthru
          _
        %s387 = sand.u32 %s36, 1
        %s388 = scalar_lea.sflag [#allocation3], %s387
        %s389 = sand.u32 %s36, 1
        %s390 = smul.addr %s389, 256
        %s391 = scalar_lea.vmem [#allocation2], %s390
        %p392 = pneg %p49
        %p393 = pneg %p46
        %p394 = pneg %p70
        %p395 = pneg %p67
        %p396 = pneg %p91
        %p397 = pneg %p88
        %p398 = pneg %p112
        %p399 = pneg %p109
        %p400 = pneg %p133
        %p401 = pneg %p130
        %p402 = pneg %p154
        %p403 = pneg %p151
        %p404 = pneg %p175
        %p405 = pneg %p172
        %p406 = pneg %p196
        %p407 = pneg %p193
        %p408 = pneg %p217
        %p409 = pneg %p214
        %p410 = pneg %p243
        %p411 = pneg %p240
        %s412 = sand.u32 %s230, 1
        %s413 = scalar_lea.sflag [#allocation4], %s412
        %s414 = sand.u32 %s230, 1
        %s415 = smul.addr %s414, 256
        %s416 = scalar_lea.vmem [#allocation11], %s415
        %s417 = smul.u32 32, %s28
        %s418 = smul.u32 32, %s28
        %v419 = vld [vmem:[%s361] sm:$0xff]
        %v420 = vld [vmem:[%s361 + $0x8] sm:$0xff]
        %v421 = vld [vmem:[%s361 + $0x10] sm:$0xff]
        %v422 = vld [vmem:[%s361 + $0x18] sm:$0xff]
        %v423 = vld [vmem:[%s361 + $0x20] sm:$0xff]
        %v424 = vld [vmem:[%s361 + $0x28] sm:$0xff]
        %v425 = vld [vmem:[%s361 + $0x30] sm:$0xff]
        %v426 = vld [vmem:[%s361 + $0x38] sm:$0xff]
        %v427 = vld [vmem:[%s361 + $0x40] sm:$0xff]
        %v428 = vld [vmem:[%s361 + $0x48] sm:$0xff]
        %v429 = vld [vmem:[%s361 + $0x50] sm:$0xff]
        %v430 = vld [vmem:[%s361 + $0x58] sm:$0xff]
        %v431 = vld [vmem:[%s361 + $0x60] sm:$0xff]
        %v432 = vld [vmem:[%s361 + $0x68] sm:$0xff]
        %v433 = vld [vmem:[%s361 + $0x70] sm:$0xff]
        %v434 = vld [vmem:[%s361 + $0x78] sm:$0xff]
        %v435 = vld [vmem:[%s361 + $0x80] sm:$0xff]
        %v436 = vld [vmem:[%s361 + $0x88] sm:$0xff]
        %v437 = vld [vmem:[%s361 + $0x90] sm:$0xff]
        %v438 = vld [vmem:[%s361 + $0x98] sm:$0xff]
        %v439 = vld [vmem:[%s361 + $0xa0] sm:$0xff]
        %v440 = vld [vmem:[%s361 + $0xa8] sm:$0xff]
        %v441 = vld [vmem:[%s361 + $0xb0] sm:$0xff]
        %v442 = vld [vmem:[%s361 + $0xb8] sm:$0xff]
        %v443 = vld [vmem:[%s361 + $0xc0] sm:$0xff]
        %v444 = vld [vmem:[%s361 + $0xc8] sm:$0xff]
        %v445 = vld [vmem:[%s361 + $0xd0] sm:$0xff]
        %v446 = vld [vmem:[%s361 + $0xd8] sm:$0xff]
        %v447 = vld [vmem:[%s361 + $0xe0] sm:$0xff]
        %v448 = vld [vmem:[%s361 + $0xe8] sm:$0xff]
        %v449 = vld [vmem:[%s361 + $0xf0] sm:$0xff]
        %v450 = vld [vmem:[%s361 + $0xf8] sm:$0xff]
        %v451 = vld [vmem:[#allocation7] sm:$0x3]
        %v452 = vld [vmem:[%s4] sm:$0x3]
        %v453 = vld [vmem:[%s6] sm:$0x1]
        %v454 = vld [vmem:[%s7] sm:$0x1]
        %v455 = vld [vmem:[%s8] sm:$0x1]
        %v456 = vpack.c.bf16 %v420, %v419
        %v457 = vpack.c.bf16 %v422, %v421
        %v458 = vpack.c.bf16 %v424, %v423
        %v459 = vpack.c.bf16 %v426, %v425
        %v460 = vpack.c.bf16 %v428, %v427
        %v461 = vpack.c.bf16 %v430, %v429
        %v462 = vpack.c.bf16 %v432, %v431
        %v463 = vpack.c.bf16 %v434, %v433
        %v464 = vpack.c.bf16 %v436, %v435
        %v465 = vpack.c.bf16 %v438, %v437
        %v466 = vpack.c.bf16 %v440, %v439
        %v467 = vpack.c.bf16 %v442, %v441
        %v468 = vpack.c.bf16 %v444, %v443
        %v469 = vpack.c.bf16 %v446, %v445
        %v470 = vpack.c.bf16 %v448, %v447
        %v471 = vpack.c.bf16 %v450, %v449
        %v472 = vld [vmem:[#allocation5] sm:$0xff]
        %v473 = vld [vmem:[#allocation5 + $0x8] sm:$0xff]
        %v474 = vld [vmem:[#allocation5 + $0x10] sm:$0xff]
        %v475 = vld [vmem:[#allocation5 + $0x18] sm:$0xff]
        %v476 = vld [vmem:[#allocation5 + $0x20] sm:$0xff]
        %v477 = vld [vmem:[#allocation5 + $0x28] sm:$0xff]
        %v478 = vld [vmem:[#allocation5 + $0x30] sm:$0xff]
        %v479 = vld [vmem:[#allocation5 + $0x38] sm:$0xff]
        %v480 = vld [vmem:[#allocation5 + $0x40] sm:$0xff]
        %v481 = vld [vmem:[#allocation5 + $0x48] sm:$0xff]
        %v482 = vld [vmem:[#allocation5 + $0x50] sm:$0xff]
        %v483 = vld [vmem:[#allocation5 + $0x58] sm:$0xff]
        %v484 = vld [vmem:[#allocation5 + $0x60] sm:$0xff]
        %v485 = vld [vmem:[#allocation5 + $0x68] sm:$0xff]
        %v486 = vld [vmem:[#allocation5 + $0x70] sm:$0xff]
        %v487 = vld [vmem:[#allocation5 + $0x78] sm:$0xff]
        %v489 = vperm.slane %v451, 0
        %v490 = vperm.slane %v451, 1
        %v509 = vunpack.c.l.b16 %v472
        %v510 = vunpack.c.h.b16 %v472
        %v511 = vunpack.c.l.b16 %v473
        %v512 = vunpack.c.h.b16 %v473
        %v513 = vunpack.c.l.b16 %v474
        %v514 = vunpack.c.h.b16 %v474
        %v515 = vunpack.c.l.b16 %v475
        %v516 = vunpack.c.h.b16 %v475
        %v517 = vunpack.c.l.b16 %v476
        %v518 = vunpack.c.h.b16 %v476
        %v519 = vunpack.c.l.b16 %v477
        %v520 = vunpack.c.h.b16 %v477
        %v521 = vunpack.c.l.b16 %v478
        %v522 = vunpack.c.h.b16 %v478
        %v523 = vunpack.c.l.b16 %v479
        %v524 = vunpack.c.h.b16 %v479
        %v525 = vunpack.c.l.b16 %v480
        %v526 = vunpack.c.h.b16 %v480
        %v527 = vunpack.c.l.b16 %v481
        %v528 = vunpack.c.h.b16 %v481
        %v529 = vunpack.c.l.b16 %v482
        %v530 = vunpack.c.h.b16 %v482
        %v531 = vunpack.c.l.b16 %v483
        %v532 = vunpack.c.h.b16 %v483
        %v533 = vunpack.c.l.b16 %v484
        %v534 = vunpack.c.h.b16 %v484
        %v535 = vunpack.c.l.b16 %v485
        %v536 = vunpack.c.h.b16 %v485
        %v537 = vunpack.c.l.b16 %v486
        %v538 = vunpack.c.h.b16 %v486
        %v539 = vunpack.c.l.b16 %v487
        %v540 = vunpack.c.h.b16 %v487
        %v541 = vpack.c.b16 %v511, %v509
        %v542 = vpack.c.b16 %v512, %v510
        %v543 = vpack.c.b16 %v515, %v513
        %v544 = vpack.c.b16 %v516, %v514
        %v545 = vpack.c.b16 %v519, %v517
        %v546 = vpack.c.b16 %v520, %v518
        %v547 = vpack.c.b16 %v523, %v521
        %v548 = vpack.c.b16 %v524, %v522
        %v549 = vpack.c.b16 %v527, %v525
        %v550 = vpack.c.b16 %v528, %v526
        %v551 = vpack.c.b16 %v531, %v529
        %v552 = vpack.c.b16 %v532, %v530
        %v553 = vpack.c.b16 %v535, %v533
        %v554 = vpack.c.b16 %v536, %v534
        %v555 = vpack.c.b16 %v539, %v537
        %v556 = vpack.c.b16 %v540, %v538
        %573 = vmatpush.bf16.msra.mxu0 %v555
        %574 = vmatpush.bf16.msra.mxu0 %v553
        %575 = vmatpush.bf16.msra.mxu0 %v551
        %576 = vmatpush.bf16.msra.mxu0 %v549
        %577 = vmatpush.bf16.msra.mxu0 %v547
        %578 = vmatpush.bf16.msra.mxu0 %v545
        %579 = vmatpush.bf16.msra.mxu0 %v543
        %580 = vmatpush.bf16.msra.mxu0 %v541
        %581 = vmatmul.bf16.gmra.mxu0 %v456
        %v582 = vpop.f32.mrf.mxu0
        %v583 = vadd.f32 %v489, %v582
        %v584 = vpop.f32.mrf.mxu0
        %v585 = vadd.f32 %v489, %v584
        %586 = vmatmul.bf16.gmra.mxu0 %v457
        %v587 = vpop.f32.mrf.mxu0
        %v588 = vadd.f32 %v489, %v587
        %v589 = vpop.f32.mrf.mxu0
        %v590 = vadd.f32 %v489, %v589
        %591 = vmatmul.bf16.gmra.mxu0 %v458
        %v592 = vpop.f32.mrf.mxu0
        %v593 = vadd.f32 %v489, %v592
        %v594 = vpop.f32.mrf.mxu0
        %v595 = vadd.f32 %v489, %v594
        %596 = vmatmul.bf16.gmra.mxu0 %v459
        %v597 = vpop.f32.mrf.mxu0
        %v598 = vadd.f32 %v489, %v597
        %v599 = vpop.f32.mrf.mxu0
        %v600 = vadd.f32 %v489, %v599
        %601 = vmatmul.bf16.gmra.mxu0 %v460
        %v602 = vpop.f32.mrf.mxu0
        %v603 = vadd.f32 %v489, %v602
        %v604 = vpop.f32.mrf.mxu0
        %v605 = vadd.f32 %v489, %v604
        %606 = vmatmul.bf16.gmra.mxu0 %v461
        %v607 = vpop.f32.mrf.mxu0
        %v608 = vadd.f32 %v489, %v607
        %v609 = vpop.f32.mrf.mxu0
        %v610 = vadd.f32 %v489, %v609
        %611 = vmatmul.bf16.gmra.mxu0 %v462
        %v612 = vpop.f32.mrf.mxu0
        %v613 = vadd.f32 %v489, %v612
        %v614 = vpop.f32.mrf.mxu0
        %v615 = vadd.f32 %v489, %v614
        %616 = vmatmul.bf16.gmra.mxu0 %v463
        %v617 = vpop.f32.mrf.mxu0
        %v618 = vadd.f32 %v489, %v617
        %v619 = vpop.f32.mrf.mxu0
        %v620 = vadd.f32 %v489, %v619
        %621 = vmatmul.bf16.gmra.mxu0 %v464
        %v622 = vpop.f32.mrf.mxu0
        %v623 = vadd.f32 %v489, %v622
        %v624 = vpop.f32.mrf.mxu0
        %v625 = vadd.f32 %v489, %v624
        %626 = vmatmul.bf16.gmra.mxu0 %v465
        %v627 = vpop.f32.mrf.mxu0
        %v628 = vadd.f32 %v489, %v627
        %v629 = vpop.f32.mrf.mxu0
        %v630 = vadd.f32 %v489, %v629
        %631 = vmatmul.bf16.gmra.mxu0 %v466
        %v632 = vpop.f32.mrf.mxu0
        %v633 = vadd.f32 %v489, %v632
        %v634 = vpop.f32.mrf.mxu0
        %v635 = vadd.f32 %v489, %v634
        %636 = vmatmul.bf16.gmra.mxu0 %v467
        %v637 = vpop.f32.mrf.mxu0
        %v638 = vadd.f32 %v489, %v637
        %v639 = vpop.f32.mrf.mxu0
        %v640 = vadd.f32 %v489, %v639
        %641 = vmatmul.bf16.gmra.mxu0 %v468
        %v642 = vpop.f32.mrf.mxu0
        %v643 = vadd.f32 %v489, %v642
        %v644 = vpop.f32.mrf.mxu0
        %v645 = vadd.f32 %v489, %v644
        %646 = vmatmul.bf16.gmra.mxu0 %v469
        %v647 = vpop.f32.mrf.mxu0
        %v648 = vadd.f32 %v489, %v647
        %v649 = vpop.f32.mrf.mxu0
        %v650 = vadd.f32 %v489, %v649
        %651 = vmatmul.bf16.gmra.mxu0 %v470
        %v652 = vpop.f32.mrf.mxu0
        %v653 = vadd.f32 %v489, %v652
        %v654 = vpop.f32.mrf.mxu0
        %v655 = vadd.f32 %v489, %v654
        %656 = vmatmul.bf16.gmra.mxu0 %v471
        %v657 = vpop.f32.mrf.mxu0
        %v658 = vadd.f32 %v489, %v657
        %v659 = vpop.f32.mrf.mxu0
        %v660 = vadd.f32 %v489, %v659
        %661 = vdwg.mxu0
        %662 = vmatpush.bf16.msra.mxu0 %v556
        %663 = vmatpush.bf16.msra.mxu0 %v554
        %664 = vmatpush.bf16.msra.mxu0 %v552
        %665 = vmatpush.bf16.msra.mxu0 %v550
        %666 = vmatpush.bf16.msra.mxu0 %v548
        %667 = vmatpush.bf16.msra.mxu0 %v546
        %668 = vmatpush.bf16.msra.mxu0 %v544
        %669 = vmatpush.bf16.msra.mxu0 %v542
        %670 = vmatmul.bf16.gmra.mxu0 %v456
        %v671 = vpop.f32.mrf.mxu0
        %v672 = vadd.f32 %v490, %v671
        %v673 = vpop.f32.mrf.mxu0
        %v674 = vadd.f32 %v490, %v673
        %675 = vmatmul.bf16.gmra.mxu0 %v457
        %v676 = vpop.f32.mrf.mxu0
        %v677 = vadd.f32 %v490, %v676
        %v678 = vpop.f32.mrf.mxu0
        %v679 = vadd.f32 %v490, %v678
        %680 = vmatmul.bf16.gmra.mxu0 %v458
        %v681 = vpop.f32.mrf.mxu0
        %v682 = vadd.f32 %v490, %v681
        %v683 = vpop.f32.mrf.mxu0
        %v684 = vadd.f32 %v490, %v683
        %685 = vmatmul.bf16.gmra.mxu0 %v459
        %v686 = vpop.f32.mrf.mxu0
        %v687 = vadd.f32 %v490, %v686
        %v688 = vpop.f32.mrf.mxu0
        %v689 = vadd.f32 %v490, %v688
        %690 = vmatmul.bf16.gmra.mxu0 %v460
        %v691 = vpop.f32.mrf.mxu0
        %v692 = vadd.f32 %v490, %v691
        %v693 = vpop.f32.mrf.mxu0
        %v694 = vadd.f32 %v490, %v693
        %695 = vmatmul.bf16.gmra.mxu0 %v461
        %v696 = vpop.f32.mrf.mxu0
        %v697 = vadd.f32 %v490, %v696
        %v698 = vpop.f32.mrf.mxu0
        %v699 = vadd.f32 %v490, %v698
        %700 = vmatmul.bf16.gmra.mxu0 %v462
        %v701 = vpop.f32.mrf.mxu0
        %v702 = vadd.f32 %v490, %v701
        %v703 = vpop.f32.mrf.mxu0
        %v704 = vadd.f32 %v490, %v703
        %705 = vmatmul.bf16.gmra.mxu0 %v463
        %v706 = vpop.f32.mrf.mxu0
        %v707 = vadd.f32 %v490, %v706
        %v708 = vpop.f32.mrf.mxu0
        %v709 = vadd.f32 %v490, %v708
        %710 = vmatmul.bf16.gmra.mxu0 %v464
        %v711 = vpop.f32.mrf.mxu0
        %v712 = vadd.f32 %v490, %v711
        %v713 = vpop.f32.mrf.mxu0
        %v714 = vadd.f32 %v490, %v713
        %715 = vmatmul.bf16.gmra.mxu0 %v465
        %v716 = vpop.f32.mrf.mxu0
        %v717 = vadd.f32 %v490, %v716
        %v718 = vpop.f32.mrf.mxu0
        %v719 = vadd.f32 %v490, %v718
        %720 = vmatmul.bf16.gmra.mxu0 %v466
        %v721 = vpop.f32.mrf.mxu0
        %v722 = vadd.f32 %v490, %v721
        %v723 = vpop.f32.mrf.mxu0
        %v724 = vadd.f32 %v490, %v723
        %725 = vmatmul.bf16.gmra.mxu0 %v467
        %v726 = vpop.f32.mrf.mxu0
        %v727 = vadd.f32 %v490, %v726
        %v728 = vpop.f32.mrf.mxu0
        %v729 = vadd.f32 %v490, %v728
        %730 = vmatmul.bf16.gmra.mxu0 %v468
        %v731 = vpop.f32.mrf.mxu0
        %v732 = vadd.f32 %v490, %v731
        %v733 = vpop.f32.mrf.mxu0
        %v734 = vadd.f32 %v490, %v733
        %735 = vmatmul.bf16.gmra.mxu0 %v469
        %v736 = vpop.f32.mrf.mxu0
        %v737 = vadd.f32 %v490, %v736
        %v738 = vpop.f32.mrf.mxu0
        %v739 = vadd.f32 %v490, %v738
        %740 = vmatmul.bf16.gmra.mxu0 %v470
        %v741 = vpop.f32.mrf.mxu0
        %v742 = vadd.f32 %v490, %v741
        %v743 = vpop.f32.mrf.mxu0
        %v744 = vadd.f32 %v490, %v743
        %745 = vmatmul.bf16.gmra.mxu0 %v471
        %v746 = vpop.f32.mrf.mxu0
        %v747 = vadd.f32 %v490, %v746
        %v748 = vpop.f32.mrf.mxu0
        %v749 = vadd.f32 %v490, %v748
        %750 = vdwg.mxu0
        %v751 = vmul.f32 %v583, %v583
        %v752 = vmul.f32 %v672, %v672
        %v753 = vmul.f32 %v585, %v585
        %v754 = vmul.f32 %v674, %v674
        %v755 = vmul.f32 %v588, %v588
        %v756 = vmul.f32 %v677, %v677
        %v757 = vmul.f32 %v590, %v590
        %v758 = vmul.f32 %v679, %v679
        %v759 = vmul.f32 %v593, %v593
        %v760 = vmul.f32 %v682, %v682
        %v761 = vmul.f32 %v595, %v595
        %v762 = vmul.f32 %v684, %v684
        %v763 = vmul.f32 %v598, %v598
        %v764 = vmul.f32 %v687, %v687
        %v765 = vmul.f32 %v600, %v600
        %v766 = vmul.f32 %v689, %v689
        %v767 = vmul.f32 %v603, %v603
        %v768 = vmul.f32 %v692, %v692
        %v769 = vmul.f32 %v605, %v605
        %v770 = vmul.f32 %v694, %v694
        %v771 = vmul.f32 %v608, %v608
        %v772 = vmul.f32 %v697, %v697
        %v773 = vmul.f32 %v610, %v610
        %v774 = vmul.f32 %v699, %v699
        %v775 = vmul.f32 %v613, %v613
        %v776 = vmul.f32 %v702, %v702
        %v777 = vmul.f32 %v615, %v615
        %v778 = vmul.f32 %v704, %v704
        %v779 = vmul.f32 %v618, %v618
        %v780 = vmul.f32 %v707, %v707
        %v781 = vmul.f32 %v620, %v620
        %v782 = vmul.f32 %v709, %v709
        %v783 = vmul.f32 %v623, %v623
        %v784 = vmul.f32 %v712, %v712
        %v785 = vmul.f32 %v625, %v625
        %v786 = vmul.f32 %v714, %v714
        %v787 = vmul.f32 %v628, %v628
        %v788 = vmul.f32 %v717, %v717
        %v789 = vmul.f32 %v630, %v630
        %v790 = vmul.f32 %v719, %v719
        %v791 = vmul.f32 %v633, %v633
        %v792 = vmul.f32 %v722, %v722
        %v793 = vmul.f32 %v635, %v635
        %v794 = vmul.f32 %v724, %v724
        %v795 = vmul.f32 %v638, %v638
        %v796 = vmul.f32 %v727, %v727
        %v797 = vmul.f32 %v640, %v640
        %v798 = vmul.f32 %v729, %v729
        %v799 = vmul.f32 %v643, %v643
        %v800 = vmul.f32 %v732, %v732
        %v801 = vmul.f32 %v645, %v645
        %v802 = vmul.f32 %v734, %v734
        %v803 = vmul.f32 %v648, %v648
        %v804 = vmul.f32 %v737, %v737
        %v805 = vmul.f32 %v650, %v650
        %v806 = vmul.f32 %v739, %v739
        %v807 = vmul.f32 %v653, %v653
        %v808 = vmul.f32 %v742, %v742
        %v809 = vmul.f32 %v655, %v655
        %v810 = vmul.f32 %v744, %v744
        %v811 = vmul.f32 %v658, %v658
        %v812 = vmul.f32 %v747, %v747
        %v813 = vmul.f32 %v660, %v660
        %v814 = vmul.f32 %v749, %v749
        %v815 = vmul.f32 %v583, %v751
        %v816 = vmul.f32 %v672, %v752
        %v817 = vmul.f32 %v585, %v753
        %v818 = vmul.f32 %v674, %v754
        %v819 = vmul.f32 %v588, %v755
        %v820 = vmul.f32 %v677, %v756
        %v821 = vmul.f32 %v590, %v757
        %v822 = vmul.f32 %v679, %v758
        %v823 = vmul.f32 %v593, %v759
        %v824 = vmul.f32 %v682, %v760
        %v825 = vmul.f32 %v595, %v761
        %v826 = vmul.f32 %v684, %v762
        %v827 = vmul.f32 %v598, %v763
        %v828 = vmul.f32 %v687, %v764
        %v829 = vmul.f32 %v600, %v765
        %v830 = vmul.f32 %v689, %v766
        %v831 = vmul.f32 %v603, %v767
        %v832 = vmul.f32 %v692, %v768
        %v833 = vmul.f32 %v605, %v769
        %v834 = vmul.f32 %v694, %v770
        %v835 = vmul.f32 %v608, %v771
        %v836 = vmul.f32 %v697, %v772
        %v837 = vmul.f32 %v610, %v773
        %v838 = vmul.f32 %v699, %v774
        %v839 = vmul.f32 %v613, %v775
        %v840 = vmul.f32 %v702, %v776
        %v841 = vmul.f32 %v615, %v777
        %v842 = vmul.f32 %v704, %v778
        %v843 = vmul.f32 %v618, %v779
        %v844 = vmul.f32 %v707, %v780
        %v845 = vmul.f32 %v620, %v781
        %v846 = vmul.f32 %v709, %v782
        %v847 = vmul.f32 %v623, %v783
        %v848 = vmul.f32 %v712, %v784
        %v849 = vmul.f32 %v625, %v785
        %v850 = vmul.f32 %v714, %v786
        %v851 = vmul.f32 %v628, %v787
        %v852 = vmul.f32 %v717, %v788
        %v853 = vmul.f32 %v630, %v789
        %v854 = vmul.f32 %v719, %v790
        %v855 = vmul.f32 %v633, %v791
        %v856 = vmul.f32 %v722, %v792
        %v857 = vmul.f32 %v635, %v793
        %v858 = vmul.f32 %v724, %v794
        %v859 = vmul.f32 %v638, %v795
        %v860 = vmul.f32 %v727, %v796
        %v861 = vmul.f32 %v640, %v797
        %v862 = vmul.f32 %v729, %v798
        %v863 = vmul.f32 %v643, %v799
        %v864 = vmul.f32 %v732, %v800
        %v865 = vmul.f32 %v645, %v801
        %v866 = vmul.f32 %v734, %v802
        %v867 = vmul.f32 %v648, %v803
        %v868 = vmul.f32 %v737, %v804
        %v869 = vmul.f32 %v650, %v805
        %v870 = vmul.f32 %v739, %v806
        %v871 = vmul.f32 %v653, %v807
        %v872 = vmul.f32 %v742, %v808
        %v873 = vmul.f32 %v655, %v809
        %v874 = vmul.f32 %v744, %v810
        %v875 = vmul.f32 %v658, %v811
        %v876 = vmul.f32 %v747, %v812
        %v877 = vmul.f32 %v660, %v813
        %v878 = vmul.f32 %v749, %v814
        %v879 = vmul.f32 %v815, 0.044715
        %v880 = vmul.f32 %v816, 0.044715
        %v881 = vmul.f32 %v817, 0.044715
        %v882 = vmul.f32 %v818, 0.044715
        %v883 = vmul.f32 %v819, 0.044715
        %v884 = vmul.f32 %v820, 0.044715
        %v885 = vmul.f32 %v821, 0.044715
        %v886 = vmul.f32 %v822, 0.044715
        %v887 = vmul.f32 %v823, 0.044715
        %v888 = vmul.f32 %v824, 0.044715
        %v889 = vmul.f32 %v825, 0.044715
        %v890 = vmul.f32 %v826, 0.044715
        %v891 = vmul.f32 %v827, 0.044715
        %v892 = vmul.f32 %v828, 0.044715
        %v893 = vmul.f32 %v829, 0.044715
        %v894 = vmul.f32 %v830, 0.044715
        %v895 = vmul.f32 %v831, 0.044715
        %v896 = vmul.f32 %v832, 0.044715
        %v897 = vmul.f32 %v833, 0.044715
        %v898 = vmul.f32 %v834, 0.044715
        %v899 = vmul.f32 %v835, 0.044715
        %v900 = vmul.f32 %v836, 0.044715
        %v901 = vmul.f32 %v837, 0.044715
        %v902 = vmul.f32 %v838, 0.044715
        %v903 = vmul.f32 %v839, 0.044715
        %v904 = vmul.f32 %v840, 0.044715
        %v905 = vmul.f32 %v841, 0.044715
        %v906 = vmul.f32 %v842, 0.044715
        %v907 = vmul.f32 %v843, 0.044715
        %v908 = vmul.f32 %v844, 0.044715
        %v909 = vmul.f32 %v845, 0.044715
        %v910 = vmul.f32 %v846, 0.044715
        %v911 = vmul.f32 %v847, 0.044715
        %v912 = vmul.f32 %v848, 0.044715
        %v913 = vmul.f32 %v849, 0.044715
        %v914 = vmul.f32 %v850, 0.044715
        %v915 = vmul.f32 %v851, 0.044715
        %v916 = vmul.f32 %v852, 0.044715
        %v917 = vmul.f32 %v853, 0.044715
        %v918 = vmul.f32 %v854, 0.044715
        %v919 = vmul.f32 %v855, 0.044715
        %v920 = vmul.f32 %v856, 0.044715
        %v921 = vmul.f32 %v857, 0.044715
        %v922 = vmul.f32 %v858, 0.044715
        %v923 = vmul.f32 %v859, 0.044715
        %v924 = vmul.f32 %v860, 0.044715
        %v925 = vmul.f32 %v861, 0.044715
        %v926 = vmul.f32 %v862, 0.044715
        %v927 = vmul.f32 %v863, 0.044715
        %v928 = vmul.f32 %v864, 0.044715
        %v929 = vmul.f32 %v865, 0.044715
        %v930 = vmul.f32 %v866, 0.044715
        %v931 = vmul.f32 %v867, 0.044715
        %v932 = vmul.f32 %v868, 0.044715
        %v933 = vmul.f32 %v869, 0.044715
        %v934 = vmul.f32 %v870, 0.044715
        %v935 = vmul.f32 %v871, 0.044715
        %v936 = vmul.f32 %v872, 0.044715
        %v937 = vmul.f32 %v873, 0.044715
        %v938 = vmul.f32 %v874, 0.044715
        %v939 = vmul.f32 %v875, 0.044715
        %v940 = vmul.f32 %v876, 0.044715
        %v941 = vmul.f32 %v877, 0.044715
        %v942 = vmul.f32 %v878, 0.044715
        %v943 = vadd.f32 %v583, %v879
        %v944 = vadd.f32 %v672, %v880
        %v945 = vadd.f32 %v585, %v881
        %v946 = vadd.f32 %v674, %v882
        %v947 = vadd.f32 %v588, %v883
        %v948 = vadd.f32 %v677, %v884
        %v949 = vadd.f32 %v590, %v885
        %v950 = vadd.f32 %v679, %v886
        %v951 = vadd.f32 %v593, %v887
        %v952 = vadd.f32 %v682, %v888
        %v953 = vadd.f32 %v595, %v889
        %v954 = vadd.f32 %v684, %v890
        %v955 = vadd.f32 %v598, %v891
        %v956 = vadd.f32 %v687, %v892
        %v957 = vadd.f32 %v600, %v893
        %v958 = vadd.f32 %v689, %v894
        %v959 = vadd.f32 %v603, %v895
        %v960 = vadd.f32 %v692, %v896
        %v961 = vadd.f32 %v605, %v897
        %v962 = vadd.f32 %v694, %v898
        %v963 = vadd.f32 %v608, %v899
        %v964 = vadd.f32 %v697, %v900
        %v965 = vadd.f32 %v610, %v901
        %v966 = vadd.f32 %v699, %v902
        %v967 = vadd.f32 %v613, %v903
        %v968 = vadd.f32 %v702, %v904
        %v969 = vadd.f32 %v615, %v905
        %v970 = vadd.f32 %v704, %v906
        %v971 = vadd.f32 %v618, %v907
        %v972 = vadd.f32 %v707, %v908
        %v973 = vadd.f32 %v620, %v909
        %v974 = vadd.f32 %v709, %v910
        %v975 = vadd.f32 %v623, %v911
        %v976 = vadd.f32 %v712, %v912
        %v977 = vadd.f32 %v625, %v913
        %v978 = vadd.f32 %v714, %v914
        %v979 = vadd.f32 %v628, %v915
        %v980 = vadd.f32 %v717, %v916
        %v981 = vadd.f32 %v630, %v917
        %v982 = vadd.f32 %v719, %v918
        %v983 = vadd.f32 %v633, %v919
        %v984 = vadd.f32 %v722, %v920
        %v985 = vadd.f32 %v635, %v921
        %v986 = vadd.f32 %v724, %v922
        %v987 = vadd.f32 %v638, %v923
        %v988 = vadd.f32 %v727, %v924
        %v989 = vadd.f32 %v640, %v925
        %v990 = vadd.f32 %v729, %v926
        %v991 = vadd.f32 %v643, %v927
        %v992 = vadd.f32 %v732, %v928
        %v993 = vadd.f32 %v645, %v929
        %v994 = vadd.f32 %v734, %v930
        %v995 = vadd.f32 %v648, %v931
        %v996 = vadd.f32 %v737, %v932
        %v997 = vadd.f32 %v650, %v933
        %v998 = vadd.f32 %v739, %v934
        %v999 = vadd.f32 %v653, %v935
        %v1000 = vadd.f32 %v742, %v936
        %v1001 = vadd.f32 %v655, %v937
        %v1002 = vadd.f32 %v744, %v938
        %v1003 = vadd.f32 %v658, %v939
        %v1004 = vadd.f32 %v747, %v940
        %v1005 = vadd.f32 %v660, %v941
        %v1006 = vadd.f32 %v749, %v942
        %v1007 = vmul.f32 %v943, 0.7978846
        %v1008 = vmul.f32 %v944, 0.7978846
        %v1009 = vmul.f32 %v945, 0.7978846
        %v1010 = vmul.f32 %v946, 0.7978846
        %v1011 = vmul.f32 %v947, 0.7978846
        %v1012 = vmul.f32 %v948, 0.7978846
        %v1013 = vmul.f32 %v949, 0.7978846
        %v1014 = vmul.f32 %v950, 0.7978846
        %v1015 = vmul.f32 %v951, 0.7978846
        %v1016 = vmul.f32 %v952, 0.7978846
        %v1017 = vmul.f32 %v953, 0.7978846
        %v1018 = vmul.f32 %v954, 0.7978846
        %v1019 = vmul.f32 %v955, 0.7978846
        %v1020 = vmul.f32 %v956, 0.7978846
        %v1021 = vmul.f32 %v957, 0.7978846
        %v1022 = vmul.f32 %v958, 0.7978846
        %v1023 = vmul.f32 %v959, 0.7978846
        %v1024 = vmul.f32 %v960, 0.7978846
        %v1025 = vmul.f32 %v961, 0.7978846
        %v1026 = vmul.f32 %v962, 0.7978846
        %v1027 = vmul.f32 %v963, 0.7978846
        %v1028 = vmul.f32 %v964, 0.7978846
        %v1029 = vmul.f32 %v965, 0.7978846
        %v1030 = vmul.f32 %v966, 0.7978846
        %v1031 = vmul.f32 %v967, 0.7978846
        %v1032 = vmul.f32 %v968, 0.7978846
        %v1033 = vmul.f32 %v969, 0.7978846
        %v1034 = vmul.f32 %v970, 0.7978846
        %v1035 = vmul.f32 %v971, 0.7978846
        %v1036 = vmul.f32 %v972, 0.7978846
        %v1037 = vmul.f32 %v973, 0.7978846
        %v1038 = vmul.f32 %v974, 0.7978846
        %v1039 = vmul.f32 %v975, 0.7978846
        %v1040 = vmul.f32 %v976, 0.7978846
        %v1041 = vmul.f32 %v977, 0.7978846
        %v1042 = vmul.f32 %v978, 0.7978846
        %v1043 = vmul.f32 %v979, 0.7978846
        %v1044 = vmul.f32 %v980, 0.7978846
        %v1045 = vmul.f32 %v981, 0.7978846
        %v1046 = vmul.f32 %v982, 0.7978846
        %v1047 = vmul.f32 %v983, 0.7978846
        %v1048 = vmul.f32 %v984, 0.7978846
        %v1049 = vmul.f32 %v985, 0.7978846
        %v1050 = vmul.f32 %v986, 0.7978846
        %v1051 = vmul.f32 %v987, 0.7978846
        %v1052 = vmul.f32 %v988, 0.7978846
        %v1053 = vmul.f32 %v989, 0.7978846
        %v1054 = vmul.f32 %v990, 0.7978846
        %v1055 = vmul.f32 %v991, 0.7978846
        %v1056 = vmul.f32 %v992, 0.7978846
        %v1057 = vmul.f32 %v993, 0.7978846
        %v1058 = vmul.f32 %v994, 0.7978846
        %v1059 = vmul.f32 %v995, 0.7978846
        %v1060 = vmul.f32 %v996, 0.7978846
        %v1061 = vmul.f32 %v997, 0.7978846
        %v1062 = vmul.f32 %v998, 0.7978846
        %v1063 = vmul.f32 %v999, 0.7978846
        %v1064 = vmul.f32 %v1000, 0.7978846
        %v1065 = vmul.f32 %v1001, 0.7978846
        %v1066 = vmul.f32 %v1002, 0.7978846
        %v1067 = vmul.f32 %v1003, 0.7978846
        %v1068 = vmul.f32 %v1004, 0.7978846
        %v1069 = vmul.f32 %v1005, 0.7978846
        %v1070 = vmul.f32 %v1006, 0.7978846
        %v1071 = vtanh.pop %v1007
        %v1072 = vtanh.pop %v1008
        %v1073 = vtanh.pop %v1009
        %v1074 = vtanh.pop %v1010
        %v1075 = vtanh.pop %v1011
        %v1076 = vtanh.pop %v1012
        %v1077 = vtanh.pop %v1013
        %v1078 = vtanh.pop %v1014
        %v1079 = vtanh.pop %v1015
        %v1080 = vtanh.pop %v1016
        %v1081 = vtanh.pop %v1017
        %v1082 = vtanh.pop %v1018
        %v1083 = vtanh.pop %v1019
        %v1084 = vtanh.pop %v1020
        %v1085 = vtanh.pop %v1021
        %v1086 = vtanh.pop %v1022
        %v1087 = vtanh.pop %v1023
        %v1088 = vtanh.pop %v1024
        %v1089 = vtanh.pop %v1025
        %v1090 = vtanh.pop %v1026
        %v1091 = vtanh.pop %v1027
        %v1092 = vtanh.pop %v1028
        %v1093 = vtanh.pop %v1029
        %v1094 = vtanh.pop %v1030
        %v1095 = vtanh.pop %v1031
        %v1096 = vtanh.pop %v1032
        %v1097 = vtanh.pop %v1033
        %v1098 = vtanh.pop %v1034
        %v1099 = vtanh.pop %v1035
        %v1100 = vtanh.pop %v1036
        %v1101 = vtanh.pop %v1037
        %v1102 = vtanh.pop %v1038
        %v1103 = vtanh.pop %v1039
        %v1104 = vtanh.pop %v1040
        %v1105 = vtanh.pop %v1041
        %v1106 = vtanh.pop %v1042
        %v1107 = vtanh.pop %v1043
        %v1108 = vtanh.pop %v1044
        %v1109 = vtanh.pop %v1045
        %v1110 = vtanh.pop %v1046
        %v1111 = vtanh.pop %v1047
        %v1112 = vtanh.pop %v1048
        %v1113 = vtanh.pop %v1049
        %v1114 = vtanh.pop %v1050
        %v1115 = vtanh.pop %v1051
        %v1116 = vtanh.pop %v1052
        %v1117 = vtanh.pop %v1053
        %v1118 = vtanh.pop %v1054
        %v1119 = vtanh.pop %v1055
        %v1120 = vtanh.pop %v1056
        %v1121 = vtanh.pop %v1057
        %v1122 = vtanh.pop %v1058
        %v1123 = vtanh.pop %v1059
        %v1124 = vtanh.pop %v1060
        %v1125 = vtanh.pop %v1061
        %v1126 = vtanh.pop %v1062
        %v1127 = vtanh.pop %v1063
        %v1128 = vtanh.pop %v1064
        %v1129 = vtanh.pop %v1065
        %v1130 = vtanh.pop %v1066
        %v1131 = vtanh.pop %v1067
        %v1132 = vtanh.pop %v1068
        %v1133 = vtanh.pop %v1069
        %v1134 = vtanh.pop %v1070
        %v1135 = vadd.f32 %v1071, 1.0
        %v1136 = vadd.f32 %v1072, 1.0
        %v1137 = vadd.f32 %v1073, 1.0
        %v1138 = vadd.f32 %v1074, 1.0
        %v1139 = vadd.f32 %v1075, 1.0
        %v1140 = vadd.f32 %v1076, 1.0
        %v1141 = vadd.f32 %v1077, 1.0
        %v1142 = vadd.f32 %v1078, 1.0
        %v1143 = vadd.f32 %v1079, 1.0
        %v1144 = vadd.f32 %v1080, 1.0
        %v1145 = vadd.f32 %v1081, 1.0
        %v1146 = vadd.f32 %v1082, 1.0
        %v1147 = vadd.f32 %v1083, 1.0
        %v1148 = vadd.f32 %v1084, 1.0
        %v1149 = vadd.f32 %v1085, 1.0
        %v1150 = vadd.f32 %v1086, 1.0
        %v1151 = vadd.f32 %v1087, 1.0
        %v1152 = vadd.f32 %v1088, 1.0
        %v1153 = vadd.f32 %v1089, 1.0
        %v1154 = vadd.f32 %v1090, 1.0
        %v1155 = vadd.f32 %v1091, 1.0
        %v1156 = vadd.f32 %v1092, 1.0
        %v1157 = vadd.f32 %v1093, 1.0
        %v1158 = vadd.f32 %v1094, 1.0
        %v1159 = vadd.f32 %v1095, 1.0
        %v1160 = vadd.f32 %v1096, 1.0
        %v1161 = vadd.f32 %v1097, 1.0
        %v1162 = vadd.f32 %v1098, 1.0
        %v1163 = vadd.f32 %v1099, 1.0
        %v1164 = vadd.f32 %v1100, 1.0
        %v1165 = vadd.f32 %v1101, 1.0
        %v1166 = vadd.f32 %v1102, 1.0
        %v1167 = vadd.f32 %v1103, 1.0
        %v1168 = vadd.f32 %v1104, 1.0
        %v1169 = vadd.f32 %v1105, 1.0
        %v1170 = vadd.f32 %v1106, 1.0
        %v1171 = vadd.f32 %v1107, 1.0
        %v1172 = vadd.f32 %v1108, 1.0
        %v1173 = vadd.f32 %v1109, 1.0
        %v1174 = vadd.f32 %v1110, 1.0
        %v1175 = vadd.f32 %v1111, 1.0
        %v1176 = vadd.f32 %v1112, 1.0
        %v1177 = vadd.f32 %v1113, 1.0
        %v1178 = vadd.f32 %v1114, 1.0
        %v1179 = vadd.f32 %v1115, 1.0
        %v1180 = vadd.f32 %v1116, 1.0
        %v1181 = vadd.f32 %v1117, 1.0
        %v1182 = vadd.f32 %v1118, 1.0
        %v1183 = vadd.f32 %v1119, 1.0
        %v1184 = vadd.f32 %v1120, 1.0
        %v1185 = vadd.f32 %v1121, 1.0
        %v1186 = vadd.f32 %v1122, 1.0
        %v1187 = vadd.f32 %v1123, 1.0
        %v1188 = vadd.f32 %v1124, 1.0
        %v1189 = vadd.f32 %v1125, 1.0
        %v1190 = vadd.f32 %v1126, 1.0
        %v1191 = vadd.f32 %v1127, 1.0
        %v1192 = vadd.f32 %v1128, 1.0
        %v1193 = vadd.f32 %v1129, 1.0
        %v1194 = vadd.f32 %v1130, 1.0
        %v1195 = vadd.f32 %v1131, 1.0
        %v1196 = vadd.f32 %v1132, 1.0
        %v1197 = vadd.f32 %v1133, 1.0
        %v1198 = vadd.f32 %v1134, 1.0
        %v1199 = vmul.f32 %v1135, 0.5
        %v1200 = vmul.f32 %v1136, 0.5
        %v1201 = vmul.f32 %v1137, 0.5
        %v1202 = vmul.f32 %v1138, 0.5
        %v1203 = vmul.f32 %v1139, 0.5
        %v1204 = vmul.f32 %v1140, 0.5
        %v1205 = vmul.f32 %v1141, 0.5
        %v1206 = vmul.f32 %v1142, 0.5
        %v1207 = vmul.f32 %v1143, 0.5
        %v1208 = vmul.f32 %v1144, 0.5
        %v1209 = vmul.f32 %v1145, 0.5
        %v1210 = vmul.f32 %v1146, 0.5
        %v1211 = vmul.f32 %v1147, 0.5
        %v1212 = vmul.f32 %v1148, 0.5
        %v1213 = vmul.f32 %v1149, 0.5
        %v1214 = vmul.f32 %v1150, 0.5
        %v1215 = vmul.f32 %v1151, 0.5
        %v1216 = vmul.f32 %v1152, 0.5
        %v1217 = vmul.f32 %v1153, 0.5
        %v1218 = vmul.f32 %v1154, 0.5
        %v1219 = vmul.f32 %v1155, 0.5
        %v1220 = vmul.f32 %v1156, 0.5
        %v1221 = vmul.f32 %v1157, 0.5
        %v1222 = vmul.f32 %v1158, 0.5
        %v1223 = vmul.f32 %v1159, 0.5
        %v1224 = vmul.f32 %v1160, 0.5
        %v1225 = vmul.f32 %v1161, 0.5
        %v1226 = vmul.f32 %v1162, 0.5
        %v1227 = vmul.f32 %v1163, 0.5
        %v1228 = vmul.f32 %v1164, 0.5
        %v1229 = vmul.f32 %v1165, 0.5
        %v1230 = vmul.f32 %v1166, 0.5
        %v1231 = vmul.f32 %v1167, 0.5
        %v1232 = vmul.f32 %v1168, 0.5
        %v1233 = vmul.f32 %v1169, 0.5
        %v1234 = vmul.f32 %v1170, 0.5
        %v1235 = vmul.f32 %v1171, 0.5
        %v1236 = vmul.f32 %v1172, 0.5
        %v1237 = vmul.f32 %v1173, 0.5
        %v1238 = vmul.f32 %v1174, 0.5
        %v1239 = vmul.f32 %v1175, 0.5
        %v1240 = vmul.f32 %v1176, 0.5
        %v1241 = vmul.f32 %v1177, 0.5
        %v1242 = vmul.f32 %v1178, 0.5
        %v1243 = vmul.f32 %v1179, 0.5
        %v1244 = vmul.f32 %v1180, 0.5
        %v1245 = vmul.f32 %v1181, 0.5
        %v1246 = vmul.f32 %v1182, 0.5
        %v1247 = vmul.f32 %v1183, 0.5
        %v1248 = vmul.f32 %v1184, 0.5
        %v1249 = vmul.f32 %v1185, 0.5
        %v1250 = vmul.f32 %v1186, 0.5
        %v1251 = vmul.f32 %v1187, 0.5
        %v1252 = vmul.f32 %v1188, 0.5
        %v1253 = vmul.f32 %v1189, 0.5
        %v1254 = vmul.f32 %v1190, 0.5
        %v1255 = vmul.f32 %v1191, 0.5
        %v1256 = vmul.f32 %v1192, 0.5
        %v1257 = vmul.f32 %v1193, 0.5
        %v1258 = vmul.f32 %v1194, 0.5
        %v1259 = vmul.f32 %v1195, 0.5
        %v1260 = vmul.f32 %v1196, 0.5
        %v1261 = vmul.f32 %v1197, 0.5
        %v1262 = vmul.f32 %v1198, 0.5
        %v1263 = vmul.f32 %v583, %v1199
        %v1264 = vmul.f32 %v672, %v1200
        %v1265 = vmul.f32 %v585, %v1201
        %v1266 = vmul.f32 %v674, %v1202
        %v1267 = vmul.f32 %v588, %v1203
        %v1268 = vmul.f32 %v677, %v1204
        %v1269 = vmul.f32 %v590, %v1205
        %v1270 = vmul.f32 %v679, %v1206
        %v1271 = vmul.f32 %v593, %v1207
        %v1272 = vmul.f32 %v682, %v1208
        %v1273 = vmul.f32 %v595, %v1209
        %v1274 = vmul.f32 %v684, %v1210
        %v1275 = vmul.f32 %v598, %v1211
        %v1276 = vmul.f32 %v687, %v1212
        %v1277 = vmul.f32 %v600, %v1213
        %v1278 = vmul.f32 %v689, %v1214
        %v1279 = vmul.f32 %v603, %v1215
        %v1280 = vmul.f32 %v692, %v1216
        %v1281 = vmul.f32 %v605, %v1217
        %v1282 = vmul.f32 %v694, %v1218
        %v1283 = vmul.f32 %v608, %v1219
        %v1284 = vmul.f32 %v697, %v1220
        %v1285 = vmul.f32 %v610, %v1221
        %v1286 = vmul.f32 %v699, %v1222
        %v1287 = vmul.f32 %v613, %v1223
        %v1288 = vmul.f32 %v702, %v1224
        %v1289 = vmul.f32 %v615, %v1225
        %v1290 = vmul.f32 %v704, %v1226
        %v1291 = vmul.f32 %v618, %v1227
        %v1292 = vmul.f32 %v707, %v1228
        %v1293 = vmul.f32 %v620, %v1229
        %v1294 = vmul.f32 %v709, %v1230
        %v1295 = vmul.f32 %v623, %v1231
        %v1296 = vmul.f32 %v712, %v1232
        %v1297 = vmul.f32 %v625, %v1233
        %v1298 = vmul.f32 %v714, %v1234
        %v1299 = vmul.f32 %v628, %v1235
        %v1300 = vmul.f32 %v717, %v1236
        %v1301 = vmul.f32 %v630, %v1237
        %v1302 = vmul.f32 %v719, %v1238
        %v1303 = vmul.f32 %v633, %v1239
        %v1304 = vmul.f32 %v722, %v1240
        %v1305 = vmul.f32 %v635, %v1241
        %v1306 = vmul.f32 %v724, %v1242
        %v1307 = vmul.f32 %v638, %v1243
        %v1308 = vmul.f32 %v727, %v1244
        %v1309 = vmul.f32 %v640, %v1245
        %v1310 = vmul.f32 %v729, %v1246
        %v1311 = vmul.f32 %v643, %v1247
        %v1312 = vmul.f32 %v732, %v1248
        %v1313 = vmul.f32 %v645, %v1249
        %v1314 = vmul.f32 %v734, %v1250
        %v1315 = vmul.f32 %v648, %v1251
        %v1316 = vmul.f32 %v737, %v1252
        %v1317 = vmul.f32 %v650, %v1253
        %v1318 = vmul.f32 %v739, %v1254
        %v1319 = vmul.f32 %v653, %v1255
        %v1320 = vmul.f32 %v742, %v1256
        %v1321 = vmul.f32 %v655, %v1257
        %v1322 = vmul.f32 %v744, %v1258
        %v1323 = vmul.f32 %v658, %v1259
        %v1324 = vmul.f32 %v747, %v1260
        %v1325 = vmul.f32 %v660, %v1261
        %v1326 = vmul.f32 %v749, %v1262
        %v1327 = vpack.c.bf16 %v1265, %v1263
        %v1328 = vpack.c.bf16 %v1266, %v1264
        %v1329 = vpack.c.bf16 %v1269, %v1267
        %v1330 = vpack.c.bf16 %v1270, %v1268
        %v1331 = vpack.c.bf16 %v1273, %v1271
        %v1332 = vpack.c.bf16 %v1274, %v1272
        %v1333 = vpack.c.bf16 %v1277, %v1275
        %v1334 = vpack.c.bf16 %v1278, %v1276
        %v1335 = vpack.c.bf16 %v1281, %v1279
        %v1336 = vpack.c.bf16 %v1282, %v1280
        %v1337 = vpack.c.bf16 %v1285, %v1283
        %v1338 = vpack.c.bf16 %v1286, %v1284
        %v1339 = vpack.c.bf16 %v1289, %v1287
        %v1340 = vpack.c.bf16 %v1290, %v1288
        %v1341 = vpack.c.bf16 %v1293, %v1291
        %v1342 = vpack.c.bf16 %v1294, %v1292
        %v1343 = vpack.c.bf16 %v1297, %v1295
        %v1344 = vpack.c.bf16 %v1298, %v1296
        %v1345 = vpack.c.bf16 %v1301, %v1299
        %v1346 = vpack.c.bf16 %v1302, %v1300
        %v1347 = vpack.c.bf16 %v1305, %v1303
        %v1348 = vpack.c.bf16 %v1306, %v1304
        %v1349 = vpack.c.bf16 %v1309, %v1307
        %v1350 = vpack.c.bf16 %v1310, %v1308
        %v1351 = vpack.c.bf16 %v1313, %v1311
        %v1352 = vpack.c.bf16 %v1314, %v1312
        %v1353 = vpack.c.bf16 %v1317, %v1315
        %v1354 = vpack.c.bf16 %v1318, %v1316
        %v1355 = vpack.c.bf16 %v1321, %v1319
        %v1356 = vpack.c.bf16 %v1322, %v1320
        %v1357 = vpack.c.bf16 %v1325, %v1323
        %v1358 = vpack.c.bf16 %v1326, %v1324
        %v1359 = vld [vmem:[#allocation8] sm:$0xff]
        %v1360 = vld [vmem:[#allocation8 + $0x8] sm:$0xff]
        %v1361 = vld [vmem:[#allocation8 + $0x10] sm:$0xff]
        %v1362 = vld [vmem:[#allocation8 + $0x18] sm:$0xff]
        %v1363 = vld [vmem:[#allocation8 + $0x20] sm:$0xff]
        %v1364 = vld [vmem:[#allocation8 + $0x28] sm:$0xff]
        %v1365 = vld [vmem:[#allocation8 + $0x30] sm:$0xff]
        %v1366 = vld [vmem:[#allocation8 + $0x38] sm:$0xff]
        %v1367 = vld [vmem:[#allocation8 + $0x40] sm:$0xff]
        %v1368 = vld [vmem:[#allocation8 + $0x48] sm:$0xff]
        %v1369 = vld [vmem:[#allocation8 + $0x50] sm:$0xff]
        %v1370 = vld [vmem:[#allocation8 + $0x58] sm:$0xff]
        %v1371 = vld [vmem:[#allocation8 + $0x60] sm:$0xff]
        %v1372 = vld [vmem:[#allocation8 + $0x68] sm:$0xff]
        %v1373 = vld [vmem:[#allocation8 + $0x70] sm:$0xff]
        %v1374 = vld [vmem:[#allocation8 + $0x78] sm:$0xff]
        %v1375 = vld [vmem:[#allocation8 + $0x80] sm:$0xff]
        %v1376 = vld [vmem:[#allocation8 + $0x88] sm:$0xff]
        %v1377 = vld [vmem:[#allocation8 + $0x90] sm:$0xff]
        %v1378 = vld [vmem:[#allocation8 + $0x98] sm:$0xff]
        %v1379 = vld [vmem:[#allocation8 + $0xa0] sm:$0xff]
        %v1380 = vld [vmem:[#allocation8 + $0xa8] sm:$0xff]
        %v1381 = vld [vmem:[#allocation8 + $0xb0] sm:$0xff]
        %v1382 = vld [vmem:[#allocation8 + $0xb8] sm:$0xff]
        %v1383 = vld [vmem:[#allocation8 + $0xc0] sm:$0xff]
        %v1384 = vld [vmem:[#allocation8 + $0xc8] sm:$0xff]
        %v1385 = vld [vmem:[#allocation8 + $0xd0] sm:$0xff]
        %v1386 = vld [vmem:[#allocation8 + $0xd8] sm:$0xff]
        %v1387 = vld [vmem:[#allocation8 + $0xe0] sm:$0xff]
        %v1388 = vld [vmem:[#allocation8 + $0xe8] sm:$0xff]
        %v1389 = vld [vmem:[#allocation8 + $0xf0] sm:$0xff]
        %v1390 = vld [vmem:[#allocation8 + $0xf8] sm:$0xff]
        %v1392 = vperm.slane %v452, 0
        %v1393 = vperm.slane %v452, 1
        %v1428 = vunpack.c.l.b16 %v1359
        %v1429 = vunpack.c.h.b16 %v1359
        %v1430 = vunpack.c.l.b16 %v1360
        %v1431 = vunpack.c.h.b16 %v1360
        %v1432 = vunpack.c.l.b16 %v1361
        %v1433 = vunpack.c.h.b16 %v1361
        %v1434 = vunpack.c.l.b16 %v1362
        %v1435 = vunpack.c.h.b16 %v1362
        %v1436 = vunpack.c.l.b16 %v1363
        %v1437 = vunpack.c.h.b16 %v1363
        %v1438 = vunpack.c.l.b16 %v1364
        %v1439 = vunpack.c.h.b16 %v1364
        %v1440 = vunpack.c.l.b16 %v1365
        %v1441 = vunpack.c.h.b16 %v1365
        %v1442 = vunpack.c.l.b16 %v1366
        %v1443 = vunpack.c.h.b16 %v1366
        %v1444 = vunpack.c.l.b16 %v1367
        %v1445 = vunpack.c.h.b16 %v1367
        %v1446 = vunpack.c.l.b16 %v1368
        %v1447 = vunpack.c.h.b16 %v1368
        %v1448 = vunpack.c.l.b16 %v1369
        %v1449 = vunpack.c.h.b16 %v1369
        %v1450 = vunpack.c.l.b16 %v1370
        %v1451 = vunpack.c.h.b16 %v1370
        %v1452 = vunpack.c.l.b16 %v1371
        %v1453 = vunpack.c.h.b16 %v1371
        %v1454 = vunpack.c.l.b16 %v1372
        %v1455 = vunpack.c.h.b16 %v1372
        %v1456 = vunpack.c.l.b16 %v1373
        %v1457 = vunpack.c.h.b16 %v1373
        %v1458 = vunpack.c.l.b16 %v1374
        %v1459 = vunpack.c.h.b16 %v1374
        %v1460 = vunpack.c.l.b16 %v1375
        %v1461 = vunpack.c.h.b16 %v1375
        %v1462 = vunpack.c.l.b16 %v1376
        %v1463 = vunpack.c.h.b16 %v1376
        %v1464 = vunpack.c.l.b16 %v1377
        %v1465 = vunpack.c.h.b16 %v1377
        %v1466 = vunpack.c.l.b16 %v1378
        %v1467 = vunpack.c.h.b16 %v1378
        %v1468 = vunpack.c.l.b16 %v1379
        %v1469 = vunpack.c.h.b16 %v1379
        %v1470 = vunpack.c.l.b16 %v1380
        %v1471 = vunpack.c.h.b16 %v1380
        %v1472 = vunpack.c.l.b16 %v1381
        %v1473 = vunpack.c.h.b16 %v1381
        %v1474 = vunpack.c.l.b16 %v1382
        %v1475 = vunpack.c.h.b16 %v1382
        %v1476 = vunpack.c.l.b16 %v1383
        %v1477 = vunpack.c.h.b16 %v1383
        %v1478 = vunpack.c.l.b16 %v1384
        %v1479 = vunpack.c.h.b16 %v1384
        %v1480 = vunpack.c.l.b16 %v1385
        %v1481 = vunpack.c.h.b16 %v1385
        %v1482 = vunpack.c.l.b16 %v1386
        %v1483 = vunpack.c.h.b16 %v1386
        %v1484 = vunpack.c.l.b16 %v1387
        %v1485 = vunpack.c.h.b16 %v1387
        %v1486 = vunpack.c.l.b16 %v1388
        %v1487 = vunpack.c.h.b16 %v1388
        %v1488 = vunpack.c.l.b16 %v1389
        %v1489 = vunpack.c.h.b16 %v1389
        %v1490 = vunpack.c.l.b16 %v1390
        %v1491 = vunpack.c.h.b16 %v1390
        %v1492 = vpack.c.b16 %v1430, %v1428
        %v1493 = vpack.c.b16 %v1431, %v1429
        %v1494 = vpack.c.b16 %v1434, %v1432
        %v1495 = vpack.c.b16 %v1435, %v1433
        %v1496 = vpack.c.b16 %v1438, %v1436
        %v1497 = vpack.c.b16 %v1439, %v1437
        %v1498 = vpack.c.b16 %v1442, %v1440
        %v1499 = vpack.c.b16 %v1443, %v1441
        %v1500 = vpack.c.b16 %v1446, %v1444
        %v1501 = vpack.c.b16 %v1447, %v1445
        %v1502 = vpack.c.b16 %v1450, %v1448
        %v1503 = vpack.c.b16 %v1451, %v1449
        %v1504 = vpack.c.b16 %v1454, %v1452
        %v1505 = vpack.c.b16 %v1455, %v1453
        %v1506 = vpack.c.b16 %v1458, %v1456
        %v1507 = vpack.c.b16 %v1459, %v1457
        %v1508 = vpack.c.b16 %v1462, %v1460
        %v1509 = vpack.c.b16 %v1463, %v1461
        %v1510 = vpack.c.b16 %v1466, %v1464
        %v1511 = vpack.c.b16 %v1467, %v1465
        %v1512 = vpack.c.b16 %v1470, %v1468
        %v1513 = vpack.c.b16 %v1471, %v1469
        %v1514 = vpack.c.b16 %v1474, %v1472
        %v1515 = vpack.c.b16 %v1475, %v1473
        %v1516 = vpack.c.b16 %v1478, %v1476
        %v1517 = vpack.c.b16 %v1479, %v1477
        %v1518 = vpack.c.b16 %v1482, %v1480
        %v1519 = vpack.c.b16 %v1483, %v1481
        %v1520 = vpack.c.b16 %v1486, %v1484
        %v1521 = vpack.c.b16 %v1487, %v1485
        %v1522 = vpack.c.b16 %v1490, %v1488
        %v1523 = vpack.c.b16 %v1491, %v1489
        %1556 = vmatpush.bf16.msra.mxu0 %v1506
        %1557 = vmatpush.bf16.msra.mxu0 %v1504
        %1558 = vmatpush.bf16.msra.mxu0 %v1502
        %1559 = vmatpush.bf16.msra.mxu0 %v1500
        %1560 = vmatpush.bf16.msra.mxu0 %v1498
        %1561 = vmatpush.bf16.msra.mxu0 %v1496
        %1562 = vmatpush.bf16.msra.mxu0 %v1494
        %1563 = vmatpush.bf16.msra.mxu0 %v1492
        %1564 = vmatmul.bf16.gmra.mxu0 %v1327
        %v1565 = vpop.f32.mrf.mxu0
        %v1566 = vadd.f32 %v1392, %v1565
        %v1567 = vpop.f32.mrf.mxu0
        %v1568 = vadd.f32 %v1392, %v1567
        %1569 = vmatmul.bf16.gmra.mxu0 %v1329
        %v1570 = vpop.f32.mrf.mxu0
        %v1571 = vadd.f32 %v1392, %v1570
        %v1572 = vpop.f32.mrf.mxu0
        %v1573 = vadd.f32 %v1392, %v1572
        %1574 = vmatmul.bf16.gmra.mxu0 %v1331
        %v1575 = vpop.f32.mrf.mxu0
        %v1576 = vadd.f32 %v1392, %v1575
        %v1577 = vpop.f32.mrf.mxu0
        %v1578 = vadd.f32 %v1392, %v1577
        %1579 = vmatmul.bf16.gmra.mxu0 %v1333
        %v1580 = vpop.f32.mrf.mxu0
        %v1581 = vadd.f32 %v1392, %v1580
        %v1582 = vpop.f32.mrf.mxu0
        %v1583 = vadd.f32 %v1392, %v1582
        %1584 = vmatmul.bf16.gmra.mxu0 %v1335
        %v1585 = vpop.f32.mrf.mxu0
        %v1586 = vadd.f32 %v1392, %v1585
        %v1587 = vpop.f32.mrf.mxu0
        %v1588 = vadd.f32 %v1392, %v1587
        %1589 = vmatmul.bf16.gmra.mxu0 %v1337
        %v1590 = vpop.f32.mrf.mxu0
        %v1591 = vadd.f32 %v1392, %v1590
        %v1592 = vpop.f32.mrf.mxu0
        %v1593 = vadd.f32 %v1392, %v1592
        %1594 = vmatmul.bf16.gmra.mxu0 %v1339
        %v1595 = vpop.f32.mrf.mxu0
        %v1596 = vadd.f32 %v1392, %v1595
        %v1597 = vpop.f32.mrf.mxu0
        %v1598 = vadd.f32 %v1392, %v1597
        %1599 = vmatmul.bf16.gmra.mxu0 %v1341
        %v1600 = vpop.f32.mrf.mxu0
        %v1601 = vadd.f32 %v1392, %v1600
        %v1602 = vpop.f32.mrf.mxu0
        %v1603 = vadd.f32 %v1392, %v1602
        %1604 = vmatmul.bf16.gmra.mxu0 %v1343
        %v1605 = vpop.f32.mrf.mxu0
        %v1606 = vadd.f32 %v1392, %v1605
        %v1607 = vpop.f32.mrf.mxu0
        %v1608 = vadd.f32 %v1392, %v1607
        %1609 = vmatmul.bf16.gmra.mxu0 %v1345
        %v1610 = vpop.f32.mrf.mxu0
        %v1611 = vadd.f32 %v1392, %v1610
        %v1612 = vpop.f32.mrf.mxu0
        %v1613 = vadd.f32 %v1392, %v1612
        %1614 = vmatmul.bf16.gmra.mxu0 %v1347
        %v1615 = vpop.f32.mrf.mxu0
        %v1616 = vadd.f32 %v1392, %v1615
        %v1617 = vpop.f32.mrf.mxu0
        %v1618 = vadd.f32 %v1392, %v1617
        %1619 = vmatmul.bf16.gmra.mxu0 %v1349
        %v1620 = vpop.f32.mrf.mxu0
        %v1621 = vadd.f32 %v1392, %v1620
        %v1622 = vpop.f32.mrf.mxu0
        %v1623 = vadd.f32 %v1392, %v1622
        %1624 = vmatmul.bf16.gmra.mxu0 %v1351
        %v1625 = vpop.f32.mrf.mxu0
        %v1626 = vadd.f32 %v1392, %v1625
        %v1627 = vpop.f32.mrf.mxu0
        %v1628 = vadd.f32 %v1392, %v1627
        %1629 = vmatmul.bf16.gmra.mxu0 %v1353
        %v1630 = vpop.f32.mrf.mxu0
        %v1631 = vadd.f32 %v1392, %v1630
        %v1632 = vpop.f32.mrf.mxu0
        %v1633 = vadd.f32 %v1392, %v1632
        %1634 = vmatmul.bf16.gmra.mxu0 %v1355
        %v1635 = vpop.f32.mrf.mxu0
        %v1636 = vadd.f32 %v1392, %v1635
        %v1637 = vpop.f32.mrf.mxu0
        %v1638 = vadd.f32 %v1392, %v1637
        %1639 = vmatmul.bf16.gmra.mxu0 %v1357
        %v1640 = vpop.f32.mrf.mxu0
        %v1641 = vadd.f32 %v1392, %v1640
        %v1642 = vpop.f32.mrf.mxu0
        %v1643 = vadd.f32 %v1392, %v1642
        %1644 = vdwg.mxu0
        %1645 = vmatpush.bf16.msra.mxu0 %v1522
        %1646 = vmatpush.bf16.msra.mxu0 %v1520
        %1647 = vmatpush.bf16.msra.mxu0 %v1518
        %1648 = vmatpush.bf16.msra.mxu0 %v1516
        %1649 = vmatpush.bf16.msra.mxu0 %v1514
        %1650 = vmatpush.bf16.msra.mxu0 %v1512
        %1651 = vmatpush.bf16.msra.mxu0 %v1510
        %1652 = vmatpush.bf16.msra.mxu0 %v1508
        %1653 = vmatmul.bf16.gmra.mxu0 %v1328
        %v1654 = vpop.f32.mrf.mxu0
        %v1655 = vadd.f32 %v1566, %v1654
        %v1656 = vpop.f32.mrf.mxu0
        %v1657 = vadd.f32 %v1568, %v1656
        %1658 = vmatmul.bf16.gmra.mxu0 %v1330
        %v1659 = vpop.f32.mrf.mxu0
        %v1660 = vadd.f32 %v1571, %v1659
        %v1661 = vpop.f32.mrf.mxu0
        %v1662 = vadd.f32 %v1573, %v1661
        %1663 = vmatmul.bf16.gmra.mxu0 %v1332
        %v1664 = vpop.f32.mrf.mxu0
        %v1665 = vadd.f32 %v1576, %v1664
        %v1666 = vpop.f32.mrf.mxu0
        %v1667 = vadd.f32 %v1578, %v1666
        %1668 = vmatmul.bf16.gmra.mxu0 %v1334
        %v1669 = vpop.f32.mrf.mxu0
        %v1670 = vadd.f32 %v1581, %v1669
        %v1671 = vpop.f32.mrf.mxu0
        %v1672 = vadd.f32 %v1583, %v1671
        %1673 = vmatmul.bf16.gmra.mxu0 %v1336
        %v1674 = vpop.f32.mrf.mxu0
        %v1675 = vadd.f32 %v1586, %v1674
        %v1676 = vpop.f32.mrf.mxu0
        %v1677 = vadd.f32 %v1588, %v1676
        %1678 = vmatmul.bf16.gmra.mxu0 %v1338
        %v1679 = vpop.f32.mrf.mxu0
        %v1680 = vadd.f32 %v1591, %v1679
        %v1681 = vpop.f32.mrf.mxu0
        %v1682 = vadd.f32 %v1593, %v1681
        %1683 = vmatmul.bf16.gmra.mxu0 %v1340
        %v1684 = vpop.f32.mrf.mxu0
        %v1685 = vadd.f32 %v1596, %v1684
        %v1686 = vpop.f32.mrf.mxu0
        %v1687 = vadd.f32 %v1598, %v1686
        %1688 = vmatmul.bf16.gmra.mxu0 %v1342
        %v1689 = vpop.f32.mrf.mxu0
        %v1690 = vadd.f32 %v1601, %v1689
        %v1691 = vpop.f32.mrf.mxu0
        %v1692 = vadd.f32 %v1603, %v1691
        %1693 = vmatmul.bf16.gmra.mxu0 %v1344
        %v1694 = vpop.f32.mrf.mxu0
        %v1695 = vadd.f32 %v1606, %v1694
        %v1696 = vpop.f32.mrf.mxu0
        %v1697 = vadd.f32 %v1608, %v1696
        %1698 = vmatmul.bf16.gmra.mxu0 %v1346
        %v1699 = vpop.f32.mrf.mxu0
        %v1700 = vadd.f32 %v1611, %v1699
        %v1701 = vpop.f32.mrf.mxu0
        %v1702 = vadd.f32 %v1613, %v1701
        %1703 = vmatmul.bf16.gmra.mxu0 %v1348
        %v1704 = vpop.f32.mrf.mxu0
        %v1705 = vadd.f32 %v1616, %v1704
        %v1706 = vpop.f32.mrf.mxu0
        %v1707 = vadd.f32 %v1618, %v1706
        %1708 = vmatmul.bf16.gmra.mxu0 %v1350
        %v1709 = vpop.f32.mrf.mxu0
        %v1710 = vadd.f32 %v1621, %v1709
        %v1711 = vpop.f32.mrf.mxu0
        %v1712 = vadd.f32 %v1623, %v1711
        %1713 = vmatmul.bf16.gmra.mxu0 %v1352
        %v1714 = vpop.f32.mrf.mxu0
        %v1715 = vadd.f32 %v1626, %v1714
        %v1716 = vpop.f32.mrf.mxu0
        %v1717 = vadd.f32 %v1628, %v1716
        %1718 = vmatmul.bf16.gmra.mxu0 %v1354
        %v1719 = vpop.f32.mrf.mxu0
        %v1720 = vadd.f32 %v1631, %v1719
        %v1721 = vpop.f32.mrf.mxu0
        %v1722 = vadd.f32 %v1633, %v1721
        %1723 = vmatmul.bf16.gmra.mxu0 %v1356
        %v1724 = vpop.f32.mrf.mxu0
        %v1725 = vadd.f32 %v1636, %v1724
        %v1726 = vpop.f32.mrf.mxu0
        %v1727 = vadd.f32 %v1638, %v1726
        %1728 = vmatmul.bf16.gmra.mxu0 %v1358
        %v1729 = vpop.f32.mrf.mxu0
        %v1730 = vadd.f32 %v1641, %v1729
        %v1731 = vpop.f32.mrf.mxu0
        %v1732 = vadd.f32 %v1643, %v1731
        %1733 = vdwg.mxu0
        %1734 = vmatpush.bf16.msra.mxu0 %v1507
        %1735 = vmatpush.bf16.msra.mxu0 %v1505
        %1736 = vmatpush.bf16.msra.mxu0 %v1503
        %1737 = vmatpush.bf16.msra.mxu0 %v1501
        %1738 = vmatpush.bf16.msra.mxu0 %v1499
        %1739 = vmatpush.bf16.msra.mxu0 %v1497
        %1740 = vmatpush.bf16.msra.mxu0 %v1495
        %1741 = vmatpush.bf16.msra.mxu0 %v1493
        %1742 = vmatmul.bf16.gmra.mxu0 %v1327
        %v1743 = vpop.f32.mrf.mxu0
        %v1744 = vadd.f32 %v1393, %v1743
        %v1745 = vpop.f32.mrf.mxu0
        %v1746 = vadd.f32 %v1393, %v1745
        %1747 = vmatmul.bf16.gmra.mxu0 %v1329
        %v1748 = vpop.f32.mrf.mxu0
        %v1749 = vadd.f32 %v1393, %v1748
        %v1750 = vpop.f32.mrf.mxu0
        %v1751 = vadd.f32 %v1393, %v1750
        %1752 = vmatmul.bf16.gmra.mxu0 %v1331
        %v1753 = vpop.f32.mrf.mxu0
        %v1754 = vadd.f32 %v1393, %v1753
        %v1755 = vpop.f32.mrf.mxu0
        %v1756 = vadd.f32 %v1393, %v1755
        %1757 = vmatmul.bf16.gmra.mxu0 %v1333
        %v1758 = vpop.f32.mrf.mxu0
        %v1759 = vadd.f32 %v1393, %v1758
        %v1760 = vpop.f32.mrf.mxu0
        %v1761 = vadd.f32 %v1393, %v1760
        %1762 = vmatmul.bf16.gmra.mxu0 %v1335
        %v1763 = vpop.f32.mrf.mxu0
        %v1764 = vadd.f32 %v1393, %v1763
        %v1765 = vpop.f32.mrf.mxu0
        %v1766 = vadd.f32 %v1393, %v1765
        %1767 = vmatmul.bf16.gmra.mxu0 %v1337
        %v1768 = vpop.f32.mrf.mxu0
        %v1769 = vadd.f32 %v1393, %v1768
        %v1770 = vpop.f32.mrf.mxu0
        %v1771 = vadd.f32 %v1393, %v1770
        %1772 = vmatmul.bf16.gmra.mxu0 %v1339
        %v1773 = vpop.f32.mrf.mxu0
        %v1774 = vadd.f32 %v1393, %v1773
        %v1775 = vpop.f32.mrf.mxu0
        %v1776 = vadd.f32 %v1393, %v1775
        %1777 = vmatmul.bf16.gmra.mxu0 %v1341
        %v1778 = vpop.f32.mrf.mxu0
        %v1779 = vadd.f32 %v1393, %v1778
        %v1780 = vpop.f32.mrf.mxu0
        %v1781 = vadd.f32 %v1393, %v1780
        %1782 = vmatmul.bf16.gmra.mxu0 %v1343
        %v1783 = vpop.f32.mrf.mxu0
        %v1784 = vadd.f32 %v1393, %v1783
        %v1785 = vpop.f32.mrf.mxu0
        %v1786 = vadd.f32 %v1393, %v1785
        %1787 = vmatmul.bf16.gmra.mxu0 %v1345
        %v1788 = vpop.f32.mrf.mxu0
        %v1789 = vadd.f32 %v1393, %v1788
        %v1790 = vpop.f32.mrf.mxu0
        %v1791 = vadd.f32 %v1393, %v1790
        %1792 = vmatmul.bf16.gmra.mxu0 %v1347
        %v1793 = vpop.f32.mrf.mxu0
        %v1794 = vadd.f32 %v1393, %v1793
        %v1795 = vpop.f32.mrf.mxu0
        %v1796 = vadd.f32 %v1393, %v1795
        %1797 = vmatmul.bf16.gmra.mxu0 %v1349
        %v1798 = vpop.f32.mrf.mxu0
        %v1799 = vadd.f32 %v1393, %v1798
        %v1800 = vpop.f32.mrf.mxu0
        %v1801 = vadd.f32 %v1393, %v1800
        %1802 = vmatmul.bf16.gmra.mxu0 %v1351
        %v1803 = vpop.f32.mrf.mxu0
        %v1804 = vadd.f32 %v1393, %v1803
        %v1805 = vpop.f32.mrf.mxu0
        %v1806 = vadd.f32 %v1393, %v1805
        %1807 = vmatmul.bf16.gmra.mxu0 %v1353
        %v1808 = vpop.f32.mrf.mxu0
        %v1809 = vadd.f32 %v1393, %v1808
        %v1810 = vpop.f32.mrf.mxu0
        %v1811 = vadd.f32 %v1393, %v1810
        %1812 = vmatmul.bf16.gmra.mxu0 %v1355
        %v1813 = vpop.f32.mrf.mxu0
        %v1814 = vadd.f32 %v1393, %v1813
        %v1815 = vpop.f32.mrf.mxu0
        %v1816 = vadd.f32 %v1393, %v1815
        %1817 = vmatmul.bf16.gmra.mxu0 %v1357
        %v1818 = vpop.f32.mrf.mxu0
        %v1819 = vadd.f32 %v1393, %v1818
        %v1820 = vpop.f32.mrf.mxu0
        %v1821 = vadd.f32 %v1393, %v1820
        %1822 = vdwg.mxu0
        %1823 = vmatpush.bf16.msra.mxu0 %v1523
        %1824 = vmatpush.bf16.msra.mxu0 %v1521
        %1825 = vmatpush.bf16.msra.mxu0 %v1519
        %1826 = vmatpush.bf16.msra.mxu0 %v1517
        %1827 = vmatpush.bf16.msra.mxu0 %v1515
        %1828 = vmatpush.bf16.msra.mxu0 %v1513
        %1829 = vmatpush.bf16.msra.mxu0 %v1511
        %1830 = vmatpush.bf16.msra.mxu0 %v1509
        %1831 = vmatmul.bf16.gmra.mxu0 %v1328
        %v1832 = vpop.f32.mrf.mxu0
        %v1833 = vadd.f32 %v1744, %v1832
        %v1834 = vpop.f32.mrf.mxu0
        %v1835 = vadd.f32 %v1746, %v1834
        %1836 = vmatmul.bf16.gmra.mxu0 %v1330
        %v1837 = vpop.f32.mrf.mxu0
        %v1838 = vadd.f32 %v1749, %v1837
        %v1839 = vpop.f32.mrf.mxu0
        %v1840 = vadd.f32 %v1751, %v1839
        %1841 = vmatmul.bf16.gmra.mxu0 %v1332
        %v1842 = vpop.f32.mrf.mxu0
        %v1843 = vadd.f32 %v1754, %v1842
        %v1844 = vpop.f32.mrf.mxu0
        %v1845 = vadd.f32 %v1756, %v1844
        %1846 = vmatmul.bf16.gmra.mxu0 %v1334
        %v1847 = vpop.f32.mrf.mxu0
        %v1848 = vadd.f32 %v1759, %v1847
        %v1849 = vpop.f32.mrf.mxu0
        %v1850 = vadd.f32 %v1761, %v1849
        %1851 = vmatmul.bf16.gmra.mxu0 %v1336
        %v1852 = vpop.f32.mrf.mxu0
        %v1853 = vadd.f32 %v1764, %v1852
        %v1854 = vpop.f32.mrf.mxu0
        %v1855 = vadd.f32 %v1766, %v1854
        %1856 = vmatmul.bf16.gmra.mxu0 %v1338
        %v1857 = vpop.f32.mrf.mxu0
        %v1858 = vadd.f32 %v1769, %v1857
        %v1859 = vpop.f32.mrf.mxu0
        %v1860 = vadd.f32 %v1771, %v1859
        %1861 = vmatmul.bf16.gmra.mxu0 %v1340
        %v1862 = vpop.f32.mrf.mxu0
        %v1863 = vadd.f32 %v1774, %v1862
        %v1864 = vpop.f32.mrf.mxu0
        %v1865 = vadd.f32 %v1776, %v1864
        %1866 = vmatmul.bf16.gmra.mxu0 %v1342
        %v1867 = vpop.f32.mrf.mxu0
        %v1868 = vadd.f32 %v1779, %v1867
        %v1869 = vpop.f32.mrf.mxu0
        %v1870 = vadd.f32 %v1781, %v1869
        %1871 = vmatmul.bf16.gmra.mxu0 %v1344
        %v1872 = vpop.f32.mrf.mxu0
        %v1873 = vadd.f32 %v1784, %v1872
        %v1874 = vpop.f32.mrf.mxu0
        %v1875 = vadd.f32 %v1786, %v1874
        %1876 = vmatmul.bf16.gmra.mxu0 %v1346
        %v1877 = vpop.f32.mrf.mxu0
        %v1878 = vadd.f32 %v1789, %v1877
        %v1879 = vpop.f32.mrf.mxu0
        %v1880 = vadd.f32 %v1791, %v1879
        %1881 = vmatmul.bf16.gmra.mxu0 %v1348
        %v1882 = vpop.f32.mrf.mxu0
        %v1883 = vadd.f32 %v1794, %v1882
        %v1884 = vpop.f32.mrf.mxu0
        %v1885 = vadd.f32 %v1796, %v1884
        %1886 = vmatmul.bf16.gmra.mxu0 %v1350
        %v1887 = vpop.f32.mrf.mxu0
        %v1888 = vadd.f32 %v1799, %v1887
        %v1889 = vpop.f32.mrf.mxu0
        %v1890 = vadd.f32 %v1801, %v1889
        %1891 = vmatmul.bf16.gmra.mxu0 %v1352
        %v1892 = vpop.f32.mrf.mxu0
        %v1893 = vadd.f32 %v1804, %v1892
        %v1894 = vpop.f32.mrf.mxu0
        %v1895 = vadd.f32 %v1806, %v1894
        %1896 = vmatmul.bf16.gmra.mxu0 %v1354
        %v1897 = vpop.f32.mrf.mxu0
        %v1898 = vadd.f32 %v1809, %v1897
        %v1899 = vpop.f32.mrf.mxu0
        %v1900 = vadd.f32 %v1811, %v1899
        %1901 = vmatmul.bf16.gmra.mxu0 %v1356
        %v1902 = vpop.f32.mrf.mxu0
        %v1903 = vadd.f32 %v1814, %v1902
        %v1904 = vpop.f32.mrf.mxu0
        %v1905 = vadd.f32 %v1816, %v1904
        %1906 = vmatmul.bf16.gmra.mxu0 %v1358
        %v1907 = vpop.f32.mrf.mxu0
        %v1908 = vadd.f32 %v1819, %v1907
        %v1909 = vpop.f32.mrf.mxu0
        %v1910 = vadd.f32 %v1821, %v1909
        %1911 = vdwg.mxu0
        %v1912 = vmul.f32 %v1655, %v1655
        %v1913 = vmul.f32 %v1833, %v1833
        %v1914 = vmul.f32 %v1657, %v1657
        %v1915 = vmul.f32 %v1835, %v1835
        %v1916 = vmul.f32 %v1660, %v1660
        %v1917 = vmul.f32 %v1838, %v1838
        %v1918 = vmul.f32 %v1662, %v1662
        %v1919 = vmul.f32 %v1840, %v1840
        %v1920 = vmul.f32 %v1665, %v1665
        %v1921 = vmul.f32 %v1843, %v1843
        %v1922 = vmul.f32 %v1667, %v1667
        %v1923 = vmul.f32 %v1845, %v1845
        %v1924 = vmul.f32 %v1670, %v1670
        %v1925 = vmul.f32 %v1848, %v1848
        %v1926 = vmul.f32 %v1672, %v1672
        %v1927 = vmul.f32 %v1850, %v1850
        %v1928 = vmul.f32 %v1675, %v1675
        %v1929 = vmul.f32 %v1853, %v1853
        %v1930 = vmul.f32 %v1677, %v1677
        %v1931 = vmul.f32 %v1855, %v1855
        %v1932 = vmul.f32 %v1680, %v1680
        %v1933 = vmul.f32 %v1858, %v1858
        %v1934 = vmul.f32 %v1682, %v1682
        %v1935 = vmul.f32 %v1860, %v1860
        %v1936 = vmul.f32 %v1685, %v1685
        %v1937 = vmul.f32 %v1863, %v1863
        %v1938 = vmul.f32 %v1687, %v1687
        %v1939 = vmul.f32 %v1865, %v1865
        %v1940 = vmul.f32 %v1690, %v1690
        %v1941 = vmul.f32 %v1868, %v1868
        %v1942 = vmul.f32 %v1692, %v1692
        %v1943 = vmul.f32 %v1870, %v1870
        %v1944 = vmul.f32 %v1695, %v1695
        %v1945 = vmul.f32 %v1873, %v1873
        %v1946 = vmul.f32 %v1697, %v1697
        %v1947 = vmul.f32 %v1875, %v1875
        %v1948 = vmul.f32 %v1700, %v1700
        %v1949 = vmul.f32 %v1878, %v1878
        %v1950 = vmul.f32 %v1702, %v1702
        %v1951 = vmul.f32 %v1880, %v1880
        %v1952 = vmul.f32 %v1705, %v1705
        %v1953 = vmul.f32 %v1883, %v1883
        %v1954 = vmul.f32 %v1707, %v1707
        %v1955 = vmul.f32 %v1885, %v1885
        %v1956 = vmul.f32 %v1710, %v1710
        %v1957 = vmul.f32 %v1888, %v1888
        %v1958 = vmul.f32 %v1712, %v1712
        %v1959 = vmul.f32 %v1890, %v1890
        %v1960 = vmul.f32 %v1715, %v1715
        %v1961 = vmul.f32 %v1893, %v1893
        %v1962 = vmul.f32 %v1717, %v1717
        %v1963 = vmul.f32 %v1895, %v1895
        %v1964 = vmul.f32 %v1720, %v1720
        %v1965 = vmul.f32 %v1898, %v1898
        %v1966 = vmul.f32 %v1722, %v1722
        %v1967 = vmul.f32 %v1900, %v1900
        %v1968 = vmul.f32 %v1725, %v1725
        %v1969 = vmul.f32 %v1903, %v1903
        %v1970 = vmul.f32 %v1727, %v1727
        %v1971 = vmul.f32 %v1905, %v1905
        %v1972 = vmul.f32 %v1730, %v1730
        %v1973 = vmul.f32 %v1908, %v1908
        %v1974 = vmul.f32 %v1732, %v1732
        %v1975 = vmul.f32 %v1910, %v1910
        %v1976 = vmul.f32 %v1655, %v1912
        %v1977 = vmul.f32 %v1833, %v1913
        %v1978 = vmul.f32 %v1657, %v1914
        %v1979 = vmul.f32 %v1835, %v1915
        %v1980 = vmul.f32 %v1660, %v1916
        %v1981 = vmul.f32 %v1838, %v1917
        %v1982 = vmul.f32 %v1662, %v1918
        %v1983 = vmul.f32 %v1840, %v1919
        %v1984 = vmul.f32 %v1665, %v1920
        %v1985 = vmul.f32 %v1843, %v1921
        %v1986 = vmul.f32 %v1667, %v1922
        %v1987 = vmul.f32 %v1845, %v1923
        %v1988 = vmul.f32 %v1670, %v1924
        %v1989 = vmul.f32 %v1848, %v1925
        %v1990 = vmul.f32 %v1672, %v1926
        %v1991 = vmul.f32 %v1850, %v1927
        %v1992 = vmul.f32 %v1675, %v1928
        %v1993 = vmul.f32 %v1853, %v1929
        %v1994 = vmul.f32 %v1677, %v1930
        %v1995 = vmul.f32 %v1855, %v1931
        %v1996 = vmul.f32 %v1680, %v1932
        %v1997 = vmul.f32 %v1858, %v1933
        %v1998 = vmul.f32 %v1682, %v1934
        %v1999 = vmul.f32 %v1860, %v1935
        %v2000 = vmul.f32 %v1685, %v1936
        %v2001 = vmul.f32 %v1863, %v1937
        %v2002 = vmul.f32 %v1687, %v1938
        %v2003 = vmul.f32 %v1865, %v1939
        %v2004 = vmul.f32 %v1690, %v1940
        %v2005 = vmul.f32 %v1868, %v1941
        %v2006 = vmul.f32 %v1692, %v1942
        %v2007 = vmul.f32 %v1870, %v1943
        %v2008 = vmul.f32 %v1695, %v1944
        %v2009 = vmul.f32 %v1873, %v1945
        %v2010 = vmul.f32 %v1697, %v1946
        %v2011 = vmul.f32 %v1875, %v1947
        %v2012 = vmul.f32 %v1700, %v1948
        %v2013 = vmul.f32 %v1878, %v1949
        %v2014 = vmul.f32 %v1702, %v1950
        %v2015 = vmul.f32 %v1880, %v1951
        %v2016 = vmul.f32 %v1705, %v1952
        %v2017 = vmul.f32 %v1883, %v1953
        %v2018 = vmul.f32 %v1707, %v1954
        %v2019 = vmul.f32 %v1885, %v1955
        %v2020 = vmul.f32 %v1710, %v1956
        %v2021 = vmul.f32 %v1888, %v1957
        %v2022 = vmul.f32 %v1712, %v1958
        %v2023 = vmul.f32 %v1890, %v1959
        %v2024 = vmul.f32 %v1715, %v1960
        %v2025 = vmul.f32 %v1893, %v1961
        %v2026 = vmul.f32 %v1717, %v1962
        %v2027 = vmul.f32 %v1895, %v1963
        %v2028 = vmul.f32 %v1720, %v1964
        %v2029 = vmul.f32 %v1898, %v1965
        %v2030 = vmul.f32 %v1722, %v1966
        %v2031 = vmul.f32 %v1900, %v1967
        %v2032 = vmul.f32 %v1725, %v1968
        %v2033 = vmul.f32 %v1903, %v1969
        %v2034 = vmul.f32 %v1727, %v1970
        %v2035 = vmul.f32 %v1905, %v1971
        %v2036 = vmul.f32 %v1730, %v1972
        %v2037 = vmul.f32 %v1908, %v1973
        %v2038 = vmul.f32 %v1732, %v1974
        %v2039 = vmul.f32 %v1910, %v1975
        %v2040 = vmul.f32 %v1976, 0.044715
        %v2041 = vmul.f32 %v1977, 0.044715
        %v2042 = vmul.f32 %v1978, 0.044715
        %v2043 = vmul.f32 %v1979, 0.044715
        %v2044 = vmul.f32 %v1980, 0.044715
        %v2045 = vmul.f32 %v1981, 0.044715
        %v2046 = vmul.f32 %v1982, 0.044715
        %v2047 = vmul.f32 %v1983, 0.044715
        %v2048 = vmul.f32 %v1984, 0.044715
        %v2049 = vmul.f32 %v1985, 0.044715
        %v2050 = vmul.f32 %v1986, 0.044715
        %v2051 = vmul.f32 %v1987, 0.044715
        %v2052 = vmul.f32 %v1988, 0.044715
        %v2053 = vmul.f32 %v1989, 0.044715
        %v2054 = vmul.f32 %v1990, 0.044715
        %v2055 = vmul.f32 %v1991, 0.044715
        %v2056 = vmul.f32 %v1992, 0.044715
        %v2057 = vmul.f32 %v1993, 0.044715
        %v2058 = vmul.f32 %v1994, 0.044715
        %v2059 = vmul.f32 %v1995, 0.044715
        %v2060 = vmul.f32 %v1996, 0.044715
        %v2061 = vmul.f32 %v1997, 0.044715
        %v2062 = vmul.f32 %v1998, 0.044715
        %v2063 = vmul.f32 %v1999, 0.044715
        %v2064 = vmul.f32 %v2000, 0.044715
        %v2065 = vmul.f32 %v2001, 0.044715
        %v2066 = vmul.f32 %v2002, 0.044715
        %v2067 = vmul.f32 %v2003, 0.044715
        %v2068 = vmul.f32 %v2004, 0.044715
        %v2069 = vmul.f32 %v2005, 0.044715
        %v2070 = vmul.f32 %v2006, 0.044715
        %v2071 = vmul.f32 %v2007, 0.044715
        %v2072 = vmul.f32 %v2008, 0.044715
        %v2073 = vmul.f32 %v2009, 0.044715
        %v2074 = vmul.f32 %v2010, 0.044715
        %v2075 = vmul.f32 %v2011, 0.044715
        %v2076 = vmul.f32 %v2012, 0.044715
        %v2077 = vmul.f32 %v2013, 0.044715
        %v2078 = vmul.f32 %v2014, 0.044715
        %v2079 = vmul.f32 %v2015, 0.044715
        %v2080 = vmul.f32 %v2016, 0.044715
        %v2081 = vmul.f32 %v2017, 0.044715
        %v2082 = vmul.f32 %v2018, 0.044715
        %v2083 = vmul.f32 %v2019, 0.044715
        %v2084 = vmul.f32 %v2020, 0.044715
        %v2085 = vmul.f32 %v2021, 0.044715
        %v2086 = vmul.f32 %v2022, 0.044715
        %v2087 = vmul.f32 %v2023, 0.044715
        %v2088 = vmul.f32 %v2024, 0.044715
        %v2089 = vmul.f32 %v2025, 0.044715
        %v2090 = vmul.f32 %v2026, 0.044715
        %v2091 = vmul.f32 %v2027, 0.044715
        %v2092 = vmul.f32 %v2028, 0.044715
        %v2093 = vmul.f32 %v2029, 0.044715
        %v2094 = vmul.f32 %v2030, 0.044715
        %v2095 = vmul.f32 %v2031, 0.044715
        %v2096 = vmul.f32 %v2032, 0.044715
        %v2097 = vmul.f32 %v2033, 0.044715
        %v2098 = vmul.f32 %v2034, 0.044715
        %v2099 = vmul.f32 %v2035, 0.044715
        %v2100 = vmul.f32 %v2036, 0.044715
        %v2101 = vmul.f32 %v2037, 0.044715
        %v2102 = vmul.f32 %v2038, 0.044715
        %v2103 = vmul.f32 %v2039, 0.044715
        %v2104 = vadd.f32 %v1655, %v2040
        %v2105 = vadd.f32 %v1833, %v2041
        %v2106 = vadd.f32 %v1657, %v2042
        %v2107 = vadd.f32 %v1835, %v2043
        %v2108 = vadd.f32 %v1660, %v2044
        %v2109 = vadd.f32 %v1838, %v2045
        %v2110 = vadd.f32 %v1662, %v2046
        %v2111 = vadd.f32 %v1840, %v2047
        %v2112 = vadd.f32 %v1665, %v2048
        %v2113 = vadd.f32 %v1843, %v2049
        %v2114 = vadd.f32 %v1667, %v2050
        %v2115 = vadd.f32 %v1845, %v2051
        %v2116 = vadd.f32 %v1670, %v2052
        %v2117 = vadd.f32 %v1848, %v2053
        %v2118 = vadd.f32 %v1672, %v2054
        %v2119 = vadd.f32 %v1850, %v2055
        %v2120 = vadd.f32 %v1675, %v2056
        %v2121 = vadd.f32 %v1853, %v2057
        %v2122 = vadd.f32 %v1677, %v2058
        %v2123 = vadd.f32 %v1855, %v2059
        %v2124 = vadd.f32 %v1680, %v2060
        %v2125 = vadd.f32 %v1858, %v2061
        %v2126 = vadd.f32 %v1682, %v2062
        %v2127 = vadd.f32 %v1860, %v2063
        %v2128 = vadd.f32 %v1685, %v2064
        %v2129 = vadd.f32 %v1863, %v2065
        %v2130 = vadd.f32 %v1687, %v2066
        %v2131 = vadd.f32 %v1865, %v2067
        %v2132 = vadd.f32 %v1690, %v2068
        %v2133 = vadd.f32 %v1868, %v2069
        %v2134 = vadd.f32 %v1692, %v2070
        %v2135 = vadd.f32 %v1870, %v2071
        %v2136 = vadd.f32 %v1695, %v2072
        %v2137 = vadd.f32 %v1873, %v2073
        %v2138 = vadd.f32 %v1697, %v2074
        %v2139 = vadd.f32 %v1875, %v2075
        %v2140 = vadd.f32 %v1700, %v2076
        %v2141 = vadd.f32 %v1878, %v2077
        %v2142 = vadd.f32 %v1702, %v2078
        %v2143 = vadd.f32 %v1880, %v2079
        %v2144 = vadd.f32 %v1705, %v2080
        %v2145 = vadd.f32 %v1883, %v2081
        %v2146 = vadd.f32 %v1707, %v2082
        %v2147 = vadd.f32 %v1885, %v2083
        %v2148 = vadd.f32 %v1710, %v2084
        %v2149 = vadd.f32 %v1888, %v2085
        %v2150 = vadd.f32 %v1712, %v2086
        %v2151 = vadd.f32 %v1890, %v2087
        %v2152 = vadd.f32 %v1715, %v2088
        %v2153 = vadd.f32 %v1893, %v2089
        %v2154 = vadd.f32 %v1717, %v2090
        %v2155 = vadd.f32 %v1895, %v2091
        %v2156 = vadd.f32 %v1720, %v2092
        %v2157 = vadd.f32 %v1898, %v2093
        %v2158 = vadd.f32 %v1722, %v2094
        %v2159 = vadd.f32 %v1900, %v2095
        %v2160 = vadd.f32 %v1725, %v2096
        %v2161 = vadd.f32 %v1903, %v2097
        %v2162 = vadd.f32 %v1727, %v2098
        %v2163 = vadd.f32 %v1905, %v2099
        %v2164 = vadd.f32 %v1730, %v2100
        %v2165 = vadd.f32 %v1908, %v2101
        %v2166 = vadd.f32 %v1732, %v2102
        %v2167 = vadd.f32 %v1910, %v2103
        %v2168 = vmul.f32 %v2104, 0.7978846
        %v2169 = vmul.f32 %v2105, 0.7978846
        %v2170 = vmul.f32 %v2106, 0.7978846
        %v2171 = vmul.f32 %v2107, 0.7978846
        %v2172 = vmul.f32 %v2108, 0.7978846
        %v2173 = vmul.f32 %v2109, 0.7978846
        %v2174 = vmul.f32 %v2110, 0.7978846
        %v2175 = vmul.f32 %v2111, 0.7978846
        %v2176 = vmul.f32 %v2112, 0.7978846
        %v2177 = vmul.f32 %v2113, 0.7978846
        %v2178 = vmul.f32 %v2114, 0.7978846
        %v2179 = vmul.f32 %v2115, 0.7978846
        %v2180 = vmul.f32 %v2116, 0.7978846
        %v2181 = vmul.f32 %v2117, 0.7978846
        %v2182 = vmul.f32 %v2118, 0.7978846
        %v2183 = vmul.f32 %v2119, 0.7978846
        %v2184 = vmul.f32 %v2120, 0.7978846
        %v2185 = vmul.f32 %v2121, 0.7978846
        %v2186 = vmul.f32 %v2122, 0.7978846
        %v2187 = vmul.f32 %v2123, 0.7978846
        %v2188 = vmul.f32 %v2124, 0.7978846
        %v2189 = vmul.f32 %v2125, 0.7978846
        %v2190 = vmul.f32 %v2126, 0.7978846
        %v2191 = vmul.f32 %v2127, 0.7978846
        %v2192 = vmul.f32 %v2128, 0.7978846
        %v2193 = vmul.f32 %v2129, 0.7978846
        %v2194 = vmul.f32 %v2130, 0.7978846
        %v2195 = vmul.f32 %v2131, 0.7978846
        %v2196 = vmul.f32 %v2132, 0.7978846
        %v2197 = vmul.f32 %v2133, 0.7978846
        %v2198 = vmul.f32 %v2134, 0.7978846
        %v2199 = vmul.f32 %v2135, 0.7978846
        %v2200 = vmul.f32 %v2136, 0.7978846
        %v2201 = vmul.f32 %v2137, 0.7978846
        %v2202 = vmul.f32 %v2138, 0.7978846
        %v2203 = vmul.f32 %v2139, 0.7978846
        %v2204 = vmul.f32 %v2140, 0.7978846
        %v2205 = vmul.f32 %v2141, 0.7978846
        %v2206 = vmul.f32 %v2142, 0.7978846
        %v2207 = vmul.f32 %v2143, 0.7978846
        %v2208 = vmul.f32 %v2144, 0.7978846
        %v2209 = vmul.f32 %v2145, 0.7978846
        %v2210 = vmul.f32 %v2146, 0.7978846
        %v2211 = vmul.f32 %v2147, 0.7978846
        %v2212 = vmul.f32 %v2148, 0.7978846
        %v2213 = vmul.f32 %v2149, 0.7978846
        %v2214 = vmul.f32 %v2150, 0.7978846
        %v2215 = vmul.f32 %v2151, 0.7978846
        %v2216 = vmul.f32 %v2152, 0.7978846
        %v2217 = vmul.f32 %v2153, 0.7978846
        %v2218 = vmul.f32 %v2154, 0.7978846
        %v2219 = vmul.f32 %v2155, 0.7978846
        %v2220 = vmul.f32 %v2156, 0.7978846
        %v2221 = vmul.f32 %v2157, 0.7978846
        %v2222 = vmul.f32 %v2158, 0.7978846
        %v2223 = vmul.f32 %v2159, 0.7978846
        %v2224 = vmul.f32 %v2160, 0.7978846
        %v2225 = vmul.f32 %v2161, 0.7978846
        %v2226 = vmul.f32 %v2162, 0.7978846
        %v2227 = vmul.f32 %v2163, 0.7978846
        %v2228 = vmul.f32 %v2164, 0.7978846
        %v2229 = vmul.f32 %v2165, 0.7978846
        %v2230 = vmul.f32 %v2166, 0.7978846
        %v2231 = vmul.f32 %v2167, 0.7978846
        %v2232 = vtanh.pop %v2168
        %v2233 = vtanh.pop %v2169
        %v2234 = vtanh.pop %v2170
        %v2235 = vtanh.pop %v2171
        %v2236 = vtanh.pop %v2172
        %v2237 = vtanh.pop %v2173
        %v2238 = vtanh.pop %v2174
        %v2239 = vtanh.pop %v2175
        %v2240 = vtanh.pop %v2176
        %v2241 = vtanh.pop %v2177
        %v2242 = vtanh.pop %v2178
        %v2243 = vtanh.pop %v2179
        %v2244 = vtanh.pop %v2180
        %v2245 = vtanh.pop %v2181
        %v2246 = vtanh.pop %v2182
        %v2247 = vtanh.pop %v2183
        %v2248 = vtanh.pop %v2184
        %v2249 = vtanh.pop %v2185
        %v2250 = vtanh.pop %v2186
        %v2251 = vtanh.pop %v2187
        %v2252 = vtanh.pop %v2188
        %v2253 = vtanh.pop %v2189
        %v2254 = vtanh.pop %v2190
        %v2255 = vtanh.pop %v2191
        %v2256 = vtanh.pop %v2192
        %v2257 = vtanh.pop %v2193
        %v2258 = vtanh.pop %v2194
        %v2259 = vtanh.pop %v2195
        %v2260 = vtanh.pop %v2196
        %v2261 = vtanh.pop %v2197
        %v2262 = vtanh.pop %v2198
        %v2263 = vtanh.pop %v2199
        %v2264 = vtanh.pop %v2200
        %v2265 = vtanh.pop %v2201
        %v2266 = vtanh.pop %v2202
        %v2267 = vtanh.pop %v2203
        %v2268 = vtanh.pop %v2204
        %v2269 = vtanh.pop %v2205
        %v2270 = vtanh.pop %v2206
        %v2271 = vtanh.pop %v2207
        %v2272 = vtanh.pop %v2208
        %v2273 = vtanh.pop %v2209
        %v2274 = vtanh.pop %v2210
        %v2275 = vtanh.pop %v2211
        %v2276 = vtanh.pop %v2212
        %v2277 = vtanh.pop %v2213
        %v2278 = vtanh.pop %v2214
        %v2279 = vtanh.pop %v2215
        %v2280 = vtanh.pop %v2216
        %v2281 = vtanh.pop %v2217
        %v2282 = vtanh.pop %v2218
        %v2283 = vtanh.pop %v2219
        %v2284 = vtanh.pop %v2220
        %v2285 = vtanh.pop %v2221
        %v2286 = vtanh.pop %v2222
        %v2287 = vtanh.pop %v2223
        %v2288 = vtanh.pop %v2224
        %v2289 = vtanh.pop %v2225
        %v2290 = vtanh.pop %v2226
        %v2291 = vtanh.pop %v2227
        %v2292 = vtanh.pop %v2228
        %v2293 = vtanh.pop %v2229
        %v2294 = vtanh.pop %v2230
        %v2295 = vtanh.pop %v2231
        %v2296 = vadd.f32 %v2232, 1.0
        %v2297 = vadd.f32 %v2233, 1.0
        %v2298 = vadd.f32 %v2234, 1.0
        %v2299 = vadd.f32 %v2235, 1.0
        %v2300 = vadd.f32 %v2236, 1.0
        %v2301 = vadd.f32 %v2237, 1.0
        %v2302 = vadd.f32 %v2238, 1.0
        %v2303 = vadd.f32 %v2239, 1.0
        %v2304 = vadd.f32 %v2240, 1.0
        %v2305 = vadd.f32 %v2241, 1.0
        %v2306 = vadd.f32 %v2242, 1.0
        %v2307 = vadd.f32 %v2243, 1.0
        %v2308 = vadd.f32 %v2244, 1.0
        %v2309 = vadd.f32 %v2245, 1.0
        %v2310 = vadd.f32 %v2246, 1.0
        %v2311 = vadd.f32 %v2247, 1.0
        %v2312 = vadd.f32 %v2248, 1.0
        %v2313 = vadd.f32 %v2249, 1.0
        %v2314 = vadd.f32 %v2250, 1.0
        %v2315 = vadd.f32 %v2251, 1.0
        %v2316 = vadd.f32 %v2252, 1.0
        %v2317 = vadd.f32 %v2253, 1.0
        %v2318 = vadd.f32 %v2254, 1.0
        %v2319 = vadd.f32 %v2255, 1.0
        %v2320 = vadd.f32 %v2256, 1.0
        %v2321 = vadd.f32 %v2257, 1.0
        %v2322 = vadd.f32 %v2258, 1.0
        %v2323 = vadd.f32 %v2259, 1.0
        %v2324 = vadd.f32 %v2260, 1.0
        %v2325 = vadd.f32 %v2261, 1.0
        %v2326 = vadd.f32 %v2262, 1.0
        %v2327 = vadd.f32 %v2263, 1.0
        %v2328 = vadd.f32 %v2264, 1.0
        %v2329 = vadd.f32 %v2265, 1.0
        %v2330 = vadd.f32 %v2266, 1.0
        %v2331 = vadd.f32 %v2267, 1.0
        %v2332 = vadd.f32 %v2268, 1.0
        %v2333 = vadd.f32 %v2269, 1.0
        %v2334 = vadd.f32 %v2270, 1.0
        %v2335 = vadd.f32 %v2271, 1.0
        %v2336 = vadd.f32 %v2272, 1.0
        %v2337 = vadd.f32 %v2273, 1.0
        %v2338 = vadd.f32 %v2274, 1.0
        %v2339 = vadd.f32 %v2275, 1.0
        %v2340 = vadd.f32 %v2276, 1.0
        %v2341 = vadd.f32 %v2277, 1.0
        %v2342 = vadd.f32 %v2278, 1.0
        %v2343 = vadd.f32 %v2279, 1.0
        %v2344 = vadd.f32 %v2280, 1.0
        %v2345 = vadd.f32 %v2281, 1.0
        %v2346 = vadd.f32 %v2282, 1.0
        %v2347 = vadd.f32 %v2283, 1.0
        %v2348 = vadd.f32 %v2284, 1.0
        %v2349 = vadd.f32 %v2285, 1.0
        %v2350 = vadd.f32 %v2286, 1.0
        %v2351 = vadd.f32 %v2287, 1.0
        %v2352 = vadd.f32 %v2288, 1.0
        %v2353 = vadd.f32 %v2289, 1.0
        %v2354 = vadd.f32 %v2290, 1.0
        %v2355 = vadd.f32 %v2291, 1.0
        %v2356 = vadd.f32 %v2292, 1.0
        %v2357 = vadd.f32 %v2293, 1.0
        %v2358 = vadd.f32 %v2294, 1.0
        %v2359 = vadd.f32 %v2295, 1.0
        %v2360 = vmul.f32 %v2296, 0.5
        %v2361 = vmul.f32 %v2297, 0.5
        %v2362 = vmul.f32 %v2298, 0.5
        %v2363 = vmul.f32 %v2299, 0.5
        %v2364 = vmul.f32 %v2300, 0.5
        %v2365 = vmul.f32 %v2301, 0.5
        %v2366 = vmul.f32 %v2302, 0.5
        %v2367 = vmul.f32 %v2303, 0.5
        %v2368 = vmul.f32 %v2304, 0.5
        %v2369 = vmul.f32 %v2305, 0.5
        %v2370 = vmul.f32 %v2306, 0.5
        %v2371 = vmul.f32 %v2307, 0.5
        %v2372 = vmul.f32 %v2308, 0.5
        %v2373 = vmul.f32 %v2309, 0.5
        %v2374 = vmul.f32 %v2310, 0.5
        %v2375 = vmul.f32 %v2311, 0.5
        %v2376 = vmul.f32 %v2312, 0.5
        %v2377 = vmul.f32 %v2313, 0.5
        %v2378 = vmul.f32 %v2314, 0.5
        %v2379 = vmul.f32 %v2315, 0.5
        %v2380 = vmul.f32 %v2316, 0.5
        %v2381 = vmul.f32 %v2317, 0.5
        %v2382 = vmul.f32 %v2318, 0.5
        %v2383 = vmul.f32 %v2319, 0.5
        %v2384 = vmul.f32 %v2320, 0.5
        %v2385 = vmul.f32 %v2321, 0.5
        %v2386 = vmul.f32 %v2322, 0.5
        %v2387 = vmul.f32 %v2323, 0.5
        %v2388 = vmul.f32 %v2324, 0.5
        %v2389 = vmul.f32 %v2325, 0.5
        %v2390 = vmul.f32 %v2326, 0.5
        %v2391 = vmul.f32 %v2327, 0.5
        %v2392 = vmul.f32 %v2328, 0.5
        %v2393 = vmul.f32 %v2329, 0.5
        %v2394 = vmul.f32 %v2330, 0.5
        %v2395 = vmul.f32 %v2331, 0.5
        %v2396 = vmul.f32 %v2332, 0.5
        %v2397 = vmul.f32 %v2333, 0.5
        %v2398 = vmul.f32 %v2334, 0.5
        %v2399 = vmul.f32 %v2335, 0.5
        %v2400 = vmul.f32 %v2336, 0.5
        %v2401 = vmul.f32 %v2337, 0.5
        %v2402 = vmul.f32 %v2338, 0.5
        %v2403 = vmul.f32 %v2339, 0.5
        %v2404 = vmul.f32 %v2340, 0.5
        %v2405 = vmul.f32 %v2341, 0.5
        %v2406 = vmul.f32 %v2342, 0.5
        %v2407 = vmul.f32 %v2343, 0.5
        %v2408 = vmul.f32 %v2344, 0.5
        %v2409 = vmul.f32 %v2345, 0.5
        %v2410 = vmul.f32 %v2346, 0.5
        %v2411 = vmul.f32 %v2347, 0.5
        %v2412 = vmul.f32 %v2348, 0.5
        %v2413 = vmul.f32 %v2349, 0.5
        %v2414 = vmul.f32 %v2350, 0.5
        %v2415 = vmul.f32 %v2351, 0.5
        %v2416 = vmul.f32 %v2352, 0.5
        %v2417 = vmul.f32 %v2353, 0.5
        %v2418 = vmul.f32 %v2354, 0.5
        %v2419 = vmul.f32 %v2355, 0.5
        %v2420 = vmul.f32 %v2356, 0.5
        %v2421 = vmul.f32 %v2357, 0.5
        %v2422 = vmul.f32 %v2358, 0.5
        %v2423 = vmul.f32 %v2359, 0.5
        %v2424 = vmul.f32 %v1655, %v2360
        %v2425 = vmul.f32 %v1833, %v2361
        %v2426 = vmul.f32 %v1657, %v2362
        %v2427 = vmul.f32 %v1835, %v2363
        %v2428 = vmul.f32 %v1660, %v2364
        %v2429 = vmul.f32 %v1838, %v2365
        %v2430 = vmul.f32 %v1662, %v2366
        %v2431 = vmul.f32 %v1840, %v2367
        %v2432 = vmul.f32 %v1665, %v2368
        %v2433 = vmul.f32 %v1843, %v2369
        %v2434 = vmul.f32 %v1667, %v2370
        %v2435 = vmul.f32 %v1845, %v2371
        %v2436 = vmul.f32 %v1670, %v2372
        %v2437 = vmul.f32 %v1848, %v2373
        %v2438 = vmul.f32 %v1672, %v2374
        %v2439 = vmul.f32 %v1850, %v2375
        %v2440 = vmul.f32 %v1675, %v2376
        %v2441 = vmul.f32 %v1853, %v2377
        %v2442 = vmul.f32 %v1677, %v2378
        %v2443 = vmul.f32 %v1855, %v2379
        %v2444 = vmul.f32 %v1680, %v2380
        %v2445 = vmul.f32 %v1858, %v2381
        %v2446 = vmul.f32 %v1682, %v2382
        %v2447 = vmul.f32 %v1860, %v2383
        %v2448 = vmul.f32 %v1685, %v2384
        %v2449 = vmul.f32 %v1863, %v2385
        %v2450 = vmul.f32 %v1687, %v2386
        %v2451 = vmul.f32 %v1865, %v2387
        %v2452 = vmul.f32 %v1690, %v2388
        %v2453 = vmul.f32 %v1868, %v2389
        %v2454 = vmul.f32 %v1692, %v2390
        %v2455 = vmul.f32 %v1870, %v2391
        %v2456 = vmul.f32 %v1695, %v2392
        %v2457 = vmul.f32 %v1873, %v2393
        %v2458 = vmul.f32 %v1697, %v2394
        %v2459 = vmul.f32 %v1875, %v2395
        %v2460 = vmul.f32 %v1700, %v2396
        %v2461 = vmul.f32 %v1878, %v2397
        %v2462 = vmul.f32 %v1702, %v2398
        %v2463 = vmul.f32 %v1880, %v2399
        %v2464 = vmul.f32 %v1705, %v2400
        %v2465 = vmul.f32 %v1883, %v2401
        %v2466 = vmul.f32 %v1707, %v2402
        %v2467 = vmul.f32 %v1885, %v2403
        %v2468 = vmul.f32 %v1710, %v2404
        %v2469 = vmul.f32 %v1888, %v2405
        %v2470 = vmul.f32 %v1712, %v2406
        %v2471 = vmul.f32 %v1890, %v2407
        %v2472 = vmul.f32 %v1715, %v2408
        %v2473 = vmul.f32 %v1893, %v2409
        %v2474 = vmul.f32 %v1717, %v2410
        %v2475 = vmul.f32 %v1895, %v2411
        %v2476 = vmul.f32 %v1720, %v2412
        %v2477 = vmul.f32 %v1898, %v2413
        %v2478 = vmul.f32 %v1722, %v2414
        %v2479 = vmul.f32 %v1900, %v2415
        %v2480 = vmul.f32 %v1725, %v2416
        %v2481 = vmul.f32 %v1903, %v2417
        %v2482 = vmul.f32 %v1727, %v2418
        %v2483 = vmul.f32 %v1905, %v2419
        %v2484 = vmul.f32 %v1730, %v2420
        %v2485 = vmul.f32 %v1908, %v2421
        %v2486 = vmul.f32 %v1732, %v2422
        %v2487 = vmul.f32 %v1910, %v2423
        %v2488 = vpack.c.bf16 %v2426, %v2424
        %v2489 = vpack.c.bf16 %v2427, %v2425
        %v2490 = vpack.c.bf16 %v2430, %v2428
        %v2491 = vpack.c.bf16 %v2431, %v2429
        %v2492 = vpack.c.bf16 %v2434, %v2432
        %v2493 = vpack.c.bf16 %v2435, %v2433
        %v2494 = vpack.c.bf16 %v2438, %v2436
        %v2495 = vpack.c.bf16 %v2439, %v2437
        %v2496 = vpack.c.bf16 %v2442, %v2440
        %v2497 = vpack.c.bf16 %v2443, %v2441
        %v2498 = vpack.c.bf16 %v2446, %v2444
        %v2499 = vpack.c.bf16 %v2447, %v2445
        %v2500 = vpack.c.bf16 %v2450, %v2448
        %v2501 = vpack.c.bf16 %v2451, %v2449
        %v2502 = vpack.c.bf16 %v2454, %v2452
        %v2503 = vpack.c.bf16 %v2455, %v2453
        %v2504 = vpack.c.bf16 %v2458, %v2456
        %v2505 = vpack.c.bf16 %v2459, %v2457
        %v2506 = vpack.c.bf16 %v2462, %v2460
        %v2507 = vpack.c.bf16 %v2463, %v2461
        %v2508 = vpack.c.bf16 %v2466, %v2464
        %v2509 = vpack.c.bf16 %v2467, %v2465
        %v2510 = vpack.c.bf16 %v2470, %v2468
        %v2511 = vpack.c.bf16 %v2471, %v2469
        %v2512 = vpack.c.bf16 %v2474, %v2472
        %v2513 = vpack.c.bf16 %v2475, %v2473
        %v2514 = vpack.c.bf16 %v2478, %v2476
        %v2515 = vpack.c.bf16 %v2479, %v2477
        %v2516 = vpack.c.bf16 %v2482, %v2480
        %v2517 = vpack.c.bf16 %v2483, %v2481
        %v2518 = vpack.c.bf16 %v2486, %v2484
        %v2519 = vpack.c.bf16 %v2487, %v2485
        %v2520 = vld [vmem:[#allocation10] sm:$0xf]
        %v2521 = vld [vmem:[#allocation10 + $0x4] sm:$0xf]
        %v2522 = vld [vmem:[#allocation10 + $0x8] sm:$0xf]
        %v2523 = vld [vmem:[#allocation10 + $0xc] sm:$0xf]
        %v2524 = vld [vmem:[#allocation10 + $0x10] sm:$0xf]
        %v2525 = vld [vmem:[#allocation10 + $0x14] sm:$0xf]
        %v2526 = vld [vmem:[#allocation10 + $0x18] sm:$0xf]
        %v2527 = vld [vmem:[#allocation10 + $0x1c] sm:$0xf]
        %v2528 = vld [vmem:[#allocation10 + $0x20] sm:$0xf]
        %v2529 = vld [vmem:[#allocation10 + $0x24] sm:$0xf]
        %v2530 = vld [vmem:[#allocation10 + $0x28] sm:$0xf]
        %v2531 = vld [vmem:[#allocation10 + $0x2c] sm:$0xf]
        %v2532 = vld [vmem:[#allocation10 + $0x30] sm:$0xf]
        %v2533 = vld [vmem:[#allocation10 + $0x34] sm:$0xf]
        %v2534 = vld [vmem:[#allocation10 + $0x38] sm:$0xf]
        %v2535 = vld [vmem:[#allocation10 + $0x3c] sm:$0xf]
        %v2536 = vld [vmem:[#allocation10 + $0x40] sm:$0xf]
        %v2537 = vld [vmem:[#allocation10 + $0x44] sm:$0xf]
        %v2538 = vld [vmem:[#allocation10 + $0x48] sm:$0xf]
        %v2539 = vld [vmem:[#allocation10 + $0x4c] sm:$0xf]
        %v2540 = vld [vmem:[#allocation10 + $0x50] sm:$0xf]
        %v2541 = vld [vmem:[#allocation10 + $0x54] sm:$0xf]
        %v2542 = vld [vmem:[#allocation10 + $0x58] sm:$0xf]
        %v2543 = vld [vmem:[#allocation10 + $0x5c] sm:$0xf]
        %v2544 = vld [vmem:[#allocation10 + $0x60] sm:$0xf]
        %v2545 = vld [vmem:[#allocation10 + $0x64] sm:$0xf]
        %v2546 = vld [vmem:[#allocation10 + $0x68] sm:$0xf]
        %v2547 = vld [vmem:[#allocation10 + $0x6c] sm:$0xf]
        %v2548 = vld [vmem:[#allocation10 + $0x70] sm:$0xf]
        %v2549 = vld [vmem:[#allocation10 + $0x74] sm:$0xf]
        %v2550 = vld [vmem:[#allocation10 + $0x78] sm:$0xf]
        %v2551 = vld [vmem:[#allocation10 + $0x7c] sm:$0xf]
        %v2553 = vperm.slane %v453, 0
        %v2587 = vunpack.c.l.b16 %v2520
        %v2588 = vunpack.c.l.b16 %v2521
        %v2589 = vunpack.c.l.b16 %v2522
        %v2590 = vunpack.c.l.b16 %v2523
        %v2591 = vunpack.c.l.b16 %v2524
        %v2592 = vunpack.c.l.b16 %v2525
        %v2593 = vunpack.c.l.b16 %v2526
        %v2594 = vunpack.c.l.b16 %v2527
        %v2595 = vunpack.c.l.b16 %v2528
        %v2596 = vunpack.c.l.b16 %v2529
        %v2597 = vunpack.c.l.b16 %v2530
        %v2598 = vunpack.c.l.b16 %v2531
        %v2599 = vunpack.c.l.b16 %v2532
        %v2600 = vunpack.c.l.b16 %v2533
        %v2601 = vunpack.c.l.b16 %v2534
        %v2602 = vunpack.c.l.b16 %v2535
        %v2603 = vunpack.c.l.b16 %v2536
        %v2604 = vunpack.c.l.b16 %v2537
        %v2605 = vunpack.c.l.b16 %v2538
        %v2606 = vunpack.c.l.b16 %v2539
        %v2607 = vunpack.c.l.b16 %v2540
        %v2608 = vunpack.c.l.b16 %v2541
        %v2609 = vunpack.c.l.b16 %v2542
        %v2610 = vunpack.c.l.b16 %v2543
        %v2611 = vunpack.c.l.b16 %v2544
        %v2612 = vunpack.c.l.b16 %v2545
        %v2613 = vunpack.c.l.b16 %v2546
        %v2614 = vunpack.c.l.b16 %v2547
        %v2615 = vunpack.c.l.b16 %v2548
        %v2616 = vunpack.c.l.b16 %v2549
        %v2617 = vunpack.c.l.b16 %v2550
        %v2618 = vunpack.c.l.b16 %v2551
        %v2619 = vpack.c.b16 %v2588, %v2587
        %v2620 = vpack.c.b16 %v2590, %v2589
        %v2621 = vpack.c.b16 %v2592, %v2591
        %v2622 = vpack.c.b16 %v2594, %v2593
        %v2623 = vpack.c.b16 %v2596, %v2595
        %v2624 = vpack.c.b16 %v2598, %v2597
        %v2625 = vpack.c.b16 %v2600, %v2599
        %v2626 = vpack.c.b16 %v2602, %v2601
        %v2627 = vpack.c.b16 %v2604, %v2603
        %v2628 = vpack.c.b16 %v2606, %v2605
        %v2629 = vpack.c.b16 %v2608, %v2607
        %v2630 = vpack.c.b16 %v2610, %v2609
        %v2631 = vpack.c.b16 %v2612, %v2611
        %v2632 = vpack.c.b16 %v2614, %v2613
        %v2633 = vpack.c.b16 %v2616, %v2615
        %v2634 = vpack.c.b16 %v2618, %v2617
        %2651 = vmatpush.bf16.msra.mxu0 %v2626
        %2652 = vmatpush.bf16.msra.mxu0 %v2625
        %2653 = vmatpush.bf16.msra.mxu0 %v2624
        %2654 = vmatpush.bf16.msra.mxu0 %v2623
        %2655 = vmatpush.bf16.msra.mxu0 %v2622
        %2656 = vmatpush.bf16.msra.mxu0 %v2621
        %2657 = vmatpush.bf16.msra.mxu0 %v2620
        %2658 = vmatpush.bf16.msra.mxu0 %v2619
        %2659 = vmatmul.bf16.gmra.mxu0 %v2488
        %v2660 = vpop.f32.mrf.mxu0
        %v2661 = vadd.f32 %v2553, %v2660
        %v2662 = vpop.f32.mrf.mxu0
        %v2663 = vadd.f32 %v2553, %v2662
        %2664 = vmatmul.bf16.gmra.mxu0 %v2490
        %v2665 = vpop.f32.mrf.mxu0
        %v2666 = vadd.f32 %v2553, %v2665
        %v2667 = vpop.f32.mrf.mxu0
        %v2668 = vadd.f32 %v2553, %v2667
        %2669 = vmatmul.bf16.gmra.mxu0 %v2492
        %v2670 = vpop.f32.mrf.mxu0
        %v2671 = vadd.f32 %v2553, %v2670
        %v2672 = vpop.f32.mrf.mxu0
        %v2673 = vadd.f32 %v2553, %v2672
        %2674 = vmatmul.bf16.gmra.mxu0 %v2494
        %v2675 = vpop.f32.mrf.mxu0
        %v2676 = vadd.f32 %v2553, %v2675
        %v2677 = vpop.f32.mrf.mxu0
        %v2678 = vadd.f32 %v2553, %v2677
        %2679 = vmatmul.bf16.gmra.mxu0 %v2496
        %v2680 = vpop.f32.mrf.mxu0
        %v2681 = vadd.f32 %v2553, %v2680
        %v2682 = vpop.f32.mrf.mxu0
        %v2683 = vadd.f32 %v2553, %v2682
        %2684 = vmatmul.bf16.gmra.mxu0 %v2498
        %v2685 = vpop.f32.mrf.mxu0
        %v2686 = vadd.f32 %v2553, %v2685
        %v2687 = vpop.f32.mrf.mxu0
        %v2688 = vadd.f32 %v2553, %v2687
        %2689 = vmatmul.bf16.gmra.mxu0 %v2500
        %v2690 = vpop.f32.mrf.mxu0
        %v2691 = vadd.f32 %v2553, %v2690
        %v2692 = vpop.f32.mrf.mxu0
        %v2693 = vadd.f32 %v2553, %v2692
        %2694 = vmatmul.bf16.gmra.mxu0 %v2502
        %v2695 = vpop.f32.mrf.mxu0
        %v2696 = vadd.f32 %v2553, %v2695
        %v2697 = vpop.f32.mrf.mxu0
        %v2698 = vadd.f32 %v2553, %v2697
        %2699 = vmatmul.bf16.gmra.mxu0 %v2504
        %v2700 = vpop.f32.mrf.mxu0
        %v2701 = vadd.f32 %v2553, %v2700
        %v2702 = vpop.f32.mrf.mxu0
        %v2703 = vadd.f32 %v2553, %v2702
        %2704 = vmatmul.bf16.gmra.mxu0 %v2506
        %v2705 = vpop.f32.mrf.mxu0
        %v2706 = vadd.f32 %v2553, %v2705
        %v2707 = vpop.f32.mrf.mxu0
        %v2708 = vadd.f32 %v2553, %v2707
        %2709 = vmatmul.bf16.gmra.mxu0 %v2508
        %v2710 = vpop.f32.mrf.mxu0
        %v2711 = vadd.f32 %v2553, %v2710
        %v2712 = vpop.f32.mrf.mxu0
        %v2713 = vadd.f32 %v2553, %v2712
        %2714 = vmatmul.bf16.gmra.mxu0 %v2510
        %v2715 = vpop.f32.mrf.mxu0
        %v2716 = vadd.f32 %v2553, %v2715
        %v2717 = vpop.f32.mrf.mxu0
        %v2718 = vadd.f32 %v2553, %v2717
        %2719 = vmatmul.bf16.gmra.mxu0 %v2512
        %v2720 = vpop.f32.mrf.mxu0
        %v2721 = vadd.f32 %v2553, %v2720
        %v2722 = vpop.f32.mrf.mxu0
        %v2723 = vadd.f32 %v2553, %v2722
        %2724 = vmatmul.bf16.gmra.mxu0 %v2514
        %v2725 = vpop.f32.mrf.mxu0
        %v2726 = vadd.f32 %v2553, %v2725
        %v2727 = vpop.f32.mrf.mxu0
        %v2728 = vadd.f32 %v2553, %v2727
        %2729 = vmatmul.bf16.gmra.mxu0 %v2516
        %v2730 = vpop.f32.mrf.mxu0
        %v2731 = vadd.f32 %v2553, %v2730
        %v2732 = vpop.f32.mrf.mxu0
        %v2733 = vadd.f32 %v2553, %v2732
        %2734 = vmatmul.bf16.gmra.mxu0 %v2518
        %v2735 = vpop.f32.mrf.mxu0
        %v2736 = vadd.f32 %v2553, %v2735
        %v2737 = vpop.f32.mrf.mxu0
        %v2738 = vadd.f32 %v2553, %v2737
        %2739 = vdwg.mxu0
        %2740 = vmatpush.bf16.msra.mxu0 %v2634
        %2741 = vmatpush.bf16.msra.mxu0 %v2633
        %2742 = vmatpush.bf16.msra.mxu0 %v2632
        %2743 = vmatpush.bf16.msra.mxu0 %v2631
        %2744 = vmatpush.bf16.msra.mxu0 %v2630
        %2745 = vmatpush.bf16.msra.mxu0 %v2629
        %2746 = vmatpush.bf16.msra.mxu0 %v2628
        %2747 = vmatpush.bf16.msra.mxu0 %v2627
        %2748 = vmatmul.bf16.gmra.mxu0 %v2489
        %v2749 = vpop.f32.mrf.mxu0
        %v2750 = vadd.f32 %v2661, %v2749
        %v2751 = vpop.f32.mrf.mxu0
        %v2752 = vadd.f32 %v2663, %v2751
        %2753 = vmatmul.bf16.gmra.mxu0 %v2491
        %v2754 = vpop.f32.mrf.mxu0
        %v2755 = vadd.f32 %v2666, %v2754
        %v2756 = vpop.f32.mrf.mxu0
        %v2757 = vadd.f32 %v2668, %v2756
        %2758 = vmatmul.bf16.gmra.mxu0 %v2493
        %v2759 = vpop.f32.mrf.mxu0
        %v2760 = vadd.f32 %v2671, %v2759
        %v2761 = vpop.f32.mrf.mxu0
        %v2762 = vadd.f32 %v2673, %v2761
        %2763 = vmatmul.bf16.gmra.mxu0 %v2495
        %v2764 = vpop.f32.mrf.mxu0
        %v2765 = vadd.f32 %v2676, %v2764
        %v2766 = vpop.f32.mrf.mxu0
        %v2767 = vadd.f32 %v2678, %v2766
        %2768 = vmatmul.bf16.gmra.mxu0 %v2497
        %v2769 = vpop.f32.mrf.mxu0
        %v2770 = vadd.f32 %v2681, %v2769
        %v2771 = vpop.f32.mrf.mxu0
        %v2772 = vadd.f32 %v2683, %v2771
        %2773 = vmatmul.bf16.gmra.mxu0 %v2499
        %v2774 = vpop.f32.mrf.mxu0
        %v2775 = vadd.f32 %v2686, %v2774
        %v2776 = vpop.f32.mrf.mxu0
        %v2777 = vadd.f32 %v2688, %v2776
        %2778 = vmatmul.bf16.gmra.mxu0 %v2501
        %v2779 = vpop.f32.mrf.mxu0
        %v2780 = vadd.f32 %v2691, %v2779
        %v2781 = vpop.f32.mrf.mxu0
        %v2782 = vadd.f32 %v2693, %v2781
        %2783 = vmatmul.bf16.gmra.mxu0 %v2503
        %v2784 = vpop.f32.mrf.mxu0
        %v2785 = vadd.f32 %v2696, %v2784
        %v2786 = vpop.f32.mrf.mxu0
        %v2787 = vadd.f32 %v2698, %v2786
        %2788 = vmatmul.bf16.gmra.mxu0 %v2505
        %v2789 = vpop.f32.mrf.mxu0
        %v2790 = vadd.f32 %v2701, %v2789
        %v2791 = vpop.f32.mrf.mxu0
        %v2792 = vadd.f32 %v2703, %v2791
        %2793 = vmatmul.bf16.gmra.mxu0 %v2507
        %v2794 = vpop.f32.mrf.mxu0
        %v2795 = vadd.f32 %v2706, %v2794
        %v2796 = vpop.f32.mrf.mxu0
        %v2797 = vadd.f32 %v2708, %v2796
        %2798 = vmatmul.bf16.gmra.mxu0 %v2509
        %v2799 = vpop.f32.mrf.mxu0
        %v2800 = vadd.f32 %v2711, %v2799
        %v2801 = vpop.f32.mrf.mxu0
        %v2802 = vadd.f32 %v2713, %v2801
        %2803 = vmatmul.bf16.gmra.mxu0 %v2511
        %v2804 = vpop.f32.mrf.mxu0
        %v2805 = vadd.f32 %v2716, %v2804
        %v2806 = vpop.f32.mrf.mxu0
        %v2807 = vadd.f32 %v2718, %v2806
        %2808 = vmatmul.bf16.gmra.mxu0 %v2513
        %v2809 = vpop.f32.mrf.mxu0
        %v2810 = vadd.f32 %v2721, %v2809
        %v2811 = vpop.f32.mrf.mxu0
        %v2812 = vadd.f32 %v2723, %v2811
        %2813 = vmatmul.bf16.gmra.mxu0 %v2515
        %v2814 = vpop.f32.mrf.mxu0
        %v2815 = vadd.f32 %v2726, %v2814
        %v2816 = vpop.f32.mrf.mxu0
        %v2817 = vadd.f32 %v2728, %v2816
        %2818 = vmatmul.bf16.gmra.mxu0 %v2517
        %v2819 = vpop.f32.mrf.mxu0
        %v2820 = vadd.f32 %v2731, %v2819
        %v2821 = vpop.f32.mrf.mxu0
        %v2822 = vadd.f32 %v2733, %v2821
        %2823 = vmatmul.bf16.gmra.mxu0 %v2519
        %v2824 = vpop.f32.mrf.mxu0
        %v2825 = vadd.f32 %v2736, %v2824
        %v2826 = vpop.f32.mrf.mxu0
        %v2827 = vadd.f32 %v2738, %v2826
        %2828 = vdwg.mxu0
        %v2829 = vadd.f32 %v2750, %v419
        %v2830 = vadd.f32 %v2752, %v420
        %v2831 = vadd.f32 %v2755, %v421
        %v2832 = vadd.f32 %v2757, %v422
        %v2833 = vadd.f32 %v2760, %v423
        %v2834 = vadd.f32 %v2762, %v424
        %v2835 = vadd.f32 %v2765, %v425
        %v2836 = vadd.f32 %v2767, %v426
        %v2837 = vadd.f32 %v2770, %v427
        %v2838 = vadd.f32 %v2772, %v428
        %v2839 = vadd.f32 %v2775, %v429
        %v2840 = vadd.f32 %v2777, %v430
        %v2841 = vadd.f32 %v2780, %v431
        %v2842 = vadd.f32 %v2782, %v432
        %v2843 = vadd.f32 %v2785, %v433
        %v2844 = vadd.f32 %v2787, %v434
        %v2845 = vadd.f32 %v2790, %v435
        %v2846 = vadd.f32 %v2792, %v436
        %v2847 = vadd.f32 %v2795, %v437
        %v2848 = vadd.f32 %v2797, %v438
        %v2849 = vadd.f32 %v2800, %v439
        %v2850 = vadd.f32 %v2802, %v440
        %v2851 = vadd.f32 %v2805, %v441
        %v2852 = vadd.f32 %v2807, %v442
        %v2853 = vadd.f32 %v2810, %v443
        %v2854 = vadd.f32 %v2812, %v444
        %v2855 = vadd.f32 %v2815, %v445
        %v2856 = vadd.f32 %v2817, %v446
        %v2857 = vadd.f32 %v2820, %v447
        %v2858 = vadd.f32 %v2822, %v448
        %v2859 = vadd.f32 %v2825, %v449
        %v2860 = vadd.f32 %v2827, %v450
        %2861 = vadd.xlane.f32.xlu0 %v2829
        %v2862 = vpop.xlane.xlu0 %2861
        %2863 = vadd.xlane.f32.xlu0 %v2830
        %v2864 = vpop.xlane.xlu0 %2863
        %2865 = vadd.xlane.f32.xlu0 %v2831
        %v2866 = vpop.xlane.xlu0 %2865
        %2867 = vadd.xlane.f32.xlu0 %v2832
        %v2868 = vpop.xlane.xlu0 %2867
        %2869 = vadd.xlane.f32.xlu0 %v2833
        %v2870 = vpop.xlane.xlu0 %2869
        %2871 = vadd.xlane.f32.xlu0 %v2834
        %v2872 = vpop.xlane.xlu0 %2871
        %2873 = vadd.xlane.f32.xlu0 %v2835
        %v2874 = vpop.xlane.xlu0 %2873
        %2875 = vadd.xlane.f32.xlu0 %v2836
        %v2876 = vpop.xlane.xlu0 %2875
        %2877 = vadd.xlane.f32.xlu0 %v2837
        %v2878 = vpop.xlane.xlu0 %2877
        %2879 = vadd.xlane.f32.xlu0 %v2838
        %v2880 = vpop.xlane.xlu0 %2879
        %2881 = vadd.xlane.f32.xlu0 %v2839
        %v2882 = vpop.xlane.xlu0 %2881
        %2883 = vadd.xlane.f32.xlu0 %v2840
        %v2884 = vpop.xlane.xlu0 %2883
        %2885 = vadd.xlane.f32.xlu0 %v2841
        %v2886 = vpop.xlane.xlu0 %2885
        %2887 = vadd.xlane.f32.xlu0 %v2842
        %v2888 = vpop.xlane.xlu0 %2887
        %2889 = vadd.xlane.f32.xlu0 %v2843
        %v2890 = vpop.xlane.xlu0 %2889
        %2891 = vadd.xlane.f32.xlu0 %v2844
        %v2892 = vpop.xlane.xlu0 %2891
        %2893 = vadd.xlane.f32.xlu0 %v2845
        %v2894 = vpop.xlane.xlu0 %2893
        %2895 = vadd.xlane.f32.xlu0 %v2846
        %v2896 = vpop.xlane.xlu0 %2895
        %2897 = vadd.xlane.f32.xlu0 %v2847
        %v2898 = vpop.xlane.xlu0 %2897
        %2899 = vadd.xlane.f32.xlu0 %v2848
        %v2900 = vpop.xlane.xlu0 %2899
        %2901 = vadd.xlane.f32.xlu0 %v2849
        %v2902 = vpop.xlane.xlu0 %2901
        %2903 = vadd.xlane.f32.xlu0 %v2850
        %v2904 = vpop.xlane.xlu0 %2903
        %2905 = vadd.xlane.f32.xlu0 %v2851
        %v2906 = vpop.xlane.xlu0 %2905
        %2907 = vadd.xlane.f32.xlu0 %v2852
        %v2908 = vpop.xlane.xlu0 %2907
        %2909 = vadd.xlane.f32.xlu0 %v2853
        %v2910 = vpop.xlane.xlu0 %2909
        %2911 = vadd.xlane.f32.xlu0 %v2854
        %v2912 = vpop.xlane.xlu0 %2911
        %2913 = vadd.xlane.f32.xlu0 %v2855
        %v2914 = vpop.xlane.xlu0 %2913
        %2915 = vadd.xlane.f32.xlu0 %v2856
        %v2916 = vpop.xlane.xlu0 %2915
        %2917 = vadd.xlane.f32.xlu0 %v2857
        %v2918 = vpop.xlane.xlu0 %2917
        %2919 = vadd.xlane.f32.xlu0 %v2858
        %v2920 = vpop.xlane.xlu0 %2919
        %2921 = vadd.xlane.f32.xlu0 %v2859
        %v2922 = vpop.xlane.xlu0 %2921
        %2923 = vadd.xlane.f32.xlu0 %v2860
        %v2924 = vpop.xlane.xlu0 %2923
        %v2925 = vrcp.pop 128.0
        %v2926 = vmul.f32 128.0, %v2925
        %v2927 = vsub.f32 1.0, %v2926
        %v2928 = vmul.f32 %v2925, %v2927
        %v2929 = vadd.f32 %v2925, %v2928
        %vm2930 = vweird.f32 %v2925
        %v2931 = vsel %vm2930, %v2925, %v2929
        %v2932 = vmul.f32 %v2862, %v2931
        %v2933 = vmul.f32 %v2864, %v2931
        %v2934 = vmul.f32 %v2866, %v2931
        %v2935 = vmul.f32 %v2868, %v2931
        %v2936 = vmul.f32 %v2870, %v2931
        %v2937 = vmul.f32 %v2872, %v2931
        %v2938 = vmul.f32 %v2874, %v2931
        %v2939 = vmul.f32 %v2876, %v2931
        %v2940 = vmul.f32 %v2878, %v2931
        %v2941 = vmul.f32 %v2880, %v2931
        %v2942 = vmul.f32 %v2882, %v2931
        %v2943 = vmul.f32 %v2884, %v2931
        %v2944 = vmul.f32 %v2886, %v2931
        %v2945 = vmul.f32 %v2888, %v2931
        %v2946 = vmul.f32 %v2890, %v2931
        %v2947 = vmul.f32 %v2892, %v2931
        %v2948 = vmul.f32 %v2894, %v2931
        %v2949 = vmul.f32 %v2896, %v2931
        %v2950 = vmul.f32 %v2898, %v2931
        %v2951 = vmul.f32 %v2900, %v2931
        %v2952 = vmul.f32 %v2902, %v2931
        %v2953 = vmul.f32 %v2904, %v2931
        %v2954 = vmul.f32 %v2906, %v2931
        %v2955 = vmul.f32 %v2908, %v2931
        %v2956 = vmul.f32 %v2910, %v2931
        %v2957 = vmul.f32 %v2912, %v2931
        %v2958 = vmul.f32 %v2914, %v2931
        %v2959 = vmul.f32 %v2916, %v2931
        %v2960 = vmul.f32 %v2918, %v2931
        %v2961 = vmul.f32 %v2920, %v2931
        %v2962 = vmul.f32 %v2922, %v2931
        %v2963 = vmul.f32 %v2924, %v2931
        %v2964 = vsub.f32 %v2829, %v2932
        %v2965 = vsub.f32 %v2830, %v2933
        %v2966 = vsub.f32 %v2831, %v2934
        %v2967 = vsub.f32 %v2832, %v2935
        %v2968 = vsub.f32 %v2833, %v2936
        %v2969 = vsub.f32 %v2834, %v2937
        %v2970 = vsub.f32 %v2835, %v2938
        %v2971 = vsub.f32 %v2836, %v2939
        %v2972 = vsub.f32 %v2837, %v2940
        %v2973 = vsub.f32 %v2838, %v2941
        %v2974 = vsub.f32 %v2839, %v2942
        %v2975 = vsub.f32 %v2840, %v2943
        %v2976 = vsub.f32 %v2841, %v2944
        %v2977 = vsub.f32 %v2842, %v2945
        %v2978 = vsub.f32 %v2843, %v2946
        %v2979 = vsub.f32 %v2844, %v2947
        %v2980 = vsub.f32 %v2845, %v2948
        %v2981 = vsub.f32 %v2846, %v2949
        %v2982 = vsub.f32 %v2847, %v2950
        %v2983 = vsub.f32 %v2848, %v2951
        %v2984 = vsub.f32 %v2849, %v2952
        %v2985 = vsub.f32 %v2850, %v2953
        %v2986 = vsub.f32 %v2851, %v2954
        %v2987 = vsub.f32 %v2852, %v2955
        %v2988 = vsub.f32 %v2853, %v2956
        %v2989 = vsub.f32 %v2854, %v2957
        %v2990 = vsub.f32 %v2855, %v2958
        %v2991 = vsub.f32 %v2856, %v2959
        %v2992 = vsub.f32 %v2857, %v2960
        %v2993 = vsub.f32 %v2858, %v2961
        %v2994 = vsub.f32 %v2859, %v2962
        %v2995 = vsub.f32 %v2860, %v2963
        %v2996 = vmul.f32 %v2964, %v2964
        %v2997 = vmul.f32 %v2965, %v2965
        %v2998 = vmul.f32 %v2966, %v2966
        %v2999 = vmul.f32 %v2967, %v2967
        %v3000 = vmul.f32 %v2968, %v2968
        %v3001 = vmul.f32 %v2969, %v2969
        %v3002 = vmul.f32 %v2970, %v2970
        %v3003 = vmul.f32 %v2971, %v2971
        %v3004 = vmul.f32 %v2972, %v2972
        %v3005 = vmul.f32 %v2973, %v2973
        %v3006 = vmul.f32 %v2974, %v2974
        %v3007 = vmul.f32 %v2975, %v2975
        %v3008 = vmul.f32 %v2976, %v2976
        %v3009 = vmul.f32 %v2977, %v2977
        %v3010 = vmul.f32 %v2978, %v2978
        %v3011 = vmul.f32 %v2979, %v2979
        %v3012 = vmul.f32 %v2980, %v2980
        %v3013 = vmul.f32 %v2981, %v2981
        %v3014 = vmul.f32 %v2982, %v2982
        %v3015 = vmul.f32 %v2983, %v2983
        %v3016 = vmul.f32 %v2984, %v2984
        %v3017 = vmul.f32 %v2985, %v2985
        %v3018 = vmul.f32 %v2986, %v2986
        %v3019 = vmul.f32 %v2987, %v2987
        %v3020 = vmul.f32 %v2988, %v2988
        %v3021 = vmul.f32 %v2989, %v2989
        %v3022 = vmul.f32 %v2990, %v2990
        %v3023 = vmul.f32 %v2991, %v2991
        %v3024 = vmul.f32 %v2992, %v2992
        %v3025 = vmul.f32 %v2993, %v2993
        %v3026 = vmul.f32 %v2994, %v2994
        %v3027 = vmul.f32 %v2995, %v2995
        %3028 = vadd.xlane.f32.xlu0 %v2996
        %v3029 = vpop.xlane.xlu0 %3028
        %3030 = vadd.xlane.f32.xlu0 %v2997
        %v3031 = vpop.xlane.xlu0 %3030
        %3032 = vadd.xlane.f32.xlu0 %v2998
        %v3033 = vpop.xlane.xlu0 %3032
        %3034 = vadd.xlane.f32.xlu0 %v2999
        %v3035 = vpop.xlane.xlu0 %3034
        %3036 = vadd.xlane.f32.xlu0 %v3000
        %v3037 = vpop.xlane.xlu0 %3036
        %3038 = vadd.xlane.f32.xlu0 %v3001
        %v3039 = vpop.xlane.xlu0 %3038
        %3040 = vadd.xlane.f32.xlu0 %v3002
        %v3041 = vpop.xlane.xlu0 %3040
        %3042 = vadd.xlane.f32.xlu0 %v3003
        %v3043 = vpop.xlane.xlu0 %3042
        %3044 = vadd.xlane.f32.xlu0 %v3004
        %v3045 = vpop.xlane.xlu0 %3044
        %3046 = vadd.xlane.f32.xlu0 %v3005
        %v3047 = vpop.xlane.xlu0 %3046
        %3048 = vadd.xlane.f32.xlu0 %v3006
        %v3049 = vpop.xlane.xlu0 %3048
        %3050 = vadd.xlane.f32.xlu0 %v3007
        %v3051 = vpop.xlane.xlu0 %3050
        %3052 = vadd.xlane.f32.xlu0 %v3008
        %v3053 = vpop.xlane.xlu0 %3052
        %3054 = vadd.xlane.f32.xlu0 %v3009
        %v3055 = vpop.xlane.xlu0 %3054
        %3056 = vadd.xlane.f32.xlu0 %v3010
        %v3057 = vpop.xlane.xlu0 %3056
        %3058 = vadd.xlane.f32.xlu0 %v3011
        %v3059 = vpop.xlane.xlu0 %3058
        %3060 = vadd.xlane.f32.xlu0 %v3012
        %v3061 = vpop.xlane.xlu0 %3060
        %3062 = vadd.xlane.f32.xlu0 %v3013
        %v3063 = vpop.xlane.xlu0 %3062
        %3064 = vadd.xlane.f32.xlu0 %v3014
        %v3065 = vpop.xlane.xlu0 %3064
        %3066 = vadd.xlane.f32.xlu0 %v3015
        %v3067 = vpop.xlane.xlu0 %3066
        %3068 = vadd.xlane.f32.xlu0 %v3016
        %v3069 = vpop.xlane.xlu0 %3068
        %3070 = vadd.xlane.f32.xlu0 %v3017
        %v3071 = vpop.xlane.xlu0 %3070
        %3072 = vadd.xlane.f32.xlu0 %v3018
        %v3073 = vpop.xlane.xlu0 %3072
        %3074 = vadd.xlane.f32.xlu0 %v3019
        %v3075 = vpop.xlane.xlu0 %3074
        %3076 = vadd.xlane.f32.xlu0 %v3020
        %v3077 = vpop.xlane.xlu0 %3076
        %3078 = vadd.xlane.f32.xlu0 %v3021
        %v3079 = vpop.xlane.xlu0 %3078
        %3080 = vadd.xlane.f32.xlu0 %v3022
        %v3081 = vpop.xlane.xlu0 %3080
        %3082 = vadd.xlane.f32.xlu0 %v3023
        %v3083 = vpop.xlane.xlu0 %3082
        %3084 = vadd.xlane.f32.xlu0 %v3024
        %v3085 = vpop.xlane.xlu0 %3084
        %3086 = vadd.xlane.f32.xlu0 %v3025
        %v3087 = vpop.xlane.xlu0 %3086
        %3088 = vadd.xlane.f32.xlu0 %v3026
        %v3089 = vpop.xlane.xlu0 %3088
        %3090 = vadd.xlane.f32.xlu0 %v3027
        %v3091 = vpop.xlane.xlu0 %3090
        %v3092 = vmul.f32 %v3029, %v2931
        %v3093 = vmul.f32 %v3031, %v2931
        %v3094 = vmul.f32 %v3033, %v2931
        %v3095 = vmul.f32 %v3035, %v2931
        %v3096 = vmul.f32 %v3037, %v2931
        %v3097 = vmul.f32 %v3039, %v2931
        %v3098 = vmul.f32 %v3041, %v2931
        %v3099 = vmul.f32 %v3043, %v2931
        %v3100 = vmul.f32 %v3045, %v2931
        %v3101 = vmul.f32 %v3047, %v2931
        %v3102 = vmul.f32 %v3049, %v2931
        %v3103 = vmul.f32 %v3051, %v2931
        %v3104 = vmul.f32 %v3053, %v2931
        %v3105 = vmul.f32 %v3055, %v2931
        %v3106 = vmul.f32 %v3057, %v2931
        %v3107 = vmul.f32 %v3059, %v2931
        %v3108 = vmul.f32 %v3061, %v2931
        %v3109 = vmul.f32 %v3063, %v2931
        %v3110 = vmul.f32 %v3065, %v2931
        %v3111 = vmul.f32 %v3067, %v2931
        %v3112 = vmul.f32 %v3069, %v2931
        %v3113 = vmul.f32 %v3071, %v2931
        %v3114 = vmul.f32 %v3073, %v2931
        %v3115 = vmul.f32 %v3075, %v2931
        %v3116 = vmul.f32 %v3077, %v2931
        %v3117 = vmul.f32 %v3079, %v2931
        %v3118 = vmul.f32 %v3081, %v2931
        %v3119 = vmul.f32 %v3083, %v2931
        %v3120 = vmul.f32 %v3085, %v2931
        %v3121 = vmul.f32 %v3087, %v2931
        %v3122 = vmul.f32 %v3089, %v2931
        %v3123 = vmul.f32 %v3091, %v2931
        %v3124 = vadd.f32 %v3092, 1e-05
        %v3125 = vadd.f32 %v3093, 1e-05
        %v3126 = vadd.f32 %v3094, 1e-05
        %v3127 = vadd.f32 %v3095, 1e-05
        %v3128 = vadd.f32 %v3096, 1e-05
        %v3129 = vadd.f32 %v3097, 1e-05
        %v3130 = vadd.f32 %v3098, 1e-05
        %v3131 = vadd.f32 %v3099, 1e-05
        %v3132 = vadd.f32 %v3100, 1e-05
        %v3133 = vadd.f32 %v3101, 1e-05
        %v3134 = vadd.f32 %v3102, 1e-05
        %v3135 = vadd.f32 %v3103, 1e-05
        %v3136 = vadd.f32 %v3104, 1e-05
        %v3137 = vadd.f32 %v3105, 1e-05
        %v3138 = vadd.f32 %v3106, 1e-05
        %v3139 = vadd.f32 %v3107, 1e-05
        %v3140 = vadd.f32 %v3108, 1e-05
        %v3141 = vadd.f32 %v3109, 1e-05
        %v3142 = vadd.f32 %v3110, 1e-05
        %v3143 = vadd.f32 %v3111, 1e-05
        %v3144 = vadd.f32 %v3112, 1e-05
        %v3145 = vadd.f32 %v3113, 1e-05
        %v3146 = vadd.f32 %v3114, 1e-05
        %v3147 = vadd.f32 %v3115, 1e-05
        %v3148 = vadd.f32 %v3116, 1e-05
        %v3149 = vadd.f32 %v3117, 1e-05
        %v3150 = vadd.f32 %v3118, 1e-05
        %v3151 = vadd.f32 %v3119, 1e-05
        %v3152 = vadd.f32 %v3120, 1e-05
        %v3153 = vadd.f32 %v3121, 1e-05
        %v3154 = vadd.f32 %v3122, 1e-05
        %v3155 = vadd.f32 %v3123, 1e-05
        %v3156 = vrsqrt.pop %v3124
        %v3157 = vmul.f32 %v3156, %v3124
        %v3158 = vmul.f32 %v3157, %v3156
        %v3159 = vmul.f32 0.5, %v3158
        %v3160 = vsub.f32 1.5, %v3159
        %v3161 = vmul.f32 %v3156, %v3160
        %vm3162 = vweird.f32 %v3124
        %vm3163 = vweird.f32 %v3156
        %vm3164 = vmor %vm3162, %vm3163
        %v3165 = vsel %vm3164, %v3156, %v3161
        %v3166 = vrsqrt.pop %v3125
        %v3167 = vmul.f32 %v3166, %v3125
        %v3168 = vmul.f32 %v3167, %v3166
        %v3169 = vmul.f32 0.5, %v3168
        %v3170 = vsub.f32 1.5, %v3169
        %v3171 = vmul.f32 %v3166, %v3170
        %vm3172 = vweird.f32 %v3125
        %vm3173 = vweird.f32 %v3166
        %vm3174 = vmor %vm3172, %vm3173
        %v3175 = vsel %vm3174, %v3166, %v3171
        %v3176 = vrsqrt.pop %v3126
        %v3177 = vmul.f32 %v3176, %v3126
        %v3178 = vmul.f32 %v3177, %v3176
        %v3179 = vmul.f32 0.5, %v3178
        %v3180 = vsub.f32 1.5, %v3179
        %v3181 = vmul.f32 %v3176, %v3180
        %vm3182 = vweird.f32 %v3126
        %vm3183 = vweird.f32 %v3176
        %vm3184 = vmor %vm3182, %vm3183
        %v3185 = vsel %vm3184, %v3176, %v3181
        %v3186 = vrsqrt.pop %v3127
        %v3187 = vmul.f32 %v3186, %v3127
        %v3188 = vmul.f32 %v3187, %v3186
        %v3189 = vmul.f32 0.5, %v3188
        %v3190 = vsub.f32 1.5, %v3189
        %v3191 = vmul.f32 %v3186, %v3190
        %vm3192 = vweird.f32 %v3127
        %vm3193 = vweird.f32 %v3186
        %vm3194 = vmor %vm3192, %vm3193
        %v3195 = vsel %vm3194, %v3186, %v3191
        %v3196 = vrsqrt.pop %v3128
        %v3197 = vmul.f32 %v3196, %v3128
        %v3198 = vmul.f32 %v3197, %v3196
        %v3199 = vmul.f32 0.5, %v3198
        %v3200 = vsub.f32 1.5, %v3199
        %v3201 = vmul.f32 %v3196, %v3200
        %vm3202 = vweird.f32 %v3128
        %vm3203 = vweird.f32 %v3196
        %vm3204 = vmor %vm3202, %vm3203
        %v3205 = vsel %vm3204, %v3196, %v3201
        %v3206 = vrsqrt.pop %v3129
        %v3207 = vmul.f32 %v3206, %v3129
        %v3208 = vmul.f32 %v3207, %v3206
        %v3209 = vmul.f32 0.5, %v3208
        %v3210 = vsub.f32 1.5, %v3209
        %v3211 = vmul.f32 %v3206, %v3210
        %vm3212 = vweird.f32 %v3129
        %vm3213 = vweird.f32 %v3206
        %vm3214 = vmor %vm3212, %vm3213
        %v3215 = vsel %vm3214, %v3206, %v3211
        %v3216 = vrsqrt.pop %v3130
        %v3217 = vmul.f32 %v3216, %v3130
        %v3218 = vmul.f32 %v3217, %v3216
        %v3219 = vmul.f32 0.5, %v3218
        %v3220 = vsub.f32 1.5, %v3219
        %v3221 = vmul.f32 %v3216, %v3220
        %vm3222 = vweird.f32 %v3130
        %vm3223 = vweird.f32 %v3216
        %vm3224 = vmor %vm3222, %vm3223
        %v3225 = vsel %vm3224, %v3216, %v3221
        %v3226 = vrsqrt.pop %v3131
        %v3227 = vmul.f32 %v3226, %v3131
        %v3228 = vmul.f32 %v3227, %v3226
        %v3229 = vmul.f32 0.5, %v3228
        %v3230 = vsub.f32 1.5, %v3229
        %v3231 = vmul.f32 %v3226, %v3230
        %vm3232 = vweird.f32 %v3131
        %vm3233 = vweird.f32 %v3226
        %vm3234 = vmor %vm3232, %vm3233
        %v3235 = vsel %vm3234, %v3226, %v3231
        %v3236 = vrsqrt.pop %v3132
        %v3237 = vmul.f32 %v3236, %v3132
        %v3238 = vmul.f32 %v3237, %v3236
        %v3239 = vmul.f32 0.5, %v3238
        %v3240 = vsub.f32 1.5, %v3239
        %v3241 = vmul.f32 %v3236, %v3240
        %vm3242 = vweird.f32 %v3132
        %vm3243 = vweird.f32 %v3236
        %vm3244 = vmor %vm3242, %vm3243
        %v3245 = vsel %vm3244, %v3236, %v3241
        %v3246 = vrsqrt.pop %v3133
        %v3247 = vmul.f32 %v3246, %v3133
        %v3248 = vmul.f32 %v3247, %v3246
        %v3249 = vmul.f32 0.5, %v3248
        %v3250 = vsub.f32 1.5, %v3249
        %v3251 = vmul.f32 %v3246, %v3250
        %vm3252 = vweird.f32 %v3133
        %vm3253 = vweird.f32 %v3246
        %vm3254 = vmor %vm3252, %vm3253
        %v3255 = vsel %vm3254, %v3246, %v3251
        %v3256 = vrsqrt.pop %v3134
        %v3257 = vmul.f32 %v3256, %v3134
        %v3258 = vmul.f32 %v3257, %v3256
        %v3259 = vmul.f32 0.5, %v3258
        %v3260 = vsub.f32 1.5, %v3259
        %v3261 = vmul.f32 %v3256, %v3260
        %vm3262 = vweird.f32 %v3134
        %vm3263 = vweird.f32 %v3256
        %vm3264 = vmor %vm3262, %vm3263
        %v3265 = vsel %vm3264, %v3256, %v3261
        %v3266 = vrsqrt.pop %v3135
        %v3267 = vmul.f32 %v3266, %v3135
        %v3268 = vmul.f32 %v3267, %v3266
        %v3269 = vmul.f32 0.5, %v3268
        %v3270 = vsub.f32 1.5, %v3269
        %v3271 = vmul.f32 %v3266, %v3270
        %vm3272 = vweird.f32 %v3135
        %vm3273 = vweird.f32 %v3266
        %vm3274 = vmor %vm3272, %vm3273
        %v3275 = vsel %vm3274, %v3266, %v3271
        %v3276 = vrsqrt.pop %v3136
        %v3277 = vmul.f32 %v3276, %v3136
        %v3278 = vmul.f32 %v3277, %v3276
        %v3279 = vmul.f32 0.5, %v3278
        %v3280 = vsub.f32 1.5, %v3279
        %v3281 = vmul.f32 %v3276, %v3280
        %vm3282 = vweird.f32 %v3136
        %vm3283 = vweird.f32 %v3276
        %vm3284 = vmor %vm3282, %vm3283
        %v3285 = vsel %vm3284, %v3276, %v3281
        %v3286 = vrsqrt.pop %v3137
        %v3287 = vmul.f32 %v3286, %v3137
        %v3288 = vmul.f32 %v3287, %v3286
        %v3289 = vmul.f32 0.5, %v3288
        %v3290 = vsub.f32 1.5, %v3289
        %v3291 = vmul.f32 %v3286, %v3290
        %vm3292 = vweird.f32 %v3137
        %vm3293 = vweird.f32 %v3286
        %vm3294 = vmor %vm3292, %vm3293
        %v3295 = vsel %vm3294, %v3286, %v3291
        %v3296 = vrsqrt.pop %v3138
        %v3297 = vmul.f32 %v3296, %v3138
        %v3298 = vmul.f32 %v3297, %v3296
        %v3299 = vmul.f32 0.5, %v3298
        %v3300 = vsub.f32 1.5, %v3299
        %v3301 = vmul.f32 %v3296, %v3300
        %vm3302 = vweird.f32 %v3138
        %vm3303 = vweird.f32 %v3296
        %vm3304 = vmor %vm3302, %vm3303
        %v3305 = vsel %vm3304, %v3296, %v3301
        %v3306 = vrsqrt.pop %v3139
        %v3307 = vmul.f32 %v3306, %v3139
        %v3308 = vmul.f32 %v3307, %v3306
        %v3309 = vmul.f32 0.5, %v3308
        %v3310 = vsub.f32 1.5, %v3309
        %v3311 = vmul.f32 %v3306, %v3310
        %vm3312 = vweird.f32 %v3139
        %vm3313 = vweird.f32 %v3306
        %vm3314 = vmor %vm3312, %vm3313
        %v3315 = vsel %vm3314, %v3306, %v3311
        %v3316 = vrsqrt.pop %v3140
        %v3317 = vmul.f32 %v3316, %v3140
        %v3318 = vmul.f32 %v3317, %v3316
        %v3319 = vmul.f32 0.5, %v3318
        %v3320 = vsub.f32 1.5, %v3319
        %v3321 = vmul.f32 %v3316, %v3320
        %vm3322 = vweird.f32 %v3140
        %vm3323 = vweird.f32 %v3316
        %vm3324 = vmor %vm3322, %vm3323
        %v3325 = vsel %vm3324, %v3316, %v3321
        %v3326 = vrsqrt.pop %v3141
        %v3327 = vmul.f32 %v3326, %v3141
        %v3328 = vmul.f32 %v3327, %v3326
        %v3329 = vmul.f32 0.5, %v3328
        %v3330 = vsub.f32 1.5, %v3329
        %v3331 = vmul.f32 %v3326, %v3330
        %vm3332 = vweird.f32 %v3141
        %vm3333 = vweird.f32 %v3326
        %vm3334 = vmor %vm3332, %vm3333
        %v3335 = vsel %vm3334, %v3326, %v3331
        %v3336 = vrsqrt.pop %v3142
        %v3337 = vmul.f32 %v3336, %v3142
        %v3338 = vmul.f32 %v3337, %v3336
        %v3339 = vmul.f32 0.5, %v3338
        %v3340 = vsub.f32 1.5, %v3339
        %v3341 = vmul.f32 %v3336, %v3340
        %vm3342 = vweird.f32 %v3142
        %vm3343 = vweird.f32 %v3336
        %vm3344 = vmor %vm3342, %vm3343
        %v3345 = vsel %vm3344, %v3336, %v3341
        %v3346 = vrsqrt.pop %v3143
        %v3347 = vmul.f32 %v3346, %v3143
        %v3348 = vmul.f32 %v3347, %v3346
        %v3349 = vmul.f32 0.5, %v3348
        %v3350 = vsub.f32 1.5, %v3349
        %v3351 = vmul.f32 %v3346, %v3350
        %vm3352 = vweird.f32 %v3143
        %vm3353 = vweird.f32 %v3346
        %vm3354 = vmor %vm3352, %vm3353
        %v3355 = vsel %vm3354, %v3346, %v3351
        %v3356 = vrsqrt.pop %v3144
        %v3357 = vmul.f32 %v3356, %v3144
        %v3358 = vmul.f32 %v3357, %v3356
        %v3359 = vmul.f32 0.5, %v3358
        %v3360 = vsub.f32 1.5, %v3359
        %v3361 = vmul.f32 %v3356, %v3360
        %vm3362 = vweird.f32 %v3144
        %vm3363 = vweird.f32 %v3356
        %vm3364 = vmor %vm3362, %vm3363
        %v3365 = vsel %vm3364, %v3356, %v3361
        %v3366 = vrsqrt.pop %v3145
        %v3367 = vmul.f32 %v3366, %v3145
        %v3368 = vmul.f32 %v3367, %v3366
        %v3369 = vmul.f32 0.5, %v3368
        %v3370 = vsub.f32 1.5, %v3369
        %v3371 = vmul.f32 %v3366, %v3370
        %vm3372 = vweird.f32 %v3145
        %vm3373 = vweird.f32 %v3366
        %vm3374 = vmor %vm3372, %vm3373
        %v3375 = vsel %vm3374, %v3366, %v3371
        %v3376 = vrsqrt.pop %v3146
        %v3377 = vmul.f32 %v3376, %v3146
        %v3378 = vmul.f32 %v3377, %v3376
        %v3379 = vmul.f32 0.5, %v3378
        %v3380 = vsub.f32 1.5, %v3379
        %v3381 = vmul.f32 %v3376, %v3380
        %vm3382 = vweird.f32 %v3146
        %vm3383 = vweird.f32 %v3376
        %vm3384 = vmor %vm3382, %vm3383
        %v3385 = vsel %vm3384, %v3376, %v3381
        %v3386 = vrsqrt.pop %v3147
        %v3387 = vmul.f32 %v3386, %v3147
        %v3388 = vmul.f32 %v3387, %v3386
        %v3389 = vmul.f32 0.5, %v3388
        %v3390 = vsub.f32 1.5, %v3389
        %v3391 = vmul.f32 %v3386, %v3390
        %vm3392 = vweird.f32 %v3147
        %vm3393 = vweird.f32 %v3386
        %vm3394 = vmor %vm3392, %vm3393
        %v3395 = vsel %vm3394, %v3386, %v3391
        %v3396 = vrsqrt.pop %v3148
        %v3397 = vmul.f32 %v3396, %v3148
        %v3398 = vmul.f32 %v3397, %v3396
        %v3399 = vmul.f32 0.5, %v3398
        %v3400 = vsub.f32 1.5, %v3399
        %v3401 = vmul.f32 %v3396, %v3400
        %vm3402 = vweird.f32 %v3148
        %vm3403 = vweird.f32 %v3396
        %vm3404 = vmor %vm3402, %vm3403
        %v3405 = vsel %vm3404, %v3396, %v3401
        %v3406 = vrsqrt.pop %v3149
        %v3407 = vmul.f32 %v3406, %v3149
        %v3408 = vmul.f32 %v3407, %v3406
        %v3409 = vmul.f32 0.5, %v3408
        %v3410 = vsub.f32 1.5, %v3409
        %v3411 = vmul.f32 %v3406, %v3410
        %vm3412 = vweird.f32 %v3149
        %vm3413 = vweird.f32 %v3406
        %vm3414 = vmor %vm3412, %vm3413
        %v3415 = vsel %vm3414, %v3406, %v3411
        %v3416 = vrsqrt.pop %v3150
        %v3417 = vmul.f32 %v3416, %v3150
        %v3418 = vmul.f32 %v3417, %v3416
        %v3419 = vmul.f32 0.5, %v3418
        %v3420 = vsub.f32 1.5, %v3419
        %v3421 = vmul.f32 %v3416, %v3420
        %vm3422 = vweird.f32 %v3150
        %vm3423 = vweird.f32 %v3416
        %vm3424 = vmor %vm3422, %vm3423
        %v3425 = vsel %vm3424, %v3416, %v3421
        %v3426 = vrsqrt.pop %v3151
        %v3427 = vmul.f32 %v3426, %v3151
        %v3428 = vmul.f32 %v3427, %v3426
        %v3429 = vmul.f32 0.5, %v3428
        %v3430 = vsub.f32 1.5, %v3429
        %v3431 = vmul.f32 %v3426, %v3430
        %vm3432 = vweird.f32 %v3151
        %vm3433 = vweird.f32 %v3426
        %vm3434 = vmor %vm3432, %vm3433
        %v3435 = vsel %vm3434, %v3426, %v3431
        %v3436 = vrsqrt.pop %v3152
        %v3437 = vmul.f32 %v3436, %v3152
        %v3438 = vmul.f32 %v3437, %v3436
        %v3439 = vmul.f32 0.5, %v3438
        %v3440 = vsub.f32 1.5, %v3439
        %v3441 = vmul.f32 %v3436, %v3440
        %vm3442 = vweird.f32 %v3152
        %vm3443 = vweird.f32 %v3436
        %vm3444 = vmor %vm3442, %vm3443
        %v3445 = vsel %vm3444, %v3436, %v3441
        %v3446 = vrsqrt.pop %v3153
        %v3447 = vmul.f32 %v3446, %v3153
        %v3448 = vmul.f32 %v3447, %v3446
        %v3449 = vmul.f32 0.5, %v3448
        %v3450 = vsub.f32 1.5, %v3449
        %v3451 = vmul.f32 %v3446, %v3450
        %vm3452 = vweird.f32 %v3153
        %vm3453 = vweird.f32 %v3446
        %vm3454 = vmor %vm3452, %vm3453
        %v3455 = vsel %vm3454, %v3446, %v3451
        %v3456 = vrsqrt.pop %v3154
        %v3457 = vmul.f32 %v3456, %v3154
        %v3458 = vmul.f32 %v3457, %v3456
        %v3459 = vmul.f32 0.5, %v3458
        %v3460 = vsub.f32 1.5, %v3459
        %v3461 = vmul.f32 %v3456, %v3460
        %vm3462 = vweird.f32 %v3154
        %vm3463 = vweird.f32 %v3456
        %vm3464 = vmor %vm3462, %vm3463
        %v3465 = vsel %vm3464, %v3456, %v3461
        %v3466 = vrsqrt.pop %v3155
        %v3467 = vmul.f32 %v3466, %v3155
        %v3468 = vmul.f32 %v3467, %v3466
        %v3469 = vmul.f32 0.5, %v3468
        %v3470 = vsub.f32 1.5, %v3469
        %v3471 = vmul.f32 %v3466, %v3470
        %vm3472 = vweird.f32 %v3155
        %vm3473 = vweird.f32 %v3466
        %vm3474 = vmor %vm3472, %vm3473
        %v3475 = vsel %vm3474, %v3466, %v3471
        %v3476 = vmul.f32 %v2964, %v3165
        %v3477 = vmul.f32 %v2965, %v3175
        %v3478 = vmul.f32 %v2966, %v3185
        %v3479 = vmul.f32 %v2967, %v3195
        %v3480 = vmul.f32 %v2968, %v3205
        %v3481 = vmul.f32 %v2969, %v3215
        %v3482 = vmul.f32 %v2970, %v3225
        %v3483 = vmul.f32 %v2971, %v3235
        %v3484 = vmul.f32 %v2972, %v3245
        %v3485 = vmul.f32 %v2973, %v3255
        %v3486 = vmul.f32 %v2974, %v3265
        %v3487 = vmul.f32 %v2975, %v3275
        %v3488 = vmul.f32 %v2976, %v3285
        %v3489 = vmul.f32 %v2977, %v3295
        %v3490 = vmul.f32 %v2978, %v3305
        %v3491 = vmul.f32 %v2979, %v3315
        %v3492 = vmul.f32 %v2980, %v3325
        %v3493 = vmul.f32 %v2981, %v3335
        %v3494 = vmul.f32 %v2982, %v3345
        %v3495 = vmul.f32 %v2983, %v3355
        %v3496 = vmul.f32 %v2984, %v3365
        %v3497 = vmul.f32 %v2985, %v3375
        %v3498 = vmul.f32 %v2986, %v3385
        %v3499 = vmul.f32 %v2987, %v3395
        %v3500 = vmul.f32 %v2988, %v3405
        %v3501 = vmul.f32 %v2989, %v3415
        %v3502 = vmul.f32 %v2990, %v3425
        %v3503 = vmul.f32 %v2991, %v3435
        %v3504 = vmul.f32 %v2992, %v3445
        %v3505 = vmul.f32 %v2993, %v3455
        %v3506 = vmul.f32 %v2994, %v3465
        %v3507 = vmul.f32 %v2995, %v3475
        %v3509 = vperm.slane %v454, 0
        %v3511 = vmul.f32 %v3476, %v3509
        %v3512 = vmul.f32 %v3477, %v3509
        %v3513 = vmul.f32 %v3478, %v3509
        %v3514 = vmul.f32 %v3479, %v3509
        %v3515 = vmul.f32 %v3480, %v3509
        %v3516 = vmul.f32 %v3481, %v3509
        %v3517 = vmul.f32 %v3482, %v3509
        %v3518 = vmul.f32 %v3483, %v3509
        %v3519 = vmul.f32 %v3484, %v3509
        %v3520 = vmul.f32 %v3485, %v3509
        %v3521 = vmul.f32 %v3486, %v3509
        %v3522 = vmul.f32 %v3487, %v3509
        %v3523 = vmul.f32 %v3488, %v3509
        %v3524 = vmul.f32 %v3489, %v3509
        %v3525 = vmul.f32 %v3490, %v3509
        %v3526 = vmul.f32 %v3491, %v3509
        %v3527 = vmul.f32 %v3492, %v3509
        %v3528 = vmul.f32 %v3493, %v3509
        %v3529 = vmul.f32 %v3494, %v3509
        %v3530 = vmul.f32 %v3495, %v3509
        %v3531 = vmul.f32 %v3496, %v3509
        %v3532 = vmul.f32 %v3497, %v3509
        %v3533 = vmul.f32 %v3498, %v3509
        %v3534 = vmul.f32 %v3499, %v3509
        %v3535 = vmul.f32 %v3500, %v3509
        %v3536 = vmul.f32 %v3501, %v3509
        %v3537 = vmul.f32 %v3502, %v3509
        %v3538 = vmul.f32 %v3503, %v3509
        %v3539 = vmul.f32 %v3504, %v3509
        %v3540 = vmul.f32 %v3505, %v3509
        %v3541 = vmul.f32 %v3506, %v3509
        %v3542 = vmul.f32 %v3507, %v3509
        %v3544 = vperm.slane %v455, 0
        %v3546 = vadd.f32 %v3511, %v3544
        %v3547 = vadd.f32 %v3512, %v3544
        %v3548 = vadd.f32 %v3513, %v3544
        %v3549 = vadd.f32 %v3514, %v3544
        %v3550 = vadd.f32 %v3515, %v3544
        %v3551 = vadd.f32 %v3516, %v3544
        %v3552 = vadd.f32 %v3517, %v3544
        %v3553 = vadd.f32 %v3518, %v3544
        %v3554 = vadd.f32 %v3519, %v3544
        %v3555 = vadd.f32 %v3520, %v3544
        %v3556 = vadd.f32 %v3521, %v3544
        %v3557 = vadd.f32 %v3522, %v3544
        %v3558 = vadd.f32 %v3523, %v3544
        %v3559 = vadd.f32 %v3524, %v3544
        %v3560 = vadd.f32 %v3525, %v3544
        %v3561 = vadd.f32 %v3526, %v3544
        %v3562 = vadd.f32 %v3527, %v3544
        %v3563 = vadd.f32 %v3528, %v3544
        %v3564 = vadd.f32 %v3529, %v3544
        %v3565 = vadd.f32 %v3530, %v3544
        %v3566 = vadd.f32 %v3531, %v3544
        %v3567 = vadd.f32 %v3532, %v3544
        %v3568 = vadd.f32 %v3533, %v3544
        %v3569 = vadd.f32 %v3534, %v3544
        %v3570 = vadd.f32 %v3535, %v3544
        %v3571 = vadd.f32 %v3536, %v3544
        %v3572 = vadd.f32 %v3537, %v3544
        %v3573 = vadd.f32 %v3538, %v3544
        %v3574 = vadd.f32 %v3539, %v3544
        %v3575 = vadd.f32 %v3540, %v3544
        %v3576 = vadd.f32 %v3541, %v3544
        %v3577 = vadd.f32 %v3542, %v3544
        %3578 = vst [vmem:[%s416] sm:$0xff] %v3546
        %3579 = vst [vmem:[%s416 + $0x8] sm:$0xff] %v3547
        %3580 = vst [vmem:[%s416 + $0x10] sm:$0xff] %v3548
        %3581 = vst [vmem:[%s416 + $0x18] sm:$0xff] %v3549
        %3582 = vst [vmem:[%s416 + $0x20] sm:$0xff] %v3550
        %3583 = vst [vmem:[%s416 + $0x28] sm:$0xff] %v3551
        %3584 = vst [vmem:[%s416 + $0x30] sm:$0xff] %v3552
        %3585 = vst [vmem:[%s416 + $0x38] sm:$0xff] %v3553
        %3586 = vst [vmem:[%s416 + $0x40] sm:$0xff] %v3554
        %3587 = vst [vmem:[%s416 + $0x48] sm:$0xff] %v3555
        %3588 = vst [vmem:[%s416 + $0x50] sm:$0xff] %v3556
        %3589 = vst [vmem:[%s416 + $0x58] sm:$0xff] %v3557
        %3590 = vst [vmem:[%s416 + $0x60] sm:$0xff] %v3558
        %3591 = vst [vmem:[%s416 + $0x68] sm:$0xff] %v3559
        %3592 = vst [vmem:[%s416 + $0x70] sm:$0xff] %v3560
        %3593 = vst [vmem:[%s416 + $0x78] sm:$0xff] %v3561
        %3594 = vst [vmem:[%s416 + $0x80] sm:$0xff] %v3562
        %3595 = vst [vmem:[%s416 + $0x88] sm:$0xff] %v3563
        %3596 = vst [vmem:[%s416 + $0x90] sm:$0xff] %v3564
        %3597 = vst [vmem:[%s416 + $0x98] sm:$0xff] %v3565
        %3598 = vst [vmem:[%s416 + $0xa0] sm:$0xff] %v3566
        %3599 = vst [vmem:[%s416 + $0xa8] sm:$0xff] %v3567
        %3600 = vst [vmem:[%s416 + $0xb0] sm:$0xff] %v3568
        %3601 = vst [vmem:[%s416 + $0xb8] sm:$0xff] %v3569
        %3602 = vst [vmem:[%s416 + $0xc0] sm:$0xff] %v3570
        %3603 = vst [vmem:[%s416 + $0xc8] sm:$0xff] %v3571
        %3604 = vst [vmem:[%s416 + $0xd0] sm:$0xff] %v3572
        %3605 = vst [vmem:[%s416 + $0xd8] sm:$0xff] %v3573
        %3606 = vst [vmem:[%s416 + $0xe0] sm:$0xff] %v3574
        %3607 = vst [vmem:[%s416 + $0xe8] sm:$0xff] %v3575
        %3608 = vst [vmem:[%s416 + $0xf0] sm:$0xff] %v3576
        %3609 = vst [vmem:[%s416 + $0xf8] sm:$0xff] %v3577
        %s3610 = sand.u32 %s230, 1
        %s3611 = scalar_lea.sflag [#allocation4], %s3610
        %s3612 = sand.u32 %s230, 1
        %s3613 = smul.addr %s3612, 256
        %s3614 = scalar_lea.vmem [#allocation11], %s3613
        // Predicated region
        $region77: #{tpu_custom_call.1} parent=55 // pred_check
          %p3615 = pneg %p240
        $region78: #{tpu_custom_call.1} parent=55 // pred_check_branch
          %3617 = sbr.rel (%p3615) target = $region80
        $region79: #{tpu_custom_call.1} parent=55 // pred_region
          %s3618 = smul.u32 32, %s28
          %3620 = vsyncadd %s3611, 0
          %s3621 = smul.addr %s3618, 8
          %s3622 = scalar_lea.hbm %s9, %s3621
          %s3623 = sshll.u32 %s3614, 4
          %s3624 = int_to_ptr.vmem [resolvable:$true] %s3623
          %s3625 = sshll.u32 %s3622, 4
          %s3626 = int_to_ptr.hbm [resolvable:$true] %s3625
          %3631 = dma.vmem_to_hbm [thread:$0]  %s3624, 4096, %s3626, %s3611, 128, 128, 8
        $region80: #{tpu_custom_call.1} parent=55 // pred_fallthru
          _
      $region56: #{tpu_custom_call.1} parent=5 // pred_fallthru
        _
      %p3632 = scmp.le.s32.totalorder 2, %s23
      // Predicated region
      $region81: #{tpu_custom_call.1} parent=5 // pred_check
        %p3633 = pneg %p3632
      $region82: #{tpu_custom_call.1} parent=5 // pred_check_branch
        %3635 = sbr.rel (%p3633) target = $region84
      $region83: #{tpu_custom_call.1} parent=5 // pred_region
        %s3636 = ssub.s32 %s23, 2
        // Predicated region
        $region85: #{tpu_custom_call.1} parent=83 // pred_check
          %p3637 = pneg %p246
        $region86: #{tpu_custom_call.1} parent=83 // pred_check_branch
          %3639 = sbr.rel (%p3637) target = $region88
        $region87: #{tpu_custom_call.1} parent=83 // pred_region
          %s3640 = sand.u32 %s231, 1
          %s3641 = scalar_lea.sflag [#allocation4], %s3640
          %s3642 = sand.u32 %s231, 1
          %s3643 = smul.addr %s3642, 256
          %s3644 = scalar_lea.vmem [#allocation11], %s3643
          %3646 = dma.done %s3641, 4096
        $region88: #{tpu_custom_call.1} parent=83 // pred_fallthru
          _
      $region84: #{tpu_custom_call.1} parent=5 // pred_fallthru
        _
    $region6: #{tpu_custom_call.1} parent=1 // loop_footer
      %s27 = sadd.s32 1, %s23
    $region7: #{tpu_custom_call.1} parent=1 // loop_footer_branch
      %22 = sbr.rel target = $region3
    $region8: #{tpu_custom_call.1} parent=1 // loop_exit
      _
    %3647 = vsyncpa [#allocation3], 1
    %s3648 = scalar_lea.sflag [#allocation3], 1
    %3649 = vsyncpa %s3648, 1
    %3650 = vsyncpa [#allocation6], 1
    %3651 = vsyncpa [#allocation9], 1
    %3652 = vsyncpa [#allocation4], 1
    %s3653 = scalar_lea.sflag [#allocation4], 1
    %3654 = vsyncpa %s3653, 1

// kernel: tpu_custom_call.1
$region0: #{tpu_custom_call.1}
  #allocation0 [shape = 'u32[]', space=smem, size = 0x4, offset = 0x4, fixed_abs, tag = 'smem constant byte address 0x4 - core index']
  #allocation1 [shape = 'u32[72,128]{1,0:T(1,128)}', space=vmem, size = 0x9000, scoped, tag = 'internal scratch']
  %s0 = inlined_call_operand.hbm [shape: f32[512,128], index: 0, kind: input, shape index: {}]
  %s1 = inlined_call_operand.hbm [shape: bf16[128,256], index: 1, kind: input, shape index: {}]
  %s2 = inlined_call_operand.hbm [shape: f32[1,256], index: 2, kind: input, shape index: {}]
  %s3 = inlined_call_operand.hbm [shape: bf16[256,256], index: 3, kind: input, shape index: {}]
  %s4 = inlined_call_operand.vmem [shape: f32[1,256], index: 4, kind: input, shape index: {}]
  %s5 = inlined_call_operand.hbm [shape: bf16[256,128], index: 5, kind: input, shape index: {}]
  %s6 = inlined_call_operand.vmem [shape: f32[1,128], index: 6, kind: input, shape index: {}]
  %s7 = inlined_call_operand.vmem [shape: f32[1,128], index: 7, kind: input, shape index: {}]
  %s8 = inlined_call_operand.vmem [shape: f32[1,128], index: 8, kind: input, shape index: {}]
  %s9 = inlined_call_operand.hbm [shape: f32[512,128], index: 9, kind: output, shape index: {}]
  %s10 = sld [smem:[#allocation0]]
  $region89: #{tpu_custom_call.1} parent=0
    _
  %s12 = ssub.s32 1, %s10
  %s13 = scalar_select 0, %s12, %s10
  $region1: #{tpu_custom_call.1} parent=0
    #allocation2 [shape = 'u8[262144]{0}', space=vmem, size = 0x40000, scoped, tag = 'input window, operand 0']
    #allocation3 [shape = 's32[2]{0}', space=sflag, size = 0x8, scoped, tag = 'scoped memory for tpu_custom_call.1']
    #allocation4 [shape = 's32[2]{0}', space=sflag, size = 0x8, scoped, tag = 'scoped memory for tpu_custom_call.1']
    #allocation5 [shape = 'u8[65536]{0}', space=vmem, size = 0x10000, scoped, tag = 'input window, operand 1, single buffered']
    #allocation6 [shape = 's32[1]{0}', space=sflag, size = 0x4, scoped, tag = 'scoped memory for tpu_custom_call.1']
    #allocation7 [shape = 'u8[1024]{0}', space=vmem, size = 0x400, scoped, tag = 'input window, operand 2, single buffered']
    #allocation8 [shape = 'u8[131072]{0}', space=vmem, size = 0x20000, scoped, tag = 'input window, operand 3, single buffered']
    #allocation9 [shape = 's32[1]{0}', space=sflag, size = 0x4, scoped, tag = 'scoped memory for tpu_custom_call.1']
    #allocation10 [shape = 'u8[65536]{0}', space=vmem, size = 0x10000, scoped, tag = 'input window, operand 5, single buffered']
    #allocation11 [shape = 'u8[262144]{0}', space=vmem, size = 0x40000, scoped, tag = 'output window, operand 0']
    %14 = vsyncpa [#allocation3], 0
    %s15 = scalar_lea.sflag [#allocation3], 1
    %16 = vsyncpa %s15, 0
    %17 = vsyncpa [#allocation6], 0
    %18 = vsyncpa [#allocation9], 0
    %19 = vsyncpa [#allocation4], 0
    %s20 = scalar_lea.sflag [#allocation4], 1
    %21 = vsyncpa %s20, 0
    loop: start=0, step=1, limit=4
    $region2: #{tpu_custom_call.1} parent=1 // loop_pre_header
      _
    $region3: #{tpu_custom_call.1} parent=1 // loop_header
      %s23 = sphi 0, %s27
      %p24 = scmp.ge.s32.totalorder %s23, 4
      %s33 = sphi 0, %s35
      %s36 = sphi 0, %s33
      %s37 = sphi 0, %s36
      %s53 = sphi 0, %s37
      %s57 = sphi 0, %s57
      %s59 = sphi 0, %s57
      %s60 = sphi 0, %s59
      %s74 = sphi 0, %s60
      %s78 = sphi 0, %s78
      %s80 = sphi 0, %s78
      %s81 = sphi 0, %s80
      %s95 = sphi 0, %s81
      %s99 = sphi 0, %s99
      %s101 = sphi 0, %s99
      %s102 = sphi 0, %s101
      %s116 = sphi 0, %s102
      %s120 = sphi 0, %s120
      %s122 = sphi 0, %s120
      %s123 = sphi 0, %s122
      %s137 = sphi 0, %s123
      %s141 = sphi 0, %s141
      %s143 = sphi 0, %s141
      %s144 = sphi 0, %s143
      %s158 = sphi 0, %s144
      %s162 = sphi 0, %s162
      %s164 = sphi 0, %s162
      %s165 = sphi 0, %s164
      %s179 = sphi 0, %s165
      %s183 = sphi 0, %s183
      %s185 = sphi 0, %s183
      %s186 = sphi 0, %s185
      %s200 = sphi 0, %s186
      %s204 = sphi 0, %s204
      %s206 = sphi 0, %s204
      %s207 = sphi 0, %s206
      %s221 = sphi 0, %s207
      %s227 = sphi 0, %s229
      %s230 = sphi 0, %s227
      %s231 = sphi 0, %s230
      %s247 = sphi 0, %s231
    $region4: #{tpu_custom_call.1} parent=1 // loop_header_branch
      %26 = sbr.rel (%p24) target = $region8
    $region5: #{tpu_custom_call.1} parent=1 // loop_body
      %s28 = ssub.s32 %s23, 1
      %s29 = ssub.s32 %s23, 2
      %s30 = sadd.s32 %s23, 1
      %s31 = ssub.s32 %s23, %s30
      %p32 = scmp.eq.s32.totalorder %s31, 0
      %s34 = sadd.s32 %s33, 1
      %s35 = scalar_select %p32, %s33, %s34
      %p38 = pneg %p32
      %p39 = scmp.eq.s32.totalorder %s23, 1
      %p40 = por %p38, %p39
      %p41 = scmp.ne.s32.totalorder %s33, %s36
      %p42 = scmp.eq.s32.totalorder %s23, 0
      %p43 = por %p41, %p42
      %p44 = scmp.ne.s32.totalorder %s33, %s36
      %p45 = scmp.eq.s32.totalorder %s28, 1
      %p46 = por %p44, %p45
      %p47 = scmp.ne.s32.totalorder %s36, %s37
      %p48 = scmp.eq.s32.totalorder %s28, 0
      %p49 = por %p47, %p48
      %p50 = scmp.ne.s32.totalorder %s36, %s37
      %p51 = scmp.eq.s32.totalorder %s29, 1
      %p52 = por %p50, %p51
      %p54 = scmp.ne.s32.totalorder %s37, %s53
      %p55 = scmp.eq.s32.totalorder %s29, 0
      %p56 = por %p54, %p55
      %s58 = sadd.s32 %s57, 1
      %p61 = scmp.eq.s32.totalorder %s23, 1
      %p62 = scmp.ne.s32.totalorder %s57, %s59
      %p63 = scmp.eq.s32.totalorder %s23, 0
      %p64 = por %p62, %p63
      %p65 = scmp.ne.s32.totalorder %s57, %s59
      %p66 = scmp.eq.s32.totalorder %s28, 1
      %p67 = por %p65, %p66
      %p68 = scmp.ne.s32.totalorder %s59, %s60
      %p69 = scmp.eq.s32.totalorder %s28, 0
      %p70 = por %p68, %p69
      %p71 = scmp.ne.s32.totalorder %s59, %s60
      %p72 = scmp.eq.s32.totalorder %s29, 1
      %p73 = por %p71, %p72
      %p75 = scmp.ne.s32.totalorder %s60, %s74
      %p76 = scmp.eq.s32.totalorder %s29, 0
      %p77 = por %p75, %p76
      %s79 = sadd.s32 %s78, 1
      %p82 = scmp.eq.s32.totalorder %s23, 1
      %p83 = scmp.ne.s32.totalorder %s78, %s80
      %p84 = scmp.eq.s32.totalorder %s23, 0
      %p85 = por %p83, %p84
      %p86 = scmp.ne.s32.totalorder %s78, %s80
      %p87 = scmp.eq.s32.totalorder %s28, 1
      %p88 = por %p86, %p87
      %p89 = scmp.ne.s32.totalorder %s80, %s81
      %p90 = scmp.eq.s32.totalorder %s28, 0
      %p91 = por %p89, %p90
      %p92 = scmp.ne.s32.totalorder %s80, %s81
      %p93 = scmp.eq.s32.totalorder %s29, 1
      %p94 = por %p92, %p93
      %p96 = scmp.ne.s32.totalorder %s81, %s95
      %p97 = scmp.eq.s32.totalorder %s29, 0
      %p98 = por %p96, %p97
      %s100 = sadd.s32 %s99, 1
      %p103 = scmp.eq.s32.totalorder %s23, 1
      %p104 = scmp.ne.s32.totalorder %s99, %s101
      %p105 = scmp.eq.s32.totalorder %s23, 0
      %p106 = por %p104, %p105
      %p107 = scmp.ne.s32.totalorder %s99, %s101
      %p108 = scmp.eq.s32.totalorder %s28, 1
      %p109 = por %p107, %p108
      %p110 = scmp.ne.s32.totalorder %s101, %s102
      %p111 = scmp.eq.s32.totalorder %s28, 0
      %p112 = por %p110, %p111
      %p113 = scmp.ne.s32.totalorder %s101, %s102
      %p114 = scmp.eq.s32.totalorder %s29, 1
      %p115 = por %p113, %p114
      %p117 = scmp.ne.s32.totalorder %s102, %s116
      %p118 = scmp.eq.s32.totalorder %s29, 0
      %p119 = por %p117, %p118
      %s121 = sadd.s32 %s120, 1
      %p124 = scmp.eq.s32.totalorder %s23, 1
      %p125 = scmp.ne.s32.totalorder %s120, %s122
      %p126 = scmp.eq.s32.totalorder %s23, 0
      %p127 = por %p125, %p126
      %p128 = scmp.ne.s32.totalorder %s120, %s122
      %p129 = scmp.eq.s32.totalorder %s28, 1
      %p130 = por %p128, %p129
      %p131 = scmp.ne.s32.totalorder %s122, %s123
      %p132 = scmp.eq.s32.totalorder %s28, 0
      %p133 = por %p131, %p132
      %p134 = scmp.ne.s32.totalorder %s122, %s123
      %p135 = scmp.eq.s32.totalorder %s29, 1
      %p136 = por %p134, %p135
      %p138 = scmp.ne.s32.totalorder %s123, %s137
      %p139 = scmp.eq.s32.totalorder %s29, 0
      %p140 = por %p138, %p139
      %s142 = sadd.s32 %s141, 1
      %p145 = scmp.eq.s32.totalorder %s23, 1
      %p146 = scmp.ne.s32.totalorder %s141, %s143
      %p147 = scmp.eq.s32.totalorder %s23, 0
      %p148 = por %p146, %p147
      %p149 = scmp.ne.s32.totalorder %s141, %s143
      %p150 = scmp.eq.s32.totalorder %s28, 1
      %p151 = por %p149, %p150
      %p152 = scmp.ne.s32.totalorder %s143, %s144
      %p153 = scmp.eq.s32.totalorder %s28, 0
      %p154 = por %p152, %p153
      %p155 = scmp.ne.s32.totalorder %s143, %s144
      %p156 = scmp.eq.s32.totalorder %s29, 1
      %p157 = por %p155, %p156
      %p159 = scmp.ne.s32.totalorder %s144, %s158
      %p160 = scmp.eq.s32.totalorder %s29, 0
      %p161 = por %p159, %p160
      %s163 = sadd.s32 %s162, 1
      %p166 = scmp.eq.s32.totalorder %s23, 1
      %p167 = scmp.ne.s32.totalorder %s162, %s164
      %p168 = scmp.eq.s32.totalorder %s23, 0
      %p169 = por %p167, %p168
      %p170 = scmp.ne.s32.totalorder %s162, %s164
      %p171 = scmp.eq.s32.totalorder %s28, 1
      %p172 = por %p170, %p171
      %p173 = scmp.ne.s32.totalorder %s164, %s165
      %p174 = scmp.eq.s32.totalorder %s28, 0
      %p175 = por %p173, %p174
      %p176 = scmp.ne.s32.totalorder %s164, %s165
      %p177 = scmp.eq.s32.totalorder %s29, 1
      %p178 = por %p176, %p177
      %p180 = scmp.ne.s32.totalorder %s165, %s179
      %p181 = scmp.eq.s32.totalorder %s29, 0
      %p182 = por %p180, %p181
      %s184 = sadd.s32 %s183, 1
      %p187 = scmp.eq.s32.totalorder %s23, 1
      %p188 = scmp.ne.s32.totalorder %s183, %s185
      %p189 = scmp.eq.s32.totalorder %s23, 0
      %p190 = por %p188, %p189
      %p191 = scmp.ne.s32.totalorder %s183, %s185
      %p192 = scmp.eq.s32.totalorder %s28, 1
      %p193 = por %p191, %p192
      %p194 = scmp.ne.s32.totalorder %s185, %s186
      %p195 = scmp.eq.s32.totalorder %s28, 0
      %p196 = por %p194, %p195
      %p197 = scmp.ne.s32.totalorder %s185, %s186
      %p198 = scmp.eq.s32.totalorder %s29, 1
      %p199 = por %p197, %p198
      %p201 = scmp.ne.s32.totalorder %s186, %s200
      %p202 = scmp.eq.s32.totalorder %s29, 0
      %p203 = por %p201, %p202
      %s205 = sadd.s32 %s204, 1
      %p208 = scmp.eq.s32.totalorder %s23, 1
      %p209 = scmp.ne.s32.totalorder %s204, %s206
      %p210 = scmp.eq.s32.totalorder %s23, 0
      %p211 = por %p209, %p210
      %p212 = scmp.ne.s32.totalorder %s204, %s206
      %p213 = scmp.eq.s32.totalorder %s28, 1
      %p214 = por %p212, %p213
      %p215 = scmp.ne.s32.totalorder %s206, %s207
      %p216 = scmp.eq.s32.totalorder %s28, 0
      %p217 = por %p215, %p216
      %p218 = scmp.ne.s32.totalorder %s206, %s207
      %p219 = scmp.eq.s32.totalorder %s29, 1
      %p220 = por %p218, %p219
      %p222 = scmp.ne.s32.totalorder %s207, %s221
      %p223 = scmp.eq.s32.totalorder %s29, 0
      %p224 = por %p222, %p223
      %s225 = ssub.s32 %s23, %s30
      %p226 = scmp.eq.s32.totalorder %s225, 0
      %s228 = sadd.s32 %s227, 1
      %s229 = scalar_select %p226, %s227, %s228
      %p232 = pneg %p226
      %p233 = scmp.eq.s32.totalorder %s23, 1
      %p234 = por %p232, %p233
      %p235 = scmp.ne.s32.totalorder %s227, %s230
      %p236 = scmp.eq.s32.totalorder %s23, 0
      %p237 = por %p235, %p236
      %p238 = scmp.ne.s32.totalorder %s227, %s230
      %p239 = scmp.eq.s32.totalorder %s28, 1
      %p240 = por %p238, %p239
      %p241 = scmp.ne.s32.totalorder %s230, %s231
      %p242 = scmp.eq.s32.totalorder %s28, 0
      %p243 = por %p241, %p242
      %p244 = scmp.ne.s32.totalorder %s230, %s231
      %p245 = scmp.eq.s32.totalorder %s29, 1
      %p246 = por %p244, %p245
      %p248 = scmp.ne.s32.totalorder %s231, %s247
      %p249 = scmp.eq.s32.totalorder %s29, 0
      %p250 = por %p248, %p249
      %p251 = scmp.le.s32.totalorder 1, %s23
      %p252 = scmp.lt.s32.totalorder %s23, 3
      %p253 = pnand %p251, %p252
      %p254 = pneg %p253
      // Predicated region
      $region9: #{tpu_custom_call.1} parent=5 // pred_check
        _
      $region10: #{tpu_custom_call.1} parent=5 // pred_check_branch
        %256 = sbr.rel (%p253) target = $region12
      $region11: #{tpu_custom_call.1} parent=5 // pred_region
        %s257 = ssub.s32 %s23, 1
        // Predicated region
        $region13: #{tpu_custom_call.1} parent=11 // pred_check
          %p258 = pneg %p70
        $region14: #{tpu_custom_call.1} parent=11 // pred_check_branch
          %260 = sbr.rel (%p258) target = $region16
        $region15: #{tpu_custom_call.1} parent=11 // pred_region
          %262 = vsyncadd [#allocation6], 0
          %s263 = sshll.u32 %s1, 4
          %s264 = int_to_ptr.hbm [resolvable:$true] %s263
          %s265 = sshll.u32 [#allocation5], 4
          %s266 = int_to_ptr.vmem [resolvable:$true] %s265
          %271 = dma.hbm_to_vmem [thread:$0]  %s264, 2048, %s266, [#allocation6], 128, 128, 8
        $region16: #{tpu_custom_call.1} parent=11 // pred_fallthru
          _
        // Predicated region
        $region17: #{tpu_custom_call.1} parent=11 // pred_check
          %p272 = pneg %p91
        $region18: #{tpu_custom_call.1} parent=11 // pred_check_branch
          %274 = sbr.rel (%p272) target = $region20
        $region19: #{tpu_custom_call.1} parent=11 // pred_region
          %276 = vsyncadd [#allocation6], 0
          %s278 = sshll.u32 %s2, 4
          %s279 = int_to_ptr.hbm [resolvable:$true] %s278
          %s280 = sshll.u32 [#allocation7], 4
          %s281 = int_to_ptr.vmem [resolvable:$true] %s280
          %283 = dma.hbm_to_vmem [thread:$0]  %s279, 32, %s281, [#allocation6]
        $region20: #{tpu_custom_call.1} parent=11 // pred_fallthru
          _
        // Predicated region
        $region21: #{tpu_custom_call.1} parent=11 // pred_check
          %p284 = pneg %p112
        $region22: #{tpu_custom_call.1} parent=11 // pred_check_branch
          %286 = sbr.rel (%p284) target = $region24
        $region23: #{tpu_custom_call.1} parent=11 // pred_region
          %288 = vsyncadd [#allocation9], 0
          %s289 = sshll.u32 %s3, 4
          %s290 = int_to_ptr.hbm [resolvable:$true] %s289
          %s291 = sshll.u32 [#allocation8], 4
          %s292 = int_to_ptr.vmem [resolvable:$true] %s291
          %297 = dma.hbm_to_vmem [thread:$0]  %s290, 4096, %s292, [#allocation9], 128, 128, 8
        $region24: #{tpu_custom_call.1} parent=11 // pred_fallthru
          _
        // Predicated region
        $region25: #{tpu_custom_call.1} parent=11 // pred_check
          %p298 = pneg %p133
        $region26: #{tpu_custom_call.1} parent=11 // pred_check_branch
          %300 = sbr.rel (%p298) target = $region28
        $region27: #{tpu_custom_call.1} parent=11 // pred_region
          _
        $region28: #{tpu_custom_call.1} parent=11 // pred_fallthru
          _
        // Predicated region
        $region29: #{tpu_custom_call.1} parent=11 // pred_check
          %p301 = pneg %p154
        $region30: #{tpu_custom_call.1} parent=11 // pred_check_branch
          %303 = sbr.rel (%p301) target = $region32
        $region31: #{tpu_custom_call.1} parent=11 // pred_region
          %305 = vsyncadd [#allocation9], 0
          %s306 = sshll.u32 %s5, 4
          %s307 = int_to_ptr.hbm [resolvable:$true] %s306
          %s308 = sshll.u32 [#allocation10], 4
          %s309 = int_to_ptr.vmem [resolvable:$true] %s308
          %314 = dma.hbm_to_vmem [thread:$0]  %s307, 2048, %s309, [#allocation9], 64, 64, 4
        $region32: #{tpu_custom_call.1} parent=11 // pred_fallthru
          _
        // Predicated region
        $region33: #{tpu_custom_call.1} parent=11 // pred_check
          %p315 = pneg %p175
        $region34: #{tpu_custom_call.1} parent=11 // pred_check_branch
          %317 = sbr.rel (%p315) target = $region36
        $region35: #{tpu_custom_call.1} parent=11 // pred_region
          _
        $region36: #{tpu_custom_call.1} parent=11 // pred_fallthru
          _
        // Predicated region
        $region37: #{tpu_custom_call.1} parent=11 // pred_check
          %p318 = pneg %p196
        $region38: #{tpu_custom_call.1} parent=11 // pred_check_branch
          %320 = sbr.rel (%p318) target = $region40
        $region39: #{tpu_custom_call.1} parent=11 // pred_region
          _
        $region40: #{tpu_custom_call.1} parent=11 // pred_fallthru
          _
        // Predicated region
        $region41: #{tpu_custom_call.1} parent=11 // pred_check
          %p321 = pneg %p217
        $region42: #{tpu_custom_call.1} parent=11 // pred_check_branch
          %323 = sbr.rel (%p321) target = $region44
        $region43: #{tpu_custom_call.1} parent=11 // pred_region
          _
        $region44: #{tpu_custom_call.1} parent=11 // pred_fallthru
          _
      $region12: #{tpu_custom_call.1} parent=5 // pred_fallthru
        _
      %p324 = scmp.lt.s32.totalorder %s23, 2
      // Predicated region
      $region45: #{tpu_custom_call.1} parent=5 // pred_check
        %p325 = pneg %p324
      $region46: #{tpu_custom_call.1} parent=5 // pred_check_branch
        %327 = sbr.rel (%p325) target = $region48
      $region47: #{tpu_custom_call.1} parent=5 // pred_region
        // Predicated region
        $region49: #{tpu_custom_call.1} parent=47 // pred_check
          %p328 = pneg %p43
        $region50: #{tpu_custom_call.1} parent=47 // pred_check_branch
          %330 = sbr.rel (%p328) target = $region52
        $region51: #{tpu_custom_call.1} parent=47 // pred_region
          %s331 = sand.u32 %s33, 1
          %s332 = scalar_lea.sflag [#allocation3], %s331
          %s333 = sand.u32 %s33, 1
          %s334 = smul.addr %s333, 256
          %s335 = scalar_lea.vmem [#allocation2], %s334
          %s336 = smul.u32 32, %s23
          %338 = vsyncadd %s332, 0
          %s339 = smul.addr %s336, 8
          %s340 = scalar_lea.hbm %s0, %s339
          %s341 = sshll.u32 %s340, 4
          %s342 = int_to_ptr.hbm [resolvable:$true] %s341
          %s343 = sshll.u32 %s335, 4
          %s344 = int_to_ptr.vmem [resolvable:$true] %s343
          %349 = dma.hbm_to_vmem [thread:$0]  %s342, 4096, %s344, %s332, 128, 128, 8
        $region52: #{tpu_custom_call.1} parent=47 // pred_fallthru
          _
      $region48: #{tpu_custom_call.1} parent=5 // pred_fallthru
        _
      %p350 = scmp.le.s32.totalorder 1, %s23
      %p351 = scmp.lt.s32.totalorder %s23, 3
      %p352 = pnand %p350, %p351
      %p353 = pneg %p352
      // Predicated region
      $region53: #{tpu_custom_call.1} parent=5 // pred_check
        _
      $region54: #{tpu_custom_call.1} parent=5 // pred_check_branch
        %355 = sbr.rel (%p352) target = $region56
      $region55: #{tpu_custom_call.1} parent=5 // pred_region
        %s356 = ssub.s32 %s23, 1
        %s357 = sand.u32 %s36, 1
        %s358 = scalar_lea.sflag [#allocation3], %s357
        %s359 = sand.u32 %s36, 1
        %s360 = smul.addr %s359, 256
        %s361 = scalar_lea.vmem [#allocation2], %s360
        // Predicated region
        $region57: #{tpu_custom_call.1} parent=55 // pred_check
          %p362 = pneg %p49
        $region58: #{tpu_custom_call.1} parent=55 // pred_check_branch
          %364 = sbr.rel (%p362) target = $region60
        $region59: #{tpu_custom_call.1} parent=55 // pred_region
          %366 = dma.done %s358, 4096
        $region60: #{tpu_custom_call.1} parent=55 // pred_fallthru
          _
        // Predicated region
        $region61: #{tpu_custom_call.1} parent=55 // pred_check
          %p367 = pneg %p70
        $region62: #{tpu_custom_call.1} parent=55 // pred_check_branch
          %369 = sbr.rel (%p367) target = $region64
        $region63: #{tpu_custom_call.1} parent=55 // pred_region
          %371 = dma.done [#allocation6], 2048
        $region64: #{tpu_custom_call.1} parent=55 // pred_fallthru
          _
        // Predicated region
        $region65: #{tpu_custom_call.1} parent=55 // pred_check
          %p372 = pneg %p91
        $region66: #{tpu_custom_call.1} parent=55 // pred_check_branch
          %374 = sbr.rel (%p372) target = $region68
        $region67: #{tpu_custom_call.1} parent=55 // pred_region
          %376 = dma.done [#allocation6], 32
        $region68: #{tpu_custom_call.1} parent=55 // pred_fallthru
          _
        // Predicated region
        $region69: #{tpu_custom_call.1} parent=55 // pred_check
          %p377 = pneg %p112
        $region70: #{tpu_custom_call.1} parent=55 // pred_check_branch
          %379 = sbr.rel (%p377) target = $region72
        $region71: #{tpu_custom_call.1} parent=55 // pred_region
          %381 = dma.done [#allocation9], 4096
        $region72: #{tpu_custom_call.1} parent=55 // pred_fallthru
          _
        // Predicated region
        $region73: #{tpu_custom_call.1} parent=55 // pred_check
          %p382 = pneg %p154
        $region74: #{tpu_custom_call.1} parent=55 // pred_check_branch
          %384 = sbr.rel (%p382) target = $region76
        $region75: #{tpu_custom_call.1} parent=55 // pred_region
          %386 = dma.done [#allocation9], 2048
        $region76: #{tpu_custom_call.1} parent=55 // pred_fallthru
          _
        %s387 = sand.u32 %s36, 1
        %s388 = scalar_lea.sflag [#allocation3], %s387
        %s389 = sand.u32 %s36, 1
        %s390 = smul.addr %s389, 256
        %s391 = scalar_lea.vmem [#allocation2], %s390
        %p392 = pneg %p49
        %p393 = pneg %p46
        %p394 = pneg %p70
        %p395 = pneg %p67
        %p396 = pneg %p91
        %p397 = pneg %p88
        %p398 = pneg %p112
        %p399 = pneg %p109
        %p400 = pneg %p133
        %p401 = pneg %p130
        %p402 = pneg %p154
        %p403 = pneg %p151
        %p404 = pneg %p175
        %p405 = pneg %p172
        %p406 = pneg %p196
        %p407 = pneg %p193
        %p408 = pneg %p217
        %p409 = pneg %p214
        %p410 = pneg %p243
        %p411 = pneg %p240
        %s412 = sand.u32 %s230, 1
        %s413 = scalar_lea.sflag [#allocation4], %s412
        %s414 = sand.u32 %s230, 1
        %s415 = smul.addr %s414, 256
        %s416 = scalar_lea.vmem [#allocation11], %s415
        %s417 = smul.u32 32, %s28
        %s418 = smul.u32 32, %s28
        %v419 = vld [vmem:[%s361] sm:$0xff]
        %v420 = vld [vmem:[%s361 + $0x8] sm:$0xff]
        %v421 = vld [vmem:[%s361 + $0x10] sm:$0xff]
        %v422 = vld [vmem:[%s361 + $0x18] sm:$0xff]
        %v423 = vld [vmem:[%s361 + $0x20] sm:$0xff]
        %v424 = vld [vmem:[%s361 + $0x28] sm:$0xff]
        %v425 = vld [vmem:[%s361 + $0x30] sm:$0xff]
        %v426 = vld [vmem:[%s361 + $0x38] sm:$0xff]
        %v427 = vld [vmem:[%s361 + $0x40] sm:$0xff]
        %v428 = vld [vmem:[%s361 + $0x48] sm:$0xff]
        %v429 = vld [vmem:[%s361 + $0x50] sm:$0xff]
        %v430 = vld [vmem:[%s361 + $0x58] sm:$0xff]
        %v431 = vld [vmem:[%s361 + $0x60] sm:$0xff]
        %v432 = vld [vmem:[%s361 + $0x68] sm:$0xff]
        %v433 = vld [vmem:[%s361 + $0x70] sm:$0xff]
        %v434 = vld [vmem:[%s361 + $0x78] sm:$0xff]
        %v435 = vld [vmem:[%s361 + $0x80] sm:$0xff]
        %v436 = vld [vmem:[%s361 + $0x88] sm:$0xff]
        %v437 = vld [vmem:[%s361 + $0x90] sm:$0xff]
        %v438 = vld [vmem:[%s361 + $0x98] sm:$0xff]
        %v439 = vld [vmem:[%s361 + $0xa0] sm:$0xff]
        %v440 = vld [vmem:[%s361 + $0xa8] sm:$0xff]
        %v441 = vld [vmem:[%s361 + $0xb0] sm:$0xff]
        %v442 = vld [vmem:[%s361 + $0xb8] sm:$0xff]
        %v443 = vld [vmem:[%s361 + $0xc0] sm:$0xff]
        %v444 = vld [vmem:[%s361 + $0xc8] sm:$0xff]
        %v445 = vld [vmem:[%s361 + $0xd0] sm:$0xff]
        %v446 = vld [vmem:[%s361 + $0xd8] sm:$0xff]
        %v447 = vld [vmem:[%s361 + $0xe0] sm:$0xff]
        %v448 = vld [vmem:[%s361 + $0xe8] sm:$0xff]
        %v449 = vld [vmem:[%s361 + $0xf0] sm:$0xff]
        %v450 = vld [vmem:[%s361 + $0xf8] sm:$0xff]
        %v451 = vld [vmem:[#allocation7] sm:$0x3]
        %v452 = vld [vmem:[%s4] sm:$0x3]
        %v453 = vld [vmem:[%s6] sm:$0x1]
        %v454 = vld [vmem:[%s7] sm:$0x1]
        %v455 = vld [vmem:[%s8] sm:$0x1]
        %v456 = vpack.c.bf16 %v420, %v419
        %v457 = vpack.c.bf16 %v422, %v421
        %v458 = vpack.c.bf16 %v424, %v423
        %v459 = vpack.c.bf16 %v426, %v425
        %v460 = vpack.c.bf16 %v428, %v427
        %v461 = vpack.c.bf16 %v430, %v429
        %v462 = vpack.c.bf16 %v432, %v431
        %v463 = vpack.c.bf16 %v434, %v433
        %v464 = vpack.c.bf16 %v436, %v435
        %v465 = vpack.c.bf16 %v438, %v437
        %v466 = vpack.c.bf16 %v440, %v439
        %v467 = vpack.c.bf16 %v442, %v441
        %v468 = vpack.c.bf16 %v444, %v443
        %v469 = vpack.c.bf16 %v446, %v445
        %v470 = vpack.c.bf16 %v448, %v447
        %v471 = vpack.c.bf16 %v450, %v449
        %v472 = vld [vmem:[#allocation5] sm:$0xff]
        %v473 = vld [vmem:[#allocation5 + $0x8] sm:$0xff]
        %v474 = vld [vmem:[#allocation5 + $0x10] sm:$0xff]
        %v475 = vld [vmem:[#allocation5 + $0x18] sm:$0xff]
        %v476 = vld [vmem:[#allocation5 + $0x20] sm:$0xff]
        %v477 = vld [vmem:[#allocation5 + $0x28] sm:$0xff]
        %v478 = vld [vmem:[#allocation5 + $0x30] sm:$0xff]
        %v479 = vld [vmem:[#allocation5 + $0x38] sm:$0xff]
        %v480 = vld [vmem:[#allocation5 + $0x40] sm:$0xff]
        %v481 = vld [vmem:[#allocation5 + $0x48] sm:$0xff]
        %v482 = vld [vmem:[#allocation5 + $0x50] sm:$0xff]
        %v483 = vld [vmem:[#allocation5 + $0x58] sm:$0xff]
        %v484 = vld [vmem:[#allocation5 + $0x60] sm:$0xff]
        %v485 = vld [vmem:[#allocation5 + $0x68] sm:$0xff]
        %v486 = vld [vmem:[#allocation5 + $0x70] sm:$0xff]
        %v487 = vld [vmem:[#allocation5 + $0x78] sm:$0xff]
        %v489 = vperm.slane %v451, 0
        %v490 = vperm.slane %v451, 1
        %v509 = vunpack.c.l.b16 %v472
        %v510 = vunpack.c.h.b16 %v472
        %v511 = vunpack.c.l.b16 %v473
        %v512 = vunpack.c.h.b16 %v473
        %v513 = vunpack.c.l.b16 %v474
        %v514 = vunpack.c.h.b16 %v474
        %v515 = vunpack.c.l.b16 %v475
        %v516 = vunpack.c.h.b16 %v475
        %v517 = vunpack.c.l.b16 %v476
        %v518 = vunpack.c.h.b16 %v476
        %v519 = vunpack.c.l.b16 %v477
        %v520 = vunpack.c.h.b16 %v477
        %v521 = vunpack.c.l.b16 %v478
        %v522 = vunpack.c.h.b16 %v478
        %v523 = vunpack.c.l.b16 %v479
        %v524 = vunpack.c.h.b16 %v479
        %v525 = vunpack.c.l.b16 %v480
        %v526 = vunpack.c.h.b16 %v480
        %v527 = vunpack.c.l.b16 %v481
        %v528 = vunpack.c.h.b16 %v481
        %v529 = vunpack.c.l.b16 %v482
        %v530 = vunpack.c.h.b16 %v482
        %v531 = vunpack.c.l.b16 %v483
        %v532 = vunpack.c.h.b16 %v483
        %v533 = vunpack.c.l.b16 %v484
        %v534 = vunpack.c.h.b16 %v484
        %v535 = vunpack.c.l.b16 %v485
        %v536 = vunpack.c.h.b16 %v485
        %v537 = vunpack.c.l.b16 %v486
        %v538 = vunpack.c.h.b16 %v486
        %v539 = vunpack.c.l.b16 %v487
        %v540 = vunpack.c.h.b16 %v487
        %v541 = vpack.c.b16 %v511, %v509
        %v542 = vpack.c.b16 %v512, %v510
        %v543 = vpack.c.b16 %v515, %v513
        %v544 = vpack.c.b16 %v516, %v514
        %v545 = vpack.c.b16 %v519, %v517
        %v546 = vpack.c.b16 %v520, %v518
        %v547 = vpack.c.b16 %v523, %v521
        %v548 = vpack.c.b16 %v524, %v522
        %v549 = vpack.c.b16 %v527, %v525
        %v550 = vpack.c.b16 %v528, %v526
        %v551 = vpack.c.b16 %v531, %v529
        %v552 = vpack.c.b16 %v532, %v530
        %v553 = vpack.c.b16 %v535, %v533
        %v554 = vpack.c.b16 %v536, %v534
        %v555 = vpack.c.b16 %v539, %v537
        %v556 = vpack.c.b16 %v540, %v538
        %573 = vmatpush.bf16.msra.mxu0 %v555
        %574 = vmatpush.bf16.msra.mxu0 %v553
        %575 = vmatpush.bf16.msra.mxu0 %v551
        %576 = vmatpush.bf16.msra.mxu0 %v549
        %577 = vmatpush.bf16.msra.mxu0 %v547
        %578 = vmatpush.bf16.msra.mxu0 %v545
        %579 = vmatpush.bf16.msra.mxu0 %v543
        %580 = vmatpush.bf16.msra.mxu0 %v541
        %581 = vmatmul.bf16.gmra.mxu0 %v456
        %v582 = vpop.f32.mrf.mxu0
        %v583 = vadd.f32 %v489, %v582
        %v584 = vpop.f32.mrf.mxu0
        %v585 = vadd.f32 %v489, %v584
        %586 = vmatmul.bf16.gmra.mxu0 %v457
        %v587 = vpop.f32.mrf.mxu0
        %v588 = vadd.f32 %v489, %v587
        %v589 = vpop.f32.mrf.mxu0
        %v590 = vadd.f32 %v489, %v589
        %591 = vmatmul.bf16.gmra.mxu0 %v458
        %v592 = vpop.f32.mrf.mxu0
        %v593 = vadd.f32 %v489, %v592
        %v594 = vpop.f32.mrf.mxu0
        %v595 = vadd.f32 %v489, %v594
        %596 = vmatmul.bf16.gmra.mxu0 %v459
        %v597 = vpop.f32.mrf.mxu0
        %v598 = vadd.f32 %v489, %v597
        %v599 = vpop.f32.mrf.mxu0
        %v600 = vadd.f32 %v489, %v599
        %601 = vmatmul.bf16.gmra.mxu0 %v460
        %v602 = vpop.f32.mrf.mxu0
        %v603 = vadd.f32 %v489, %v602
        %v604 = vpop.f32.mrf.mxu0
        %v605 = vadd.f32 %v489, %v604
        %606 = vmatmul.bf16.gmra.mxu0 %v461
        %v607 = vpop.f32.mrf.mxu0
        %v608 = vadd.f32 %v489, %v607
        %v609 = vpop.f32.mrf.mxu0
        %v610 = vadd.f32 %v489, %v609
        %611 = vmatmul.bf16.gmra.mxu0 %v462
        %v612 = vpop.f32.mrf.mxu0
        %v613 = vadd.f32 %v489, %v612
        %v614 = vpop.f32.mrf.mxu0
        %v615 = vadd.f32 %v489, %v614
        %616 = vmatmul.bf16.gmra.mxu0 %v463
        %v617 = vpop.f32.mrf.mxu0
        %v618 = vadd.f32 %v489, %v617
        %v619 = vpop.f32.mrf.mxu0
        %v620 = vadd.f32 %v489, %v619
        %621 = vmatmul.bf16.gmra.mxu0 %v464
        %v622 = vpop.f32.mrf.mxu0
        %v623 = vadd.f32 %v489, %v622
        %v624 = vpop.f32.mrf.mxu0
        %v625 = vadd.f32 %v489, %v624
        %626 = vmatmul.bf16.gmra.mxu0 %v465
        %v627 = vpop.f32.mrf.mxu0
        %v628 = vadd.f32 %v489, %v627
        %v629 = vpop.f32.mrf.mxu0
        %v630 = vadd.f32 %v489, %v629
        %631 = vmatmul.bf16.gmra.mxu0 %v466
        %v632 = vpop.f32.mrf.mxu0
        %v633 = vadd.f32 %v489, %v632
        %v634 = vpop.f32.mrf.mxu0
        %v635 = vadd.f32 %v489, %v634
        %636 = vmatmul.bf16.gmra.mxu0 %v467
        %v637 = vpop.f32.mrf.mxu0
        %v638 = vadd.f32 %v489, %v637
        %v639 = vpop.f32.mrf.mxu0
        %v640 = vadd.f32 %v489, %v639
        %641 = vmatmul.bf16.gmra.mxu0 %v468
        %v642 = vpop.f32.mrf.mxu0
        %v643 = vadd.f32 %v489, %v642
        %v644 = vpop.f32.mrf.mxu0
        %v645 = vadd.f32 %v489, %v644
        %646 = vmatmul.bf16.gmra.mxu0 %v469
        %v647 = vpop.f32.mrf.mxu0
        %v648 = vadd.f32 %v489, %v647
        %v649 = vpop.f32.mrf.mxu0
        %v650 = vadd.f32 %v489, %v649
        %651 = vmatmul.bf16.gmra.mxu0 %v470
        %v652 = vpop.f32.mrf.mxu0
        %v653 = vadd.f32 %v489, %v652
        %v654 = vpop.f32.mrf.mxu0
        %v655 = vadd.f32 %v489, %v654
        %656 = vmatmul.bf16.gmra.mxu0 %v471
        %v657 = vpop.f32.mrf.mxu0
        %v658 = vadd.f32 %v489, %v657
        %v659 = vpop.f32.mrf.mxu0
        %v660 = vadd.f32 %v489, %v659
        %661 = vdwg.mxu0
        %662 = vmatpush.bf16.msra.mxu0 %v556
        %663 = vmatpush.bf16.msra.mxu0 %v554
        %664 = vmatpush.bf16.msra.mxu0 %v552
        %665 = vmatpush.bf16.msra.mxu0 %v550
        %666 = vmatpush.bf16.msra.mxu0 %v548
        %667 = vmatpush.bf16.msra.mxu0 %v546
        %668 = vmatpush.bf16.msra.mxu0 %v544
        %669 = vmatpush.bf16.msra.mxu0 %v542
        %670 = vmatmul.bf16.gmra.mxu0 %v456
        %v671 = vpop.f32.mrf.mxu0
        %v672 = vadd.f32 %v490, %v671
        %v673 = vpop.f32.mrf.mxu0
        %v674 = vadd.f32 %v490, %v673
        %675 = vmatmul.bf16.gmra.mxu0 %v457
        %v676 = vpop.f32.mrf.mxu0
        %v677 = vadd.f32 %v490, %v676
        %v678 = vpop.f32.mrf.mxu0
        %v679 = vadd.f32 %v490, %v678
        %680 = vmatmul.bf16.gmra.mxu0 %v458
        %v681 = vpop.f32.mrf.mxu0
        %v682 = vadd.f32 %v490, %v681
        %v683 = vpop.f32.mrf.mxu0
        %v684 = vadd.f32 %v490, %v683
        %685 = vmatmul.bf16.gmra.mxu0 %v459
        %v686 = vpop.f32.mrf.mxu0
        %v687 = vadd.f32 %v490, %v686
        %v688 = vpop.f32.mrf.mxu0
        %v689 = vadd.f32 %v490, %v688
        %690 = vmatmul.bf16.gmra.mxu0 %v460
        %v691 = vpop.f32.mrf.mxu0
        %v692 = vadd.f32 %v490, %v691
        %v693 = vpop.f32.mrf.mxu0
        %v694 = vadd.f32 %v490, %v693
        %695 = vmatmul.bf16.gmra.mxu0 %v461
        %v696 = vpop.f32.mrf.mxu0
        %v697 = vadd.f32 %v490, %v696
        %v698 = vpop.f32.mrf.mxu0
        %v699 = vadd.f32 %v490, %v698
        %700 = vmatmul.bf16.gmra.mxu0 %v462
        %v701 = vpop.f32.mrf.mxu0
        %v702 = vadd.f32 %v490, %v701
        %v703 = vpop.f32.mrf.mxu0
        %v704 = vadd.f32 %v490, %v703
        %705 = vmatmul.bf16.gmra.mxu0 %v463
        %v706 = vpop.f32.mrf.mxu0
        %v707 = vadd.f32 %v490, %v706
        %v708 = vpop.f32.mrf.mxu0
        %v709 = vadd.f32 %v490, %v708
        %710 = vmatmul.bf16.gmra.mxu0 %v464
        %v711 = vpop.f32.mrf.mxu0
        %v712 = vadd.f32 %v490, %v711
        %v713 = vpop.f32.mrf.mxu0
        %v714 = vadd.f32 %v490, %v713
        %715 = vmatmul.bf16.gmra.mxu0 %v465
        %v716 = vpop.f32.mrf.mxu0
        %v717 = vadd.f32 %v490, %v716
        %v718 = vpop.f32.mrf.mxu0
        %v719 = vadd.f32 %v490, %v718
        %720 = vmatmul.bf16.gmra.mxu0 %v466
        %v721 = vpop.f32.mrf.mxu0
        %v722 = vadd.f32 %v490, %v721
        %v723 = vpop.f32.mrf.mxu0
        %v724 = vadd.f32 %v490, %v723
        %725 = vmatmul.bf16.gmra.mxu0 %v467
        %v726 = vpop.f32.mrf.mxu0
        %v727 = vadd.f32 %v490, %v726
        %v728 = vpop.f32.mrf.mxu0
        %v729 = vadd.f32 %v490, %v728
        %730 = vmatmul.bf16.gmra.mxu0 %v468
        %v731 = vpop.f32.mrf.mxu0
        %v732 = vadd.f32 %v490, %v731
        %v733 = vpop.f32.mrf.mxu0
        %v734 = vadd.f32 %v490, %v733
        %735 = vmatmul.bf16.gmra.mxu0 %v469
        %v736 = vpop.f32.mrf.mxu0
        %v737 = vadd.f32 %v490, %v736
        %v738 = vpop.f32.mrf.mxu0
        %v739 = vadd.f32 %v490, %v738
        %740 = vmatmul.bf16.gmra.mxu0 %v470
        %v741 = vpop.f32.mrf.mxu0
        %v742 = vadd.f32 %v490, %v741
        %v743 = vpop.f32.mrf.mxu0
        %v744 = vadd.f32 %v490, %v743
        %745 = vmatmul.bf16.gmra.mxu0 %v471
        %v746 = vpop.f32.mrf.mxu0
        %v747 = vadd.f32 %v490, %v746
        %v748 = vpop.f32.mrf.mxu0
        %v749 = vadd.f32 %v490, %v748
        %750 = vdwg.mxu0
        %v751 = vmul.f32 %v583, %v583
        %v752 = vmul.f32 %v672, %v672
        %v753 = vmul.f32 %v585, %v585
        %v754 = vmul.f32 %v674, %v674
        %v755 = vmul.f32 %v588, %v588
        %v756 = vmul.f32 %v677, %v677
        %v757 = vmul.f32 %v590, %v590
        %v758 = vmul.f32 %v679, %v679
        %v759 = vmul.f32 %v593, %v593
        %v760 = vmul.f32 %v682, %v682
        %v761 = vmul.f32 %v595, %v595
        %v762 = vmul.f32 %v684, %v684
        %v763 = vmul.f32 %v598, %v598
        %v764 = vmul.f32 %v687, %v687
        %v765 = vmul.f32 %v600, %v600
        %v766 = vmul.f32 %v689, %v689
        %v767 = vmul.f32 %v603, %v603
        %v768 = vmul.f32 %v692, %v692
        %v769 = vmul.f32 %v605, %v605
        %v770 = vmul.f32 %v694, %v694
        %v771 = vmul.f32 %v608, %v608
        %v772 = vmul.f32 %v697, %v697
        %v773 = vmul.f32 %v610, %v610
        %v774 = vmul.f32 %v699, %v699
        %v775 = vmul.f32 %v613, %v613
        %v776 = vmul.f32 %v702, %v702
        %v777 = vmul.f32 %v615, %v615
        %v778 = vmul.f32 %v704, %v704
        %v779 = vmul.f32 %v618, %v618
        %v780 = vmul.f32 %v707, %v707
        %v781 = vmul.f32 %v620, %v620
        %v782 = vmul.f32 %v709, %v709
        %v783 = vmul.f32 %v623, %v623
        %v784 = vmul.f32 %v712, %v712
        %v785 = vmul.f32 %v625, %v625
        %v786 = vmul.f32 %v714, %v714
        %v787 = vmul.f32 %v628, %v628
        %v788 = vmul.f32 %v717, %v717
        %v789 = vmul.f32 %v630, %v630
        %v790 = vmul.f32 %v719, %v719
        %v791 = vmul.f32 %v633, %v633
        %v792 = vmul.f32 %v722, %v722
        %v793 = vmul.f32 %v635, %v635
        %v794 = vmul.f32 %v724, %v724
        %v795 = vmul.f32 %v638, %v638
        %v796 = vmul.f32 %v727, %v727
        %v797 = vmul.f32 %v640, %v640
        %v798 = vmul.f32 %v729, %v729
        %v799 = vmul.f32 %v643, %v643
        %v800 = vmul.f32 %v732, %v732
        %v801 = vmul.f32 %v645, %v645
        %v802 = vmul.f32 %v734, %v734
        %v803 = vmul.f32 %v648, %v648
        %v804 = vmul.f32 %v737, %v737
        %v805 = vmul.f32 %v650, %v650
        %v806 = vmul.f32 %v739, %v739
        %v807 = vmul.f32 %v653, %v653
        %v808 = vmul.f32 %v742, %v742
        %v809 = vmul.f32 %v655, %v655
        %v810 = vmul.f32 %v744, %v744
        %v811 = vmul.f32 %v658, %v658
        %v812 = vmul.f32 %v747, %v747
        %v813 = vmul.f32 %v660, %v660
        %v814 = vmul.f32 %v749, %v749
        %v815 = vmul.f32 %v583, %v751
        %v816 = vmul.f32 %v672, %v752
        %v817 = vmul.f32 %v585, %v753
        %v818 = vmul.f32 %v674, %v754
        %v819 = vmul.f32 %v588, %v755
        %v820 = vmul.f32 %v677, %v756
        %v821 = vmul.f32 %v590, %v757
        %v822 = vmul.f32 %v679, %v758
        %v823 = vmul.f32 %v593, %v759
        %v824 = vmul.f32 %v682, %v760
        %v825 = vmul.f32 %v595, %v761
        %v826 = vmul.f32 %v684, %v762
        %v827 = vmul.f32 %v598, %v763
        %v828 = vmul.f32 %v687, %v764
        %v829 = vmul.f32 %v600, %v765
        %v830 = vmul.f32 %v689, %v766
        %v831 = vmul.f32 %v603, %v767
        %v832 = vmul.f32 %v692, %v768
        %v833 = vmul.f32 %v605, %v769
        %v834 = vmul.f32 %v694, %v770
        %v835 = vmul.f32 %v608, %v771
        %v836 = vmul.f32 %v697, %v772
        %v837 = vmul.f32 %v610, %v773
        %v838 = vmul.f32 %v699, %v774
        %v839 = vmul.f32 %v613, %v775
        %v840 = vmul.f32 %v702, %v776
        %v841 = vmul.f32 %v615, %v777
        %v842 = vmul.f32 %v704, %v778
        %v843 = vmul.f32 %v618, %v779
        %v844 = vmul.f32 %v707, %v780
        %v845 = vmul.f32 %v620, %v781
        %v846 = vmul.f32 %v709, %v782
        %v847 = vmul.f32 %v623, %v783
        %v848 = vmul.f32 %v712, %v784
        %v849 = vmul.f32 %v625, %v785
        %v850 = vmul.f32 %v714, %v786
        %v851 = vmul.f32 %v628, %v787
        %v852 = vmul.f32 %v717, %v788
        %v853 = vmul.f32 %v630, %v789
        %v854 = vmul.f32 %v719, %v790
        %v855 = vmul.f32 %v633, %v791
        %v856 = vmul.f32 %v722, %v792
        %v857 = vmul.f32 %v635, %v793
        %v858 = vmul.f32 %v724, %v794
        %v859 = vmul.f32 %v638, %v795
        %v860 = vmul.f32 %v727, %v796
        %v861 = vmul.f32 %v640, %v797
        %v862 = vmul.f32 %v729, %v798
        %v863 = vmul.f32 %v643, %v799
        %v864 = vmul.f32 %v732, %v800
        %v865 = vmul.f32 %v645, %v801
        %v866 = vmul.f32 %v734, %v802
        %v867 = vmul.f32 %v648, %v803
        %v868 = vmul.f32 %v737, %v804
        %v869 = vmul.f32 %v650, %v805
        %v870 = vmul.f32 %v739, %v806
        %v871 = vmul.f32 %v653, %v807
        %v872 = vmul.f32 %v742, %v808
        %v873 = vmul.f32 %v655, %v809
        %v874 = vmul.f32 %v744, %v810
        %v875 = vmul.f32 %v658, %v811
        %v876 = vmul.f32 %v747, %v812
        %v877 = vmul.f32 %v660, %v813
        %v878 = vmul.f32 %v749, %v814
        %v879 = vmul.f32 %v815, 0.044715
        %v880 = vmul.f32 %v816, 0.044715
        %v881 = vmul.f32 %v817, 0.044715
        %v882 = vmul.f32 %v818, 0.044715
        %v883 = vmul.f32 %v819, 0.044715
        %v884 = vmul.f32 %v820, 0.044715
        %v885 = vmul.f32 %v821, 0.044715
        %v886 = vmul.f32 %v822, 0.044715
        %v887 = vmul.f32 %v823, 0.044715
        %v888 = vmul.f32 %v824, 0.044715
        %v889 = vmul.f32 %v825, 0.044715
        %v890 = vmul.f32 %v826, 0.044715
        %v891 = vmul.f32 %v827, 0.044715
        %v892 = vmul.f32 %v828, 0.044715
        %v893 = vmul.f32 %v829, 0.044715
        %v894 = vmul.f32 %v830, 0.044715
        %v895 = vmul.f32 %v831, 0.044715
        %v896 = vmul.f32 %v832, 0.044715
        %v897 = vmul.f32 %v833, 0.044715
        %v898 = vmul.f32 %v834, 0.044715
        %v899 = vmul.f32 %v835, 0.044715
        %v900 = vmul.f32 %v836, 0.044715
        %v901 = vmul.f32 %v837, 0.044715
        %v902 = vmul.f32 %v838, 0.044715
        %v903 = vmul.f32 %v839, 0.044715
        %v904 = vmul.f32 %v840, 0.044715
        %v905 = vmul.f32 %v841, 0.044715
        %v906 = vmul.f32 %v842, 0.044715
        %v907 = vmul.f32 %v843, 0.044715
        %v908 = vmul.f32 %v844, 0.044715
        %v909 = vmul.f32 %v845, 0.044715
        %v910 = vmul.f32 %v846, 0.044715
        %v911 = vmul.f32 %v847, 0.044715
        %v912 = vmul.f32 %v848, 0.044715
        %v913 = vmul.f32 %v849, 0.044715
        %v914 = vmul.f32 %v850, 0.044715
        %v915 = vmul.f32 %v851, 0.044715
        %v916 = vmul.f32 %v852, 0.044715
        %v917 = vmul.f32 %v853, 0.044715
        %v918 = vmul.f32 %v854, 0.044715
        %v919 = vmul.f32 %v855, 0.044715
        %v920 = vmul.f32 %v856, 0.044715
        %v921 = vmul.f32 %v857, 0.044715
        %v922 = vmul.f32 %v858, 0.044715
        %v923 = vmul.f32 %v859, 0.044715
        %v924 = vmul.f32 %v860, 0.044715
        %v925 = vmul.f32 %v861, 0.044715
        %v926 = vmul.f32 %v862, 0.044715
        %v927 = vmul.f32 %v863, 0.044715
        %v928 = vmul.f32 %v864, 0.044715
        %v929 = vmul.f32 %v865, 0.044715
        %v930 = vmul.f32 %v866, 0.044715
        %v931 = vmul.f32 %v867, 0.044715
        %v932 = vmul.f32 %v868, 0.044715
        %v933 = vmul.f32 %v869, 0.044715
        %v934 = vmul.f32 %v870, 0.044715
        %v935 = vmul.f32 %v871, 0.044715
        %v936 = vmul.f32 %v872, 0.044715
        %v937 = vmul.f32 %v873, 0.044715
        %v938 = vmul.f32 %v874, 0.044715
        %v939 = vmul.f32 %v875, 0.044715
        %v940 = vmul.f32 %v876, 0.044715
        %v941 = vmul.f32 %v877, 0.044715
        %v942 = vmul.f32 %v878, 0.044715
        %v943 = vadd.f32 %v583, %v879
        %v944 = vadd.f32 %v672, %v880
        %v945 = vadd.f32 %v585, %v881
        %v946 = vadd.f32 %v674, %v882
        %v947 = vadd.f32 %v588, %v883
        %v948 = vadd.f32 %v677, %v884
        %v949 = vadd.f32 %v590, %v885
        %v950 = vadd.f32 %v679, %v886
        %v951 = vadd.f32 %v593, %v887
        %v952 = vadd.f32 %v682, %v888
        %v953 = vadd.f32 %v595, %v889
        %v954 = vadd.f32 %v684, %v890
        %v955 = vadd.f32 %v598, %v891
        %v956 = vadd.f32 %v687, %v892
        %v957 = vadd.f32 %v600, %v893
        %v958 = vadd.f32 %v689, %v894
        %v959 = vadd.f32 %v603, %v895
        %v960 = vadd.f32 %v692, %v896
        %v961 = vadd.f32 %v605, %v897
        %v962 = vadd.f32 %v694, %v898
        %v963 = vadd.f32 %v608, %v899
        %v964 = vadd.f32 %v697, %v900
        %v965 = vadd.f32 %v610, %v901
        %v966 = vadd.f32 %v699, %v902
        %v967 = vadd.f32 %v613, %v903
        %v968 = vadd.f32 %v702, %v904
        %v969 = vadd.f32 %v615, %v905
        %v970 = vadd.f32 %v704, %v906
        %v971 = vadd.f32 %v618, %v907
        %v972 = vadd.f32 %v707, %v908
        %v973 = vadd.f32 %v620, %v909
        %v974 = vadd.f32 %v709, %v910
        %v975 = vadd.f32 %v623, %v911
        %v976 = vadd.f32 %v712, %v912
        %v977 = vadd.f32 %v625, %v913
        %v978 = vadd.f32 %v714, %v914
        %v979 = vadd.f32 %v628, %v915
        %v980 = vadd.f32 %v717, %v916
        %v981 = vadd.f32 %v630, %v917
        %v982 = vadd.f32 %v719, %v918
        %v983 = vadd.f32 %v633, %v919
        %v984 = vadd.f32 %v722, %v920
        %v985 = vadd.f32 %v635, %v921
        %v986 = vadd.f32 %v724, %v922
        %v987 = vadd.f32 %v638, %v923
        %v988 = vadd.f32 %v727, %v924
        %v989 = vadd.f32 %v640, %v925
        %v990 = vadd.f32 %v729, %v926
        %v991 = vadd.f32 %v643, %v927
        %v992 = vadd.f32 %v732, %v928
        %v993 = vadd.f32 %v645, %v929
        %v994 = vadd.f32 %v734, %v930
        %v995 = vadd.f32 %v648, %v931
        %v996 = vadd.f32 %v737, %v932
        %v997 = vadd.f32 %v650, %v933
        %v998 = vadd.f32 %v739, %v934
        %v999 = vadd.f32 %v653, %v935
        %v1000 = vadd.f32 %v742, %v936
        %v1001 = vadd.f32 %v655, %v937
        %v1002 = vadd.f32 %v744, %v938
        %v1003 = vadd.f32 %v658, %v939
        %v1004 = vadd.f32 %v747, %v940
        %v1005 = vadd.f32 %v660, %v941
        %v1006 = vadd.f32 %v749, %v942
        %v1007 = vmul.f32 %v943, 0.7978846
        %v1008 = vmul.f32 %v944, 0.7978846
        %v1009 = vmul.f32 %v945, 0.7978846
        %v1010 = vmul.f32 %v946, 0.7978846
        %v1011 = vmul.f32 %v947, 0.7978846
        %v1012 = vmul.f32 %v948, 0.7978846
        %v1013 = vmul.f32 %v949, 0.7978846
        %v1014 = vmul.f32 %v950, 0.7978846
        %v1015 = vmul.f32 %v951, 0.7978846
        %v1016 = vmul.f32 %v952, 0.7978846
        %v1017 = vmul.f32 %v953, 0.7978846
        %v1018 = vmul.f32 %v954, 0.7978846
        %v1019 = vmul.f32 %v955, 0.7978846
        %v1020 = vmul.f32 %v956, 0.7978846
        %v1021 = vmul.f32 %v957, 0.7978846
        %v1022 = vmul.f32 %v958, 0.7978846
        %v1023 = vmul.f32 %v959, 0.7978846
        %v1024 = vmul.f32 %v960, 0.7978846
        %v1025 = vmul.f32 %v961, 0.7978846
        %v1026 = vmul.f32 %v962, 0.7978846
        %v1027 = vmul.f32 %v963, 0.7978846
        %v1028 = vmul.f32 %v964, 0.7978846
        %v1029 = vmul.f32 %v965, 0.7978846
        %v1030 = vmul.f32 %v966, 0.7978846
        %v1031 = vmul.f32 %v967, 0.7978846
        %v1032 = vmul.f32 %v968, 0.7978846
        %v1033 = vmul.f32 %v969, 0.7978846
        %v1034 = vmul.f32 %v970, 0.7978846
        %v1035 = vmul.f32 %v971, 0.7978846
        %v1036 = vmul.f32 %v972, 0.7978846
        %v1037 = vmul.f32 %v973, 0.7978846
        %v1038 = vmul.f32 %v974, 0.7978846
        %v1039 = vmul.f32 %v975, 0.7978846
        %v1040 = vmul.f32 %v976, 0.7978846
        %v1041 = vmul.f32 %v977, 0.7978846
        %v1042 = vmul.f32 %v978, 0.7978846
        %v1043 = vmul.f32 %v979, 0.7978846
        %v1044 = vmul.f32 %v980, 0.7978846
        %v1045 = vmul.f32 %v981, 0.7978846
        %v1046 = vmul.f32 %v982, 0.7978846
        %v1047 = vmul.f32 %v983, 0.7978846
        %v1048 = vmul.f32 %v984, 0.7978846
        %v1049 = vmul.f32 %v985, 0.7978846
        %v1050 = vmul.f32 %v986, 0.7978846
        %v1051 = vmul.f32 %v987, 0.7978846
        %v1052 = vmul.f32 %v988, 0.7978846
        %v1053 = vmul.f32 %v989, 0.7978846
        %v1054 = vmul.f32 %v990, 0.7978846
        %v1055 = vmul.f32 %v991, 0.7978846
        %v1056 = vmul.f32 %v992, 0.7978846
        %v1057 = vmul.f32 %v993, 0.7978846
        %v1058 = vmul.f32 %v994, 0.7978846
        %v1059 = vmul.f32 %v995, 0.7978846
        %v1060 = vmul.f32 %v996, 0.7978846
        %v1061 = vmul.f32 %v997, 0.7978846
        %v1062 = vmul.f32 %v998, 0.7978846
        %v1063 = vmul.f32 %v999, 0.7978846
        %v1064 = vmul.f32 %v1000, 0.7978846
        %v1065 = vmul.f32 %v1001, 0.7978846
        %v1066 = vmul.f32 %v1002, 0.7978846
        %v1067 = vmul.f32 %v1003, 0.7978846
        %v1068 = vmul.f32 %v1004, 0.7978846
        %v1069 = vmul.f32 %v1005, 0.7978846
        %v1070 = vmul.f32 %v1006, 0.7978846
        %v1071 = vtanh.pop %v1007
        %v1072 = vtanh.pop %v1008
        %v1073 = vtanh.pop %v1009
        %v1074 = vtanh.pop %v1010
        %v1075 = vtanh.pop %v1011
        %v1076 = vtanh.pop %v1012
        %v1077 = vtanh.pop %v1013
        %v1078 = vtanh.pop %v1014
        %v1079 = vtanh.pop %v1015
        %v1080 = vtanh.pop %v1016
        %v1081 = vtanh.pop %v1017
        %v1082 = vtanh.pop %v1018
        %v1083 = vtanh.pop %v1019
        %v1084 = vtanh.pop %v1020
        %v1085 = vtanh.pop %v1021
        %v1086 = vtanh.pop %v1022
        %v1087 = vtanh.pop %v1023
        %v1088 = vtanh.pop %v1024
        %v1089 = vtanh.pop %v1025
        %v1090 = vtanh.pop %v1026
        %v1091 = vtanh.pop %v1027
        %v1092 = vtanh.pop %v1028
        %v1093 = vtanh.pop %v1029
        %v1094 = vtanh.pop %v1030
        %v1095 = vtanh.pop %v1031
        %v1096 = vtanh.pop %v1032
        %v1097 = vtanh.pop %v1033
        %v1098 = vtanh.pop %v1034
        %v1099 = vtanh.pop %v1035
        %v1100 = vtanh.pop %v1036
        %v1101 = vtanh.pop %v1037
        %v1102 = vtanh.pop %v1038
        %v1103 = vtanh.pop %v1039
        %v1104 = vtanh.pop %v1040
        %v1105 = vtanh.pop %v1041
        %v1106 = vtanh.pop %v1042
        %v1107 = vtanh.pop %v1043
        %v1108 = vtanh.pop %v1044
        %v1109 = vtanh.pop %v1045
        %v1110 = vtanh.pop %v1046
        %v1111 = vtanh.pop %v1047
        %v1112 = vtanh.pop %v1048
        %v1113 = vtanh.pop %v1049
        %v1114 = vtanh.pop %v1050
        %v1115 = vtanh.pop %v1051
        %v1116 = vtanh.pop %v1052
        %v1117 = vtanh.pop %v1053
        %v1118 = vtanh.pop %v1054
        %v1119 = vtanh.pop %v1055
        %v1120 = vtanh.pop %v1056
        %v1121 = vtanh.pop %v1057
        %v1122 = vtanh.pop %v1058
        %v1123 = vtanh.pop %v1059
        %v1124 = vtanh.pop %v1060
        %v1125 = vtanh.pop %v1061
        %v1126 = vtanh.pop %v1062
        %v1127 = vtanh.pop %v1063
        %v1128 = vtanh.pop %v1064
        %v1129 = vtanh.pop %v1065
        %v1130 = vtanh.pop %v1066
        %v1131 = vtanh.pop %v1067
        %v1132 = vtanh.pop %v1068
        %v1133 = vtanh.pop %v1069
        %v1134 = vtanh.pop %v1070
        %v1135 = vadd.f32 %v1071, 1.0
        %v1136 = vadd.f32 %v1072, 1.0
        %v1137 = vadd.f32 %v1073, 1.0
        %v1138 = vadd.f32 %v1074, 1.0
        %v1139 = vadd.f32 %v1075, 1.0
        %v1140 = vadd.f32 %v1076, 1.0
        %v1141 = vadd.f32 %v1077, 1.0
        %v1142 = vadd.f32 %v1078, 1.0
        %v1143 = vadd.f32 %v1079, 1.0
        %v1144 = vadd.f32 %v1080, 1.0
        %v1145 = vadd.f32 %v1081, 1.0
        %v1146 = vadd.f32 %v1082, 1.0
        %v1147 = vadd.f32 %v1083, 1.0
        %v1148 = vadd.f32 %v1084, 1.0
        %v1149 = vadd.f32 %v1085, 1.0
        %v1150 = vadd.f32 %v1086, 1.0
        %v1151 = vadd.f32 %v1087, 1.0
        %v1152 = vadd.f32 %v1088, 1.0
        %v1153 = vadd.f32 %v1089, 1.0
        %v1154 = vadd.f32 %v1090, 1.0
        %v1155 = vadd.f32 %v1091, 1.0
        %v1156 = vadd.f32 %v1092, 1.0
        %v1157 = vadd.f32 %v1093, 1.0
        %v1158 = vadd.f32 %v1094, 1.0
        %v1159 = vadd.f32 %v1095, 1.0
        %v1160 = vadd.f32 %v1096, 1.0
        %v1161 = vadd.f32 %v1097, 1.0
        %v1162 = vadd.f32 %v1098, 1.0
        %v1163 = vadd.f32 %v1099, 1.0
        %v1164 = vadd.f32 %v1100, 1.0
        %v1165 = vadd.f32 %v1101, 1.0
        %v1166 = vadd.f32 %v1102, 1.0
        %v1167 = vadd.f32 %v1103, 1.0
        %v1168 = vadd.f32 %v1104, 1.0
        %v1169 = vadd.f32 %v1105, 1.0
        %v1170 = vadd.f32 %v1106, 1.0
        %v1171 = vadd.f32 %v1107, 1.0
        %v1172 = vadd.f32 %v1108, 1.0
        %v1173 = vadd.f32 %v1109, 1.0
        %v1174 = vadd.f32 %v1110, 1.0
        %v1175 = vadd.f32 %v1111, 1.0
        %v1176 = vadd.f32 %v1112, 1.0
        %v1177 = vadd.f32 %v1113, 1.0
        %v1178 = vadd.f32 %v1114, 1.0
        %v1179 = vadd.f32 %v1115, 1.0
        %v1180 = vadd.f32 %v1116, 1.0
        %v1181 = vadd.f32 %v1117, 1.0
        %v1182 = vadd.f32 %v1118, 1.0
        %v1183 = vadd.f32 %v1119, 1.0
        %v1184 = vadd.f32 %v1120, 1.0
        %v1185 = vadd.f32 %v1121, 1.0
        %v1186 = vadd.f32 %v1122, 1.0
        %v1187 = vadd.f32 %v1123, 1.0
        %v1188 = vadd.f32 %v1124, 1.0
        %v1189 = vadd.f32 %v1125, 1.0
        %v1190 = vadd.f32 %v1126, 1.0
        %v1191 = vadd.f32 %v1127, 1.0
        %v1192 = vadd.f32 %v1128, 1.0
        %v1193 = vadd.f32 %v1129, 1.0
        %v1194 = vadd.f32 %v1130, 1.0
        %v1195 = vadd.f32 %v1131, 1.0
        %v1196 = vadd.f32 %v1132, 1.0
        %v1197 = vadd.f32 %v1133, 1.0
        %v1198 = vadd.f32 %v1134, 1.0
        %v1199 = vmul.f32 %v1135, 0.5
        %v1200 = vmul.f32 %v1136, 0.5
        %v1201 = vmul.f32 %v1137, 0.5
        %v1202 = vmul.f32 %v1138, 0.5
        %v1203 = vmul.f32 %v1139, 0.5
        %v1204 = vmul.f32 %v1140, 0.5
        %v1205 = vmul.f32 %v1141, 0.5
        %v1206 = vmul.f32 %v1142, 0.5
        %v1207 = vmul.f32 %v1143, 0.5
        %v1208 = vmul.f32 %v1144, 0.5
        %v1209 = vmul.f32 %v1145, 0.5
        %v1210 = vmul.f32 %v1146, 0.5
        %v1211 = vmul.f32 %v1147, 0.5
        %v1212 = vmul.f32 %v1148, 0.5
        %v1213 = vmul.f32 %v1149, 0.5
        %v1214 = vmul.f32 %v1150, 0.5
        %v1215 = vmul.f32 %v1151, 0.5
        %v1216 = vmul.f32 %v1152, 0.5
        %v1217 = vmul.f32 %v1153, 0.5
        %v1218 = vmul.f32 %v1154, 0.5
        %v1219 = vmul.f32 %v1155, 0.5
        %v1220 = vmul.f32 %v1156, 0.5
        %v1221 = vmul.f32 %v1157, 0.5
        %v1222 = vmul.f32 %v1158, 0.5
        %v1223 = vmul.f32 %v1159, 0.5
        %v1224 = vmul.f32 %v1160, 0.5
        %v1225 = vmul.f32 %v1161, 0.5
        %v1226 = vmul.f32 %v1162, 0.5
        %v1227 = vmul.f32 %v1163, 0.5
        %v1228 = vmul.f32 %v1164, 0.5
        %v1229 = vmul.f32 %v1165, 0.5
        %v1230 = vmul.f32 %v1166, 0.5
        %v1231 = vmul.f32 %v1167, 0.5
        %v1232 = vmul.f32 %v1168, 0.5
        %v1233 = vmul.f32 %v1169, 0.5
        %v1234 = vmul.f32 %v1170, 0.5
        %v1235 = vmul.f32 %v1171, 0.5
        %v1236 = vmul.f32 %v1172, 0.5
        %v1237 = vmul.f32 %v1173, 0.5
        %v1238 = vmul.f32 %v1174, 0.5
        %v1239 = vmul.f32 %v1175, 0.5
        %v1240 = vmul.f32 %v1176, 0.5
        %v1241 = vmul.f32 %v1177, 0.5
        %v1242 = vmul.f32 %v1178, 0.5
        %v1243 = vmul.f32 %v1179, 0.5
        %v1244 = vmul.f32 %v1180, 0.5
        %v1245 = vmul.f32 %v1181, 0.5
        %v1246 = vmul.f32 %v1182, 0.5
        %v1247 = vmul.f32 %v1183, 0.5
        %v1248 = vmul.f32 %v1184, 0.5
        %v1249 = vmul.f32 %v1185, 0.5
        %v1250 = vmul.f32 %v1186, 0.5
        %v1251 = vmul.f32 %v1187, 0.5
        %v1252 = vmul.f32 %v1188, 0.5
        %v1253 = vmul.f32 %v1189, 0.5
        %v1254 = vmul.f32 %v1190, 0.5
        %v1255 = vmul.f32 %v1191, 0.5
        %v1256 = vmul.f32 %v1192, 0.5
        %v1257 = vmul.f32 %v1193, 0.5
        %v1258 = vmul.f32 %v1194, 0.5
        %v1259 = vmul.f32 %v1195, 0.5
        %v1260 = vmul.f32 %v1196, 0.5
        %v1261 = vmul.f32 %v1197, 0.5
        %v1262 = vmul.f32 %v1198, 0.5
        %v1263 = vmul.f32 %v583, %v1199
        %v1264 = vmul.f32 %v672, %v1200
        %v1265 = vmul.f32 %v585, %v1201
        %v1266 = vmul.f32 %v674, %v1202
        %v1267 = vmul.f32 %v588, %v1203
        %v1268 = vmul.f32 %v677, %v1204
        %v1269 = vmul.f32 %v590, %v1205
        %v1270 = vmul.f32 %v679, %v1206
        %v1271 = vmul.f32 %v593, %v1207
        %v1272 = vmul.f32 %v682, %v1208
        %v1273 = vmul.f32 %v595, %v1209
        %v1274 = vmul.f32 %v684, %v1210
        %v1275 = vmul.f32 %v598, %v1211
        %v1276 = vmul.f32 %v687, %v1212
        %v1277 = vmul.f32 %v600, %v1213
        %v1278 = vmul.f32 %v689, %v1214
        %v1279 = vmul.f32 %v603, %v1215
        %v1280 = vmul.f32 %v692, %v1216
        %v1281 = vmul.f32 %v605, %v1217
        %v1282 = vmul.f32 %v694, %v1218
        %v1283 = vmul.f32 %v608, %v1219
        %v1284 = vmul.f32 %v697, %v1220
        %v1285 = vmul.f32 %v610, %v1221
        %v1286 = vmul.f32 %v699, %v1222
        %v1287 = vmul.f32 %v613, %v1223
        %v1288 = vmul.f32 %v702, %v1224
        %v1289 = vmul.f32 %v615, %v1225
        %v1290 = vmul.f32 %v704, %v1226
        %v1291 = vmul.f32 %v618, %v1227
        %v1292 = vmul.f32 %v707, %v1228
        %v1293 = vmul.f32 %v620, %v1229
        %v1294 = vmul.f32 %v709, %v1230
        %v1295 = vmul.f32 %v623, %v1231
        %v1296 = vmul.f32 %v712, %v1232
        %v1297 = vmul.f32 %v625, %v1233
        %v1298 = vmul.f32 %v714, %v1234
        %v1299 = vmul.f32 %v628, %v1235
        %v1300 = vmul.f32 %v717, %v1236
        %v1301 = vmul.f32 %v630, %v1237
        %v1302 = vmul.f32 %v719, %v1238
        %v1303 = vmul.f32 %v633, %v1239
        %v1304 = vmul.f32 %v722, %v1240
        %v1305 = vmul.f32 %v635, %v1241
        %v1306 = vmul.f32 %v724, %v1242
        %v1307 = vmul.f32 %v638, %v1243
        %v1308 = vmul.f32 %v727, %v1244
        %v1309 = vmul.f32 %v640, %v1245
        %v1310 = vmul.f32 %v729, %v1246
        %v1311 = vmul.f32 %v643, %v1247
        %v1312 = vmul.f32 %v732, %v1248
        %v1313 = vmul.f32 %v645, %v1249
        %v1314 = vmul.f32 %v734, %v1250
        %v1315 = vmul.f32 %v648, %v1251
        %v1316 = vmul.f32 %v737, %v1252
        %v1317 = vmul.f32 %v650, %v1253
        %v1318 = vmul.f32 %v739, %v1254
        %v1319 = vmul.f32 %v653, %v1255
        %v1320 = vmul.f32 %v742, %v1256
        %v1321 = vmul.f32 %v655, %v1257
        %v1322 = vmul.f32 %v744, %v1258
        %v1323 = vmul.f32 %v658, %v1259
        %v1324 = vmul.f32 %v747, %v1260
        %v1325 = vmul.f32 %v660, %v1261
        %v1326 = vmul.f32 %v749, %v1262
        %v1327 = vpack.c.bf16 %v1265, %v1263
        %v1328 = vpack.c.bf16 %v1266, %v1264
        %v1329 = vpack.c.bf16 %v1269, %v1267
        %v1330 = vpack.c.bf16 %v1270, %v1268
        %v1331 = vpack.c.bf16 %v1273, %v1271
        %v1332 = vpack.c.bf16 %v1274, %v1272
        %v1333 = vpack.c.bf16 %v1277, %v1275
        %v1334 = vpack.c.bf16 %v1278, %v1276
        %v1335 = vpack.c.bf16 %v1281, %v1279
        %v1336 = vpack.c.bf16 %v1282, %v1280
        %v1337 = vpack.c.bf16 %v1285, %v1283
        %v1338 = vpack.c.bf16 %v1286, %v1284
        %v1339 = vpack.c.bf16 %v1289, %v1287
        %v1340 = vpack.c.bf16 %v1290, %v1288
        %v1341 = vpack.c.bf16 %v1293, %v1291
        %v1342 = vpack.c.bf16 %v1294, %v1292
        %v1343 = vpack.c.bf16 %v1297, %v1295
        %v1344 = vpack.c.bf16 %v1298, %v1296
        %v1345 = vpack.c.bf16 %v1301, %v1299
        %v1346 = vpack.c.bf16 %v1302, %v1300
        %v1347 = vpack.c.bf16 %v1305, %v1303
        %v1348 = vpack.c.bf16 %v1306, %v1304
        %v1349 = vpack.c.bf16 %v1309, %v1307
        %v1350 = vpack.c.bf16 %v1310, %v1308
        %v1351 = vpack.c.bf16 %v1313, %v1311
        %v1352 = vpack.c.bf16 %v1314, %v1312
        %v1353 = vpack.c.bf16 %v1317, %v1315
        %v1354 = vpack.c.bf16 %v1318, %v1316
        %v1355 = vpack.c.bf16 %v1321, %v1319
        %v1356 = vpack.c.bf16 %v1322, %v1320
        %v1357 = vpack.c.bf16 %v1325, %v1323
        %v1358 = vpack.c.bf16 %v1326, %v1324
        %v1359 = vld [vmem:[#allocation8] sm:$0xff]
        %v1360 = vld [vmem:[#allocation8 + $0x8] sm:$0xff]
        %v1361 = vld [vmem:[#allocation8 + $0x10] sm:$0xff]
        %v1362 = vld [vmem:[#allocation8 + $0x18] sm:$0xff]
        %v1363 = vld [vmem:[#allocation8 + $0x20] sm:$0xff]
        %v1364 = vld [vmem:[#allocation8 + $0x28] sm:$0xff]
        %v1365 = vld [vmem:[#allocation8 + $0x30] sm:$0xff]
        %v1366 = vld [vmem:[#allocation8 + $0x38] sm:$0xff]
        %v1367 = vld [vmem:[#allocation8 + $0x40] sm:$0xff]
        %v1368 = vld [vmem:[#allocation8 + $0x48] sm:$0xff]
        %v1369 = vld [vmem:[#allocation8 + $0x50] sm:$0xff]
        %v1370 = vld [vmem:[#allocation8 + $0x58] sm:$0xff]
        %v1371 = vld [vmem:[#allocation8 + $0x60] sm:$0xff]
        %v1372 = vld [vmem:[#allocation8 + $0x68] sm:$0xff]
        %v1373 = vld [vmem:[#allocation8 + $0x70] sm:$0xff]
        %v1374 = vld [vmem:[#allocation8 + $0x78] sm:$0xff]
        %v1375 = vld [vmem:[#allocation8 + $0x80] sm:$0xff]
        %v1376 = vld [vmem:[#allocation8 + $0x88] sm:$0xff]
        %v1377 = vld [vmem:[#allocation8 + $0x90] sm:$0xff]
        %v1378 = vld [vmem:[#allocation8 + $0x98] sm:$0xff]
        %v1379 = vld [vmem:[#allocation8 + $0xa0] sm:$0xff]
        %v1380 = vld [vmem:[#allocation8 + $0xa8] sm:$0xff]
        %v1381 = vld [vmem:[#allocation8 + $0xb0] sm:$0xff]
        %v1382 = vld [vmem:[#allocation8 + $0xb8] sm:$0xff]
        %v1383 = vld [vmem:[#allocation8 + $0xc0] sm:$0xff]
        %v1384 = vld [vmem:[#allocation8 + $0xc8] sm:$0xff]
        %v1385 = vld [vmem:[#allocation8 + $0xd0] sm:$0xff]
        %v1386 = vld [vmem:[#allocation8 + $0xd8] sm:$0xff]
        %v1387 = vld [vmem:[#allocation8 + $0xe0] sm:$0xff]
        %v1388 = vld [vmem:[#allocation8 + $0xe8] sm:$0xff]
        %v1389 = vld [vmem:[#allocation8 + $0xf0] sm:$0xff]
        %v1390 = vld [vmem:[#allocation8 + $0xf8] sm:$0xff]
        %v1392 = vperm.slane %v452, 0
        %v1393 = vperm.slane %v452, 1
        %v1428 = vunpack.c.l.b16 %v1359
        %v1429 = vunpack.c.h.b16 %v1359
        %v1430 = vunpack.c.l.b16 %v1360
        %v1431 = vunpack.c.h.b16 %v1360
        %v1432 = vunpack.c.l.b16 %v1361
        %v1433 = vunpack.c.h.b16 %v1361
        %v1434 = vunpack.c.l.b16 %v1362
        %v1435 = vunpack.c.h.b16 %v1362
        %v1436 = vunpack.c.l.b16 %v1363
        %v1437 = vunpack.c.h.b16 %v1363
        %v1438 = vunpack.c.l.b16 %v1364
        %v1439 = vunpack.c.h.b16 %v1364
        %v1440 = vunpack.c.l.b16 %v1365
        %v1441 = vunpack.c.h.b16 %v1365
        %v1442 = vunpack.c.l.b16 %v1366
        %v1443 = vunpack.c.h.b16 %v1366
        %v1444 = vunpack.c.l.b16 %v1367
        %v1445 = vunpack.c.h.b16 %v1367
        %v1446 = vunpack.c.l.b16 %v1368
        %v1447 = vunpack.c.h.b16 %v1368
        %v1448 = vunpack.c.l.b16 %v1369
        %v1449 = vunpack.c.h.b16 %v1369
        %v1450 = vunpack.c.l.b16 %v1370
        %v1451 = vunpack.c.h.b16 %v1370
        %v1452 = vunpack.c.l.b16 %v1371
        %v1453 = vunpack.c.h.b16 %v1371
        %v1454 = vunpack.c.l.b16 %v1372
        %v1455 = vunpack.c.h.b16 %v1372
        %v1456 = vunpack.c.l.b16 %v1373
        %v1457 = vunpack.c.h.b16 %v1373
        %v1458 = vunpack.c.l.b16 %v1374
        %v1459 = vunpack.c.h.b16 %v1374
        %v1460 = vunpack.c.l.b16 %v1375
        %v1461 = vunpack.c.h.b16 %v1375
        %v1462 = vunpack.c.l.b16 %v1376
        %v1463 = vunpack.c.h.b16 %v1376
        %v1464 = vunpack.c.l.b16 %v1377
        %v1465 = vunpack.c.h.b16 %v1377
        %v1466 = vunpack.c.l.b16 %v1378
        %v1467 = vunpack.c.h.b16 %v1378
        %v1468 = vunpack.c.l.b16 %v1379
        %v1469 = vunpack.c.h.b16 %v1379
        %v1470 = vunpack.c.l.b16 %v1380
        %v1471 = vunpack.c.h.b16 %v1380
        %v1472 = vunpack.c.l.b16 %v1381
        %v1473 = vunpack.c.h.b16 %v1381
        %v1474 = vunpack.c.l.b16 %v1382
        %v1475 = vunpack.c.h.b16 %v1382
        %v1476 = vunpack.c.l.b16 %v1383
        %v1477 = vunpack.c.h.b16 %v1383
        %v1478 = vunpack.c.l.b16 %v1384
        %v1479 = vunpack.c.h.b16 %v1384
        %v1480 = vunpack.c.l.b16 %v1385
        %v1481 = vunpack.c.h.b16 %v1385
        %v1482 = vunpack.c.l.b16 %v1386
        %v1483 = vunpack.c.h.b16 %v1386
        %v1484 = vunpack.c.l.b16 %v1387
        %v1485 = vunpack.c.h.b16 %v1387
        %v1486 = vunpack.c.l.b16 %v1388
        %v1487 = vunpack.c.h.b16 %v1388
        %v1488 = vunpack.c.l.b16 %v1389
        %v1489 = vunpack.c.h.b16 %v1389
        %v1490 = vunpack.c.l.b16 %v1390
        %v1491 = vunpack.c.h.b16 %v1390
        %v1492 = vpack.c.b16 %v1430, %v1428
        %v1493 = vpack.c.b16 %v1431, %v1429
        %v1494 = vpack.c.b16 %v1434, %v1432
        %v1495 = vpack.c.b16 %v1435, %v1433
        %v1496 = vpack.c.b16 %v1438, %v1436
        %v1497 = vpack.c.b16 %v1439, %v1437
        %v1498 = vpack.c.b16 %v1442, %v1440
        %v1499 = vpack.c.b16 %v1443, %v1441
        %v1500 = vpack.c.b16 %v1446, %v1444
        %v1501 = vpack.c.b16 %v1447, %v1445
        %v1502 = vpack.c.b16 %v1450, %v1448
        %v1503 = vpack.c.b16 %v1451, %v1449
        %v1504 = vpack.c.b16 %v1454, %v1452
        %v1505 = vpack.c.b16 %v1455, %v1453
        %v1506 = vpack.c.b16 %v1458, %v1456
        %v1507 = vpack.c.b16 %v1459, %v1457
        %v1508 = vpack.c.b16 %v1462, %v1460
        %v1509 = vpack.c.b16 %v1463, %v1461
        %v1510 = vpack.c.b16 %v1466, %v1464
        %v1511 = vpack.c.b16 %v1467, %v1465
        %v1512 = vpack.c.b16 %v1470, %v1468
        %v1513 = vpack.c.b16 %v1471, %v1469
        %v1514 = vpack.c.b16 %v1474, %v1472
        %v1515 = vpack.c.b16 %v1475, %v1473
        %v1516 = vpack.c.b16 %v1478, %v1476
        %v1517 = vpack.c.b16 %v1479, %v1477
        %v1518 = vpack.c.b16 %v1482, %v1480
        %v1519 = vpack.c.b16 %v1483, %v1481
        %v1520 = vpack.c.b16 %v1486, %v1484
        %v1521 = vpack.c.b16 %v1487, %v1485
        %v1522 = vpack.c.b16 %v1490, %v1488
        %v1523 = vpack.c.b16 %v1491, %v1489
        %1556 = vmatpush.bf16.msra.mxu0 %v1506
        %1557 = vmatpush.bf16.msra.mxu0 %v1504
        %1558 = vmatpush.bf16.msra.mxu0 %v1502
        %1559 = vmatpush.bf16.msra.mxu0 %v1500
        %1560 = vmatpush.bf16.msra.mxu0 %v1498
        %1561 = vmatpush.bf16.msra.mxu0 %v1496
        %1562 = vmatpush.bf16.msra.mxu0 %v1494
        %1563 = vmatpush.bf16.msra.mxu0 %v1492
        %1564 = vmatmul.bf16.gmra.mxu0 %v1327
        %v1565 = vpop.f32.mrf.mxu0
        %v1566 = vadd.f32 %v1392, %v1565
        %v1567 = vpop.f32.mrf.mxu0
        %v1568 = vadd.f32 %v1392, %v1567
        %1569 = vmatmul.bf16.gmra.mxu0 %v1329
        %v1570 = vpop.f32.mrf.mxu0
        %v1571 = vadd.f32 %v1392, %v1570
        %v1572 = vpop.f32.mrf.mxu0
        %v1573 = vadd.f32 %v1392, %v1572
        %1574 = vmatmul.bf16.gmra.mxu0 %v1331
        %v1575 = vpop.f32.mrf.mxu0
        %v1576 = vadd.f32 %v1392, %v1575
        %v1577 = vpop.f32.mrf.mxu0
        %v1578 = vadd.f32 %v1392, %v1577
        %1579 = vmatmul.bf16.gmra.mxu0 %v1333
        %v1580 = vpop.f32.mrf.mxu0
        %v1581 = vadd.f32 %v1392, %v1580
        %v1582 = vpop.f32.mrf.mxu0
        %v1583 = vadd.f32 %v1392, %v1582
        %1584 = vmatmul.bf16.gmra.mxu0 %v1335
        %v1585 = vpop.f32.mrf.mxu0
        %v1586 = vadd.f32 %v1392, %v1585
        %v1587 = vpop.f32.mrf.mxu0
        %v1588 = vadd.f32 %v1392, %v1587
        %1589 = vmatmul.bf16.gmra.mxu0 %v1337
        %v1590 = vpop.f32.mrf.mxu0
        %v1591 = vadd.f32 %v1392, %v1590
        %v1592 = vpop.f32.mrf.mxu0
        %v1593 = vadd.f32 %v1392, %v1592
        %1594 = vmatmul.bf16.gmra.mxu0 %v1339
        %v1595 = vpop.f32.mrf.mxu0
        %v1596 = vadd.f32 %v1392, %v1595
        %v1597 = vpop.f32.mrf.mxu0
        %v1598 = vadd.f32 %v1392, %v1597
        %1599 = vmatmul.bf16.gmra.mxu0 %v1341
        %v1600 = vpop.f32.mrf.mxu0
        %v1601 = vadd.f32 %v1392, %v1600
        %v1602 = vpop.f32.mrf.mxu0
        %v1603 = vadd.f32 %v1392, %v1602
        %1604 = vmatmul.bf16.gmra.mxu0 %v1343
        %v1605 = vpop.f32.mrf.mxu0
        %v1606 = vadd.f32 %v1392, %v1605
        %v1607 = vpop.f32.mrf.mxu0
        %v1608 = vadd.f32 %v1392, %v1607
        %1609 = vmatmul.bf16.gmra.mxu0 %v1345
        %v1610 = vpop.f32.mrf.mxu0
        %v1611 = vadd.f32 %v1392, %v1610
        %v1612 = vpop.f32.mrf.mxu0
        %v1613 = vadd.f32 %v1392, %v1612
        %1614 = vmatmul.bf16.gmra.mxu0 %v1347
        %v1615 = vpop.f32.mrf.mxu0
        %v1616 = vadd.f32 %v1392, %v1615
        %v1617 = vpop.f32.mrf.mxu0
        %v1618 = vadd.f32 %v1392, %v1617
        %1619 = vmatmul.bf16.gmra.mxu0 %v1349
        %v1620 = vpop.f32.mrf.mxu0
        %v1621 = vadd.f32 %v1392, %v1620
        %v1622 = vpop.f32.mrf.mxu0
        %v1623 = vadd.f32 %v1392, %v1622
        %1624 = vmatmul.bf16.gmra.mxu0 %v1351
        %v1625 = vpop.f32.mrf.mxu0
        %v1626 = vadd.f32 %v1392, %v1625
        %v1627 = vpop.f32.mrf.mxu0
        %v1628 = vadd.f32 %v1392, %v1627
        %1629 = vmatmul.bf16.gmra.mxu0 %v1353
        %v1630 = vpop.f32.mrf.mxu0
        %v1631 = vadd.f32 %v1392, %v1630
        %v1632 = vpop.f32.mrf.mxu0
        %v1633 = vadd.f32 %v1392, %v1632
        %1634 = vmatmul.bf16.gmra.mxu0 %v1355
        %v1635 = vpop.f32.mrf.mxu0
        %v1636 = vadd.f32 %v1392, %v1635
        %v1637 = vpop.f32.mrf.mxu0
        %v1638 = vadd.f32 %v1392, %v1637
        %1639 = vmatmul.bf16.gmra.mxu0 %v1357
        %v1640 = vpop.f32.mrf.mxu0
        %v1641 = vadd.f32 %v1392, %v1640
        %v1642 = vpop.f32.mrf.mxu0
        %v1643 = vadd.f32 %v1392, %v1642
        %1644 = vdwg.mxu0
        %1645 = vmatpush.bf16.msra.mxu0 %v1522
        %1646 = vmatpush.bf16.msra.mxu0 %v1520
        %1647 = vmatpush.bf16.msra.mxu0 %v1518
        %1648 = vmatpush.bf16.msra.mxu0 %v1516
        %1649 = vmatpush.bf16.msra.mxu0 %v1514
        %1650 = vmatpush.bf16.msra.mxu0 %v1512
        %1651 = vmatpush.bf16.msra.mxu0 %v1510
        %1652 = vmatpush.bf16.msra.mxu0 %v1508
        %1653 = vmatmul.bf16.gmra.mxu0 %v1328
        %v1654 = vpop.f32.mrf.mxu0
        %v1655 = vadd.f32 %v1566, %v1654
        %v1656 = vpop.f32.mrf.mxu0
        %v1657 = vadd.f32 %v1568, %v1656
        %1658 = vmatmul.bf16.gmra.mxu0 %v1330
        %v1659 = vpop.f32.mrf.mxu0
        %v1660 = vadd.f32 %v1571, %v1659
        %v1661 = vpop.f32.mrf.mxu0
        %v1662 = vadd.f32 %v1573, %v1661
        %1663 = vmatmul.bf16.gmra.mxu0 %v1332
        %v1664 = vpop.f32.mrf.mxu0
        %v1665 = vadd.f32 %v1576, %v1664
        %v1666 = vpop.f32.mrf.mxu0
        %v1667 = vadd.f32 %v1578, %v1666
        %1668 = vmatmul.bf16.gmra.mxu0 %v1334
        %v1669 = vpop.f32.mrf.mxu0
        %v1670 = vadd.f32 %v1581, %v1669
        %v1671 = vpop.f32.mrf.mxu0
        %v1672 = vadd.f32 %v1583, %v1671
        %1673 = vmatmul.bf16.gmra.mxu0 %v1336
        %v1674 = vpop.f32.mrf.mxu0
        %v1675 = vadd.f32 %v1586, %v1674
        %v1676 = vpop.f32.mrf.mxu0
        %v1677 = vadd.f32 %v1588, %v1676
        %1678 = vmatmul.bf16.gmra.mxu0 %v1338
        %v1679 = vpop.f32.mrf.mxu0
        %v1680 = vadd.f32 %v1591, %v1679
        %v1681 = vpop.f32.mrf.mxu0
        %v1682 = vadd.f32 %v1593, %v1681
        %1683 = vmatmul.bf16.gmra.mxu0 %v1340
        %v1684 = vpop.f32.mrf.mxu0
        %v1685 = vadd.f32 %v1596, %v1684
        %v1686 = vpop.f32.mrf.mxu0
        %v1687 = vadd.f32 %v1598, %v1686
        %1688 = vmatmul.bf16.gmra.mxu0 %v1342
        %v1689 = vpop.f32.mrf.mxu0
        %v1690 = vadd.f32 %v1601, %v1689
        %v1691 = vpop.f32.mrf.mxu0
        %v1692 = vadd.f32 %v1603, %v1691
        %1693 = vmatmul.bf16.gmra.mxu0 %v1344
        %v1694 = vpop.f32.mrf.mxu0
        %v1695 = vadd.f32 %v1606, %v1694
        %v1696 = vpop.f32.mrf.mxu0
        %v1697 = vadd.f32 %v1608, %v1696
        %1698 = vmatmul.bf16.gmra.mxu0 %v1346
        %v1699 = vpop.f32.mrf.mxu0
        %v1700 = vadd.f32 %v1611, %v1699
        %v1701 = vpop.f32.mrf.mxu0
        %v1702 = vadd.f32 %v1613, %v1701
        %1703 = vmatmul.bf16.gmra.mxu0 %v1348
        %v1704 = vpop.f32.mrf.mxu0
        %v1705 = vadd.f32 %v1616, %v1704
        %v1706 = vpop.f32.mrf.mxu0
        %v1707 = vadd.f32 %v1618, %v1706
        %1708 = vmatmul.bf16.gmra.mxu0 %v1350
        %v1709 = vpop.f32.mrf.mxu0
        %v1710 = vadd.f32 %v1621, %v1709
        %v1711 = vpop.f32.mrf.mxu0
        %v1712 = vadd.f32 %v1623, %v1711
        %1713 = vmatmul.bf16.gmra.mxu0 %v1352
        %v1714 = vpop.f32.mrf.mxu0
        %v1715 = vadd.f32 %v1626, %v1714
        %v1716 = vpop.f32.mrf.mxu0
        %v1717 = vadd.f32 %v1628, %v1716
        %1718 = vmatmul.bf16.gmra.mxu0 %v1354
        %v1719 = vpop.f32.mrf.mxu0
        %v1720 = vadd.f32 %v1631, %v1719
        %v1721 = vpop.f32.mrf.mxu0
        %v1722 = vadd.f32 %v1633, %v1721
        %1723 = vmatmul.bf16.gmra.mxu0 %v1356
        %v1724 = vpop.f32.mrf.mxu0
        %v1725 = vadd.f32 %v1636, %v1724
        %v1726 = vpop.f32.mrf.mxu0
        %v1727 = vadd.f32 %v1638, %v1726
        %1728 = vmatmul.bf16.gmra.mxu0 %v1358
        %v1729 = vpop.f32.mrf.mxu0
        %v1730 = vadd.f32 %v1641, %v1729
        %v1731 = vpop.f32.mrf.mxu0
        %v1732 = vadd.f32 %v1643, %v1731
        %1733 = vdwg.mxu0
        %1734 = vmatpush.bf16.msra.mxu0 %v1507
        %1735 = vmatpush.bf16.msra.mxu0 %v1505
        %1736 = vmatpush.bf16.msra.mxu0 %v1503
        %1737 = vmatpush.bf16.msra.mxu0 %v1501
        %1738 = vmatpush.bf16.msra.mxu0 %v1499
        %1739 = vmatpush.bf16.msra.mxu0 %v1497
        %1740 = vmatpush.bf16.msra.mxu0 %v1495
        %1741 = vmatpush.bf16.msra.mxu0 %v1493
        %1742 = vmatmul.bf16.gmra.mxu0 %v1327
        %v1743 = vpop.f32.mrf.mxu0
        %v1744 = vadd.f32 %v1393, %v1743
        %v1745 = vpop.f32.mrf.mxu0
        %v1746 = vadd.f32 %v1393, %v1745
        %1747 = vmatmul.bf16.gmra.mxu0 %v1329
        %v1748 = vpop.f32.mrf.mxu0
        %v1749 = vadd.f32 %v1393, %v1748
        %v1750 = vpop.f32.mrf.mxu0
        %v1751 = vadd.f32 %v1393, %v1750
        %1752 = vmatmul.bf16.gmra.mxu0 %v1331
        %v1753 = vpop.f32.mrf.mxu0
        %v1754 = vadd.f32 %v1393, %v1753
        %v1755 = vpop.f32.mrf.mxu0
        %v1756 = vadd.f32 %v1393, %v1755
        %1757 = vmatmul.bf16.gmra.mxu0 %v1333
        %v1758 = vpop.f32.mrf.mxu0
        %v1759 = vadd.f32 %v1393, %v1758
        %v1760 = vpop.f32.mrf.mxu0
        %v1761 = vadd.f32 %v1393, %v1760
        %1762 = vmatmul.bf16.gmra.mxu0 %v1335
        %v1763 = vpop.f32.mrf.mxu0
        %v1764 = vadd.f32 %v1393, %v1763
        %v1765 = vpop.f32.mrf.mxu0
        %v1766 = vadd.f32 %v1393, %v1765
        %1767 = vmatmul.bf16.gmra.mxu0 %v1337
        %v1768 = vpop.f32.mrf.mxu0
        %v1769 = vadd.f32 %v1393, %v1768
        %v1770 = vpop.f32.mrf.mxu0
        %v1771 = vadd.f32 %v1393, %v1770
        %1772 = vmatmul.bf16.gmra.mxu0 %v1339
        %v1773 = vpop.f32.mrf.mxu0
        %v1774 = vadd.f32 %v1393, %v1773
        %v1775 = vpop.f32.mrf.mxu0
        %v1776 = vadd.f32 %v1393, %v1775
        %1777 = vmatmul.bf16.gmra.mxu0 %v1341
        %v1778 = vpop.f32.mrf.mxu0
        %v1779 = vadd.f32 %v1393, %v1778
        %v1780 = vpop.f32.mrf.mxu0
        %v1781 = vadd.f32 %v1393, %v1780
        %1782 = vmatmul.bf16.gmra.mxu0 %v1343
        %v1783 = vpop.f32.mrf.mxu0
        %v1784 = vadd.f32 %v1393, %v1783
        %v1785 = vpop.f32.mrf.mxu0
        %v1786 = vadd.f32 %v1393, %v1785
        %1787 = vmatmul.bf16.gmra.mxu0 %v1345
        %v1788 = vpop.f32.mrf.mxu0
        %v1789 = vadd.f32 %v1393, %v1788
        %v1790 = vpop.f32.mrf.mxu0
        %v1791 = vadd.f32 %v1393, %v1790
        %1792 = vmatmul.bf16.gmra.mxu0 %v1347
        %v1793 = vpop.f32.mrf.mxu0
        %v1794 = vadd.f32 %v1393, %v1793
        %v1795 = vpop.f32.mrf.mxu0
        %v1796 = vadd.f32 %v1393, %v1795
        %1797 = vmatmul.bf16.gmra.mxu0 %v1349
        %v1798 = vpop.f32.mrf.mxu0
        %v1799 = vadd.f32 %v1393, %v1798
        %v1800 = vpop.f32.mrf.mxu0
        %v1801 = vadd.f32 %v1393, %v1800
        %1802 = vmatmul.bf16.gmra.mxu0 %v1351
        %v1803 = vpop.f32.mrf.mxu0
        %v1804 = vadd.f32 %v1393, %v1803
        %v1805 = vpop.f32.mrf.mxu0
        %v1806 = vadd.f32 %v1393, %v1805
        %1807 = vmatmul.bf16.gmra.mxu0 %v1353
        %v1808 = vpop.f32.mrf.mxu0
        %v1809 = vadd.f32 %v1393, %v1808
        %v1810 = vpop.f32.mrf.mxu0
        %v1811 = vadd.f32 %v1393, %v1810
        %1812 = vmatmul.bf16.gmra.mxu0 %v1355
        %v1813 = vpop.f32.mrf.mxu0
        %v1814 = vadd.f32 %v1393, %v1813
        %v1815 = vpop.f32.mrf.mxu0
        %v1816 = vadd.f32 %v1393, %v1815
        %1817 = vmatmul.bf16.gmra.mxu0 %v1357
        %v1818 = vpop.f32.mrf.mxu0
        %v1819 = vadd.f32 %v1393, %v1818
        %v1820 = vpop.f32.mrf.mxu0
        %v1821 = vadd.f32 %v1393, %v1820
        %1822 = vdwg.mxu0
        %1823 = vmatpush.bf16.msra.mxu0 %v1523
        %1824 = vmatpush.bf16.msra.mxu0 %v1521
        %1825 = vmatpush.bf16.msra.mxu0 %v1519
        %1826 = vmatpush.bf16.msra.mxu0 %v1517
        %1827 = vmatpush.bf16.msra.mxu0 %v1515
        %1828 = vmatpush.bf16.msra.mxu0 %v1513
        %1829 = vmatpush.bf16.msra.mxu0 %v1511
        %1830 = vmatpush.bf16.msra.mxu0 %v1509
        %1831 = vmatmul.bf16.gmra.mxu0 %v1328
        %v1832 = vpop.f32.mrf.mxu0
        %v1833 = vadd.f32 %v1744, %v1832
        %v1834 = vpop.f32.mrf.mxu0
        %v1835 = vadd.f32 %v1746, %v1834
        %1836 = vmatmul.bf16.gmra.mxu0 %v1330
        %v1837 = vpop.f32.mrf.mxu0
        %v1838 = vadd.f32 %v1749, %v1837
        %v1839 = vpop.f32.mrf.mxu0
        %v1840 = vadd.f32 %v1751, %v1839
        %1841 = vmatmul.bf16.gmra.mxu0 %v1332
        %v1842 = vpop.f32.mrf.mxu0
        %v1843 = vadd.f32 %v1754, %v1842
        %v1844 = vpop.f32.mrf.mxu0
        %v1845 = vadd.f32 %v1756, %v1844
        %1846 = vmatmul.bf16.gmra.mxu0 %v1334
        %v1847 = vpop.f32.mrf.mxu0
        %v1848 = vadd.f32 %v1759, %v1847
        %v1849 = vpop.f32.mrf.mxu0
        %v1850 = vadd.f32 %v1761, %v1849
        %1851 = vmatmul.bf16.gmra.mxu0 %v1336
        %v1852 = vpop.f32.mrf.mxu0
        %v1853 = vadd.f32 %v1764, %v1852
        %v1854 = vpop.f32.mrf.mxu0
        %v1855 = vadd.f32 %v1766, %v1854
        %1856 = vmatmul.bf16.gmra.mxu0 %v1338
        %v1857 = vpop.f32.mrf.mxu0
        %v1858 = vadd.f32 %v1769, %v1857
        %v1859 = vpop.f32.mrf.mxu0
        %v1860 = vadd.f32 %v1771, %v1859
        %1861 = vmatmul.bf16.gmra.mxu0 %v1340
        %v1862 = vpop.f32.mrf.mxu0
        %v1863 = vadd.f32 %v1774, %v1862
        %v1864 = vpop.f32.mrf.mxu0
        %v1865 = vadd.f32 %v1776, %v1864
        %1866 = vmatmul.bf16.gmra.mxu0 %v1342
        %v1867 = vpop.f32.mrf.mxu0
        %v1868 = vadd.f32 %v1779, %v1867
        %v1869 = vpop.f32.mrf.mxu0
        %v1870 = vadd.f32 %v1781, %v1869
        %1871 = vmatmul.bf16.gmra.mxu0 %v1344
        %v1872 = vpop.f32.mrf.mxu0
        %v1873 = vadd.f32 %v1784, %v1872
        %v1874 = vpop.f32.mrf.mxu0
        %v1875 = vadd.f32 %v1786, %v1874
        %1876 = vmatmul.bf16.gmra.mxu0 %v1346
        %v1877 = vpop.f32.mrf.mxu0
        %v1878 = vadd.f32 %v1789, %v1877
        %v1879 = vpop.f32.mrf.mxu0
        %v1880 = vadd.f32 %v1791, %v1879
        %1881 = vmatmul.bf16.gmra.mxu0 %v1348
        %v1882 = vpop.f32.mrf.mxu0
        %v1883 = vadd.f32 %v1794, %v1882
        %v1884 = vpop.f32.mrf.mxu0
        %v1885 = vadd.f32 %v1796, %v1884
        %1886 = vmatmul.bf16.gmra.mxu0 %v1350
        %v1887 = vpop.f32.mrf.mxu0
        %v1888 = vadd.f32 %v1799, %v1887
        %v1889 = vpop.f32.mrf.mxu0
        %v1890 = vadd.f32 %v1801, %v1889
        %1891 = vmatmul.bf16.gmra.mxu0 %v1352
        %v1892 = vpop.f32.mrf.mxu0
        %v1893 = vadd.f32 %v1804, %v1892
        %v1894 = vpop.f32.mrf.mxu0
        %v1895 = vadd.f32 %v1806, %v1894
        %1896 = vmatmul.bf16.gmra.mxu0 %v1354
        %v1897 = vpop.f32.mrf.mxu0
        %v1898 = vadd.f32 %v1809, %v1897
        %v1899 = vpop.f32.mrf.mxu0
        %v1900 = vadd.f32 %v1811, %v1899
        %1901 = vmatmul.bf16.gmra.mxu0 %v1356
        %v1902 = vpop.f32.mrf.mxu0
        %v1903 = vadd.f32 %v1814, %v1902
        %v1904 = vpop.f32.mrf.mxu0
        %v1905 = vadd.f32 %v1816, %v1904
        %1906 = vmatmul.bf16.gmra.mxu0 %v1358
        %v1907 = vpop.f32.mrf.mxu0
        %v1908 = vadd.f32 %v1819, %v1907
        %v1909 = vpop.f32.mrf.mxu0
        %v1910 = vadd.f32 %v1821, %v1909
        %1911 = vdwg.mxu0
        %v1912 = vmul.f32 %v1655, %v1655
        %v1913 = vmul.f32 %v1833, %v1833
        %v1914 = vmul.f32 %v1657, %v1657
        %v1915 = vmul.f32 %v1835, %v1835
        %v1916 = vmul.f32 %v1660, %v1660
        %v1917 = vmul.f32 %v1838, %v1838
        %v1918 = vmul.f32 %v1662, %v1662
        %v1919 = vmul.f32 %v1840, %v1840
        %v1920 = vmul.f32 %v1665, %v1665
        %v1921 = vmul.f32 %v1843, %v1843
        %v1922 = vmul.f32 %v1667, %v1667
        %v1923 = vmul.f32 %v1845, %v1845
        %v1924 = vmul.f32 %v1670, %v1670
        %v1925 = vmul.f32 %v1848, %v1848
        %v1926 = vmul.f32 %v1672, %v1672
        %v1927 = vmul.f32 %v1850, %v1850
        %v1928 = vmul.f32 %v1675, %v1675
        %v1929 = vmul.f32 %v1853, %v1853
        %v1930 = vmul.f32 %v1677, %v1677
        %v1931 = vmul.f32 %v1855, %v1855
        %v1932 = vmul.f32 %v1680, %v1680
        %v1933 = vmul.f32 %v1858, %v1858
        %v1934 = vmul.f32 %v1682, %v1682
        %v1935 = vmul.f32 %v1860, %v1860
        %v1936 = vmul.f32 %v1685, %v1685
        %v1937 = vmul.f32 %v1863, %v1863
        %v1938 = vmul.f32 %v1687, %v1687
        %v1939 = vmul.f32 %v1865, %v1865
        %v1940 = vmul.f32 %v1690, %v1690
        %v1941 = vmul.f32 %v1868, %v1868
        %v1942 = vmul.f32 %v1692, %v1692
        %v1943 = vmul.f32 %v1870, %v1870
        %v1944 = vmul.f32 %v1695, %v1695
        %v1945 = vmul.f32 %v1873, %v1873
        %v1946 = vmul.f32 %v1697, %v1697
        %v1947 = vmul.f32 %v1875, %v1875
        %v1948 = vmul.f32 %v1700, %v1700
        %v1949 = vmul.f32 %v1878, %v1878
        %v1950 = vmul.f32 %v1702, %v1702
        %v1951 = vmul.f32 %v1880, %v1880
        %v1952 = vmul.f32 %v1705, %v1705
        %v1953 = vmul.f32 %v1883, %v1883
        %v1954 = vmul.f32 %v1707, %v1707
        %v1955 = vmul.f32 %v1885, %v1885
        %v1956 = vmul.f32 %v1710, %v1710
        %v1957 = vmul.f32 %v1888, %v1888
        %v1958 = vmul.f32 %v1712, %v1712
        %v1959 = vmul.f32 %v1890, %v1890
        %v1960 = vmul.f32 %v1715, %v1715
        %v1961 = vmul.f32 %v1893, %v1893
        %v1962 = vmul.f32 %v1717, %v1717
        %v1963 = vmul.f32 %v1895, %v1895
        %v1964 = vmul.f32 %v1720, %v1720
        %v1965 = vmul.f32 %v1898, %v1898
        %v1966 = vmul.f32 %v1722, %v1722
        %v1967 = vmul.f32 %v1900, %v1900
        %v1968 = vmul.f32 %v1725, %v1725
        %v1969 = vmul.f32 %v1903, %v1903
        %v1970 = vmul.f32 %v1727, %v1727
        %v1971 = vmul.f32 %v1905, %v1905
        %v1972 = vmul.f32 %v1730, %v1730
        %v1973 = vmul.f32 %v1908, %v1908
        %v1974 = vmul.f32 %v1732, %v1732
        %v1975 = vmul.f32 %v1910, %v1910
        %v1976 = vmul.f32 %v1655, %v1912
        %v1977 = vmul.f32 %v1833, %v1913
        %v1978 = vmul.f32 %v1657, %v1914
        %v1979 = vmul.f32 %v1835, %v1915
        %v1980 = vmul.f32 %v1660, %v1916
        %v1981 = vmul.f32 %v1838, %v1917
        %v1982 = vmul.f32 %v1662, %v1918
        %v1983 = vmul.f32 %v1840, %v1919
        %v1984 = vmul.f32 %v1665, %v1920
        %v1985 = vmul.f32 %v1843, %v1921
        %v1986 = vmul.f32 %v1667, %v1922
        %v1987 = vmul.f32 %v1845, %v1923
        %v1988 = vmul.f32 %v1670, %v1924
        %v1989 = vmul.f32 %v1848, %v1925
        %v1990 = vmul.f32 %v1672, %v1926
        %v1991 = vmul.f32 %v1850, %v1927
        %v1992 = vmul.f32 %v1675, %v1928
        %v1993 = vmul.f32 %v1853, %v1929
        %v1994 = vmul.f32 %v1677, %v1930
        %v1995 = vmul.f32 %v1855, %v1931
        %v1996 = vmul.f32 %v1680, %v1932
        %v1997 = vmul.f32 %v1858, %v1933
        %v1998 = vmul.f32 %v1682, %v1934
        %v1999 = vmul.f32 %v1860, %v1935
        %v2000 = vmul.f32 %v1685, %v1936
        %v2001 = vmul.f32 %v1863, %v1937
        %v2002 = vmul.f32 %v1687, %v1938
        %v2003 = vmul.f32 %v1865, %v1939
        %v2004 = vmul.f32 %v1690, %v1940
        %v2005 = vmul.f32 %v1868, %v1941
        %v2006 = vmul.f32 %v1692, %v1942
        %v2007 = vmul.f32 %v1870, %v1943
        %v2008 = vmul.f32 %v1695, %v1944
        %v2009 = vmul.f32 %v1873, %v1945
        %v2010 = vmul.f32 %v1697, %v1946
        %v2011 = vmul.f32 %v1875, %v1947
        %v2012 = vmul.f32 %v1700, %v1948
        %v2013 = vmul.f32 %v1878, %v1949
        %v2014 = vmul.f32 %v1702, %v1950
        %v2015 = vmul.f32 %v1880, %v1951
        %v2016 = vmul.f32 %v1705, %v1952
        %v2017 = vmul.f32 %v1883, %v1953
        %v2018 = vmul.f32 %v1707, %v1954
        %v2019 = vmul.f32 %v1885, %v1955
        %v2020 = vmul.f32 %v1710, %v1956
        %v2021 = vmul.f32 %v1888, %v1957
        %v2022 = vmul.f32 %v1712, %v1958
        %v2023 = vmul.f32 %v1890, %v1959
        %v2024 = vmul.f32 %v1715, %v1960
        %v2025 = vmul.f32 %v1893, %v1961
        %v2026 = vmul.f32 %v1717, %v1962
        %v2027 = vmul.f32 %v1895, %v1963
        %v2028 = vmul.f32 %v1720, %v1964
        %v2029 = vmul.f32 %v1898, %v1965
        %v2030 = vmul.f32 %v1722, %v1966
        %v2031 = vmul.f32 %v1900, %v1967
        %v2032 = vmul.f32 %v1725, %v1968
        %v2033 = vmul.f32 %v1903, %v1969
        %v2034 = vmul.f32 %v1727, %v1970
        %v2035 = vmul.f32 %v1905, %v1971
        %v2036 = vmul.f32 %v1730, %v1972
        %v2037 = vmul.f32 %v1908, %v1973
        %v2038 = vmul.f32 %v1732, %v1974
        %v2039 = vmul.f32 %v1910, %v1975
        %v2040 = vmul.f32 %v1976, 0.044715
        %v2041 = vmul.f32 %v1977, 0.044715
        %v2042 = vmul.f32 %v1978, 0.044715
        %v2043 = vmul.f32 %v1979, 0.044715
        %v2044 = vmul.f32 %v1980, 0.044715
        %v2045 = vmul.f32 %v1981, 0.044715
        %v2046 = vmul.f32 %v1982, 0.044715
        %v2047 = vmul.f32 %v1983, 0.044715
        %v2048 = vmul.f32 %v1984, 0.044715
        %v2049 = vmul.f32 %v1985, 0.044715
        %v2050 = vmul.f32 %v1986, 0.044715
        %v2051 = vmul.f32 %v1987, 0.044715
        %v2052 = vmul.f32 %v1988, 0.044715
        %v2053 = vmul.f32 %v1989, 0.044715
        %v2054 = vmul.f32 %v1990, 0.044715
        %v2055 = vmul.f32 %v1991, 0.044715
        %v2056 = vmul.f32 %v1992, 0.044715
        %v2057 = vmul.f32 %v1993, 0.044715
        %v2058 = vmul.f32 %v1994, 0.044715
        %v2059 = vmul.f32 %v1995, 0.044715
        %v2060 = vmul.f32 %v1996, 0.044715
        %v2061 = vmul.f32 %v1997, 0.044715
        %v2062 = vmul.f32 %v1998, 0.044715
        %v2063 = vmul.f32 %v1999, 0.044715
        %v2064 = vmul.f32 %v2000, 0.044715
        %v2065 = vmul.f32 %v2001, 0.044715
        %v2066 = vmul.f32 %v2002, 0.044715
        %v2067 = vmul.f32 %v2003, 0.044715
        %v2068 = vmul.f32 %v2004, 0.044715
        %v2069 = vmul.f32 %v2005, 0.044715
        %v2070 = vmul.f32 %v2006, 0.044715
        %v2071 = vmul.f32 %v2007, 0.044715
        %v2072 = vmul.f32 %v2008, 0.044715
        %v2073 = vmul.f32 %v2009, 0.044715
        %v2074 = vmul.f32 %v2010, 0.044715
        %v2075 = vmul.f32 %v2011, 0.044715
        %v2076 = vmul.f32 %v2012, 0.044715
        %v2077 = vmul.f32 %v2013, 0.044715
        %v2078 = vmul.f32 %v2014, 0.044715
        %v2079 = vmul.f32 %v2015, 0.044715
        %v2080 = vmul.f32 %v2016, 0.044715
        %v2081 = vmul.f32 %v2017, 0.044715
        %v2082 = vmul.f32 %v2018, 0.044715
        %v2083 = vmul.f32 %v2019, 0.044715
        %v2084 = vmul.f32 %v2020, 0.044715
        %v2085 = vmul.f32 %v2021, 0.044715
        %v2086 = vmul.f32 %v2022, 0.044715
        %v2087 = vmul.f32 %v2023, 0.044715
        %v2088 = vmul.f32 %v2024, 0.044715
        %v2089 = vmul.f32 %v2025, 0.044715
        %v2090 = vmul.f32 %v2026, 0.044715
        %v2091 = vmul.f32 %v2027, 0.044715
        %v2092 = vmul.f32 %v2028, 0.044715
        %v2093 = vmul.f32 %v2029, 0.044715
        %v2094 = vmul.f32 %v2030, 0.044715
        %v2095 = vmul.f32 %v2031, 0.044715
        %v2096 = vmul.f32 %v2032, 0.044715
        %v2097 = vmul.f32 %v2033, 0.044715
        %v2098 = vmul.f32 %v2034, 0.044715
        %v2099 = vmul.f32 %v2035, 0.044715
        %v2100 = vmul.f32 %v2036, 0.044715
        %v2101 = vmul.f32 %v2037, 0.044715
        %v2102 = vmul.f32 %v2038, 0.044715
        %v2103 = vmul.f32 %v2039, 0.044715
        %v2104 = vadd.f32 %v1655, %v2040
        %v2105 = vadd.f32 %v1833, %v2041
        %v2106 = vadd.f32 %v1657, %v2042
        %v2107 = vadd.f32 %v1835, %v2043
        %v2108 = vadd.f32 %v1660, %v2044
        %v2109 = vadd.f32 %v1838, %v2045
        %v2110 = vadd.f32 %v1662, %v2046
        %v2111 = vadd.f32 %v1840, %v2047
        %v2112 = vadd.f32 %v1665, %v2048
        %v2113 = vadd.f32 %v1843, %v2049
        %v2114 = vadd.f32 %v1667, %v2050
        %v2115 = vadd.f32 %v1845, %v2051
        %v2116 = vadd.f32 %v1670, %v2052
        %v2117 = vadd.f32 %v1848, %v2053
        %v2118 = vadd.f32 %v1672, %v2054
        %v2119 = vadd.f32 %v1850, %v2055
        %v2120 = vadd.f32 %v1675, %v2056
        %v2121 = vadd.f32 %v1853, %v2057
        %v2122 = vadd.f32 %v1677, %v2058
        %v2123 = vadd.f32 %v1855, %v2059
        %v2124 = vadd.f32 %v1680, %v2060
        %v2125 = vadd.f32 %v1858, %v2061
        %v2126 = vadd.f32 %v1682, %v2062
        %v2127 = vadd.f32 %v1860, %v2063
        %v2128 = vadd.f32 %v1685, %v2064
        %v2129 = vadd.f32 %v1863, %v2065
        %v2130 = vadd.f32 %v1687, %v2066
        %v2131 = vadd.f32 %v1865, %v2067
        %v2132 = vadd.f32 %v1690, %v2068
        %v2133 = vadd.f32 %v1868, %v2069
        %v2134 = vadd.f32 %v1692, %v2070
        %v2135 = vadd.f32 %v1870, %v2071
        %v2136 = vadd.f32 %v1695, %v2072
        %v2137 = vadd.f32 %v1873, %v2073
        %v2138 = vadd.f32 %v1697, %v2074
        %v2139 = vadd.f32 %v1875, %v2075
        %v2140 = vadd.f32 %v1700, %v2076
        %v2141 = vadd.f32 %v1878, %v2077
        %v2142 = vadd.f32 %v1702, %v2078
        %v2143 = vadd.f32 %v1880, %v2079
        %v2144 = vadd.f32 %v1705, %v2080
        %v2145 = vadd.f32 %v1883, %v2081
        %v2146 = vadd.f32 %v1707, %v2082
        %v2147 = vadd.f32 %v1885, %v2083
        %v2148 = vadd.f32 %v1710, %v2084
        %v2149 = vadd.f32 %v1888, %v2085
        %v2150 = vadd.f32 %v1712, %v2086
        %v2151 = vadd.f32 %v1890, %v2087
        %v2152 = vadd.f32 %v1715, %v2088
        %v2153 = vadd.f32 %v1893, %v2089
        %v2154 = vadd.f32 %v1717, %v2090
        %v2155 = vadd.f32 %v1895, %v2091
        %v2156 = vadd.f32 %v1720, %v2092
        %v2157 = vadd.f32 %v1898, %v2093
        %v2158 = vadd.f32 %v1722, %v2094
        %v2159 = vadd.f32 %v1900, %v2095
        %v2160 = vadd.f32 %v1725, %v2096
        %v2161 = vadd.f32 %v1903, %v2097
        %v2162 = vadd.f32 %v1727, %v2098
        %v2163 = vadd.f32 %v1905, %v2099
        %v2164 = vadd.f32 %v1730, %v2100
        %v2165 = vadd.f32 %v1908, %v2101
        %v2166 = vadd.f32 %v1732, %v2102
        %v2167 = vadd.f32 %v1910, %v2103
        %v2168 = vmul.f32 %v2104, 0.7978846
        %v2169 = vmul.f32 %v2105, 0.7978846
        %v2170 = vmul.f32 %v2106, 0.7978846
        %v2171 = vmul.f32 %v2107, 0.7978846
        %v2172 = vmul.f32 %v2108, 0.7978846
        %v2173 = vmul.f32 %v2109, 0.7978846
        %v2174 = vmul.f32 %v2110, 0.7978846
        %v2175 = vmul.f32 %v2111, 0.7978846
        %v2176 = vmul.f32 %v2112, 0.7978846
        %v2177 = vmul.f32 %v2113, 0.7978846
        %v2178 = vmul.f32 %v2114, 0.7978846
        %v2179 = vmul.f32 %v2115, 0.7978846
        %v2180 = vmul.f32 %v2116, 0.7978846
        %v2181 = vmul.f32 %v2117, 0.7978846
        %v2182 = vmul.f32 %v2118, 0.7978846
        %v2183 = vmul.f32 %v2119, 0.7978846
        %v2184 = vmul.f32 %v2120, 0.7978846
        %v2185 = vmul.f32 %v2121, 0.7978846
        %v2186 = vmul.f32 %v2122, 0.7978846
        %v2187 = vmul.f32 %v2123, 0.7978846
        %v2188 = vmul.f32 %v2124, 0.7978846
        %v2189 = vmul.f32 %v2125, 0.7978846
        %v2190 = vmul.f32 %v2126, 0.7978846
        %v2191 = vmul.f32 %v2127, 0.7978846
        %v2192 = vmul.f32 %v2128, 0.7978846
        %v2193 = vmul.f32 %v2129, 0.7978846
        %v2194 = vmul.f32 %v2130, 0.7978846
        %v2195 = vmul.f32 %v2131, 0.7978846
        %v2196 = vmul.f32 %v2132, 0.7978846
        %v2197 = vmul.f32 %v2133, 0.7978846
        %v2198 = vmul.f32 %v2134, 0.7978846
        %v2199 = vmul.f32 %v2135, 0.7978846
        %v2200 = vmul.f32 %v2136, 0.7978846
        %v2201 = vmul.f32 %v2137, 0.7978846
        %v2202 = vmul.f32 %v2138, 0.7978846
        %v2203 = vmul.f32 %v2139, 0.7978846
        %v2204 = vmul.f32 %v2140, 0.7978846
        %v2205 = vmul.f32 %v2141, 0.7978846
        %v2206 = vmul.f32 %v2142, 0.7978846
        %v2207 = vmul.f32 %v2143, 0.7978846
        %v2208 = vmul.f32 %v2144, 0.7978846
        %v2209 = vmul.f32 %v2145, 0.7978846
        %v2210 = vmul.f32 %v2146, 0.7978846
        %v2211 = vmul.f32 %v2147, 0.7978846
        %v2212 = vmul.f32 %v2148, 0.7978846
        %v2213 = vmul.f32 %v2149, 0.7978846
        %v2214 = vmul.f32 %v2150, 0.7978846
        %v2215 = vmul.f32 %v2151, 0.7978846
        %v2216 = vmul.f32 %v2152, 0.7978846
        %v2217 = vmul.f32 %v2153, 0.7978846
        %v2218 = vmul.f32 %v2154, 0.7978846
        %v2219 = vmul.f32 %v2155, 0.7978846
        %v2220 = vmul.f32 %v2156, 0.7978846
        %v2221 = vmul.f32 %v2157, 0.7978846
        %v2222 = vmul.f32 %v2158, 0.7978846
        %v2223 = vmul.f32 %v2159, 0.7978846
        %v2224 = vmul.f32 %v2160, 0.7978846
        %v2225 = vmul.f32 %v2161, 0.7978846
        %v2226 = vmul.f32 %v2162, 0.7978846
        %v2227 = vmul.f32 %v2163, 0.7978846
        %v2228 = vmul.f32 %v2164, 0.7978846
        %v2229 = vmul.f32 %v2165, 0.7978846
        %v2230 = vmul.f32 %v2166, 0.7978846
        %v2231 = vmul.f32 %v2167, 0.7978846
        %v2232 = vtanh.pop %v2168
        %v2233 = vtanh.pop %v2169
        %v2234 = vtanh.pop %v2170
        %v2235 = vtanh.pop %v2171
        %v2236 = vtanh.pop %v2172
        %v2237 = vtanh.pop %v2173
        %v2238 = vtanh.pop %v2174
        %v2239 = vtanh.pop %v2175
        %v2240 = vtanh.pop %v2176
        %v2241 = vtanh.pop %v2177
        %v2242 = vtanh.pop %v2178
        %v2243 = vtanh.pop %v2179
        %v2244 = vtanh.pop %v2180
        %v2245 = vtanh.pop %v2181
        %v2246 = vtanh.pop %v2182
        %v2247 = vtanh.pop %v2183
        %v2248 = vtanh.pop %v2184
        %v2249 = vtanh.pop %v2185
        %v2250 = vtanh.pop %v2186
        %v2251 = vtanh.pop %v2187
        %v2252 = vtanh.pop %v2188
        %v2253 = vtanh.pop %v2189
        %v2254 = vtanh.pop %v2190
        %v2255 = vtanh.pop %v2191
        %v2256 = vtanh.pop %v2192
        %v2257 = vtanh.pop %v2193
        %v2258 = vtanh.pop %v2194
        %v2259 = vtanh.pop %v2195
        %v2260 = vtanh.pop %v2196
        %v2261 = vtanh.pop %v2197
        %v2262 = vtanh.pop %v2198
        %v2263 = vtanh.pop %v2199
        %v2264 = vtanh.pop %v2200
        %v2265 = vtanh.pop %v2201
        %v2266 = vtanh.pop %v2202
        %v2267 = vtanh.pop %v2203
        %v2268 = vtanh.pop %v2204
        %v2269 = vtanh.pop %v2205
        %v2270 = vtanh.pop %v2206
        %v2271 = vtanh.pop %v2207
        %v2272 = vtanh.pop %v2208
        %v2273 = vtanh.pop %v2209
        %v2274 = vtanh.pop %v2210
        %v2275 = vtanh.pop %v2211
        %v2276 = vtanh.pop %v2212
        %v2277 = vtanh.pop %v2213
        %v2278 = vtanh.pop %v2214
        %v2279 = vtanh.pop %v2215
        %v2280 = vtanh.pop %v2216
        %v2281 = vtanh.pop %v2217
        %v2282 = vtanh.pop %v2218
        %v2283 = vtanh.pop %v2219
        %v2284 = vtanh.pop %v2220
        %v2285 = vtanh.pop %v2221
        %v2286 = vtanh.pop %v2222
        %v2287 = vtanh.pop %v2223
        %v2288 = vtanh.pop %v2224
        %v2289 = vtanh.pop %v2225
        %v2290 = vtanh.pop %v2226
        %v2291 = vtanh.pop %v2227
        %v2292 = vtanh.pop %v2228
        %v2293 = vtanh.pop %v2229
        %v2294 = vtanh.pop %v2230
        %v2295 = vtanh.pop %v2231
        %v2296 = vadd.f32 %v2232, 1.0
        %v2297 = vadd.f32 %v2233, 1.0
        %v2298 = vadd.f32 %v2234, 1.0
        %v2299 = vadd.f32 %v2235, 1.0
        %v2300 = vadd.f32 %v2236, 1.0
        %v2301 = vadd.f32 %v2237, 1.0
        %v2302 = vadd.f32 %v2238, 1.0
        %v2303 = vadd.f32 %v2239, 1.0
        %v2304 = vadd.f32 %v2240, 1.0
        %v2305 = vadd.f32 %v2241, 1.0
        %v2306 = vadd.f32 %v2242, 1.0
        %v2307 = vadd.f32 %v2243, 1.0
        %v2308 = vadd.f32 %v2244, 1.0
        %v2309 = vadd.f32 %v2245, 1.0
        %v2310 = vadd.f32 %v2246, 1.0
        %v2311 = vadd.f32 %v2247, 1.0
        %v2312 = vadd.f32 %v2248, 1.0
        %v2313 = vadd.f32 %v2249, 1.0
        %v2314 = vadd.f32 %v2250, 1.0
        %v2315 = vadd.f32 %v2251, 1.0
        %v2316 = vadd.f32 %v2252, 1.0
        %v2317 = vadd.f32 %v2253, 1.0
        %v2318 = vadd.f32 %v2254, 1.0
        %v2319 = vadd.f32 %v2255, 1.0
        %v2320 = vadd.f32 %v2256, 1.0
        %v2321 = vadd.f32 %v2257, 1.0
        %v2322 = vadd.f32 %v2258, 1.0
        %v2323 = vadd.f32 %v2259, 1.0
        %v2324 = vadd.f32 %v2260, 1.0
        %v2325 = vadd.f32 %v2261, 1.0
        %v2326 = vadd.f32 %v2262, 1.0
        %v2327 = vadd.f32 %v2263, 1.0
        %v2328 = vadd.f32 %v2264, 1.0
        %v2329 = vadd.f32 %v2265, 1.0
        %v2330 = vadd.f32 %v2266, 1.0
        %v2331 = vadd.f32 %v2267, 1.0
        %v2332 = vadd.f32 %v2268, 1.0
        %v2333 = vadd.f32 %v2269, 1.0
        %v2334 = vadd.f32 %v2270, 1.0
        %v2335 = vadd.f32 %v2271, 1.0
        %v2336 = vadd.f32 %v2272, 1.0
        %v2337 = vadd.f32 %v2273, 1.0
        %v2338 = vadd.f32 %v2274, 1.0
        %v2339 = vadd.f32 %v2275, 1.0
        %v2340 = vadd.f32 %v2276, 1.0
        %v2341 = vadd.f32 %v2277, 1.0
        %v2342 = vadd.f32 %v2278, 1.0
        %v2343 = vadd.f32 %v2279, 1.0
        %v2344 = vadd.f32 %v2280, 1.0
        %v2345 = vadd.f32 %v2281, 1.0
        %v2346 = vadd.f32 %v2282, 1.0
        %v2347 = vadd.f32 %v2283, 1.0
        %v2348 = vadd.f32 %v2284, 1.0
        %v2349 = vadd.f32 %v2285, 1.0
        %v2350 = vadd.f32 %v2286, 1.0
        %v2351 = vadd.f32 %v2287, 1.0
        %v2352 = vadd.f32 %v2288, 1.0
        %v2353 = vadd.f32 %v2289, 1.0
        %v2354 = vadd.f32 %v2290, 1.0
        %v2355 = vadd.f32 %v2291, 1.0
        %v2356 = vadd.f32 %v2292, 1.0
        %v2357 = vadd.f32 %v2293, 1.0
        %v2358 = vadd.f32 %v2294, 1.0
        %v2359 = vadd.f32 %v2295, 1.0
        %v2360 = vmul.f32 %v2296, 0.5
        %v2361 = vmul.f32 %v2297, 0.5
        %v2362 = vmul.f32 %v2298, 0.5
        %v2363 = vmul.f32 %v2299, 0.5
        %v2364 = vmul.f32 %v2300, 0.5
        %v2365 = vmul.f32 %v2301, 0.5
        %v2366 = vmul.f32 %v2302, 0.5
        %v2367 = vmul.f32 %v2303, 0.5
        %v2368 = vmul.f32 %v2304, 0.5
        %v2369 = vmul.f32 %v2305, 0.5
        %v2370 = vmul.f32 %v2306, 0.5
        %v2371 = vmul.f32 %v2307, 0.5
        %v2372 = vmul.f32 %v2308, 0.5
        %v2373 = vmul.f32 %v2309, 0.5
        %v2374 = vmul.f32 %v2310, 0.5
        %v2375 = vmul.f32 %v2311, 0.5
        %v2376 = vmul.f32 %v2312, 0.5
        %v2377 = vmul.f32 %v2313, 0.5
        %v2378 = vmul.f32 %v2314, 0.5
        %v2379 = vmul.f32 %v2315, 0.5
        %v2380 = vmul.f32 %v2316, 0.5
        %v2381 = vmul.f32 %v2317, 0.5
        %v2382 = vmul.f32 %v2318, 0.5
        %v2383 = vmul.f32 %v2319, 0.5
        %v2384 = vmul.f32 %v2320, 0.5
        %v2385 = vmul.f32 %v2321, 0.5
        %v2386 = vmul.f32 %v2322, 0.5
        %v2387 = vmul.f32 %v2323, 0.5
        %v2388 = vmul.f32 %v2324, 0.5
        %v2389 = vmul.f32 %v2325, 0.5
        %v2390 = vmul.f32 %v2326, 0.5
        %v2391 = vmul.f32 %v2327, 0.5
        %v2392 = vmul.f32 %v2328, 0.5
        %v2393 = vmul.f32 %v2329, 0.5
        %v2394 = vmul.f32 %v2330, 0.5
        %v2395 = vmul.f32 %v2331, 0.5
        %v2396 = vmul.f32 %v2332, 0.5
        %v2397 = vmul.f32 %v2333, 0.5
        %v2398 = vmul.f32 %v2334, 0.5
        %v2399 = vmul.f32 %v2335, 0.5
        %v2400 = vmul.f32 %v2336, 0.5
        %v2401 = vmul.f32 %v2337, 0.5
        %v2402 = vmul.f32 %v2338, 0.5
        %v2403 = vmul.f32 %v2339, 0.5
        %v2404 = vmul.f32 %v2340, 0.5
        %v2405 = vmul.f32 %v2341, 0.5
        %v2406 = vmul.f32 %v2342, 0.5
        %v2407 = vmul.f32 %v2343, 0.5
        %v2408 = vmul.f32 %v2344, 0.5
        %v2409 = vmul.f32 %v2345, 0.5
        %v2410 = vmul.f32 %v2346, 0.5
        %v2411 = vmul.f32 %v2347, 0.5
        %v2412 = vmul.f32 %v2348, 0.5
        %v2413 = vmul.f32 %v2349, 0.5
        %v2414 = vmul.f32 %v2350, 0.5
        %v2415 = vmul.f32 %v2351, 0.5
        %v2416 = vmul.f32 %v2352, 0.5
        %v2417 = vmul.f32 %v2353, 0.5
        %v2418 = vmul.f32 %v2354, 0.5
        %v2419 = vmul.f32 %v2355, 0.5
        %v2420 = vmul.f32 %v2356, 0.5
        %v2421 = vmul.f32 %v2357, 0.5
        %v2422 = vmul.f32 %v2358, 0.5
        %v2423 = vmul.f32 %v2359, 0.5
        %v2424 = vmul.f32 %v1655, %v2360
        %v2425 = vmul.f32 %v1833, %v2361
        %v2426 = vmul.f32 %v1657, %v2362
        %v2427 = vmul.f32 %v1835, %v2363
        %v2428 = vmul.f32 %v1660, %v2364
        %v2429 = vmul.f32 %v1838, %v2365
        %v2430 = vmul.f32 %v1662, %v2366
        %v2431 = vmul.f32 %v1840, %v2367
        %v2432 = vmul.f32 %v1665, %v2368
        %v2433 = vmul.f32 %v1843, %v2369
        %v2434 = vmul.f32 %v1667, %v2370
        %v2435 = vmul.f32 %v1845, %v2371
        %v2436 = vmul.f32 %v1670, %v2372
        %v2437 = vmul.f32 %v1848, %v2373
        %v2438 = vmul.f32 %v1672, %v2374
        %v2439 = vmul.f32 %v1850, %v2375
        %v2440 = vmul.f32 %v1675, %v2376
        %v2441 = vmul.f32 %v1853, %v2377
        %v2442 = vmul.f32 %v1677, %v2378
        %v2443 = vmul.f32 %v1855, %v2379
        %v2444 = vmul.f32 %v1680, %v2380
        %v2445 = vmul.f32 %v1858, %v2381
        %v2446 = vmul.f32 %v1682, %v2382
        %v2447 = vmul.f32 %v1860, %v2383
        %v2448 = vmul.f32 %v1685, %v2384
        %v2449 = vmul.f32 %v1863, %v2385
        %v2450 = vmul.f32 %v1687, %v2386
        %v2451 = vmul.f32 %v1865, %v2387
        %v2452 = vmul.f32 %v1690, %v2388
        %v2453 = vmul.f32 %v1868, %v2389
        %v2454 = vmul.f32 %v1692, %v2390
        %v2455 = vmul.f32 %v1870, %v2391
        %v2456 = vmul.f32 %v1695, %v2392
        %v2457 = vmul.f32 %v1873, %v2393
        %v2458 = vmul.f32 %v1697, %v2394
        %v2459 = vmul.f32 %v1875, %v2395
        %v2460 = vmul.f32 %v1700, %v2396
        %v2461 = vmul.f32 %v1878, %v2397
        %v2462 = vmul.f32 %v1702, %v2398
        %v2463 = vmul.f32 %v1880, %v2399
        %v2464 = vmul.f32 %v1705, %v2400
        %v2465 = vmul.f32 %v1883, %v2401
        %v2466 = vmul.f32 %v1707, %v2402
        %v2467 = vmul.f32 %v1885, %v2403
        %v2468 = vmul.f32 %v1710, %v2404
        %v2469 = vmul.f32 %v1888, %v2405
        %v2470 = vmul.f32 %v1712, %v2406
        %v2471 = vmul.f32 %v1890, %v2407
        %v2472 = vmul.f32 %v1715, %v2408
        %v2473 = vmul.f32 %v1893, %v2409
        %v2474 = vmul.f32 %v1717, %v2410
        %v2475 = vmul.f32 %v1895, %v2411
        %v2476 = vmul.f32 %v1720, %v2412
        %v2477 = vmul.f32 %v1898, %v2413
        %v2478 = vmul.f32 %v1722, %v2414
        %v2479 = vmul.f32 %v1900, %v2415
        %v2480 = vmul.f32 %v1725, %v2416
        %v2481 = vmul.f32 %v1903, %v2417
        %v2482 = vmul.f32 %v1727, %v2418
        %v2483 = vmul.f32 %v1905, %v2419
        %v2484 = vmul.f32 %v1730, %v2420
        %v2485 = vmul.f32 %v1908, %v2421
        %v2486 = vmul.f32 %v1732, %v2422
        %v2487 = vmul.f32 %v1910, %v2423
        %v2488 = vpack.c.bf16 %v2426, %v2424
        %v2489 = vpack.c.bf16 %v2427, %v2425
        %v2490 = vpack.c.bf16 %v2430, %v2428
        %v2491 = vpack.c.bf16 %v2431, %v2429
        %v2492 = vpack.c.bf16 %v2434, %v2432
        %v2493 = vpack.c.bf16 %v2435, %v2433
        %v2494 = vpack.c.bf16 %v2438, %v2436
        %v2495 = vpack.c.bf16 %v2439, %v2437
        %v2496 = vpack.c.bf16 %v2442, %v2440
        %v2497 = vpack.c.bf16 %v2443, %v2441
        %v2498 = vpack.c.bf16 %v2446, %v2444
        %v2499 = vpack.c.bf16 %v2447, %v2445
        %v2500 = vpack.c.bf16 %v2450, %v2448
        %v2501 = vpack.c.bf16 %v2451, %v2449
        %v2502 = vpack.c.bf16 %v2454, %v2452
        %v2503 = vpack.c.bf16 %v2455, %v2453
        %v2504 = vpack.c.bf16 %v2458, %v2456
        %v2505 = vpack.c.bf16 %v2459, %v2457
        %v2506 = vpack.c.bf16 %v2462, %v2460
        %v2507 = vpack.c.bf16 %v2463, %v2461
        %v2508 = vpack.c.bf16 %v2466, %v2464
        %v2509 = vpack.c.bf16 %v2467, %v2465
        %v2510 = vpack.c.bf16 %v2470, %v2468
        %v2511 = vpack.c.bf16 %v2471, %v2469
        %v2512 = vpack.c.bf16 %v2474, %v2472
        %v2513 = vpack.c.bf16 %v2475, %v2473
        %v2514 = vpack.c.bf16 %v2478, %v2476
        %v2515 = vpack.c.bf16 %v2479, %v2477
        %v2516 = vpack.c.bf16 %v2482, %v2480
        %v2517 = vpack.c.bf16 %v2483, %v2481
        %v2518 = vpack.c.bf16 %v2486, %v2484
        %v2519 = vpack.c.bf16 %v2487, %v2485
        %v2520 = vld [vmem:[#allocation10] sm:$0xf]
        %v2521 = vld [vmem:[#allocation10 + $0x4] sm:$0xf]
        %v2522 = vld [vmem:[#allocation10 + $0x8] sm:$0xf]
        %v2523 = vld [vmem:[#allocation10 + $0xc] sm:$0xf]
        %v2524 = vld [vmem:[#allocation10 + $0x10] sm:$0xf]
        %v2525 = vld [vmem:[#allocation10 + $0x14] sm:$0xf]
        %v2526 = vld [vmem:[#allocation10 + $0x18] sm:$0xf]
        %v2527 = vld [vmem:[#allocation10 + $0x1c] sm:$0xf]
        %v2528 = vld [vmem:[#allocation10 + $0x20] sm:$0xf]
        %v2529 = vld [vmem:[#allocation10 + $0x24] sm:$0xf]
        %v2530 = vld [vmem:[#allocation10 + $0x28] sm:$0xf]
        %v2531 = vld [vmem:[#allocation10 + $0x2c] sm:$0xf]
        %v2532 = vld [vmem:[#allocation10 + $0x30] sm:$0xf]
        %v2533 = vld [vmem:[#allocation10 + $0x34] sm:$0xf]
        %v2534 = vld [vmem:[#allocation10 + $0x38] sm:$0xf]
        %v2535 = vld [vmem:[#allocation10 + $0x3c] sm:$0xf]
        %v2536 = vld [vmem:[#allocation10 + $0x40] sm:$0xf]
        %v2537 = vld [vmem:[#allocation10 + $0x44] sm:$0xf]
        %v2538 = vld [vmem:[#allocation10 + $0x48] sm:$0xf]
        %v2539 = vld [vmem:[#allocation10 + $0x4c] sm:$0xf]
        %v2540 = vld [vmem:[#allocation10 + $0x50] sm:$0xf]
        %v2541 = vld [vmem:[#allocation10 + $0x54] sm:$0xf]
        %v2542 = vld [vmem:[#allocation10 + $0x58] sm:$0xf]
        %v2543 = vld [vmem:[#allocation10 + $0x5c] sm:$0xf]
        %v2544 = vld [vmem:[#allocation10 + $0x60] sm:$0xf]
        %v2545 = vld [vmem:[#allocation10 + $0x64] sm:$0xf]
        %v2546 = vld [vmem:[#allocation10 + $0x68] sm:$0xf]
        %v2547 = vld [vmem:[#allocation10 + $0x6c] sm:$0xf]
        %v2548 = vld [vmem:[#allocation10 + $0x70] sm:$0xf]
        %v2549 = vld [vmem:[#allocation10 + $0x74] sm:$0xf]
        %v2550 = vld [vmem:[#allocation10 + $0x78] sm:$0xf]
        %v2551 = vld [vmem:[#allocation10 + $0x7c] sm:$0xf]
        %v2553 = vperm.slane %v453, 0
        %v2587 = vunpack.c.l.b16 %v2520
        %v2588 = vunpack.c.l.b16 %v2521
        %v2589 = vunpack.c.l.b16 %v2522
        %v2590 = vunpack.c.l.b16 %v2523
        %v2591 = vunpack.c.l.b16 %v2524
        %v2592 = vunpack.c.l.b16 %v2525
        %v2593 = vunpack.c.l.b16 %v2526
        %v2594 = vunpack.c.l.b16 %v2527
        %v2595 = vunpack.c.l.b16 %v2528
        %v2596 = vunpack.c.l.b16 %v2529
        %v2597 = vunpack.c.l.b16 %v2530
        %v2598 = vunpack.c.l.b16 %v2531
        %v2599 = vunpack.c.l.b16 %v2532
        %v2600 = vunpack.c.l.b16 %v2533
        %v2601 = vunpack.c.l.b16 %v2534
        %v2602 = vunpack.c.l.b16 %v2535
        %v2603 = vunpack.c.l.b16 %v2536
        %v2604 = vunpack.c.l.b16 %v2537
        %v2605 = vunpack.c.l.b16 %v2538
        %v2606 = vunpack.c.l.b16 %v2539
        %v2607 = vunpack.c.l.b16 %v2540
        %v2608 = vunpack.c.l.b16 %v2541
        %v2609 = vunpack.c.l.b16 %v2542
        %v2610 = vunpack.c.l.b16 %v2543
        %v2611 = vunpack.c.l.b16 %v2544
        %v2612 = vunpack.c.l.b16 %v2545
        %v2613 = vunpack.c.l.b16 %v2546
        %v2614 = vunpack.c.l.b16 %v2547
        %v2615 = vunpack.c.l.b16 %v2548
        %v2616 = vunpack.c.l.b16 %v2549
        %v2617 = vunpack.c.l.b16 %v2550
        %v2618 = vunpack.c.l.b16 %v2551
        %v2619 = vpack.c.b16 %v2588, %v2587
        %v2620 = vpack.c.b16 %v2590, %v2589
        %v2621 = vpack.c.b16 %v2592, %v2591
        %v2622 = vpack.c.b16 %v2594, %v2593
        %v2623 = vpack.c.b16 %v2596, %v2595
        %v2624 = vpack.c.b16 %v2598, %v2597
        %v2625 = vpack.c.b16 %v2600, %v2599
        %v2626 = vpack.c.b16 %v2602, %v2601
        %v2627 = vpack.c.b16 %v2604, %v2603
        %v2628 = vpack.c.b16 %v2606, %v2605
        %v2629 = vpack.c.b16 %v2608, %v2607
        %v2630 = vpack.c.b16 %v2610, %v2609
        %v2631 = vpack.c.b16 %v2612, %v2611
        %v2632 = vpack.c.b16 %v2614, %v2613
        %v2633 = vpack.c.b16 %v2616, %v2615
        %v2634 = vpack.c.b16 %v2618, %v2617
        %2651 = vmatpush.bf16.msra.mxu0 %v2626
        %2652 = vmatpush.bf16.msra.mxu0 %v2625
        %2653 = vmatpush.bf16.msra.mxu0 %v2624
        %2654 = vmatpush.bf16.msra.mxu0 %v2623
        %2655 = vmatpush.bf16.msra.mxu0 %v2622
        %2656 = vmatpush.bf16.msra.mxu0 %v2621
        %2657 = vmatpush.bf16.msra.mxu0 %v2620
        %2658 = vmatpush.bf16.msra.mxu0 %v2619
        %2659 = vmatmul.bf16.gmra.mxu0 %v2488
        %v2660 = vpop.f32.mrf.mxu0
        %v2661 = vadd.f32 %v2553, %v2660
        %v2662 = vpop.f32.mrf.mxu0
        %v2663 = vadd.f32 %v2553, %v2662
        %2664 = vmatmul.bf16.gmra.mxu0 %v2490
        %v2665 = vpop.f32.mrf.mxu0
        %v2666 = vadd.f32 %v2553, %v2665
        %v2667 = vpop.f32.mrf.mxu0
        %v2668 = vadd.f32 %v2553, %v2667
        %2669 = vmatmul.bf16.gmra.mxu0 %v2492
        %v2670 = vpop.f32.mrf.mxu0
        %v2671 = vadd.f32 %v2553, %v2670
        %v2672 = vpop.f32.mrf.mxu0
        %v2673 = vadd.f32 %v2553, %v2672
        %2674 = vmatmul.bf16.gmra.mxu0 %v2494
        %v2675 = vpop.f32.mrf.mxu0
        %v2676 = vadd.f32 %v2553, %v2675
        %v2677 = vpop.f32.mrf.mxu0
        %v2678 = vadd.f32 %v2553, %v2677
        %2679 = vmatmul.bf16.gmra.mxu0 %v2496
        %v2680 = vpop.f32.mrf.mxu0
        %v2681 = vadd.f32 %v2553, %v2680
        %v2682 = vpop.f32.mrf.mxu0
        %v2683 = vadd.f32 %v2553, %v2682
        %2684 = vmatmul.bf16.gmra.mxu0 %v2498
        %v2685 = vpop.f32.mrf.mxu0
        %v2686 = vadd.f32 %v2553, %v2685
        %v2687 = vpop.f32.mrf.mxu0
        %v2688 = vadd.f32 %v2553, %v2687
        %2689 = vmatmul.bf16.gmra.mxu0 %v2500
        %v2690 = vpop.f32.mrf.mxu0
        %v2691 = vadd.f32 %v2553, %v2690
        %v2692 = vpop.f32.mrf.mxu0
        %v2693 = vadd.f32 %v2553, %v2692
        %2694 = vmatmul.bf16.gmra.mxu0 %v2502
        %v2695 = vpop.f32.mrf.mxu0
        %v2696 = vadd.f32 %v2553, %v2695
        %v2697 = vpop.f32.mrf.mxu0
        %v2698 = vadd.f32 %v2553, %v2697
        %2699 = vmatmul.bf16.gmra.mxu0 %v2504
        %v2700 = vpop.f32.mrf.mxu0
        %v2701 = vadd.f32 %v2553, %v2700
        %v2702 = vpop.f32.mrf.mxu0
        %v2703 = vadd.f32 %v2553, %v2702
        %2704 = vmatmul.bf16.gmra.mxu0 %v2506
        %v2705 = vpop.f32.mrf.mxu0
        %v2706 = vadd.f32 %v2553, %v2705
        %v2707 = vpop.f32.mrf.mxu0
        %v2708 = vadd.f32 %v2553, %v2707
        %2709 = vmatmul.bf16.gmra.mxu0 %v2508
        %v2710 = vpop.f32.mrf.mxu0
        %v2711 = vadd.f32 %v2553, %v2710
        %v2712 = vpop.f32.mrf.mxu0
        %v2713 = vadd.f32 %v2553, %v2712
        %2714 = vmatmul.bf16.gmra.mxu0 %v2510
        %v2715 = vpop.f32.mrf.mxu0
        %v2716 = vadd.f32 %v2553, %v2715
        %v2717 = vpop.f32.mrf.mxu0
        %v2718 = vadd.f32 %v2553, %v2717
        %2719 = vmatmul.bf16.gmra.mxu0 %v2512
        %v2720 = vpop.f32.mrf.mxu0
        %v2721 = vadd.f32 %v2553, %v2720
        %v2722 = vpop.f32.mrf.mxu0
        %v2723 = vadd.f32 %v2553, %v2722
        %2724 = vmatmul.bf16.gmra.mxu0 %v2514
        %v2725 = vpop.f32.mrf.mxu0
        %v2726 = vadd.f32 %v2553, %v2725
        %v2727 = vpop.f32.mrf.mxu0
        %v2728 = vadd.f32 %v2553, %v2727
        %2729 = vmatmul.bf16.gmra.mxu0 %v2516
        %v2730 = vpop.f32.mrf.mxu0
        %v2731 = vadd.f32 %v2553, %v2730
        %v2732 = vpop.f32.mrf.mxu0
        %v2733 = vadd.f32 %v2553, %v2732
        %2734 = vmatmul.bf16.gmra.mxu0 %v2518
        %v2735 = vpop.f32.mrf.mxu0
        %v2736 = vadd.f32 %v2553, %v2735
        %v2737 = vpop.f32.mrf.mxu0
        %v2738 = vadd.f32 %v2553, %v2737
        %2739 = vdwg.mxu0
        %2740 = vmatpush.bf16.msra.mxu0 %v2634
        %2741 = vmatpush.bf16.msra.mxu0 %v2633
        %2742 = vmatpush.bf16.msra.mxu0 %v2632
        %2743 = vmatpush.bf16.msra.mxu0 %v2631
        %2744 = vmatpush.bf16.msra.mxu0 %v2630
        %2745 = vmatpush.bf16.msra.mxu0 %v2629
        %2746 = vmatpush.bf16.msra.mxu0 %v2628
        %2747 = vmatpush.bf16.msra.mxu0 %v2627
        %2748 = vmatmul.bf16.gmra.mxu0 %v2489
        %v2749 = vpop.f32.mrf.mxu0
        %v2750 = vadd.f32 %v2661, %v2749
        %v2751 = vpop.f32.mrf.mxu0
        %v2752 = vadd.f32 %v2663, %v2751
        %2753 = vmatmul.bf16.gmra.mxu0 %v2491
        %v2754 = vpop.f32.mrf.mxu0
        %v2755 = vadd.f32 %v2666, %v2754
        %v2756 = vpop.f32.mrf.mxu0
        %v2757 = vadd.f32 %v2668, %v2756
        %2758 = vmatmul.bf16.gmra.mxu0 %v2493
        %v2759 = vpop.f32.mrf.mxu0
        %v2760 = vadd.f32 %v2671, %v2759
        %v2761 = vpop.f32.mrf.mxu0
        %v2762 = vadd.f32 %v2673, %v2761
        %2763 = vmatmul.bf16.gmra.mxu0 %v2495
        %v2764 = vpop.f32.mrf.mxu0
        %v2765 = vadd.f32 %v2676, %v2764
        %v2766 = vpop.f32.mrf.mxu0
        %v2767 = vadd.f32 %v2678, %v2766
        %2768 = vmatmul.bf16.gmra.mxu0 %v2497
        %v2769 = vpop.f32.mrf.mxu0
        %v2770 = vadd.f32 %v2681, %v2769
        %v2771 = vpop.f32.mrf.mxu0
        %v2772 = vadd.f32 %v2683, %v2771
        %2773 = vmatmul.bf16.gmra.mxu0 %v2499
        %v2774 = vpop.f32.mrf.mxu0
        %v2775 = vadd.f32 %v2686, %v2774
        %v2776 = vpop.f32.mrf.mxu0
        %v2777 = vadd.f32 %v2688, %v2776
        %2778 = vmatmul.bf16.gmra.mxu0 %v2501
        %v2779 = vpop.f32.mrf.mxu0
        %v2780 = vadd.f32 %v2691, %v2779
        %v2781 = vpop.f32.mrf.mxu0
        %v2782 = vadd.f32 %v2693, %v2781
        %2783 = vmatmul.bf16.gmra.mxu0 %v2503
        %v2784 = vpop.f32.mrf.mxu0
        %v2785 = vadd.f32 %v2696, %v2784
        %v2786 = vpop.f32.mrf.mxu0
        %v2787 = vadd.f32 %v2698, %v2786
        %2788 = vmatmul.bf16.gmra.mxu0 %v2505
        %v2789 = vpop.f32.mrf.mxu0
        %v2790 = vadd.f32 %v2701, %v2789
        %v2791 = vpop.f32.mrf.mxu0
        %v2792 = vadd.f32 %v2703, %v2791
        %2793 = vmatmul.bf16.gmra.mxu0 %v2507
        %v2794 = vpop.f32.mrf.mxu0
        %v2795 = vadd.f32 %v2706, %v2794
        %v2796 = vpop.f32.mrf.mxu0
        %v2797 = vadd.f32 %v2708, %v2796
        %2798 = vmatmul.bf16.gmra.mxu0 %v2509
        %v2799 = vpop.f32.mrf.mxu0
        %v2800 = vadd.f32 %v2711, %v2799
        %v2801 = vpop.f32.mrf.mxu0
        %v2802 = vadd.f32 %v2713, %v2801
        %2803 = vmatmul.bf16.gmra.mxu0 %v2511
        %v2804 = vpop.f32.mrf.mxu0
        %v2805 = vadd.f32 %v2716, %v2804
        %v2806 = vpop.f32.mrf.mxu0
        %v2807 = vadd.f32 %v2718, %v2806
        %2808 = vmatmul.bf16.gmra.mxu0 %v2513
        %v2809 = vpop.f32.mrf.mxu0
        %v2810 = vadd.f32 %v2721, %v2809
        %v2811 = vpop.f32.mrf.mxu0
        %v2812 = vadd.f32 %v2723, %v2811
        %2813 = vmatmul.bf16.gmra.mxu0 %v2515
        %v2814 = vpop.f32.mrf.mxu0
        %v2815 = vadd.f32 %v2726, %v2814
        %v2816 = vpop.f32.mrf.mxu0
        %v2817 = vadd.f32 %v2728, %v2816
        %2818 = vmatmul.bf16.gmra.mxu0 %v2517
        %v2819 = vpop.f32.mrf.mxu0
        %v2820 = vadd.f32 %v2731, %v2819
        %v2821 = vpop.f32.mrf.mxu0
        %v2822 = vadd.f32 %v2733, %v2821
        %2823 = vmatmul.bf16.gmra.mxu0 %v2519
        %v2824 = vpop.f32.mrf.mxu0
        %v2825 = vadd.f32 %v2736, %v2824
        %v2826 = vpop.f32.mrf.mxu0
        %v2827 = vadd.f32 %v2738, %v2826
        %2828 = vdwg.mxu0
        %v2829 = vadd.f32 %v2750, %v419
        %v2830 = vadd.f32 %v2752, %v420
        %v2831 = vadd.f32 %v2755, %v421
        %v2832 = vadd.f32 %v2757, %v422
        %v2833 = vadd.f32 %v2760, %v423
        %v2834 = vadd.f32 %v2762, %v424
        %v2835 = vadd.f32 %v2765, %v425
        %v2836 = vadd.f32 %v2767, %v426
        %v2837 = vadd.f32 %v2770, %v427
        %v2838 = vadd.f32 %v2772, %v428
        %v2839 = vadd.f32 %v2775, %v429
        %v2840 = vadd.f32 %v2777, %v430
        %v2841 = vadd.f32 %v2780, %v431
        %v2842 = vadd.f32 %v2782, %v432
        %v2843 = vadd.f32 %v2785, %v433
        %v2844 = vadd.f32 %v2787, %v434
        %v2845 = vadd.f32 %v2790, %v435
        %v2846 = vadd.f32 %v2792, %v436
        %v2847 = vadd.f32 %v2795, %v437
        %v2848 = vadd.f32 %v2797, %v438
        %v2849 = vadd.f32 %v2800, %v439
        %v2850 = vadd.f32 %v2802, %v440
        %v2851 = vadd.f32 %v2805, %v441
        %v2852 = vadd.f32 %v2807, %v442
        %v2853 = vadd.f32 %v2810, %v443
        %v2854 = vadd.f32 %v2812, %v444
        %v2855 = vadd.f32 %v2815, %v445
        %v2856 = vadd.f32 %v2817, %v446
        %v2857 = vadd.f32 %v2820, %v447
        %v2858 = vadd.f32 %v2822, %v448
        %v2859 = vadd.f32 %v2825, %v449
        %v2860 = vadd.f32 %v2827, %v450
        %2861 = vadd.xlane.f32.xlu0 %v2829
        %v2862 = vpop.xlane.xlu0 %2861
        %2863 = vadd.xlane.f32.xlu0 %v2830
        %v2864 = vpop.xlane.xlu0 %2863
        %2865 = vadd.xlane.f32.xlu0 %v2831
        %v2866 = vpop.xlane.xlu0 %2865
        %2867 = vadd.xlane.f32.xlu0 %v2832
        %v2868 = vpop.xlane.xlu0 %2867
        %2869 = vadd.xlane.f32.xlu0 %v2833
        %v2870 = vpop.xlane.xlu0 %2869
        %2871 = vadd.xlane.f32.xlu0 %v2834
        %v2872 = vpop.xlane.xlu0 %2871
        %2873 = vadd.xlane.f32.xlu0 %v2835
        %v2874 = vpop.xlane.xlu0 %2873
        %2875 = vadd.xlane.f32.xlu0 %v2836
        %v2876 = vpop.xlane.xlu0 %2875
        %2877 = vadd.xlane.f32.xlu0 %v2837
        %v2878 = vpop.xlane.xlu0 %2877
        %2879 = vadd.xlane.f32.xlu0 %v2838
        %v2880 = vpop.xlane.xlu0 %2879
        %2881 = vadd.xlane.f32.xlu0 %v2839
        %v2882 = vpop.xlane.xlu0 %2881
        %2883 = vadd.xlane.f32.xlu0 %v2840
        %v2884 = vpop.xlane.xlu0 %2883
        %2885 = vadd.xlane.f32.xlu0 %v2841
        %v2886 = vpop.xlane.xlu0 %2885
        %2887 = vadd.xlane.f32.xlu0 %v2842
        %v2888 = vpop.xlane.xlu0 %2887
        %2889 = vadd.xlane.f32.xlu0 %v2843
        %v2890 = vpop.xlane.xlu0 %2889
        %2891 = vadd.xlane.f32.xlu0 %v2844
        %v2892 = vpop.xlane.xlu0 %2891
        %2893 = vadd.xlane.f32.xlu0 %v2845
        %v2894 = vpop.xlane.xlu0 %2893
        %2895 = vadd.xlane.f32.xlu0 %v2846
        %v2896 = vpop.xlane.xlu0 %2895
        %2897 = vadd.xlane.f32.xlu0 %v2847
        %v2898 = vpop.xlane.xlu0 %2897
        %2899 = vadd.xlane.f32.xlu0 %v2848
        %v2900 = vpop.xlane.xlu0 %2899
        %2901 = vadd.xlane.f32.xlu0 %v2849
        %v2902 = vpop.xlane.xlu0 %2901
        %2903 = vadd.xlane.f32.xlu0 %v2850
        %v2904 = vpop.xlane.xlu0 %2903
        %2905 = vadd.xlane.f32.xlu0 %v2851
        %v2906 = vpop.xlane.xlu0 %2905
        %2907 = vadd.xlane.f32.xlu0 %v2852
        %v2908 = vpop.xlane.xlu0 %2907
        %2909 = vadd.xlane.f32.xlu0 %v2853
        %v2910 = vpop.xlane.xlu0 %2909
        %2911 = vadd.xlane.f32.xlu0 %v2854
        %v2912 = vpop.xlane.xlu0 %2911
        %2913 = vadd.xlane.f32.xlu0 %v2855
        %v2914 = vpop.xlane.xlu0 %2913
        %2915 = vadd.xlane.f32.xlu0 %v2856
        %v2916 = vpop.xlane.xlu0 %2915
        %2917 = vadd.xlane.f32.xlu0 %v2857
        %v2918 = vpop.xlane.xlu0 %2917
        %2919 = vadd.xlane.f32.xlu0 %v2858
        %v2920 = vpop.xlane.xlu0 %2919
        %2921 = vadd.xlane.f32.xlu0 %v2859
        %v2922 = vpop.xlane.xlu0 %2921
        %2923 = vadd.xlane.f32.xlu0 %v2860
        %v2924 = vpop.xlane.xlu0 %2923
        %v2925 = vrcp.pop 128.0
        %v2926 = vmul.f32 128.0, %v2925
        %v2927 = vsub.f32 1.0, %v2926
        %v2928 = vmul.f32 %v2925, %v2927
        %v2929 = vadd.f32 %v2925, %v2928
        %vm2930 = vweird.f32 %v2925
        %v2931 = vsel %vm2930, %v2925, %v2929
        %v2932 = vmul.f32 %v2862, %v2931
        %v2933 = vmul.f32 %v2864, %v2931
        %v2934 = vmul.f32 %v2866, %v2931
        %v2935 = vmul.f32 %v2868, %v2931
        %v2936 = vmul.f32 %v2870, %v2931
        %v2937 = vmul.f32 %v2872, %v2931
        %v2938 = vmul.f32 %v2874, %v2931
        %v2939 = vmul.f32 %v2876, %v2931
        %v2940 = vmul.f32 %v2878, %v2931
        %v2941 = vmul.f32 %v2880, %v2931
        %v2942 = vmul.f32 %v2882, %v2931
        %v2943 = vmul.f32 %v2884, %v2931
        %v2944 = vmul.f32 %v2886, %v2931
        %v2945 = vmul.f32 %v2888, %v2931
        %v2946 = vmul.f32 %v2890, %v2931
        %v2947 = vmul.f32 %v2892, %v2931
        %v2948 = vmul.f32 %v2894, %v2931
        %v2949 = vmul.f32 %v2896, %v2931
        %v2950 = vmul.f32 %v2898, %v2931
        %v2951 = vmul.f32 %v2900, %v2931
        %v2952 = vmul.f32 %v2902, %v2931
        %v2953 = vmul.f32 %v2904, %v2931
        %v2954 = vmul.f32 %v2906, %v2931
        %v2955 = vmul.f32 %v2908, %v2931
        %v2956 = vmul.f32 %v2910, %v2931
        %v2957 = vmul.f32 %v2912, %v2931
        %v2958 = vmul.f32 %v2914, %v2931
        %v2959 = vmul.f32 %v2916, %v2931
        %v2960 = vmul.f32 %v2918, %v2931
        %v2961 = vmul.f32 %v2920, %v2931
        %v2962 = vmul.f32 %v2922, %v2931
        %v2963 = vmul.f32 %v2924, %v2931
        %v2964 = vsub.f32 %v2829, %v2932
        %v2965 = vsub.f32 %v2830, %v2933
        %v2966 = vsub.f32 %v2831, %v2934
        %v2967 = vsub.f32 %v2832, %v2935
        %v2968 = vsub.f32 %v2833, %v2936
        %v2969 = vsub.f32 %v2834, %v2937
        %v2970 = vsub.f32 %v2835, %v2938
        %v2971 = vsub.f32 %v2836, %v2939
        %v2972 = vsub.f32 %v2837, %v2940
        %v2973 = vsub.f32 %v2838, %v2941
        %v2974 = vsub.f32 %v2839, %v2942
        %v2975 = vsub.f32 %v2840, %v2943
        %v2976 = vsub.f32 %v2841, %v2944
        %v2977 = vsub.f32 %v2842, %v2945
        %v2978 = vsub.f32 %v2843, %v2946
        %v2979 = vsub.f32 %v2844, %v2947
        %v2980 = vsub.f32 %v2845, %v2948
        %v2981 = vsub.f32 %v2846, %v2949
        %v2982 = vsub.f32 %v2847, %v2950
        %v2983 = vsub.f32 %v2848, %v2951
        %v2984 = vsub.f32 %v2849, %v2952
        %v2985 = vsub.f32 %v2850, %v2953
        %v2986 = vsub.f32 %v2851, %v2954
        %v2987 = vsub.f32 %v2852, %v2955
        %v2988 = vsub.f32 %v2853, %v2956
        %v2989 = vsub.f32 %v2854, %v2957
        %v2990 = vsub.f32 %v2855, %v2958
        %v2991 = vsub.f32 %v2856, %v2959
        %v2992 = vsub.f32 %v2857, %v2960
        %v2993 = vsub.f32 %v2858, %v2961
        %v2994 = vsub.f32 %v2859, %v2962
        %v2995 = vsub.f32 %v2860, %v2963
        %v2996 = vmul.f32 %v2964, %v2964
        %v2997 = vmul.f32 %v2965, %v2965
        %v2998 = vmul.f32 %v2966, %v2966
        %v2999 = vmul.f32 %v2967, %v2967
        %v3000 = vmul.f32 %v2968, %v2968
        %v3001 = vmul.f32 %v2969, %v2969
        %v3002 = vmul.f32 %v2970, %v2970
        %v3003 = vmul.f32 %v2971, %v2971
        %v3004 = vmul.f32 %v2972, %v2972
        %v3005 = vmul.f32 %v2973, %v2973
        %v3006 = vmul.f32 %v2974, %v2974
        %v3007 = vmul.f32 %v2975, %v2975
        %v3008 = vmul.f32 %v2976, %v2976
        %v3009 = vmul.f32 %v2977, %v2977
        %v3010 = vmul.f32 %v2978, %v2978
        %v3011 = vmul.f32 %v2979, %v2979
        %v3012 = vmul.f32 %v2980, %v2980
        %v3013 = vmul.f32 %v2981, %v2981
        %v3014 = vmul.f32 %v2982, %v2982
        %v3015 = vmul.f32 %v2983, %v2983
        %v3016 = vmul.f32 %v2984, %v2984
        %v3017 = vmul.f32 %v2985, %v2985
        %v3018 = vmul.f32 %v2986, %v2986
        %v3019 = vmul.f32 %v2987, %v2987
        %v3020 = vmul.f32 %v2988, %v2988
        %v3021 = vmul.f32 %v2989, %v2989
        %v3022 = vmul.f32 %v2990, %v2990
        %v3023 = vmul.f32 %v2991, %v2991
        %v3024 = vmul.f32 %v2992, %v2992
        %v3025 = vmul.f32 %v2993, %v2993
        %v3026 = vmul.f32 %v2994, %v2994
        %v3027 = vmul.f32 %v2995, %v2995
        %3028 = vadd.xlane.f32.xlu0 %v2996
        %v3029 = vpop.xlane.xlu0 %3028
        %3030 = vadd.xlane.f32.xlu0 %v2997
        %v3031 = vpop.xlane.xlu0 %3030
        %3032 = vadd.xlane.f32.xlu0 %v2998
        %v3033 = vpop.xlane.xlu0 %3032
        %3034 = vadd.xlane.f32.xlu0 %v2999
        %v3035 = vpop.xlane.xlu0 %3034
        %3036 = vadd.xlane.f32.xlu0 %v3000
        %v3037 = vpop.xlane.xlu0 %3036
        %3038 = vadd.xlane.f32.xlu0 %v3001
        %v3039 = vpop.xlane.xlu0 %3038
        %3040 = vadd.xlane.f32.xlu0 %v3002
        %v3041 = vpop.xlane.xlu0 %3040
        %3042 = vadd.xlane.f32.xlu0 %v3003
        %v3043 = vpop.xlane.xlu0 %3042
        %3044 = vadd.xlane.f32.xlu0 %v3004
        %v3045 = vpop.xlane.xlu0 %3044
        %3046 = vadd.xlane.f32.xlu0 %v3005
        %v3047 = vpop.xlane.xlu0 %3046
        %3048 = vadd.xlane.f32.xlu0 %v3006
        %v3049 = vpop.xlane.xlu0 %3048
        %3050 = vadd.xlane.f32.xlu0 %v3007
        %v3051 = vpop.xlane.xlu0 %3050
        %3052 = vadd.xlane.f32.xlu0 %v3008
        %v3053 = vpop.xlane.xlu0 %3052
        %3054 = vadd.xlane.f32.xlu0 %v3009
        %v3055 = vpop.xlane.xlu0 %3054
        %3056 = vadd.xlane.f32.xlu0 %v3010
        %v3057 = vpop.xlane.xlu0 %3056
        %3058 = vadd.xlane.f32.xlu0 %v3011
        %v3059 = vpop.xlane.xlu0 %3058
        %3060 = vadd.xlane.f32.xlu0 %v3012
        %v3061 = vpop.xlane.xlu0 %3060
        %3062 = vadd.xlane.f32.xlu0 %v3013
        %v3063 = vpop.xlane.xlu0 %3062
        %3064 = vadd.xlane.f32.xlu0 %v3014
        %v3065 = vpop.xlane.xlu0 %3064
        %3066 = vadd.xlane.f32.xlu0 %v3015
        %v3067 = vpop.xlane.xlu0 %3066
        %3068 = vadd.xlane.f32.xlu0 %v3016
        %v3069 = vpop.xlane.xlu0 %3068
        %3070 = vadd.xlane.f32.xlu0 %v3017
        %v3071 = vpop.xlane.xlu0 %3070
        %3072 = vadd.xlane.f32.xlu0 %v3018
        %v3073 = vpop.xlane.xlu0 %3072
        %3074 = vadd.xlane.f32.xlu0 %v3019
        %v3075 = vpop.xlane.xlu0 %3074
        %3076 = vadd.xlane.f32.xlu0 %v3020
        %v3077 = vpop.xlane.xlu0 %3076
        %3078 = vadd.xlane.f32.xlu0 %v3021
        %v3079 = vpop.xlane.xlu0 %3078
        %3080 = vadd.xlane.f32.xlu0 %v3022
        %v3081 = vpop.xlane.xlu0 %3080
        %3082 = vadd.xlane.f32.xlu0 %v3023
        %v3083 = vpop.xlane.xlu0 %3082
        %3084 = vadd.xlane.f32.xlu0 %v3024
        %v3085 = vpop.xlane.xlu0 %3084
        %3086 = vadd.xlane.f32.xlu0 %v3025
        %v3087 = vpop.xlane.xlu0 %3086
        %3088 = vadd.xlane.f32.xlu0 %v3026
        %v3089 = vpop.xlane.xlu0 %3088
        %3090 = vadd.xlane.f32.xlu0 %v3027
        %v3091 = vpop.xlane.xlu0 %3090
        %v3092 = vmul.f32 %v3029, %v2931
        %v3093 = vmul.f32 %v3031, %v2931
        %v3094 = vmul.f32 %v3033, %v2931
        %v3095 = vmul.f32 %v3035, %v2931
        %v3096 = vmul.f32 %v3037, %v2931
        %v3097 = vmul.f32 %v3039, %v2931
        %v3098 = vmul.f32 %v3041, %v2931
        %v3099 = vmul.f32 %v3043, %v2931
        %v3100 = vmul.f32 %v3045, %v2931
        %v3101 = vmul.f32 %v3047, %v2931
        %v3102 = vmul.f32 %v3049, %v2931
        %v3103 = vmul.f32 %v3051, %v2931
        %v3104 = vmul.f32 %v3053, %v2931
        %v3105 = vmul.f32 %v3055, %v2931
        %v3106 = vmul.f32 %v3057, %v2931
        %v3107 = vmul.f32 %v3059, %v2931
        %v3108 = vmul.f32 %v3061, %v2931
        %v3109 = vmul.f32 %v3063, %v2931
        %v3110 = vmul.f32 %v3065, %v2931
        %v3111 = vmul.f32 %v3067, %v2931
        %v3112 = vmul.f32 %v3069, %v2931
        %v3113 = vmul.f32 %v3071, %v2931
        %v3114 = vmul.f32 %v3073, %v2931
        %v3115 = vmul.f32 %v3075, %v2931
        %v3116 = vmul.f32 %v3077, %v2931
        %v3117 = vmul.f32 %v3079, %v2931
        %v3118 = vmul.f32 %v3081, %v2931
        %v3119 = vmul.f32 %v3083, %v2931
        %v3120 = vmul.f32 %v3085, %v2931
        %v3121 = vmul.f32 %v3087, %v2931
        %v3122 = vmul.f32 %v3089, %v2931
        %v3123 = vmul.f32 %v3091, %v2931
        %v3124 = vadd.f32 %v3092, 1e-05
        %v3125 = vadd.f32 %v3093, 1e-05
        %v3126 = vadd.f32 %v3094, 1e-05
        %v3127 = vadd.f32 %v3095, 1e-05
        %v3128 = vadd.f32 %v3096, 1e-05
        %v3129 = vadd.f32 %v3097, 1e-05
        %v3130 = vadd.f32 %v3098, 1e-05
        %v3131 = vadd.f32 %v3099, 1e-05
        %v3132 = vadd.f32 %v3100, 1e-05
        %v3133 = vadd.f32 %v3101, 1e-05
        %v3134 = vadd.f32 %v3102, 1e-05
        %v3135 = vadd.f32 %v3103, 1e-05
        %v3136 = vadd.f32 %v3104, 1e-05
        %v3137 = vadd.f32 %v3105, 1e-05
        %v3138 = vadd.f32 %v3106, 1e-05
        %v3139 = vadd.f32 %v3107, 1e-05
        %v3140 = vadd.f32 %v3108, 1e-05
        %v3141 = vadd.f32 %v3109, 1e-05
        %v3142 = vadd.f32 %v3110, 1e-05
        %v3143 = vadd.f32 %v3111, 1e-05
        %v3144 = vadd.f32 %v3112, 1e-05
        %v3145 = vadd.f32 %v3113, 1e-05
        %v3146 = vadd.f32 %v3114, 1e-05
        %v3147 = vadd.f32 %v3115, 1e-05
        %v3148 = vadd.f32 %v3116, 1e-05
        %v3149 = vadd.f32 %v3117, 1e-05
        %v3150 = vadd.f32 %v3118, 1e-05
        %v3151 = vadd.f32 %v3119, 1e-05
        %v3152 = vadd.f32 %v3120, 1e-05
        %v3153 = vadd.f32 %v3121, 1e-05
        %v3154 = vadd.f32 %v3122, 1e-05
        %v3155 = vadd.f32 %v3123, 1e-05
        %v3156 = vrsqrt.pop %v3124
        %v3157 = vmul.f32 %v3156, %v3124
        %v3158 = vmul.f32 %v3157, %v3156
        %v3159 = vmul.f32 0.5, %v3158
        %v3160 = vsub.f32 1.5, %v3159
        %v3161 = vmul.f32 %v3156, %v3160
        %vm3162 = vweird.f32 %v3124
        %vm3163 = vweird.f32 %v3156
        %vm3164 = vmor %vm3162, %vm3163
        %v3165 = vsel %vm3164, %v3156, %v3161
        %v3166 = vrsqrt.pop %v3125
        %v3167 = vmul.f32 %v3166, %v3125
        %v3168 = vmul.f32 %v3167, %v3166
        %v3169 = vmul.f32 0.5, %v3168
        %v3170 = vsub.f32 1.5, %v3169
        %v3171 = vmul.f32 %v3166, %v3170
        %vm3172 = vweird.f32 %v3125
        %vm3173 = vweird.f32 %v3166
        %vm3174 = vmor %vm3172, %vm3173
        %v3175 = vsel %vm3174, %v3166, %v3171
        %v3176 = vrsqrt.pop %v3126
        %v3177 = vmul.f32 %v3176, %v3126
        %v3178 = vmul.f32 %v3177, %v3176
        %v3179 = vmul.f32 0.5, %v3178
        %v3180 = vsub.f32 1.5, %v3179
        %v3181 = vmul.f32 %v3176, %v3180
        %vm3182 = vweird.f32 %v3126
        %vm3183 = vweird.f32 %v3176
        %vm3184 = vmor %vm3182, %vm3183
        %v3185 = vsel %vm3184, %v3176, %v3181
        %v3186 = vrsqrt.pop %v3127
        %v3187 = vmul.f32 %v3186, %v3127
        %v3188 = vmul.f32 %v3187, %v3186
        %v3189 = vmul.f32 0.5, %v3188
        %v3190 = vsub.f32 1.5, %v3189
        %v3191 = vmul.f32 %v3186, %v3190
        %vm3192 = vweird.f32 %v3127
        %vm3193 = vweird.f32 %v3186
        %vm3194 = vmor %vm3192, %vm3193
        %v3195 = vsel %vm3194, %v3186, %v3191
        %v3196 = vrsqrt.pop %v3128
        %v3197 = vmul.f32 %v3196, %v3128
        %v3198 = vmul.f32 %v3197, %v3196
        %v3199 = vmul.f32 0.5, %v3198
        %v3200 = vsub.f32 1.5, %v3199
        %v3201 = vmul.f32 %v3196, %v3200
        %vm3202 = vweird.f32 %v3128
        %vm3203 = vweird.f32 %v3196
        %vm3204 = vmor %vm3202, %vm3203
        %v3205 = vsel %vm3204, %v3196, %v3201
        %v3206 = vrsqrt.pop %v3129
        %v3207 = vmul.f32 %v3206, %v3129
        %v3208 = vmul.f32 %v3207, %v3206
        %v3209 = vmul.f32 0.5, %v3208
        %v3210 = vsub.f32 1.5, %v3209
        %v3211 = vmul.f32 %v3206, %v3210
        %vm3212 = vweird.f32 %v3129
        %vm3213 = vweird.f32 %v3206
        %vm3214 = vmor %vm3212, %vm3213
        %v3215 = vsel %vm3214, %v3206, %v3211
        %v3216 = vrsqrt.pop %v3130
        %v3217 = vmul.f32 %v3216, %v3130
        %v3218 = vmul.f32 %v3217, %v3216
        %v3219 = vmul.f32 0.5, %v3218
        %v3220 = vsub.f32 1.5, %v3219
        %v3221 = vmul.f32 %v3216, %v3220
        %vm3222 = vweird.f32 %v3130
        %vm3223 = vweird.f32 %v3216
        %vm3224 = vmor %vm3222, %vm3223
        %v3225 = vsel %vm3224, %v3216, %v3221
        %v3226 = vrsqrt.pop %v3131
        %v3227 = vmul.f32 %v3226, %v3131
        %v3228 = vmul.f32 %v3227, %v3226
        %v3229 = vmul.f32 0.5, %v3228
        %v3230 = vsub.f32 1.5, %v3229
        %v3231 = vmul.f32 %v3226, %v3230
        %vm3232 = vweird.f32 %v3131
        %vm3233 = vweird.f32 %v3226
        %vm3234 = vmor %vm3232, %vm3233
        %v3235 = vsel %vm3234, %v3226, %v3231
        %v3236 = vrsqrt.pop %v3132
        %v3237 = vmul.f32 %v3236, %v3132
        %v3238 = vmul.f32 %v3237, %v3236
        %v3239 = vmul.f32 0.5, %v3238
        %v3240 = vsub.f32 1.5, %v3239
        %v3241 = vmul.f32 %v3236, %v3240
        %vm3242 = vweird.f32 %v3132
        %vm3243 = vweird.f32 %v3236
        %vm3244 = vmor %vm3242, %vm3243
        %v3245 = vsel %vm3244, %v3236, %v3241
        %v3246 = vrsqrt.pop %v3133
        %v3247 = vmul.f32 %v3246, %v3133
        %v3248 = vmul.f32 %v3247, %v3246
        %v3249 = vmul.f32 0.5, %v3248
        %v3250 = vsub.f32 1.5, %v3249
        %v3251 = vmul.f32 %v3246, %v3250
        %vm3252 = vweird.f32 %v3133
        %vm3253 = vweird.f32 %v3246
        %vm3254 = vmor %vm3252, %vm3253
        %v3255 = vsel %vm3254, %v3246, %v3251
        %v3256 = vrsqrt.pop %v3134
        %v3257 = vmul.f32 %v3256, %v3134
        %v3258 = vmul.f32 %v3257, %v3256
        %v3259 = vmul.f32 0.5, %v3258
        %v3260 = vsub.f32 1.5, %v3259
        %v3261 = vmul.f32 %v3256, %v3260
        %vm3262 = vweird.f32 %v3134
        %vm3263 = vweird.f32 %v3256
        %vm3264 = vmor %vm3262, %vm3263
        %v3265 = vsel %vm3264, %v3256, %v3261
        %v3266 = vrsqrt.pop %v3135
        %v3267 = vmul.f32 %v3266, %v3135
        %v3268 = vmul.f32 %v3267, %v3266
        %v3269 = vmul.f32 0.5, %v3268
        %v3270 = vsub.f32 1.5, %v3269
        %v3271 = vmul.f32 %v3266, %v3270
        %vm3272 = vweird.f32 %v3135
        %vm3273 = vweird.f32 %v3266
        %vm3274 = vmor %vm3272, %vm3273
        %v3275 = vsel %vm3274, %v3266, %v3271
        %v3276 = vrsqrt.pop %v3136
        %v3277 = vmul.f32 %v3276, %v3136
        %v3278 = vmul.f32 %v3277, %v3276
        %v3279 = vmul.f32 0.5, %v3278
        %v3280 = vsub.f32 1.5, %v3279
        %v3281 = vmul.f32 %v3276, %v3280
        %vm3282 = vweird.f32 %v3136
        %vm3283 = vweird.f32 %v3276
        %vm3284 = vmor %vm3282, %vm3283
        %v3285 = vsel %vm3284, %v3276, %v3281
        %v3286 = vrsqrt.pop %v3137
        %v3287 = vmul.f32 %v3286, %v3137
        %v3288 = vmul.f32 %v3287, %v3286
        %v3289 = vmul.f32 0.5, %v3288
        %v3290 = vsub.f32 1.5, %v3289
        %v3291 = vmul.f32 %v3286, %v3290
        %vm3292 = vweird.f32 %v3137
        %vm3293 = vweird.f32 %v3286
        %vm3294 = vmor %vm3292, %vm3293
        %v3295 = vsel %vm3294, %v3286, %v3291
        %v3296 = vrsqrt.pop %v3138
        %v3297 = vmul.f32 %v3296, %v3138
        %v3298 = vmul.f32 %v3297, %v3296
        %v3299 = vmul.f32 0.5, %v3298
        %v3300 = vsub.f32 1.5, %v3299
        %v3301 = vmul.f32 %v3296, %v3300
        %vm3302 = vweird.f32 %v3138
        %vm3303 = vweird.f32 %v3296
        %vm3304 = vmor %vm3302, %vm3303
        %v3305 = vsel %vm3304, %v3296, %v3301
        %v3306 = vrsqrt.pop %v3139
        %v3307 = vmul.f32 %v3306, %v3139
        %v3308 = vmul.f32 %v3307, %v3306
        %v3309 = vmul.f32 0.5, %v3308
        %v3310 = vsub.f32 1.5, %v3309
        %v3311 = vmul.f32 %v3306, %v3310
        %vm3312 = vweird.f32 %v3139
        %vm3313 = vweird.f32 %v3306
        %vm3314 = vmor %vm3312, %vm3313
        %v3315 = vsel %vm3314, %v3306, %v3311
        %v3316 = vrsqrt.pop %v3140
        %v3317 = vmul.f32 %v3316, %v3140
        %v3318 = vmul.f32 %v3317, %v3316
        %v3319 = vmul.f32 0.5, %v3318
        %v3320 = vsub.f32 1.5, %v3319
        %v3321 = vmul.f32 %v3316, %v3320
        %vm3322 = vweird.f32 %v3140
        %vm3323 = vweird.f32 %v3316
        %vm3324 = vmor %vm3322, %vm3323
        %v3325 = vsel %vm3324, %v3316, %v3321
        %v3326 = vrsqrt.pop %v3141
        %v3327 = vmul.f32 %v3326, %v3141
        %v3328 = vmul.f32 %v3327, %v3326
        %v3329 = vmul.f32 0.5, %v3328
        %v3330 = vsub.f32 1.5, %v3329
        %v3331 = vmul.f32 %v3326, %v3330
        %vm3332 = vweird.f32 %v3141
        %vm3333 = vweird.f32 %v3326
        %vm3334 = vmor %vm3332, %vm3333
        %v3335 = vsel %vm3334, %v3326, %v3331
        %v3336 = vrsqrt.pop %v3142
        %v3337 = vmul.f32 %v3336, %v3142
        %v3338 = vmul.f32 %v3337, %v3336
        %v3339 = vmul.f32 0.5, %v3338
        %v3340 = vsub.f32 1.5, %v3339
        %v3341 = vmul.f32 %v3336, %v3340
        %vm3342 = vweird.f32 %v3142
        %vm3343 = vweird.f32 %v3336
        %vm3344 = vmor %vm3342, %vm3343
        %v3345 = vsel %vm3344, %v3336, %v3341
        %v3346 = vrsqrt.pop %v3143
        %v3347 = vmul.f32 %v3346, %v3143
        %v3348 = vmul.f32 %v3347, %v3346
        %v3349 = vmul.f32 0.5, %v3348
        %v3350 = vsub.f32 1.5, %v3349
        %v3351 = vmul.f32 %v3346, %v3350
        %vm3352 = vweird.f32 %v3143
        %vm3353 = vweird.f32 %v3346
        %vm3354 = vmor %vm3352, %vm3353
        %v3355 = vsel %vm3354, %v3346, %v3351
        %v3356 = vrsqrt.pop %v3144
        %v3357 = vmul.f32 %v3356, %v3144
        %v3358 = vmul.f32 %v3357, %v3356
        %v3359 = vmul.f32 0.5, %v3358
        %v3360 = vsub.f32 1.5, %v3359
        %v3361 = vmul.f32 %v3356, %v3360
        %vm3362 = vweird.f32 %v3144
        %vm3363 = vweird.f32 %v3356
        %vm3364 = vmor %vm3362, %vm3363
        %v3365 = vsel %vm3364, %v3356, %v3361
        %v3366 = vrsqrt.pop %v3145
        %v3367 = vmul.f32 %v3366, %v3145
        %v3368 = vmul.f32 %v3367, %v3366
        %v3369 = vmul.f32 0.5, %v3368
        %v3370 = vsub.f32 1.5, %v3369
        %v3371 = vmul.f32 %v3366, %v3370
        %vm3372 = vweird.f32 %v3145
        %vm3373 = vweird.f32 %v3366
        %vm3374 = vmor %vm3372, %vm3373
        %v3375 = vsel %vm3374, %v3366, %v3371
        %v3376 = vrsqrt.pop %v3146
        %v3377 = vmul.f32 %v3376, %v3146
        %v3378 = vmul.f32 %v3377, %v3376
        %v3379 = vmul.f32 0.5, %v3378
        %v3380 = vsub.f32 1.5, %v3379
        %v3381 = vmul.f32 %v3376, %v3380
        %vm3382 = vweird.f32 %v3146
        %vm3383 = vweird.f32 %v3376
        %vm3384 = vmor %vm3382, %vm3383
        %v3385 = vsel %vm3384, %v3376, %v3381
        %v3386 = vrsqrt.pop %v3147
        %v3387 = vmul.f32 %v3386, %v3147
        %v3388 = vmul.f32 %v3387, %v3386
        %v3389 = vmul.f32 0.5, %v3388
        %v3390 = vsub.f32 1.5, %v3389
        %v3391 = vmul.f32 %v3386, %v3390
        %vm3392 = vweird.f32 %v3147
        %vm3393 = vweird.f32 %v3386
        %vm3394 = vmor %vm3392, %vm3393
        %v3395 = vsel %vm3394, %v3386, %v3391
        %v3396 = vrsqrt.pop %v3148
        %v3397 = vmul.f32 %v3396, %v3148
        %v3398 = vmul.f32 %v3397, %v3396
        %v3399 = vmul.f32 0.5, %v3398
        %v3400 = vsub.f32 1.5, %v3399
        %v3401 = vmul.f32 %v3396, %v3400
        %vm3402 = vweird.f32 %v3148
        %vm3403 = vweird.f32 %v3396
        %vm3404 = vmor %vm3402, %vm3403
        %v3405 = vsel %vm3404, %v3396, %v3401
        %v3406 = vrsqrt.pop %v3149
        %v3407 = vmul.f32 %v3406, %v3149
        %v3408 = vmul.f32 %v3407, %v3406
        %v3409 = vmul.f32 0.5, %v3408
        %v3410 = vsub.f32 1.5, %v3409
        %v3411 = vmul.f32 %v3406, %v3410
        %vm3412 = vweird.f32 %v3149
        %vm3413 = vweird.f32 %v3406
        %vm3414 = vmor %vm3412, %vm3413
        %v3415 = vsel %vm3414, %v3406, %v3411
        %v3416 = vrsqrt.pop %v3150
        %v3417 = vmul.f32 %v3416, %v3150
        %v3418 = vmul.f32 %v3417, %v3416
        %v3419 = vmul.f32 0.5, %v3418
        %v3420 = vsub.f32 1.5, %v3419
        %v3421 = vmul.f32 %v3416, %v3420
        %vm3422 = vweird.f32 %v3150
        %vm3423 = vweird.f32 %v3416
        %vm3424 = vmor %vm3422, %vm3423
        %v3425 = vsel %vm3424, %v3416, %v3421
        %v3426 = vrsqrt.pop %v3151
        %v3427 = vmul.f32 %v3426, %v3151
        %v3428 = vmul.f32 %v3427, %v3426
        %v3429 = vmul.f32 0.5, %v3428
        %v3430 = vsub.f32 1.5, %v3429
        %v3431 = vmul.f32 %v3426, %v3430
        %vm3432 = vweird.f32 %v3151
        %vm3433 = vweird.f32 %v3426
        %vm3434 = vmor %vm3432, %vm3433
        %v3435 = vsel %vm3434, %v3426, %v3431
        %v3436 = vrsqrt.pop %v3152
        %v3437 = vmul.f32 %v3436, %v3152
        %v3438 = vmul.f32 %v3437, %v3436
        %v3439 = vmul.f32 0.5, %v3438
        %v3440 = vsub.f32 1.5, %v3439
        %v3441 = vmul.f32 %v3436, %v3440
        %vm3442 = vweird.f32 %v3152
        %vm3443 = vweird.f32 %v3436
        %vm3444 = vmor %vm3442, %vm3443
        %v3445 = vsel %vm3444, %v3436, %v3441
        %v3446 = vrsqrt.pop %v3153
        %v3447 = vmul.f32 %v3446, %v3153
        %v3448 = vmul.f32 %v3447, %v3446
        %v3449 = vmul.f32 0.5, %v3448
        %v3450 = vsub.f32 1.5, %v3449
        %v3451 = vmul.f32 %v3446, %v3450
        %vm3452 = vweird.f32 %v3153
        %vm3453 = vweird.f32 %v3446
        %vm3454 = vmor %vm3452, %vm3453
        %v3455 = vsel %vm3454, %v3446, %v3451
        %v3456 = vrsqrt.pop %v3154
        %v3457 = vmul.f32 %v3456, %v3154
        %v3458 = vmul.f32 %v3457, %v3456
        %v3459 = vmul.f32 0.5, %v3458
        %v3460 = vsub.f32 1.5, %v3459
        %v3461 = vmul.f32 %v3456, %v3460
        %vm3462 = vweird.f32 %v3154
        %vm3463 = vweird.f32 %v3456
        %vm3464 = vmor %vm3462, %vm3463
        %v3465 = vsel %vm3464, %v3456, %v3461
        %v3466 = vrsqrt.pop %v3155
        %v3467 = vmul.f32 %v3466, %v3155
        %v3468 = vmul.f32 %v3467, %v3466
        %v3469 = vmul.f32 0.5, %v3468
        %v3470 = vsub.f32 1.5, %v3469
        %v3471 = vmul.f32 %v3466, %v3470
        %vm3472 = vweird.f32 %v3155
        %vm3473 = vweird.f32 %v3466
        %vm3474 = vmor %vm3472, %vm3473
        %v3475 = vsel %vm3474, %v3466, %v3471
        %v3476 = vmul.f32 %v2964, %v3165
        %v3477 = vmul.f32 %v2965, %v3175
        %v3478 = vmul.f32 %v2966, %v3185
        %v3479 = vmul.f32 %v2967, %v3195
        %v3480 = vmul.f32 %v2968, %v3205
        %v3481 = vmul.f32 %v2969, %v3215
        %v3482 = vmul.f32 %v2970, %v3225
        %v3483 = vmul.f32 %v2971, %v3235
        %v3484 = vmul.f32 %v2972, %v3245
        %v3485 = vmul.f32 %v2973, %v3255
        %v3486 = vmul.f32 %v2974, %v3265
        %v3487 = vmul.f32 %v2975, %v3275
        %v3488 = vmul.f32 %v2976, %v3285
        %v3489 = vmul.f32 %v2977, %v3295
        %v3490 = vmul.f32 %v2978, %v3305
        %v3491 = vmul.f32 %v2979, %v3315
        %v3492 = vmul.f32 %v2980, %v3325
        %v3493 = vmul.f32 %v2981, %v3335
        %v3494 = vmul.f32 %v2982, %v3345
        %v3495 = vmul.f32 %v2983, %v3355
        %v3496 = vmul.f32 %v2984, %v3365
        %v3497 = vmul.f32 %v2985, %v3375
        %v3498 = vmul.f32 %v2986, %v3385
        %v3499 = vmul.f32 %v2987, %v3395
        %v3500 = vmul.f32 %v2988, %v3405
        %v3501 = vmul.f32 %v2989, %v3415
        %v3502 = vmul.f32 %v2990, %v3425
        %v3503 = vmul.f32 %v2991, %v3435
        %v3504 = vmul.f32 %v2992, %v3445
        %v3505 = vmul.f32 %v2993, %v3455
        %v3506 = vmul.f32 %v2994, %v3465
        %v3507 = vmul.f32 %v2995, %v3475
        %v3509 = vperm.slane %v454, 0
        %v3511 = vmul.f32 %v3476, %v3509
        %v3512 = vmul.f32 %v3477, %v3509
        %v3513 = vmul.f32 %v3478, %v3509
        %v3514 = vmul.f32 %v3479, %v3509
        %v3515 = vmul.f32 %v3480, %v3509
        %v3516 = vmul.f32 %v3481, %v3509
        %v3517 = vmul.f32 %v3482, %v3509
        %v3518 = vmul.f32 %v3483, %v3509
        %v3519 = vmul.f32 %v3484, %v3509
        %v3520 = vmul.f32 %v3485, %v3509
        %v3521 = vmul.f32 %v3486, %v3509
        %v3522 = vmul.f32 %v3487, %v3509
        %v3523 = vmul.f32 %v3488, %v3509
        %v3524 = vmul.f32 %v3489, %v3509
        %v3525 = vmul.f32 %v3490, %v3509
        %v3526 = vmul.f32 %v3491, %v3509
        %v3527 = vmul.f32 %v3492, %v3509
        %v3528 = vmul.f32 %v3493, %v3509
        %v3529 = vmul.f32 %v3494, %v3509
        %v3530 = vmul.f32 %v3495, %v3509
        %v3531 = vmul.f32 %v3496, %v3509
        %v3532 = vmul.f32 %v3497, %v3509
        %v3533 = vmul.f32 %v3498, %v3509
        %v3534 = vmul.f32 %v3499, %v3509
        %v3535 = vmul.f32 %v3500, %v3509
        %v3536 = vmul.f32 %v3501, %v3509
        %v3537 = vmul.f32 %v3502, %v3509
        %v3538 = vmul.f32 %v3503, %v3509
        %v3539 = vmul.f32 %v3504, %v3509
        %v3540 = vmul.f32 %v3505, %v3509
        %v3541 = vmul.f32 %v3506, %v3509
        %v3542 = vmul.f32 %v3507, %v3509
        %v3544 = vperm.slane %v455, 0
        %v3546 = vadd.f32 %v3511, %v3544
        %v3547 = vadd.f32 %v3512, %v3544
        %v3548 = vadd.f32 %v3513, %v3544
        %v3549 = vadd.f32 %v3514, %v3544
        %v3550 = vadd.f32 %v3515, %v3544
        %v3551 = vadd.f32 %v3516, %v3544
        %v3552 = vadd.f32 %v3517, %v3544
        %v3553 = vadd.f32 %v3518, %v3544
        %v3554 = vadd.f32 %v3519, %v3544
        %v3555 = vadd.f32 %v3520, %v3544
        %v3556 = vadd.f32 %v3521, %v3544
        %v3557 = vadd.f32 %v3522, %v3544
        %v3558 = vadd.f32 %v3523, %v3544
        %v3559 = vadd.f32 %v3524, %v3544
        %v3560 = vadd.f32 %v3525, %v3544
        %v3561 = vadd.f32 %v3526, %v3544
        %v3562 = vadd.f32 %v3527, %v3544
        %v3563 = vadd.f32 %v3528, %v3544
        %v3564 = vadd.f32 %v3529, %v3544
        %v3565 = vadd.f32 %v3530, %v3544
        %v3566 = vadd.f32 %v3531, %v3544
        %v3567 = vadd.f32 %v3532, %v3544
        %v3568 = vadd.f32 %v3533, %v3544
        %v3569 = vadd.f32 %v3534, %v3544
        %v3570 = vadd.f32 %v3535, %v3544
        %v3571 = vadd.f32 %v3536, %v3544
        %v3572 = vadd.f32 %v3537, %v3544
        %v3573 = vadd.f32 %v3538, %v3544
        %v3574 = vadd.f32 %v3539, %v3544
        %v3575 = vadd.f32 %v3540, %v3544
        %v3576 = vadd.f32 %v3541, %v3544
        %v3577 = vadd.f32 %v3542, %v3544
        %3578 = vst [vmem:[%s416] sm:$0xff] %v3546
        %3579 = vst [vmem:[%s416 + $0x8] sm:$0xff] %v3547
        %3580 = vst [vmem:[%s416 + $0x10] sm:$0xff] %v3548
        %3581 = vst [vmem:[%s416 + $0x18] sm:$0xff] %v3549
        %3582 = vst [vmem:[%s416 + $0x20] sm:$0xff] %v3550
        %3583 = vst [vmem:[%s416 + $0x28] sm:$0xff] %v3551
        %3584 = vst [vmem:[%s416 + $0x30] sm:$0xff] %v3552
        %3585 = vst [vmem:[%s416 + $0x38] sm:$0xff] %v3553
        %3586 = vst [vmem:[%s416 + $0x40] sm:$0xff] %v3554
        %3587 = vst [vmem:[%s416 + $0x48] sm:$0xff] %v3555
        %3588 = vst [vmem:[%s416 + $0x50] sm:$0xff] %v3556
        %3589 = vst [vmem:[%s416 + $0x58] sm:$0xff] %v3557
        %3590 = vst [vmem:[%s416 + $0x60] sm:$0xff] %v3558
        %3591 = vst [vmem:[%s416 + $0x68] sm:$0xff] %v3559
        %3592 = vst [vmem:[%s416 + $0x70] sm:$0xff] %v3560
        %3593 = vst [vmem:[%s416 + $0x78] sm:$0xff] %v3561
        %3594 = vst [vmem:[%s416 + $0x80] sm:$0xff] %v3562
        %3595 = vst [vmem:[%s416 + $0x88] sm:$0xff] %v3563
        %3596 = vst [vmem:[%s416 + $0x90] sm:$0xff] %v3564
        %3597 = vst [vmem:[%s416 + $0x98] sm:$0xff] %v3565
        %3598 = vst [vmem:[%s416 + $0xa0] sm:$0xff] %v3566
        %3599 = vst [vmem:[%s416 + $0xa8] sm:$0xff] %v3567
        %3600 = vst [vmem:[%s416 + $0xb0] sm:$0xff] %v3568
        %3601 = vst [vmem:[%s416 + $0xb8] sm:$0xff] %v3569
        %3602 = vst [vmem:[%s416 + $0xc0] sm:$0xff] %v3570
        %3603 = vst [vmem:[%s416 + $0xc8] sm:$0xff] %v3571
        %3604 = vst [vmem:[%s416 + $0xd0] sm:$0xff] %v3572
        %3605 = vst [vmem:[%s416 + $0xd8] sm:$0xff] %v3573
        %3606 = vst [vmem:[%s416 + $0xe0] sm:$0xff] %v3574
        %3607 = vst [vmem:[%s416 + $0xe8] sm:$0xff] %v3575
        %3608 = vst [vmem:[%s416 + $0xf0] sm:$0xff] %v3576
        %3609 = vst [vmem:[%s416 + $0xf8] sm:$0xff] %v3577
        %s3610 = sand.u32 %s230, 1
        %s3611 = scalar_lea.sflag [#allocation4], %s3610
        %s3612 = sand.u32 %s230, 1
        %s3613 = smul.addr %s3612, 256
        %s3614 = scalar_lea.vmem [#allocation11], %s3613
        // Predicated region
        $region77: #{tpu_custom_call.1} parent=55 // pred_check
          %p3615 = pneg %p240
        $region78: #{tpu_custom_call.1} parent=55 // pred_check_branch
          %3617 = sbr.rel (%p3615) target = $region80
        $region79: #{tpu_custom_call.1} parent=55 // pred_region
          %s3618 = smul.u32 32, %s28
          %3620 = vsyncadd %s3611, 0
          %s3621 = smul.addr %s3618, 8
          %s3622 = scalar_lea.hbm %s9, %s3621
          %s3623 = sshll.u32 %s3614, 4
          %s3624 = int_to_ptr.vmem [resolvable:$true] %s3623
          %s3625 = sshll.u32 %s3622, 4
          %s3626 = int_to_ptr.hbm [resolvable:$true] %s3625
          %3631 = dma.vmem_to_hbm [thread:$0]  %s3624, 4096, %s3626, %s3611, 128, 128, 8
        $region80: #{tpu_custom_call.1} parent=55 // pred_fallthru
          _
      $region56: #{tpu_custom_call.1} parent=5 // pred_fallthru
        _
      %p3632 = scmp.le.s32.totalorder 2, %s23
      // Predicated region
      $region81: #{tpu_custom_call.1} parent=5 // pred_check
        %p3633 = pneg %p3632
      $region82: #{tpu_custom_call.1} parent=5 // pred_check_branch
        %3635 = sbr.rel (%p3633) target = $region84
      $region83: #{tpu_custom_call.1} parent=5 // pred_region
        %s3636 = ssub.s32 %s23, 2
        // Predicated region
        $region85: #{tpu_custom_call.1} parent=83 // pred_check
          %p3637 = pneg %p246
        $region86: #{tpu_custom_call.1} parent=83 // pred_check_branch
          %3639 = sbr.rel (%p3637) target = $region88
        $region87: #{tpu_custom_call.1} parent=83 // pred_region
          %s3640 = sand.u32 %s231, 1
          %s3641 = scalar_lea.sflag [#allocation4], %s3640
          %s3642 = sand.u32 %s231, 1
          %s3643 = smul.addr %s3642, 256
          %s3644 = scalar_lea.vmem [#allocation11], %s3643
          %3646 = dma.done %s3641, 4096
        $region88: #{tpu_custom_call.1} parent=83 // pred_fallthru
          _
      $region84: #{tpu_custom_call.1} parent=5 // pred_fallthru
        _
    $region6: #{tpu_custom_call.1} parent=1 // loop_footer
      %s27 = sadd.s32 1, %s23
    $region7: #{tpu_custom_call.1} parent=1 // loop_footer_branch
      %22 = sbr.rel target = $region3
    $region8: #{tpu_custom_call.1} parent=1 // loop_exit
      _
    %3647 = vsyncpa [#allocation3], 1
    %s3648 = scalar_lea.sflag [#allocation3], 1
    %3649 = vsyncpa %s3648, 1
    %3650 = vsyncpa [#allocation6], 1
    %3651 = vsyncpa [#allocation9], 1
    %3652 = vsyncpa [#allocation4], 1
    %s3653 = scalar_lea.sflag [#allocation4], 1
    %3654 = vsyncpa %s3653, 1

</llo_original>
